<compile_context>
chip_gen: v5e
topology: v5e:2x2
jax: 0.10.0
libtpu: 0.0.40
codegen_flags: <defaults>
</compile_context>

<pallas_src>
import functools

import jax
import jax.numpy as jnp
import numpy as np
from jax import lax
from jax.experimental import pallas as pl
from jax.experimental.pallas import tpu as pltpu

_NEG_SLOPE = 0.1


def _leaky(y):
    # LeakyReLU(0.1) on the f32 accumulator (elementwise path stays f32 on all chips).
    return jnp.where(y >= 0.0, y, _NEG_SLOPE * y)


def _round_up(x, m):
    return ((x + m - 1) // m) * m


@functools.lru_cache(maxsize=1)
def _vmem_limit():
    # ~50% of physical VMEM: 64 MiB on v5e/v6e (128 MiB parts), 32 MiB on v7x.
    try:
        cap = int(getattr(pltpu.get_tpu_info(), "vmem_capacity_bytes", 0))
        if cap > 0:
            return max(16 * 1024 * 1024, min(cap // 2, 100 * 1024 * 1024))
    except Exception:
        pass
    return 32 * 1024 * 1024


# ----------------------------------------------------------------------------
# Kernel 1: fused SpaConv + fuse stage (spa1 -> spa2 -> fuse1 -> fuse2 + x)
# ----------------------------------------------------------------------------
def _spa_fuse_kernel(xpad_ref, g_ref, eh_ref, ev_ref,
                     ws1_ref, ws2_ref, wf1_ref, wf2_ref,
                     o_ref, pad_ref, col_ref, *, H, W, d, SpaC, AngC, EpiC):
    Hp, Wp, C = xpad_ref.shape
    HW = H * W
    Cb = SpaC + AngC + 2 * EpiC
    cd = col_ref.dtype
    Cp = pad_ref.shape[2]

    def gather_taps(src_ref, Cin):
        # In-VMEM im2col for a dilated 3x3 conv: 9 shifted slabs laid side by
        # side so the conv becomes ONE K=9*Cin MXU dot (instead of 9 small-K dots).
        for t in range(9):
            ki, kj = t // 3, t % 3
            tap = src_ref[pl.ds(ki * d, H), pl.ds(kj * d, W), pl.ds(0, Cin)]
            col_ref[:, pl.ds(t * Cin, Cin)] = tap.reshape(HW, Cin).astype(cd)

    # ---------------- spa1 ----------------
    gather_taps(xpad_ref, C)
    s1 = _leaky(jnp.dot(col_ref[:, pl.ds(0, 9 * C)], ws1_ref[...],
                        preferred_element_type=jnp.float32))

    # Zero only the d-wide halo of the padded scratch; the interior is fully
    # rewritten below and the halo is reused untouched by spa2 AND fuse2.
    pad_ref[pl.ds(0, d), :, :] = jnp.zeros((d, Wp, Cp), cd)
    pad_ref[pl.ds(d + H, d), :, :] = jnp.zeros((d, Wp, Cp), cd)
    pad_ref[pl.ds(d, H), pl.ds(0, d), :] = jnp.zeros((H, d, Cp), cd)
    pad_ref[pl.ds(d, H), pl.ds(d + W, d), :] = jnp.zeros((H, d, Cp), cd)

    pad_ref[pl.ds(d, H), pl.ds(d, W), pl.ds(0, SpaC)] = (
        s1.reshape(H, W, SpaC).astype(cd))

    # ---------------- spa2 ----------------
    gather_taps(pad_ref, SpaC)
    s = _leaky(jnp.dot(col_ref[:, pl.ds(0, 9 * SpaC)], ws2_ref[...],
                       preferred_element_type=jnp.float32))

    # ---------------- fuse1: single K=Cb dot over [s | g | eh | ev] ----------
    col_ref[:, pl.ds(0, SpaC)] = s.astype(cd)
    col_ref[:, pl.ds(SpaC, AngC)] = g_ref[...].reshape(HW, AngC)
    col_ref[:, pl.ds(SpaC + AngC, EpiC)] = eh_ref[...].reshape(HW, EpiC)
    col_ref[:, pl.ds(SpaC + AngC + EpiC, EpiC)] = ev_ref[...].reshape(HW, EpiC)
    f1 = _leaky(jnp.dot(col_ref[:, pl.ds(0, Cb)], wf1_ref[...],
                        preferred_element_type=jnp.float32))

    pad_ref[pl.ds(d, H), pl.ds(d, W), pl.ds(0, C)] = (
        f1.reshape(H, W, C).astype(cd))

    # ---------------- fuse2 + residual ----------------
    gather_taps(pad_ref, C)
    res = xpad_ref[pl.ds(d, H), pl.ds(d, W), :].reshape(HW, C).astype(jnp.float32)
    y = jnp.dot(col_ref[:, pl.ds(0, 9 * C)], wf2_ref[...],
                preferred_element_type=jnp.float32) + res
    # TODO(synk): a lane-dense (C, H*W)/(H, W*C) store would make the final vst
    # unmasked and drop the trailing XLA NHWC->NCHW pass; kept NHWC here to stay
    # on the best-supported in-kernel reshape/store path.
    o_ref[...] = y.reshape(H, W, C).astype(o_ref.dtype)


def spa_fuse_forward(xpad, g, eh, ev, p, d, out_dtype):
    B, Hp, Wp, C = xpad.shape
    H, W = Hp - 2 * d, Wp - 2 * d
    SpaC = p["spa1"].shape[0]
    AngC = p["ang1"].shape[0]
    EpiC = p["epi1"].shape[0]
    Cb = SpaC + AngC + 2 * EpiC
    cd = xpad.dtype

    # Per-tap weight layout: row index = (ki*3 + kj)*Cin + cin, matching the
    # in-kernel im2col column order.
    ws1 = jnp.transpose(p["spa1"], (2, 3, 1, 0)).reshape(9 * C, SpaC)
    ws2 = jnp.transpose(p["spa2"], (2, 3, 1, 0)).reshape(9 * SpaC, SpaC)
    wf1 = jnp.transpose(p["fuse1"].reshape(C, Cb))               # (Cb, C)
    wf2 = jnp.transpose(p["fuse2"], (2, 3, 1, 0)).reshape(9 * C, C)

    kern = functools.partial(_spa_fuse_kernel, H=H, W=W, d=d,
                             SpaC=SpaC, AngC=AngC, EpiC=EpiC)
    return pl.pallas_call(
        kern,
        out_shape=jax.ShapeDtypeStruct((B, H, W, C), out_dtype),
        grid=(B,),
        in_specs=[
            pl.BlockSpec((None, Hp, Wp, C), lambda b: (b, 0, 0, 0)),
            pl.BlockSpec((None, H, W, AngC), lambda b: (b, 0, 0, 0)),
            pl.BlockSpec((None, H, W, EpiC), lambda b: (b, 0, 0, 0)),
            pl.BlockSpec((None, H, W, EpiC), lambda b: (b, 0, 0, 0)),
            pl.BlockSpec((9 * C, SpaC), lambda b: (0, 0)),
            pl.BlockSpec((9 * SpaC, SpaC), lambda b: (0, 0)),
            pl.BlockSpec((Cb, C), lambda b: (0, 0)),
            pl.BlockSpec((9 * C, C), lambda b: (0, 0)),
        ],
        out_specs=pl.BlockSpec((None, H, W, C), lambda b: (b, 0, 0, 0)),
        scratch_shapes=[
            pltpu.VMEM((Hp, Wp, max(SpaC, C)), cd),     # padded intermediate (reused spa1/f1)
            pltpu.VMEM((H * W, 9 * max(SpaC, C)), cd),  # im2col / concat staging
        ],
        compiler_params=pltpu.CompilerParams(
            dimension_semantics=("parallel",),
            vmem_limit_bytes=_vmem_limit()),
    )(xpad, g, eh, ev, ws1, ws2, wf1, wf2)


# ----------------------------------------------------------------------------
# Kernel 2: fused pair of pointwise matmuls, transposed orientation
#           out = leaky(w2t @ leaky(w1t @ x^T))           (ang1->ang2, epi1->epi2)
# ----------------------------------------------------------------------------
def _mm2t_kernel(xT_ref, w1t_ref, w2t_ref, o_ref):
    h = _leaky(jnp.dot(w1t_ref[...], xT_ref[...],
                       preferred_element_type=jnp.float32))
    y = _leaky(jnp.dot(w2t_ref[...], h.astype(w2t_ref.dtype),
                       preferred_element_type=jnp.float32))
    o_ref[...] = y.astype(o_ref.dtype)


def mm2t_leaky(xT, w1t, w2t, out_dtype, block_m=256):
    """leaky(w2t @ leaky(w1t @ xT)) -> (N2, M), tiled along M (the lane axis)."""
    K, M = xT.shape
    N1, N2 = w1t.shape[0], w2t.shape[0]
    tm = min(block_m, _round_up(M, 128))
    Mp = _round_up(M, tm)
    if Mp != M:
        xT = jnp.pad(xT, ((0, 0), (0, Mp - M)))
    out = pl.pallas_call(
        _mm2t_kernel,
        out_shape=jax.ShapeDtypeStruct((N2, Mp), out_dtype),
        grid=(Mp // tm,),
        in_specs=[
            pl.BlockSpec((K, tm), lambda i: (0, i)),
            pl.BlockSpec((N1, K), lambda i: (0, 0)),
            pl.BlockSpec((N2, N1), lambda i: (0, 0)),
        ],
        out_specs=pl.BlockSpec((N2, tm), lambda i: (0, i)),
        compiler_params=pltpu.CompilerParams(
            dimension_semantics=("parallel",),
            vmem_limit_bytes=_vmem_limit()),
    )(xT, w1t, w2t)
    return out[:, :M] if Mp != M else out


# ----------------------------------------------------------------------------
# XLA glue: stride==kernel patch gathers (pure data re-ordering, no FLOPs),
# built directly in the transposed (K, M) layout the mm2t kernel wants.
# ----------------------------------------------------------------------------
def _ang_patches_t(x_nhwc, a):
    """Transposed patches for kernel=a, stride=a, pad=0: row = c*a*a + di*a + dj."""
    B, H, W, C = x_nhwc.shape
    hp, wp = H // a, W // a
    t = x_nhwc.reshape(B, hp, a, wp, a, C)            # (b, i, di, j, dj, c)
    t = t.transpose(5, 2, 4, 0, 1, 3)                 # (c, di, dj, b, i, j)
    return t.reshape(C * a * a, B * hp * wp)


def _epi_patches_t(x_nhwc, a):
    """Transposed patches for kernel=[1,a*a], stride=[1,a], pad=[0,a*(a-1)//2]."""
    B, H, W, C = x_nhwc.shape
    p = a * (a - 1) // 2
    xp = jnp.pad(x_nhwc, ((0, 0), (0, 0), (p, p), (0, 0)))
    wout = W // a
    cols = [xp[:, :, kw:kw + (wout - 1) * a + 1:a, :] for kw in range(a * a)]
    pat = jnp.stack(cols, axis=0)                     # (kw, b, h, j, c)
    pat = pat.transpose(4, 0, 1, 2, 3)                # (c, kw, b, h, j)
    return pat.reshape(C * a * a, B * H * wout)


# ----------------------------------------------------------------------------
# DisentgBlock forward (Pallas-backed)
# ----------------------------------------------------------------------------
def disentg_block_forward(x_nchw, params, a, compute_dtype=jnp.float32):
    B, C, H, W = x_nchw.shape
    assert H % a == 0 and W % a == 0, "H and W must be divisible by angRes"
    out_dtype = x_nchw.dtype
    cd = compute_dtype
    # Matmul operands (activations + weights) in `cd` (bf16 on v6e/v7x for the
    # MXU-native path); all accumulation / LeakyReLU stays f32 inside the kernels.
    p = {k: v.astype(cd) for k, v in params.items()}
    x = jnp.transpose(x_nchw, (0, 2, 3, 1)).astype(cd)        # NHWC
    d = a
    xpad = jnp.pad(x, ((0, 0), (d, d), (d, d), (0, 0)))

    AngC = p["ang1"].shape[0]
    EpiC = p["epi1"].shape[0]

    # --- AngConv: ang1 -> ang2 fused (transposed pointwise kernel) ---
    hp, wp = H // a, W // a
    wa1t = p["ang1"].reshape(AngC, C * a * a)
    wa2t = p["ang2"].reshape(a * a * AngC, AngC)
    gT = mm2t_leaky(_ang_patches_t(x, a), wa1t, wa2t, cd)     # (a*a*AngC, B*hp*wp)
    g = (gT.reshape(AngC, a, a, B, hp, wp)
           .transpose(3, 4, 1, 5, 2, 0)                       # nn.PixelShuffle(a)
           .reshape(B, H, W, AngC))

    # --- EPIConv: horizontal + vertical share weights -> ONE merged call ---
    we1t = p["epi1"].reshape(EpiC, C * a * a)
    we2t = p["epi2"].reshape(a * EpiC, EpiC)
    eh_pat = _epi_patches_t(x, a)                             # (C*a*a, B*H*(W//a))
    ev_pat = _epi_patches_t(jnp.transpose(x, (0, 2, 1, 3)), a)
    Mh = eh_pat.shape[1]
    eT = mm2t_leaky(jnp.concatenate([eh_pat, ev_pat], axis=1), we1t, we2t, cd)
    ehT, evT = eT[:, :Mh], eT[:, Mh:]
    eh = (ehT.reshape(a, EpiC, B, H, W // a)
             .transpose(2, 3, 4, 0, 1)                        # PixelShuffle1D(a)
             .reshape(B, H, W, EpiC))
    ev = (evT.reshape(a, EpiC, B, W, H // a)
             .transpose(2, 3, 4, 0, 1)
             .reshape(B, W, H, EpiC))
    ev = jnp.transpose(ev, (0, 2, 1, 3))

    # --- spa1 -> spa2 -> fuse1 -> fuse2 + residual: ONE kernel per batch ---
    out = spa_fuse_forward(xpad, g, eh, ev, p, d, out_dtype)  # (B, H, W, C)
    return jnp.transpose(out, (0, 3, 1, 2))                   # back to NCHW


# ----------------------------------------------------------------------------
# Pure-JAX reference (lax.conv_general_dilated), mirrors the PyTorch module.
# ----------------------------------------------------------------------------
def reference_forward(x, params, a):
    leaky = lambda t: jnp.where(t >= 0.0, t, 0.1 * t)

    def conv(xx, w, stride, pad, dil):
        return lax.conv_general_dilated(
            xx, w, window_strides=stride, padding=pad, rhs_dilation=dil,
            dimension_numbers=("NCHW", "OIHW", "NCHW"),
            precision=lax.Precision.HIGHEST)

    s = leaky(conv(x, params["spa1"], (1, 1), [(a, a), (a, a)], (a, a)))
    s = leaky(conv(s, params["spa2"], (1, 1), [(a, a), (a, a)], (a, a)))

    g = leaky(conv(x, params["ang1"], (a, a), [(0, 0), (0, 0)], (1, 1)))
    g = leaky(conv(g, params["ang2"], (1, 1), [(0, 0), (0, 0)], (1, 1)))
    B, _, hp, wp = g.shape
    AngC = params["ang1"].shape[0]
    g = (g.reshape(B, AngC, a, a, hp, wp)
          .transpose(0, 1, 4, 2, 5, 3)
          .reshape(B, AngC, hp * a, wp * a))                  # nn.PixelShuffle(a)

    def epi(xx):
        p = a * (a - 1) // 2
        e = leaky(conv(xx, params["epi1"], (1, a), [(0, 0), (p, p)], (1, 1)))
        e = leaky(conv(e, params["epi2"], (1, 1), [(0, 0), (0, 0)], (1, 1)))
        b, fc, h, w = e.shape
        c = fc // a
        return (e.reshape(b, a, c, h, w)
                 .transpose(0, 2, 3, 4, 1)
                 .reshape(b, c, h, w * a))                    # PixelShuffle1D(a)

    eh = epi(x)
    ev = jnp.transpose(epi(jnp.transpose(x, (0, 1, 3, 2))), (0, 1, 3, 2))

    buf = jnp.concatenate([s, g, eh, ev], axis=1)
    f = leaky(conv(buf, params["fuse1"], (1, 1), [(0, 0), (0, 0)], (1, 1)))
    f = conv(f, params["fuse2"], (1, 1), [(a, a), (a, a)], (a, a))
    return f + x


# ----------------------------------------------------------------------------
# Parameter init + demo
# ----------------------------------------------------------------------------
def init_params(key, channels, a):
    SpaC, AngC, EpiC = channels, channels // 4, channels // 2
    shapes = {
        "spa1": (SpaC, channels, 3, 3),
        "spa2": (SpaC, SpaC, 3, 3),
        "ang1": (AngC, channels, a, a),
        "ang2": (a * a * AngC, AngC, 1, 1),
        "epi1": (EpiC, channels, 1, a * a),
        "epi2": (a * EpiC, EpiC, 1, 1),
        "fuse1": (channels, SpaC + AngC + 2 * EpiC, 1, 1),
        "fuse2": (channels, channels, 3, 3),
    }
    params = {}
    keys = jax.random.split(key, len(shapes))
    for k, (name, shp) in zip(keys, sorted(shapes.items())):
        fan_in = shp[1] * shp[2] * shp[3]
        params[name] = (jax.random.normal(k, shp, jnp.float32)
                        / np.sqrt(float(fan_in)))
    return params


if __name__ == "__main__":
    angRes = 2
    channels = 8
    B, H, W = 2, 16, 16   # H, W divisible by angRes

    key = jax.random.PRNGKey(0)
    kx, kp = jax.random.split(key)
    x = jax.random.normal(kx, (B, channels, H, W), jnp.float32)  # NCHW
    params = init_params(kp, channels, angRes)

    ref = jax.block_until_ready(reference_forward(x, params, angRes))

    # f32 operand path (accuracy baseline).
    fwd32 = jax.jit(functools.partial(disentg_block_forward, a=angRes))
    out32 = jax.block_until_ready(fwd32(x, params))
    assert out32.shape == (B, channels, H, W)
    assert np.allclose(np.asarray(out32), np.asarray(ref), atol=2e-2, rtol=2e-2)

    # bf16 operand path (MXU-native / half-DMA on v6e & v7x); f32 accumulation,
    # so only operand rounding differs -> loose tolerance sanity check.
    fwd16 = jax.jit(functools.partial(disentg_block_forward, a=angRes,
                                      compute_dtype=jnp.bfloat16))
    out16 = jax.block_until_ready(fwd16(x, params))
    assert out16.shape == (B, channels, H, W)
    assert np.allclose(np.asarray(out16), np.asarray(ref), atol=1e-1, rtol=1e-1)

    print("KERNEL_OK")
</pallas_src>

<mosaic_0001>
module attributes {stable_mosaic.version = 11 : i64} {
  func.func @_mm2t_kernel(%arg0: i32, %arg1: memref<32x256xf32, #tpu.memory_space<vmem>>, %arg2: memref<4x32xf32, #tpu.memory_space<vmem>>, %arg3: memref<8x4xf32, #tpu.memory_space<vmem>>, %arg4: memref<8x256xf32, #tpu.memory_space<vmem>>) attributes {dimension_semantics = [#tpu.dimension_semantics<parallel>], iteration_bounds = array<i64: 2>, scalar_prefetch = 0 : i64, scratch_operands = 0 : i64, tpu.core_type = #tpu.core_type<tc>, window_params = [{transform_indices = @transform_0, window_bounds = array<i64: 32, 256>}, {pipeline_mode = #tpu.pipeline_mode<synchronous>, transform_indices = @transform_1, window_bounds = array<i64: 4, 32>}, {pipeline_mode = #tpu.pipeline_mode<synchronous>, transform_indices = @transform_2, window_bounds = array<i64: 8, 4>}, {transform_indices = @transform_3, window_bounds = array<i64: 8, 256>}]} {
    %c0 = arith.constant 0 : index
    %c0_0 = arith.constant 0 : index
    %0 = vector.load %arg2[%c0, %c0_0] : memref<4x32xf32, #tpu.memory_space<vmem>>, vector<4x32xf32>
    %c0_1 = arith.constant 0 : index
    %c0_2 = arith.constant 0 : index
    %1 = vector.load %arg1[%c0_1, %c0_2] : memref<32x256xf32, #tpu.memory_space<vmem>>, vector<32x256xf32>
    %cst = arith.constant dense<0.000000e+00> : vector<4x256xf32>
    %2 = tpu.matmul %0, %1, %cst {dimension_numbers = #tpu.dot_dimension_numbers<[1], [0], [0], [1], [0, 0, 1, 1], [], []>} : vector<4x32xf32>, vector<32x256xf32>, vector<4x256xf32> -> vector<4x256xf32>
    %cst_3 = arith.constant 0.000000e+00 : f32
    %3 = vector.broadcast %cst_3 : f32 to vector<4x256xf32>
    %4 = arith.cmpf oge, %2, %3 : vector<4x256xf32>
    %cst_4 = arith.constant 1.000000e-01 : f32
    %5 = vector.broadcast %cst_4 : f32 to vector<4x256xf32>
    %6 = arith.mulf %5, %2 : vector<4x256xf32>
    %7 = arith.select %4, %2, %6 : vector<4x256xi1>, vector<4x256xf32>
    %c0_5 = arith.constant 0 : index
    %c0_6 = arith.constant 0 : index
    %8 = vector.load %arg3[%c0_5, %c0_6] : memref<8x4xf32, #tpu.memory_space<vmem>>, vector<8x4xf32>
    %cst_7 = arith.constant dense<0.000000e+00> : vector<8x256xf32>
    %9 = tpu.matmul %8, %7, %cst_7 {dimension_numbers = #tpu.dot_dimension_numbers<[1], [0], [0], [1], [0, 0, 1, 1], [], []>} : vector<8x4xf32>, vector<4x256xf32>, vector<8x256xf32> -> vector<8x256xf32>
    %cst_8 = arith.constant 0.000000e+00 : f32
    %10 = vector.broadcast %cst_8 : f32 to vector<8x256xf32>
    %11 = arith.cmpf oge, %9, %10 : vector<8x256xf32>
    %cst_9 = arith.constant 1.000000e-01 : f32
    %12 = vector.broadcast %cst_9 : f32 to vector<8x256xf32>
    %13 = arith.mulf %12, %9 : vector<8x256xf32>
    %14 = arith.select %11, %9, %13 : vector<8x256xi1>, vector<8x256xf32>
    %c0_10 = arith.constant 0 : index
    %c0_11 = arith.constant 0 : index
    %15 = vector.load %arg4[%c0_10, %c0_11] : memref<8x256xf32, #tpu.memory_space<vmem>>, vector<8x256xf32>
    tpu.vector_store %arg4[%c0_10, %c0_11], %14 {strides = array<i32>} : memref<8x256xf32, #tpu.memory_space<vmem>>, vector<8x256xf32>,
    return
  }
  func.func @transform_0(%arg0: i32) -> (i32, i32) {
    %c0_i32 = arith.constant 0 : i32
    %c0_i32_0 = arith.constant 0 : i32
    return %c0_i32, %arg0 : i32, i32
  }
  func.func @transform_1(%arg0: i32) -> (i32, i32) {
    %c0_i32 = arith.constant 0 : i32
    %c0_i32_0 = arith.constant 0 : i32
    %c0_i32_1 = arith.constant 0 : i32
    return %c0_i32, %c0_i32_0 : i32, i32
  }
  func.func @transform_2(%arg0: i32) -> (i32, i32) {
    %c0_i32 = arith.constant 0 : i32
    %c0_i32_0 = arith.constant 0 : i32
    %c0_i32_1 = arith.constant 0 : i32
    return %c0_i32, %c0_i32_0 : i32, i32
  }
  func.func @transform_3(%arg0: i32) -> (i32, i32) {
    %c0_i32 = arith.constant 0 : i32
    %c0_i32_0 = arith.constant 0 : i32
    return %c0_i32, %arg0 : i32, i32
  }
}

module attributes {stable_mosaic.version = 11 : i64} {
  func.func @_mm2t_kernel(%arg0: i32, %arg1: memref<32x128xf32, #tpu.memory_space<vmem>>, %arg2: memref<2x32xf32, #tpu.memory_space<vmem>>, %arg3: memref<8x2xf32, #tpu.memory_space<vmem>>, %arg4: memref<8x128xf32, #tpu.memory_space<vmem>>) attributes {dimension_semantics = [#tpu.dimension_semantics<parallel>], iteration_bounds = array<i64: 1>, scalar_prefetch = 0 : i64, scratch_operands = 0 : i64, tpu.core_type = #tpu.core_type<tc>, window_params = [{transform_indices = @transform_0, window_bounds = array<i64: 32, 128>}, {pipeline_mode = #tpu.pipeline_mode<synchronous>, transform_indices = @transform_1, window_bounds = array<i64: 2, 32>}, {pipeline_mode = #tpu.pipeline_mode<synchronous>, transform_indices = @transform_2, window_bounds = array<i64: 8, 2>}, {transform_indices = @transform_3, window_bounds = array<i64: 8, 128>}]} {
    %c0 = arith.constant 0 : index
    %c0_0 = arith.constant 0 : index
    %0 = vector.load %arg2[%c0, %c0_0] : memref<2x32xf32, #tpu.memory_space<vmem>>, vector<2x32xf32>
    %c0_1 = arith.constant 0 : index
    %c0_2 = arith.constant 0 : index
    %1 = vector.load %arg1[%c0_1, %c0_2] : memref<32x128xf32, #tpu.memory_space<vmem>>, vector<32x128xf32>
    %cst = arith.constant dense<0.000000e+00> : vector<2x128xf32>
    %2 = tpu.matmul %0, %1, %cst {dimension_numbers = #tpu.dot_dimension_numbers<[1], [0], [0], [1], [0, 0, 1, 1], [], []>} : vector<2x32xf32>, vector<32x128xf32>, vector<2x128xf32> -> vector<2x128xf32>
    %cst_3 = arith.constant 0.000000e+00 : f32
    %3 = vector.broadcast %cst_3 : f32 to vector<2x128xf32>
    %4 = arith.cmpf oge, %2, %3 : vector<2x128xf32>
    %cst_4 = arith.constant 1.000000e-01 : f32
    %5 = vector.broadcast %cst_4 : f32 to vector<2x128xf32>
    %6 = arith.mulf %5, %2 : vector<2x128xf32>
    %7 = arith.select %4, %2, %6 : vector<2x128xi1>, vector<2x128xf32>
    %c0_5 = arith.constant 0 : index
    %c0_6 = arith.constant 0 : index
    %8 = vector.load %arg3[%c0_5, %c0_6] : memref<8x2xf32, #tpu.memory_space<vmem>>, vector<8x2xf32>
    %cst_7 = arith.constant dense<0.000000e+00> : vector<8x128xf32>
    %9 = tpu.matmul %8, %7, %cst_7 {dimension_numbers = #tpu.dot_dimension_numbers<[1], [0], [0], [1], [0, 0, 1, 1], [], []>} : vector<8x2xf32>, vector<2x128xf32>, vector<8x128xf32> -> vector<8x128xf32>
    %cst_8 = arith.constant 0.000000e+00 : f32
    %10 = vector.broadcast %cst_8 : f32 to vector<8x128xf32>
    %11 = arith.cmpf oge, %9, %10 : vector<8x128xf32>
    %cst_9 = arith.constant 1.000000e-01 : f32
    %12 = vector.broadcast %cst_9 : f32 to vector<8x128xf32>
    %13 = arith.mulf %12, %9 : vector<8x128xf32>
    %14 = arith.select %11, %9, %13 : vector<8x128xi1>, vector<8x128xf32>
    %c0_10 = arith.constant 0 : index
    %c0_11 = arith.constant 0 : index
    %15 = vector.load %arg4[%c0_10, %c0_11] : memref<8x128xf32, #tpu.memory_space<vmem>>, vector<8x128xf32>
    tpu.vector_store %arg4[%c0_10, %c0_11], %14 {strides = array<i32>} : memref<8x128xf32, #tpu.memory_space<vmem>>, vector<8x128xf32>,
    return
  }
  func.func @transform_0(%arg0: i32) -> (i32, i32) {
    %c0_i32 = arith.constant 0 : i32
    %c0_i32_0 = arith.constant 0 : i32
    return %c0_i32, %arg0 : i32, i32
  }
  func.func @transform_1(%arg0: i32) -> (i32, i32) {
    %c0_i32 = arith.constant 0 : i32
    %c0_i32_0 = arith.constant 0 : i32
    %c0_i32_1 = arith.constant 0 : i32
    return %c0_i32, %c0_i32_0 : i32, i32
  }
  func.func @transform_2(%arg0: i32) -> (i32, i32) {
    %c0_i32 = arith.constant 0 : i32
    %c0_i32_0 = arith.constant 0 : i32
    %c0_i32_1 = arith.constant 0 : i32
    return %c0_i32, %c0_i32_0 : i32, i32
  }
  func.func @transform_3(%arg0: i32) -> (i32, i32) {
    %c0_i32 = arith.constant 0 : i32
    %c0_i32_0 = arith.constant 0 : i32
    return %c0_i32, %arg0 : i32, i32
  }
}

module attributes {stable_mosaic.version = 11 : i64} {
  func.func @_spa_fuse_kernel(%arg0: i32, %arg1: memref<1x20x20x8xf32, #tpu.memory_space<vmem>>, %arg2: memref<1x16x16x2xf32, #tpu.memory_space<vmem>>, %arg3: memref<1x16x16x4xf32, #tpu.memory_space<vmem>>, %arg4: memref<1x16x16x4xf32, #tpu.memory_space<vmem>>, %arg5: memref<72x8xf32, #tpu.memory_space<vmem>>, %arg6: memref<72x8xf32, #tpu.memory_space<vmem>>, %arg7: memref<18x8xf32, #tpu.memory_space<vmem>>, %arg8: memref<72x8xf32, #tpu.memory_space<vmem>>, %arg9: memref<1x16x16x8xf32, #tpu.memory_space<vmem>>, %arg10: memref<20x20x8xf32, #tpu.memory_space<vmem>>, %arg11: memref<256x72xf32, #tpu.memory_space<vmem>>) attributes {dimension_semantics = [#tpu.dimension_semantics<parallel>], iteration_bounds = array<i64: 2>, scalar_prefetch = 0 : i64, scratch_operands = 2 : i64, tpu.core_type = #tpu.core_type<tc>, window_params = [{transform_indices = @transform_0, window_bounds = array<i64: 1, 20, 20, 8>}, {transform_indices = @transform_1, window_bounds = array<i64: 1, 16, 16, 2>}, {transform_indices = @transform_2, window_bounds = array<i64: 1, 16, 16, 4>}, {transform_indices = @transform_3, window_bounds = array<i64: 1, 16, 16, 4>}, {pipeline_mode = #tpu.pipeline_mode<synchronous>, transform_indices = @transform_4, window_bounds = array<i64: 72, 8>}, {pipeline_mode = #tpu.pipeline_mode<synchronous>, transform_indices = @transform_5, window_bounds = array<i64: 72, 8>}, {pipeline_mode = #tpu.pipeline_mode<synchronous>, transform_indices = @transform_6, window_bounds = array<i64: 18, 8>}, {pipeline_mode = #tpu.pipeline_mode<synchronous>, transform_indices = @transform_7, window_bounds = array<i64: 72, 8>}, {transform_indices = @transform_8, window_bounds = array<i64: 1, 16, 16, 8>}]} {
    %c0 = arith.constant 0 : index
    %c0_0 = arith.constant 0 : index
    %c0_1 = arith.constant 0 : index
    %c0_2 = arith.constant 0 : index
    %0 = vector.load %arg1[%c0, %c0_0, %c0_1, %c0_2] : memref<1x20x20x8xf32, #tpu.memory_space<vmem>>, vector<1x16x16x8xf32>
    %1 = vector.shape_cast %0 : vector<1x16x16x8xf32> to vector<16x16x8xf32>
    %2 = vector.shape_cast %1 : vector<16x16x8xf32> to vector<256x8xf32>
    %c0_3 = arith.constant 0 : index
    %c0_4 = arith.constant 0 : index
    %3 = vector.load %arg11[%c0_3, %c0_4] : memref<256x72xf32, #tpu.memory_space<vmem>>, vector<256x8xf32>
    tpu.vector_store %arg11[%c0_3, %c0_4], %2 {strides = array<i32>} : memref<256x72xf32, #tpu.memory_space<vmem>>, vector<256x8xf32>,
    %c0_5 = arith.constant 0 : index
    %c0_6 = arith.constant 0 : index
    %c2 = arith.constant 2 : index
    %c0_7 = arith.constant 0 : index
    %4 = vector.load %arg1[%c0_5, %c0_6, %c2, %c0_7] : memref<1x20x20x8xf32, #tpu.memory_space<vmem>>, vector<1x16x16x8xf32>
    %5 = vector.shape_cast %4 : vector<1x16x16x8xf32> to vector<16x16x8xf32>
    %6 = vector.shape_cast %5 : vector<16x16x8xf32> to vector<256x8xf32>
    %c0_8 = arith.constant 0 : index
    %c8 = arith.constant 8 : index
    %7 = vector.load %arg11[%c0_8, %c8] : memref<256x72xf32, #tpu.memory_space<vmem>>, vector<256x8xf32>
    tpu.vector_store %arg11[%c0_8, %c8], %6 {strides = array<i32>} : memref<256x72xf32, #tpu.memory_space<vmem>>, vector<256x8xf32>,
    %c0_9 = arith.constant 0 : index
    %c0_10 = arith.constant 0 : index
    %c4 = arith.constant 4 : index
    %c0_11 = arith.constant 0 : index
    %8 = vector.load %arg1[%c0_9, %c0_10, %c4, %c0_11] : memref<1x20x20x8xf32, #tpu.memory_space<vmem>>, vector<1x16x16x8xf32>
    %9 = vector.shape_cast %8 : vector<1x16x16x8xf32> to vector<16x16x8xf32>
    %10 = vector.shape_cast %9 : vector<16x16x8xf32> to vector<256x8xf32>
    %c0_12 = arith.constant 0 : index
    %c16 = arith.constant 16 : index
    %11 = vector.load %arg11[%c0_12, %c16] : memref<256x72xf32, #tpu.memory_space<vmem>>, vector<256x8xf32>
    tpu.vector_store %arg11[%c0_12, %c16], %10 {strides = array<i32>} : memref<256x72xf32, #tpu.memory_space<vmem>>, vector<256x8xf32>,
    %c0_13 = arith.constant 0 : index
    %c2_14 = arith.constant 2 : index
    %c0_15 = arith.constant 0 : index
    %c0_16 = arith.constant 0 : index
    %12 = vector.load %arg1[%c0_13, %c2_14, %c0_15, %c0_16] : memref<1x20x20x8xf32, #tpu.memory_space<vmem>>, vector<1x16x16x8xf32>
    %13 = vector.shape_cast %12 : vector<1x16x16x8xf32> to vector<16x16x8xf32>
    %14 = vector.shape_cast %13 : vector<16x16x8xf32> to vector<256x8xf32>
    %c0_17 = arith.constant 0 : index
    %c24 = arith.constant 24 : index
    %15 = vector.load %arg11[%c0_17, %c24] : memref<256x72xf32, #tpu.memory_space<vmem>>, vector<256x8xf32>
    tpu.vector_store %arg11[%c0_17, %c24], %14 {strides = array<i32>} : memref<256x72xf32, #tpu.memory_space<vmem>>, vector<256x8xf32>,
    %c0_18 = arith.constant 0 : index
    %c2_19 = arith.constant 2 : index
    %c2_20 = arith.constant 2 : index
    %c0_21 = arith.constant 0 : index
    %16 = vector.load %arg1[%c0_18, %c2_19, %c2_20, %c0_21] : memref<1x20x20x8xf32, #tpu.memory_space<vmem>>, vector<1x16x16x8xf32>
    %17 = vector.shape_cast %16 : vector<1x16x16x8xf32> to vector<16x16x8xf32>
    %18 = vector.shape_cast %17 : vector<16x16x8xf32> to vector<256x8xf32>
    %c0_22 = arith.constant 0 : index
    %c32 = arith.constant 32 : index
    %19 = vector.load %arg11[%c0_22, %c32] : memref<256x72xf32, #tpu.memory_space<vmem>>, vector<256x8xf32>
    tpu.vector_store %arg11[%c0_22, %c32], %18 {strides = array<i32>} : memref<256x72xf32, #tpu.memory_space<vmem>>, vector<256x8xf32>,
    %c0_23 = arith.constant 0 : index
    %c2_24 = arith.constant 2 : index
    %c4_25 = arith.constant 4 : index
    %c0_26 = arith.constant 0 : index
    %20 = vector.load %arg1[%c0_23, %c2_24, %c4_25, %c0_26] : memref<1x20x20x8xf32, #tpu.memory_space<vmem>>, vector<1x16x16x8xf32>
    %21 = vector.shape_cast %20 : vector<1x16x16x8xf32> to vector<16x16x8xf32>
    %22 = vector.shape_cast %21 : vector<16x16x8xf32> to vector<256x8xf32>
    %c0_27 = arith.constant 0 : index
    %c40 = arith.constant 40 : index
    %23 = vector.load %arg11[%c0_27, %c40] : memref<256x72xf32, #tpu.memory_space<vmem>>, vector<256x8xf32>
    tpu.vector_store %arg11[%c0_27, %c40], %22 {strides = array<i32>} : memref<256x72xf32, #tpu.memory_space<vmem>>, vector<256x8xf32>,
    %c0_28 = arith.constant 0 : index
    %c4_29 = arith.constant 4 : index
    %c0_30 = arith.constant 0 : index
    %c0_31 = arith.constant 0 : index
    %24 = vector.load %arg1[%c0_28, %c4_29, %c0_30, %c0_31] : memref<1x20x20x8xf32, #tpu.memory_space<vmem>>, vector<1x16x16x8xf32>
    %25 = vector.shape_cast %24 : vector<1x16x16x8xf32> to vector<16x16x8xf32>
    %26 = vector.shape_cast %25 : vector<16x16x8xf32> to vector<256x8xf32>
    %c0_32 = arith.constant 0 : index
    %c48 = arith.constant 48 : index
    %27 = vector.load %arg11[%c0_32, %c48] : memref<256x72xf32, #tpu.memory_space<vmem>>, vector<256x8xf32>
    tpu.vector_store %arg11[%c0_32, %c48], %26 {strides = array<i32>} : memref<256x72xf32, #tpu.memory_space<vmem>>, vector<256x8xf32>,
    %c0_33 = arith.constant 0 : index
    %c4_34 = arith.constant 4 : index
    %c2_35 = arith.constant 2 : index
    %c0_36 = arith.constant 0 : index
    %28 = vector.load %arg1[%c0_33, %c4_34, %c2_35, %c0_36] : memref<1x20x20x8xf32, #tpu.memory_space<vmem>>, vector<1x16x16x8xf32>
    %29 = vector.shape_cast %28 : vector<1x16x16x8xf32> to vector<16x16x8xf32>
    %30 = vector.shape_cast %29 : vector<16x16x8xf32> to vector<256x8xf32>
    %c0_37 = arith.constant 0 : index
    %c56 = arith.constant 56 : index
    %31 = vector.load %arg11[%c0_37, %c56] : memref<256x72xf32, #tpu.memory_space<vmem>>, vector<256x8xf32>
    tpu.vector_store %arg11[%c0_37, %c56], %30 {strides = array<i32>} : memref<256x72xf32, #tpu.memory_space<vmem>>, vector<256x8xf32>,
    %c0_38 = arith.constant 0 : index
    %c4_39 = arith.constant 4 : index
    %c4_40 = arith.constant 4 : index
    %c0_41 = arith.constant 0 : index
    %32 = vector.load %arg1[%c0_38, %c4_39, %c4_40, %c0_41] : memref<1x20x20x8xf32, #tpu.memory_space<vmem>>, vector<1x16x16x8xf32>
    %33 = vector.shape_cast %32 : vector<1x16x16x8xf32> to vector<16x16x8xf32>
    %34 = vector.shape_cast %33 : vector<16x16x8xf32> to vector<256x8xf32>
    %c0_42 = arith.constant 0 : index
    %c64 = arith.constant 64 : index
    %35 = vector.load %arg11[%c0_42, %c64] : memref<256x72xf32, #tpu.memory_space<vmem>>, vector<256x8xf32>
    tpu.vector_store %arg11[%c0_42, %c64], %34 {strides = array<i32>} : memref<256x72xf32, #tpu.memory_space<vmem>>, vector<256x8xf32>,
    %c0_43 = arith.constant 0 : index
    %c0_44 = arith.constant 0 : index
    %36 = vector.load %arg11[%c0_43, %c0_44] : memref<256x72xf32, #tpu.memory_space<vmem>>, vector<256x72xf32>
    %c0_45 = arith.constant 0 : index
    %c0_46 = arith.constant 0 : index
    %37 = vector.load %arg5[%c0_45, %c0_46] : memref<72x8xf32, #tpu.memory_space<vmem>>, vector<72x8xf32>
    %cst = arith.constant dense<0.000000e+00> : vector<256x8xf32>
    %38 = tpu.matmul %36, %37, %cst {dimension_numbers = #tpu.dot_dimension_numbers<[1], [0], [0], [1], [0, 0, 1, 1], [], []>} : vector<256x72xf32>, vector<72x8xf32>, vector<256x8xf32> -> vector<256x8xf32>
    %cst_47 = arith.constant 0.000000e+00 : f32
    %39 = vector.broadcast %cst_47 : f32 to vector<256x8xf32>
    %40 = arith.cmpf oge, %38, %39 : vector<256x8xf32>
    %cst_48 = arith.constant 1.000000e-01 : f32
    %41 = vector.broadcast %cst_48 : f32 to vector<256x8xf32>
    %42 = arith.mulf %41, %38 : vector<256x8xf32>
    %43 = arith.select %40, %38, %42 : vector<256x8xi1>, vector<256x8xf32>
    %cst_49 = arith.constant 0.000000e+00 : f32
    %44 = vector.broadcast %cst_49 : f32 to vector<2x20x8xf32>
    %c0_50 = arith.constant 0 : index
    %c0_51 = arith.constant 0 : index
    %c0_52 = arith.constant 0 : index
    %45 = vector.load %arg10[%c0_50, %c0_51, %c0_52] : memref<20x20x8xf32, #tpu.memory_space<vmem>>, vector<2x20x8xf32>
    tpu.vector_store %arg10[%c0_50, %c0_51, %c0_52], %44 {strides = array<i32>} : memref<20x20x8xf32, #tpu.memory_space<vmem>>, vector<2x20x8xf32>,
    %cst_53 = arith.constant 0.000000e+00 : f32
    %46 = vector.broadcast %cst_53 : f32 to vector<2x20x8xf32>
    %c18 = arith.constant 18 : index
    %c0_54 = arith.constant 0 : index
    %c0_55 = arith.constant 0 : index
    %47 = vector.load %arg10[%c18, %c0_54, %c0_55] : memref<20x20x8xf32, #tpu.memory_space<vmem>>, vector<2x20x8xf32>
    tpu.vector_store %arg10[%c18, %c0_54, %c0_55], %46 {strides = array<i32>} : memref<20x20x8xf32, #tpu.memory_space<vmem>>, vector<2x20x8xf32>,
    %cst_56 = arith.constant 0.000000e+00 : f32
    %48 = vector.broadcast %cst_56 : f32 to vector<16x2x8xf32>
    %c2_57 = arith.constant 2 : index
    %c0_58 = arith.constant 0 : index
    %c0_59 = arith.constant 0 : index
    %49 = vector.load %arg10[%c2_57, %c0_58, %c0_59] : memref<20x20x8xf32, #tpu.memory_space<vmem>>, vector<16x2x8xf32>
    tpu.vector_store %arg10[%c2_57, %c0_58, %c0_59], %48 {strides = array<i32>} : memref<20x20x8xf32, #tpu.memory_space<vmem>>, vector<16x2x8xf32>,
    %cst_60 = arith.constant 0.000000e+00 : f32
    %50 = vector.broadcast %cst_60 : f32 to vector<16x2x8xf32>
    %c2_61 = arith.constant 2 : index
    %c18_62 = arith.constant 18 : index
    %c0_63 = arith.constant 0 : index
    %51 = vector.load %arg10[%c2_61, %c18_62, %c0_63] : memref<20x20x8xf32, #tpu.memory_space<vmem>>, vector<16x2x8xf32>
    tpu.vector_store %arg10[%c2_61, %c18_62, %c0_63], %50 {strides = array<i32>} : memref<20x20x8xf32, #tpu.memory_space<vmem>>, vector<16x2x8xf32>,
    %52 = vector.shape_cast %43 : vector<256x8xf32> to vector<16x16x8xf32>
    %c2_64 = arith.constant 2 : index
    %c2_65 = arith.constant 2 : index
    %c0_66 = arith.constant 0 : index
    %53 = vector.load %arg10[%c2_64, %c2_65, %c0_66] : memref<20x20x8xf32, #tpu.memory_space<vmem>>, vector<16x16x8xf32>
    tpu.vector_store %arg10[%c2_64, %c2_65, %c0_66], %52 {strides = array<i32>} : memref<20x20x8xf32, #tpu.memory_space<vmem>>, vector<16x16x8xf32>,
    %c0_67 = arith.constant 0 : index
    %c0_68 = arith.constant 0 : index
    %c0_69 = arith.constant 0 : index
    %54 = vector.load %arg10[%c0_67, %c0_68, %c0_69] : memref<20x20x8xf32, #tpu.memory_space<vmem>>, vector<16x16x8xf32>
    %55 = vector.shape_cast %54 : vector<16x16x8xf32> to vector<256x8xf32>
    %c0_70 = arith.constant 0 : index
    %c0_71 = arith.constant 0 : index
    %56 = vector.load %arg11[%c0_70, %c0_71] : memref<256x72xf32, #tpu.memory_space<vmem>>, vector<256x8xf32>
    tpu.vector_store %arg11[%c0_70, %c0_71], %55 {strides = array<i32>} : memref<256x72xf32, #tpu.memory_space<vmem>>, vector<256x8xf32>,
    %c0_72 = arith.constant 0 : index
    %c2_73 = arith.constant 2 : index
    %c0_74 = arith.constant 0 : index
    %57 = vector.load %arg10[%c0_72, %c2_73, %c0_74] : memref<20x20x8xf32, #tpu.memory_space<vmem>>, vector<16x16x8xf32>
    %58 = vector.shape_cast %57 : vector<16x16x8xf32> to vector<256x8xf32>
    %c0_75 = arith.constant 0 : index
    %c8_76 = arith.constant 8 : index
    %59 = vector.load %arg11[%c0_75, %c8_76] : memref<256x72xf32, #tpu.memory_space<vmem>>, vector<256x8xf32>
    tpu.vector_store %arg11[%c0_75, %c8_76], %58 {strides = array<i32>} : memref<256x72xf32, #tpu.memory_space<vmem>>, vector<256x8xf32>,
    %c0_77 = arith.constant 0 : index
    %c4_78 = arith.constant 4 : index
    %c0_79 = arith.constant 0 : index
    %60 = vector.load %arg10[%c0_77, %c4_78, %c0_79] : memref<20x20x8xf32, #tpu.memory_space<vmem>>, vector<16x16x8xf32>
    %61 = vector.shape_cast %60 : vector<16x16x8xf32> to vector<256x8xf32>
    %c0_80 = arith.constant 0 : index
    %c16_81 = arith.constant 16 : index
    %62 = vector.load %arg11[%c0_80, %c16_81] : memref<256x72xf32, #tpu.memory_space<vmem>>, vector<256x8xf32>
    tpu.vector_store %arg11[%c0_80, %c16_81], %61 {strides = array<i32>} : memref<256x72xf32, #tpu.memory_space<vmem>>, vector<256x8xf32>,
    %c2_82 = arith.constant 2 : index
    %c0_83 = arith.constant 0 : index
    %c0_84 = arith.constant 0 : index
    %63 = vector.load %arg10[%c2_82, %c0_83, %c0_84] : memref<20x20x8xf32, #tpu.memory_space<vmem>>, vector<16x16x8xf32>
    %64 = vector.shape_cast %63 : vector<16x16x8xf32> to vector<256x8xf32>
    %c0_85 = arith.constant 0 : index
    %c24_86 = arith.constant 24 : index
    %65 = vector.load %arg11[%c0_85, %c24_86] : memref<256x72xf32, #tpu.memory_space<vmem>>, vector<256x8xf32>
    tpu.vector_store %arg11[%c0_85, %c24_86], %64 {strides = array<i32>} : memref<256x72xf32, #tpu.memory_space<vmem>>, vector<256x8xf32>,
    %c2_87 = arith.constant 2 : index
    %c2_88 = arith.constant 2 : index
    %c0_89 = arith.constant 0 : index
    %66 = vector.load %arg10[%c2_87, %c2_88, %c0_89] : memref<20x20x8xf32, #tpu.memory_space<vmem>>, vector<16x16x8xf32>
    %67 = vector.shape_cast %66 : vector<16x16x8xf32> to vector<256x8xf32>
    %c0_90 = arith.constant 0 : index
    %c32_91 = arith.constant 32 : index
    %68 = vector.load %arg11[%c0_90, %c32_91] : memref<256x72xf32, #tpu.memory_space<vmem>>, vector<256x8xf32>
    tpu.vector_store %arg11[%c0_90, %c32_91], %67 {strides = array<i32>} : memref<256x72xf32, #tpu.memory_space<vmem>>, vector<256x8xf32>,
    %c2_92 = arith.constant 2 : index
    %c4_93 = arith.constant 4 : index
    %c0_94 = arith.constant 0 : index
    %69 = vector.load %arg10[%c2_92, %c4_93, %c0_94] : memref<20x20x8xf32, #tpu.memory_space<vmem>>, vector<16x16x8xf32>
    %70 = vector.shape_cast %69 : vector<16x16x8xf32> to vector<256x8xf32>
    %c0_95 = arith.constant 0 : index
    %c40_96 = arith.constant 40 : index
    %71 = vector.load %arg11[%c0_95, %c40_96] : memref<256x72xf32, #tpu.memory_space<vmem>>, vector<256x8xf32>
    tpu.vector_store %arg11[%c0_95, %c40_96], %70 {strides = array<i32>} : memref<256x72xf32, #tpu.memory_space<vmem>>, vector<256x8xf32>,
    %c4_97 = arith.constant 4 : index
    %c0_98 = arith.constant 0 : index
    %c0_99 = arith.constant 0 : index
    %72 = vector.load %arg10[%c4_97, %c0_98, %c0_99] : memref<20x20x8xf32, #tpu.memory_space<vmem>>, vector<16x16x8xf32>
    %73 = vector.shape_cast %72 : vector<16x16x8xf32> to vector<256x8xf32>
    %c0_100 = arith.constant 0 : index
    %c48_101 = arith.constant 48 : index
    %74 = vector.load %arg11[%c0_100, %c48_101] : memref<256x72xf32, #tpu.memory_space<vmem>>, vector<256x8xf32>
    tpu.vector_store %arg11[%c0_100, %c48_101], %73 {strides = array<i32>} : memref<256x72xf32, #tpu.memory_space<vmem>>, vector<256x8xf32>,
    %c4_102 = arith.constant 4 : index
    %c2_103 = arith.constant 2 : index
    %c0_104 = arith.constant 0 : index
    %75 = vector.load %arg10[%c4_102, %c2_103, %c0_104] : memref<20x20x8xf32, #tpu.memory_space<vmem>>, vector<16x16x8xf32>
    %76 = vector.shape_cast %75 : vector<16x16x8xf32> to vector<256x8xf32>
    %c0_105 = arith.constant 0 : index
    %c56_106 = arith.constant 56 : index
    %77 = vector.load %arg11[%c0_105, %c56_106] : memref<256x72xf32, #tpu.memory_space<vmem>>, vector<256x8xf32>
    tpu.vector_store %arg11[%c0_105, %c56_106], %76 {strides = array<i32>} : memref<256x72xf32, #tpu.memory_space<vmem>>, vector<256x8xf32>,
    %c4_107 = arith.constant 4 : index
    %c4_108 = arith.constant 4 : index
    %c0_109 = arith.constant 0 : index
    %78 = vector.load %arg10[%c4_107, %c4_108, %c0_109] : memref<20x20x8xf32, #tpu.memory_space<vmem>>, vector<16x16x8xf32>
    %79 = vector.shape_cast %78 : vector<16x16x8xf32> to vector<256x8xf32>
    %c0_110 = arith.constant 0 : index
    %c64_111 = arith.constant 64 : index
    %80 = vector.load %arg11[%c0_110, %c64_111] : memref<256x72xf32, #tpu.memory_space<vmem>>, vector<256x8xf32>
    tpu.vector_store %arg11[%c0_110, %c64_111], %79 {strides = array<i32>} : memref<256x72xf32, #tpu.memory_space<vmem>>, vector<256x8xf32>,
    %c0_112 = arith.constant 0 : index
    %c0_113 = arith.constant 0 : index
    %81 = vector.load %arg11[%c0_112, %c0_113] : memref<256x72xf32, #tpu.memory_space<vmem>>, vector<256x72xf32>
    %c0_114 = arith.constant 0 : index
    %c0_115 = arith.constant 0 : index
    %82 = vector.load %arg6[%c0_114, %c0_115] : memref<72x8xf32, #tpu.memory_space<vmem>>, vector<72x8xf32>
    %cst_116 = arith.constant dense<0.000000e+00> : vector<256x8xf32>
    %83 = tpu.matmul %81, %82, %cst_116 {dimension_numbers = #tpu.dot_dimension_numbers<[1], [0], [0], [1], [0, 0, 1, 1], [], []>} : vector<256x72xf32>, vector<72x8xf32>, vector<256x8xf32> -> vector<256x8xf32>
    %cst_117 = arith.constant 0.000000e+00 : f32
    %84 = vector.broadcast %cst_117 : f32 to vector<256x8xf32>
    %85 = arith.cmpf oge, %83, %84 : vector<256x8xf32>
    %cst_118 = arith.constant 1.000000e-01 : f32
    %86 = vector.broadcast %cst_118 : f32 to vector<256x8xf32>
    %87 = arith.mulf %86, %83 : vector<256x8xf32>
    %88 = arith.select %85, %83, %87 : vector<256x8xi1>, vector<256x8xf32>
    %c0_119 = arith.constant 0 : index
    %c0_120 = arith.constant 0 : index
    %89 = vector.load %arg11[%c0_119, %c0_120] : memref<256x72xf32, #tpu.memory_space<vmem>>, vector<256x8xf32>
    tpu.vector_store %arg11[%c0_119, %c0_120], %88 {strides = array<i32>} : memref<256x72xf32, #tpu.memory_space<vmem>>, vector<256x8xf32>,
    %c0_121 = arith.constant 0 : index
    %c0_122 = arith.constant 0 : index
    %c0_123 = arith.constant 0 : index
    %c0_124 = arith.constant 0 : index
    %90 = vector.load %arg2[%c0_121, %c0_122, %c0_123, %c0_124] : memref<1x16x16x2xf32, #tpu.memory_space<vmem>>, vector<1x16x16x2xf32>
    %91 = vector.shape_cast %90 : vector<1x16x16x2xf32> to vector<16x16x2xf32>
    %92 = vector.shape_cast %91 : vector<16x16x2xf32> to vector<256x2xf32>
    %c0_125 = arith.constant 0 : index
    %c8_126 = arith.constant 8 : index
    %93 = vector.load %arg11[%c0_125, %c8_126] : memref<256x72xf32, #tpu.memory_space<vmem>>, vector<256x2xf32>
    tpu.vector_store %arg11[%c0_125, %c8_126], %92 {strides = array<i32>} : memref<256x72xf32, #tpu.memory_space<vmem>>, vector<256x2xf32>,
    %c0_127 = arith.constant 0 : index
    %c0_128 = arith.constant 0 : index
    %c0_129 = arith.constant 0 : index
    %c0_130 = arith.constant 0 : index
    %94 = vector.load %arg3[%c0_127, %c0_128, %c0_129, %c0_130] : memref<1x16x16x4xf32, #tpu.memory_space<vmem>>, vector<1x16x16x4xf32>
    %95 = vector.shape_cast %94 : vector<1x16x16x4xf32> to vector<16x16x4xf32>
    %96 = vector.shape_cast %95 : vector<16x16x4xf32> to vector<256x4xf32>
    %c0_131 = arith.constant 0 : index
    %c10 = arith.constant 10 : index
    %97 = vector.load %arg11[%c0_131, %c10] : memref<256x72xf32, #tpu.memory_space<vmem>>, vector<256x4xf32>
    tpu.vector_store %arg11[%c0_131, %c10], %96 {strides = array<i32>} : memref<256x72xf32, #tpu.memory_space<vmem>>, vector<256x4xf32>,
    %c0_132 = arith.constant 0 : index
    %c0_133 = arith.constant 0 : index
    %c0_134 = arith.constant 0 : index
    %c0_135 = arith.constant 0 : index
    %98 = vector.load %arg4[%c0_132, %c0_133, %c0_134, %c0_135] : memref<1x16x16x4xf32, #tpu.memory_space<vmem>>, vector<1x16x16x4xf32>
    %99 = vector.shape_cast %98 : vector<1x16x16x4xf32> to vector<16x16x4xf32>
    %100 = vector.shape_cast %99 : vector<16x16x4xf32> to vector<256x4xf32>
    %c0_136 = arith.constant 0 : index
    %c14 = arith.constant 14 : index
    %101 = vector.load %arg11[%c0_136, %c14] : memref<256x72xf32, #tpu.memory_space<vmem>>, vector<256x4xf32>
    tpu.vector_store %arg11[%c0_136, %c14], %100 {strides = array<i32>} : memref<256x72xf32, #tpu.memory_space<vmem>>, vector<256x4xf32>,
    %c0_137 = arith.constant 0 : index
    %c0_138 = arith.constant 0 : index
    %102 = vector.load %arg11[%c0_137, %c0_138] : memref<256x72xf32, #tpu.memory_space<vmem>>, vector<256x18xf32>
    %c0_139 = arith.constant 0 : index
    %c0_140 = arith.constant 0 : index
    %103 = vector.load %arg7[%c0_139, %c0_140] : memref<18x8xf32, #tpu.memory_space<vmem>>, vector<18x8xf32>
    %cst_141 = arith.constant dense<0.000000e+00> : vector<256x8xf32>
    %104 = tpu.matmul %102, %103, %cst_141 {dimension_numbers = #tpu.dot_dimension_numbers<[1], [0], [0], [1], [0, 0, 1, 1], [], []>} : vector<256x18xf32>, vector<18x8xf32>, vector<256x8xf32> -> vector<256x8xf32>
    %cst_142 = arith.constant 0.000000e+00 : f32
    %105 = vector.broadcast %cst_142 : f32 to vector<256x8xf32>
    %106 = arith.cmpf oge, %104, %105 : vector<256x8xf32>
    %cst_143 = arith.constant 1.000000e-01 : f32
    %107 = vector.broadcast %cst_143 : f32 to vector<256x8xf32>
    %108 = arith.mulf %107, %104 : vector<256x8xf32>
    %109 = arith.select %106, %104, %108 : vector<256x8xi1>, vector<256x8xf32>
    %110 = vector.shape_cast %109 : vector<256x8xf32> to vector<16x16x8xf32>
    %c2_144 = arith.constant 2 : index
    %c2_145 = arith.constant 2 : index
    %c0_146 = arith.constant 0 : index
    %111 = vector.load %arg10[%c2_144, %c2_145, %c0_146] : memref<20x20x8xf32, #tpu.memory_space<vmem>>, vector<16x16x8xf32>
    tpu.vector_store %arg10[%c2_144, %c2_145, %c0_146], %110 {strides = array<i32>} : memref<20x20x8xf32, #tpu.memory_space<vmem>>, vector<16x16x8xf32>,
    %c0_147 = arith.constant 0 : index
    %c0_148 = arith.constant 0 : index
    %c0_149 = arith.constant 0 : index
    %112 = vector.load %arg10[%c0_147, %c0_148, %c0_149] : memref<20x20x8xf32, #tpu.memory_space<vmem>>, vector<16x16x8xf32>
    %113 = vector.shape_cast %112 : vector<16x16x8xf32> to vector<256x8xf32>
    %c0_150 = arith.constant 0 : index
    %c0_151 = arith.constant 0 : index
    %114 = vector.load %arg11[%c0_150, %c0_151] : memref<256x72xf32, #tpu.memory_space<vmem>>, vector<256x8xf32>
    tpu.vector_store %arg11[%c0_150, %c0_151], %113 {strides = array<i32>} : memref<256x72xf32, #tpu.memory_space<vmem>>, vector<256x8xf32>,
    %c0_152 = arith.constant 0 : index
    %c2_153 = arith.constant 2 : index
    %c0_154 = arith.constant 0 : index
    %115 = vector.load %arg10[%c0_152, %c2_153, %c0_154] : memref<20x20x8xf32, #tpu.memory_space<vmem>>, vector<16x16x8xf32>
    %116 = vector.shape_cast %115 : vector<16x16x8xf32> to vector<256x8xf32>
    %c0_155 = arith.constant 0 : index
    %c8_156 = arith.constant 8 : index
    %117 = vector.load %arg11[%c0_155, %c8_156] : memref<256x72xf32, #tpu.memory_space<vmem>>, vector<256x8xf32>
    tpu.vector_store %arg11[%c0_155, %c8_156], %116 {strides = array<i32>} : memref<256x72xf32, #tpu.memory_space<vmem>>, vector<256x8xf32>,
    %c0_157 = arith.constant 0 : index
    %c4_158 = arith.constant 4 : index
    %c0_159 = arith.constant 0 : index
    %118 = vector.load %arg10[%c0_157, %c4_158, %c0_159] : memref<20x20x8xf32, #tpu.memory_space<vmem>>, vector<16x16x8xf32>
    %119 = vector.shape_cast %118 : vector<16x16x8xf32> to vector<256x8xf32>
    %c0_160 = arith.constant 0 : index
    %c16_161 = arith.constant 16 : index
    %120 = vector.load %arg11[%c0_160, %c16_161] : memref<256x72xf32, #tpu.memory_space<vmem>>, vector<256x8xf32>
    tpu.vector_store %arg11[%c0_160, %c16_161], %119 {strides = array<i32>} : memref<256x72xf32, #tpu.memory_space<vmem>>, vector<256x8xf32>,
    %c2_162 = arith.constant 2 : index
    %c0_163 = arith.constant 0 : index
    %c0_164 = arith.constant 0 : index
    %121 = vector.load %arg10[%c2_162, %c0_163, %c0_164] : memref<20x20x8xf32, #tpu.memory_space<vmem>>, vector<16x16x8xf32>
    %122 = vector.shape_cast %121 : vector<16x16x8xf32> to vector<256x8xf32>
    %c0_165 = arith.constant 0 : index
    %c24_166 = arith.constant 24 : index
    %123 = vector.load %arg11[%c0_165, %c24_166] : memref<256x72xf32, #tpu.memory_space<vmem>>, vector<256x8xf32>
    tpu.vector_store %arg11[%c0_165, %c24_166], %122 {strides = array<i32>} : memref<256x72xf32, #tpu.memory_space<vmem>>, vector<256x8xf32>,
    %c2_167 = arith.constant 2 : index
    %c2_168 = arith.constant 2 : index
    %c0_169 = arith.constant 0 : index
    %124 = vector.load %arg10[%c2_167, %c2_168, %c0_169] : memref<20x20x8xf32, #tpu.memory_space<vmem>>, vector<16x16x8xf32>
    %125 = vector.shape_cast %124 : vector<16x16x8xf32> to vector<256x8xf32>
    %c0_170 = arith.constant 0 : index
    %c32_171 = arith.constant 32 : index
    %126 = vector.load %arg11[%c0_170, %c32_171] : memref<256x72xf32, #tpu.memory_space<vmem>>, vector<256x8xf32>
    tpu.vector_store %arg11[%c0_170, %c32_171], %125 {strides = array<i32>} : memref<256x72xf32, #tpu.memory_space<vmem>>, vector<256x8xf32>,
    %c2_172 = arith.constant 2 : index
    %c4_173 = arith.constant 4 : index
    %c0_174 = arith.constant 0 : index
    %127 = vector.load %arg10[%c2_172, %c4_173, %c0_174] : memref<20x20x8xf32, #tpu.memory_space<vmem>>, vector<16x16x8xf32>
    %128 = vector.shape_cast %127 : vector<16x16x8xf32> to vector<256x8xf32>
    %c0_175 = arith.constant 0 : index
    %c40_176 = arith.constant 40 : index
    %129 = vector.load %arg11[%c0_175, %c40_176] : memref<256x72xf32, #tpu.memory_space<vmem>>, vector<256x8xf32>
    tpu.vector_store %arg11[%c0_175, %c40_176], %128 {strides = array<i32>} : memref<256x72xf32, #tpu.memory_space<vmem>>, vector<256x8xf32>,
    %c4_177 = arith.constant 4 : index
    %c0_178 = arith.constant 0 : index
    %c0_179 = arith.constant 0 : index
    %130 = vector.load %arg10[%c4_177, %c0_178, %c0_179] : memref<20x20x8xf32, #tpu.memory_space<vmem>>, vector<16x16x8xf32>
    %131 = vector.shape_cast %130 : vector<16x16x8xf32> to vector<256x8xf32>
    %c0_180 = arith.constant 0 : index
    %c48_181 = arith.constant 48 : index
    %132 = vector.load %arg11[%c0_180, %c48_181] : memref<256x72xf32, #tpu.memory_space<vmem>>, vector<256x8xf32>
    tpu.vector_store %arg11[%c0_180, %c48_181], %131 {strides = array<i32>} : memref<256x72xf32, #tpu.memory_space<vmem>>, vector<256x8xf32>,
    %c4_182 = arith.constant 4 : index
    %c2_183 = arith.constant 2 : index
    %c0_184 = arith.constant 0 : index
    %133 = vector.load %arg10[%c4_182, %c2_183, %c0_184] : memref<20x20x8xf32, #tpu.memory_space<vmem>>, vector<16x16x8xf32>
    %134 = vector.shape_cast %133 : vector<16x16x8xf32> to vector<256x8xf32>
    %c0_185 = arith.constant 0 : index
    %c56_186 = arith.constant 56 : index
    %135 = vector.load %arg11[%c0_185, %c56_186] : memref<256x72xf32, #tpu.memory_space<vmem>>, vector<256x8xf32>
    tpu.vector_store %arg11[%c0_185, %c56_186], %134 {strides = array<i32>} : memref<256x72xf32, #tpu.memory_space<vmem>>, vector<256x8xf32>,
    %c4_187 = arith.constant 4 : index
    %c4_188 = arith.constant 4 : index
    %c0_189 = arith.constant 0 : index
    %136 = vector.load %arg10[%c4_187, %c4_188, %c0_189] : memref<20x20x8xf32, #tpu.memory_space<vmem>>, vector<16x16x8xf32>
    %137 = vector.shape_cast %136 : vector<16x16x8xf32> to vector<256x8xf32>
    %c0_190 = arith.constant 0 : index
    %c64_191 = arith.constant 64 : index
    %138 = vector.load %arg11[%c0_190, %c64_191] : memref<256x72xf32, #tpu.memory_space<vmem>>, vector<256x8xf32>
    tpu.vector_store %arg11[%c0_190, %c64_191], %137 {strides = array<i32>} : memref<256x72xf32, #tpu.memory_space<vmem>>, vector<256x8xf32>,
    %c0_192 = arith.constant 0 : index
    %c2_193 = arith.constant 2 : index
    %c2_194 = arith.constant 2 : index
    %c0_195 = arith.constant 0 : index
    %139 = vector.load %arg1[%c0_192, %c2_193, %c2_194, %c0_195] : memref<1x20x20x8xf32, #tpu.memory_space<vmem>>, vector<1x16x16x8xf32>
    %140 = vector.shape_cast %139 : vector<1x16x16x8xf32> to vector<16x16x8xf32>
    %141 = vector.shape_cast %140 : vector<16x16x8xf32> to vector<256x8xf32>
    %c0_196 = arith.constant 0 : index
    %c0_197 = arith.constant 0 : index
    %142 = vector.load %arg11[%c0_196, %c0_197] : memref<256x72xf32, #tpu.memory_space<vmem>>, vector<256x72xf32>
    %c0_198 = arith.constant 0 : index
    %c0_199 = arith.constant 0 : index
    %143 = vector.load %arg8[%c0_198, %c0_199] : memref<72x8xf32, #tpu.memory_space<vmem>>, vector<72x8xf32>
    %cst_200 = arith.constant dense<0.000000e+00> : vector<256x8xf32>
    %144 = tpu.matmul %142, %143, %cst_200 {dimension_numbers = #tpu.dot_dimension_numbers<[1], [0], [0], [1], [0, 0, 1, 1], [], []>} : vector<256x72xf32>, vector<72x8xf32>, vector<256x8xf32> -> vector<256x8xf32>
    %145 = arith.addf %144, %141 : vector<256x8xf32>
    %146 = vector.shape_cast %145 : vector<256x8xf32> to vector<16x16x8xf32>
    %c0_201 = arith.constant 0 : index
    %c0_202 = arith.constant 0 : index
    %c0_203 = arith.constant 0 : index
    %c0_204 = arith.constant 0 : index
    %147 = vector.load %arg9[%c0_201, %c0_202, %c0_203, %c0_204] : memref<1x16x16x8xf32, #tpu.memory_space<vmem>>, vector<1x16x16x8xf32>
    %148 = vector.shape_cast %147 : vector<1x16x16x8xf32> to vector<16x16x8xf32>
    %149 = vector.shape_cast %146 : vector<16x16x8xf32> to vector<1x16x16x8xf32>
    tpu.vector_store %arg9[%c0_201, %c0_202, %c0_203, %c0_204], %149 {strides = array<i32>} : memref<1x16x16x8xf32, #tpu.memory_space<vmem>>, vector<1x16x16x8xf32>,
    return
  }
  func.func @transform_0(%arg0: i32) -> (i32, i32, i32, i32) {
    %c0_i32 = arith.constant 0 : i32
    %c0_i32_0 = arith.constant 0 : i32
    %c0_i32_1 = arith.constant 0 : i32
    %c0_i32_2 = arith.constant 0 : i32
    return %arg0, %c0_i32, %c0_i32_0, %c0_i32_1 : i32, i32, i32, i32
  }
  func.func @transform_1(%arg0: i32) -> (i32, i32, i32, i32) {
    %c0_i32 = arith.constant 0 : i32
    %c0_i32_0 = arith.constant 0 : i32
    %c0_i32_1 = arith.constant 0 : i32
    %c0_i32_2 = arith.constant 0 : i32
    return %arg0, %c0_i32, %c0_i32_0, %c0_i32_1 : i32, i32, i32, i32
  }
  func.func @transform_2(%arg0: i32) -> (i32, i32, i32, i32) {
    %c0_i32 = arith.constant 0 : i32
    %c0_i32_0 = arith.constant 0 : i32
    %c0_i32_1 = arith.constant 0 : i32
    %c0_i32_2 = arith.constant 0 : i32
    return %arg0, %c0_i32, %c0_i32_0, %c0_i32_1 : i32, i32, i32, i32
  }
  func.func @transform_3(%arg0: i32) -> (i32, i32, i32, i32) {
    %c0_i32 = arith.constant 0 : i32
    %c0_i32_0 = arith.constant 0 : i32
    %c0_i32_1 = arith.constant 0 : i32
    %c0_i32_2 = arith.constant 0 : i32
    return %arg0, %c0_i32, %c0_i32_0, %c0_i32_1 : i32, i32, i32, i32
  }
  func.func @transform_4(%arg0: i32) -> (i32, i32) {
    %c0_i32 = arith.constant 0 : i32
    %c0_i32_0 = arith.constant 0 : i32
    %c0_i32_1 = arith.constant 0 : i32
    return %c0_i32, %c0_i32_0 : i32, i32
  }
  func.func @transform_5(%arg0: i32) -> (i32, i32) {
    %c0_i32 = arith.constant 0 : i32
    %c0_i32_0 = arith.constant 0 : i32
    %c0_i32_1 = arith.constant 0 : i32
    return %c0_i32, %c0_i32_0 : i32, i32
  }
  func.func @transform_6(%arg0: i32) -> (i32, i32) {
    %c0_i32 = arith.constant 0 : i32
    %c0_i32_0 = arith.constant 0 : i32
    %c0_i32_1 = arith.constant 0 : i32
    return %c0_i32, %c0_i32_0 : i32, i32
  }
  func.func @transform_7(%arg0: i32) -> (i32, i32) {
    %c0_i32 = arith.constant 0 : i32
    %c0_i32_0 = arith.constant 0 : i32
    %c0_i32_1 = arith.constant 0 : i32
    return %c0_i32, %c0_i32_0 : i32, i32
  }
  func.func @transform_8(%arg0: i32) -> (i32, i32, i32, i32) {
    %c0_i32 = arith.constant 0 : i32
    %c0_i32_0 = arith.constant 0 : i32
    %c0_i32_1 = arith.constant 0 : i32
    %c0_i32_2 = arith.constant 0 : i32
    return %arg0, %c0_i32, %c0_i32_0, %c0_i32_1 : i32, i32, i32, i32
  }
}

</mosaic_0001>

<llo_original>
// kernel: disentg_block_forward.4
$region0: #{disentg_block_forward.4}
  #allocation0 [shape = 'u32[]', space=smem, size = 0x4, offset = 0x4, fixed_abs, tag = 'smem constant byte address 0x4 - core index']
  #allocation1 [shape = 'u32[72,128]{1,0:T(1,128)}', space=vmem, size = 0x9000, scoped, tag = 'internal scratch']
  %s0 = inlined_call_operand.vmem [shape: f32[32,512], index: 0, kind: input, shape index: {}]
  %s1 = inlined_call_operand.vmem [shape: f32[4,32], index: 1, kind: input, shape index: {}]
  %s2 = inlined_call_operand.vmem [shape: f32[8,4], index: 2, kind: input, shape index: {}]
  %s3 = inlined_call_operand.vmem [shape: f32[8,512], index: 3, kind: output, shape index: {}]
  %s4 = sld [smem:[#allocation0]]
  $region68: #{disentg_block_forward.4} parent=0
    _
  %s6 = ssub.s32 1, %s4
  %s7 = scalar_select 0, %s6, %s4
  $region1: #{disentg_block_forward.4} parent=0
    #allocation2 [shape = 'u8[65536]{0}', space=vmem, size = 0x10000, scoped, tag = 'input window, operand 0']
    loop: start=0, step=1, limit=4
    $region2: #{disentg_block_forward.4} parent=1 // loop_pre_header
      _
    $region3: #{disentg_block_forward.4} parent=1 // loop_header
      %s9 = sphi 0, %s13
      %p10 = scmp.ge.s32.totalorder %s9, 4
      %s19 = sphi 0, %s21
      %s22 = sphi 0, %s19
      %s23 = sphi 0, %s22
      %s39 = sphi 0, %s23
      %s43 = sphi 0, %s43
      %s45 = sphi 0, %s43
      %s46 = sphi 0, %s45
      %s60 = sphi 0, %s46
      %s64 = sphi 0, %s64
      %s66 = sphi 0, %s64
      %s67 = sphi 0, %s66
      %s81 = sphi 0, %s67
      %s87 = sphi 0, %s89
      %s90 = sphi 0, %s87
      %s91 = sphi 0, %s90
      %s107 = sphi 0, %s91
    $region4: #{disentg_block_forward.4} parent=1 // loop_header_branch
      %12 = sbr.rel (%p10) target = $region8
    $region5: #{disentg_block_forward.4} parent=1 // loop_body
      %s14 = ssub.s32 %s9, 1
      %s15 = ssub.s32 %s9, 2
      %s16 = sadd.s32 %s9, 1
      %s17 = ssub.s32 %s9, %s16
      %p18 = scmp.eq.s32.totalorder %s17, 0
      %s20 = sadd.s32 %s19, 1
      %s21 = scalar_select %p18, %s19, %s20
      %p24 = pneg %p18
      %p25 = scmp.eq.s32.totalorder %s9, 1
      %p26 = por %p24, %p25
      %p27 = scmp.ne.s32.totalorder %s19, %s22
      %p28 = scmp.eq.s32.totalorder %s9, 0
      %p29 = por %p27, %p28
      %p30 = scmp.ne.s32.totalorder %s19, %s22
      %p31 = scmp.eq.s32.totalorder %s14, 1
      %p32 = por %p30, %p31
      %p33 = scmp.ne.s32.totalorder %s22, %s23
      %p34 = scmp.eq.s32.totalorder %s14, 0
      %p35 = por %p33, %p34
      %p36 = scmp.ne.s32.totalorder %s22, %s23
      %p37 = scmp.eq.s32.totalorder %s15, 1
      %p38 = por %p36, %p37
      %p40 = scmp.ne.s32.totalorder %s23, %s39
      %p41 = scmp.eq.s32.totalorder %s15, 0
      %p42 = por %p40, %p41
      %s44 = sadd.s32 %s43, 1
      %p47 = scmp.eq.s32.totalorder %s9, 1
      %p48 = scmp.ne.s32.totalorder %s43, %s45
      %p49 = scmp.eq.s32.totalorder %s9, 0
      %p50 = por %p48, %p49
      %p51 = scmp.ne.s32.totalorder %s43, %s45
      %p52 = scmp.eq.s32.totalorder %s14, 1
      %p53 = por %p51, %p52
      %p54 = scmp.ne.s32.totalorder %s45, %s46
      %p55 = scmp.eq.s32.totalorder %s14, 0
      %p56 = por %p54, %p55
      %p57 = scmp.ne.s32.totalorder %s45, %s46
      %p58 = scmp.eq.s32.totalorder %s15, 1
      %p59 = por %p57, %p58
      %p61 = scmp.ne.s32.totalorder %s46, %s60
      %p62 = scmp.eq.s32.totalorder %s15, 0
      %p63 = por %p61, %p62
      %s65 = sadd.s32 %s64, 1
      %p68 = scmp.eq.s32.totalorder %s9, 1
      %p69 = scmp.ne.s32.totalorder %s64, %s66
      %p70 = scmp.eq.s32.totalorder %s9, 0
      %p71 = por %p69, %p70
      %p72 = scmp.ne.s32.totalorder %s64, %s66
      %p73 = scmp.eq.s32.totalorder %s14, 1
      %p74 = por %p72, %p73
      %p75 = scmp.ne.s32.totalorder %s66, %s67
      %p76 = scmp.eq.s32.totalorder %s14, 0
      %p77 = por %p75, %p76
      %p78 = scmp.ne.s32.totalorder %s66, %s67
      %p79 = scmp.eq.s32.totalorder %s15, 1
      %p80 = por %p78, %p79
      %p82 = scmp.ne.s32.totalorder %s67, %s81
      %p83 = scmp.eq.s32.totalorder %s15, 0
      %p84 = por %p82, %p83
      %s85 = ssub.s32 %s9, %s16
      %p86 = scmp.eq.s32.totalorder %s85, 0
      %s88 = sadd.s32 %s87, 1
      %s89 = scalar_select %p86, %s87, %s88
      %p92 = pneg %p86
      %p93 = scmp.eq.s32.totalorder %s9, 1
      %p94 = por %p92, %p93
      %p95 = scmp.ne.s32.totalorder %s87, %s90
      %p96 = scmp.eq.s32.totalorder %s9, 0
      %p97 = por %p95, %p96
      %p98 = scmp.ne.s32.totalorder %s87, %s90
      %p99 = scmp.eq.s32.totalorder %s14, 1
      %p100 = por %p98, %p99
      %p101 = scmp.ne.s32.totalorder %s90, %s91
      %p102 = scmp.eq.s32.totalorder %s14, 0
      %p103 = por %p101, %p102
      %p104 = scmp.ne.s32.totalorder %s90, %s91
      %p105 = scmp.eq.s32.totalorder %s15, 1
      %p106 = por %p104, %p105
      %p108 = scmp.ne.s32.totalorder %s91, %s107
      %p109 = scmp.eq.s32.totalorder %s15, 0
      %p110 = por %p108, %p109
      %p111 = scmp.le.s32.totalorder 1, %s9
      %p112 = scmp.lt.s32.totalorder %s9, 3
      %p113 = pnand %p111, %p112
      %p114 = pneg %p113
      // Predicated region
      $region9: #{disentg_block_forward.4} parent=5 // pred_check
        _
      $region10: #{disentg_block_forward.4} parent=5 // pred_check_branch
        %116 = sbr.rel (%p113) target = $region12
      $region11: #{disentg_block_forward.4} parent=5 // pred_region
        %s117 = ssub.s32 %s9, 1
        // Predicated region
        $region13: #{disentg_block_forward.4} parent=11 // pred_check
          %p118 = pneg %p56
        $region14: #{disentg_block_forward.4} parent=11 // pred_check_branch
          %120 = sbr.rel (%p118) target = $region16
        $region15: #{disentg_block_forward.4} parent=11 // pred_region
          _
        $region16: #{disentg_block_forward.4} parent=11 // pred_fallthru
          _
        // Predicated region
        $region17: #{disentg_block_forward.4} parent=11 // pred_check
          %p121 = pneg %p77
        $region18: #{disentg_block_forward.4} parent=11 // pred_check_branch
          %123 = sbr.rel (%p121) target = $region20
        $region19: #{disentg_block_forward.4} parent=11 // pred_region
          _
        $region20: #{disentg_block_forward.4} parent=11 // pred_fallthru
          _
      $region12: #{disentg_block_forward.4} parent=5 // pred_fallthru
        _
      %p124 = scmp.lt.s32.totalorder %s9, 2
      // Predicated region
      $region21: #{disentg_block_forward.4} parent=5 // pred_check
        %p125 = pneg %p124
      $region22: #{disentg_block_forward.4} parent=5 // pred_check_branch
        %127 = sbr.rel (%p125) target = $region24
      $region23: #{disentg_block_forward.4} parent=5 // pred_region
        // Predicated region
        $region25: #{disentg_block_forward.4} parent=23 // pred_check
          %p128 = pneg %p29
        $region26: #{disentg_block_forward.4} parent=23 // pred_check_branch
          %130 = sbr.rel (%p128) target = $region28
        $region27: #{disentg_block_forward.4} parent=23 // pred_region
          %s131 = sand.u32 %s19, 1
          %s132 = sand.u32 %s19, 1
          %s133 = smul.addr %s132, 64
          %s134 = scalar_lea.vmem [#allocation2], %s133
          %s135 = smul.u32 2, %s9
          %s136 = smul.addr %s135, 8
          %s137 = scalar_lea.vmem %s0, %s136
          // Predicated region
          $region29: #{disentg_block_forward.4} parent=27 // pred_check
            _
          $region30: #{disentg_block_forward.4} parent=27 // pred_check_branch
            %139 = sbr.rel (0) target = $region32
          $region31: #{disentg_block_forward.4} parent=27 // pred_region
            // Predicated region
            $region33: #{disentg_block_forward.4} parent=31 // pred_check
              _
            $region34: #{disentg_block_forward.4} parent=31 // pred_check_branch
              %141 = sbr.rel (0) target = $region36
            $region35: #{disentg_block_forward.4} parent=31 // pred_region
              loop: start=0, step=1, limit=1
              $region37: #{disentg_block_forward.4} parent=35 // loop_pre_header
                _
              $region38: #{disentg_block_forward.4} parent=35 // loop_header
                %s143 = sphi 0, %s147
                %p144 = scmp.ge.s32.totalorder %s143, 1
                %s148 = sphi %s137, %s137
                %s149 = sphi %s134, %s134
              $region39: #{disentg_block_forward.4} parent=35 // loop_header_branch
                %146 = sbr.rel (%p144) target = $region43
              $region40: #{disentg_block_forward.4} parent=35 // loop_body
                %v150 = vld [vmem:[%s148] sm:$0xff]
                %151 = vst [vmem:[%s149] sm:$0xff] %v150
                %v152 = vld [vmem:[%s148 + $0x8] sm:$0xff]
                %153 = vst [vmem:[%s149 + $0x8] sm:$0xff] %v152
                %v154 = vld [vmem:[%s148 + $0x20] sm:$0xff]
                %155 = vst [vmem:[%s149 + $0x10] sm:$0xff] %v154
                %v156 = vld [vmem:[%s148 + $0x28] sm:$0xff]
                %157 = vst [vmem:[%s149 + $0x18] sm:$0xff] %v156
                %v158 = vld [vmem:[%s148 + $0x40] sm:$0xff]
                %159 = vst [vmem:[%s149 + $0x20] sm:$0xff] %v158
                %v160 = vld [vmem:[%s148 + $0x48] sm:$0xff]
                %161 = vst [vmem:[%s149 + $0x28] sm:$0xff] %v160
                %v162 = vld [vmem:[%s148 + $0x60] sm:$0xff]
                %163 = vst [vmem:[%s149 + $0x30] sm:$0xff] %v162
                %v164 = vld [vmem:[%s148 + $0x68] sm:$0xff]
                %165 = vst [vmem:[%s149 + $0x38] sm:$0xff] %v164
              $region41: #{disentg_block_forward.4} parent=35 // loop_footer
                %s147 = sadd.s32 1, %s143
              $region42: #{disentg_block_forward.4} parent=35 // loop_footer_branch
                %142 = sbr.rel target = $region38
              $region43: #{disentg_block_forward.4} parent=35 // loop_exit
                _
            $region36: #{disentg_block_forward.4} parent=31 // pred_fallthru
              _
            // Predicated region
            $region44: #{disentg_block_forward.4} parent=31 // pred_check
              _
            $region45: #{disentg_block_forward.4} parent=31 // pred_check_branch
              %167 = sbr.rel target = $region47
            $region46: #{disentg_block_forward.4} parent=31 // pred_region
              _
            $region47: #{disentg_block_forward.4} parent=31 // pred_fallthru
              _
          $region32: #{disentg_block_forward.4} parent=27 // pred_fallthru
            _
          %168 = vnop
        $region28: #{disentg_block_forward.4} parent=23 // pred_fallthru
          _
      $region24: #{disentg_block_forward.4} parent=5 // pred_fallthru
        _
      %p169 = scmp.le.s32.totalorder 1, %s9
      %p170 = scmp.lt.s32.totalorder %s9, 3
      %p171 = pnand %p169, %p170
      %p172 = pneg %p171
      // Predicated region
      $region48: #{disentg_block_forward.4} parent=5 // pred_check
        _
      $region49: #{disentg_block_forward.4} parent=5 // pred_check_branch
        %174 = sbr.rel (%p171) target = $region51
      $region50: #{disentg_block_forward.4} parent=5 // pred_region
        %s175 = ssub.s32 %s9, 1
        %s176 = sand.u32 %s22, 1
        %s177 = sand.u32 %s22, 1
        %s178 = smul.addr %s177, 64
        %s179 = scalar_lea.vmem [#allocation2], %s178
        // Predicated region
        $region52: #{disentg_block_forward.4} parent=50 // pred_check
          %p180 = pneg %p35
        $region53: #{disentg_block_forward.4} parent=50 // pred_check_branch
          %182 = sbr.rel (%p180) target = $region55
        $region54: #{disentg_block_forward.4} parent=50 // pred_region
          _
        $region55: #{disentg_block_forward.4} parent=50 // pred_fallthru
          _
        %s183 = sand.u32 %s22, 1
        %s184 = sand.u32 %s22, 1
        %s185 = smul.addr %s184, 64
        %s186 = scalar_lea.vmem [#allocation2], %s185
        %p187 = pneg %p35
        %p188 = pneg %p32
        %p189 = pneg %p56
        %p190 = pneg %p53
        %p191 = pneg %p77
        %p192 = pneg %p74
        %p193 = pneg %p103
        %p194 = pneg %p100
        %s195 = smul.u32 2, %s14
        %p196 = scmp.lt.s32.totalorder %s195, 3
        %s197 = scalar_select %p196, %s195, 3
        %s198 = smul.addr %s197, 8
        %s199 = scalar_lea.vmem %s3, %s198
        %s200 = smul.u32 2, %s14
        %s201 = smul.u32 2, %s14
        %p202 = scmp.lt.s32.totalorder %s201, 3
        %s203 = scalar_select %p202, %s201, 3
        %s204 = smul.addr %s203, 8
        %s205 = scalar_lea.vmem %s3, %s204
        %s206 = smul.u32 2, %s14
        %v207 = vld [vmem:[%s1] sm:$0xf]
        %v208 = vld [vmem:[%s179] sm:$0xff]
        %v209 = vld [vmem:[%s179 + $0x8] sm:$0xff]
        %v210 = vld [vmem:[%s179 + $0x10] sm:$0xff]
        %v211 = vld [vmem:[%s179 + $0x18] sm:$0xff]
        %v212 = vld [vmem:[%s179 + $0x20] sm:$0xff]
        %v213 = vld [vmem:[%s179 + $0x28] sm:$0xff]
        %v214 = vld [vmem:[%s179 + $0x30] sm:$0xff]
        %v215 = vld [vmem:[%s179 + $0x38] sm:$0xff]
        %vm216 = vcmask 261120
        %v218 = vsel %vm216, %v207, 0
        %220 = vmatpush.msra.mxu0 0.0
        %221 = vmatpush.msra.mxu0 0.0
        %222 = vmatpush.msra.mxu0 0.0
        %223 = vmatpush.msra.mxu0 0.0
        %224 = vmatpush.msra.mxu0 0.0
        %225 = vmatpush.msra.mxu0 0.0
        %226 = vmatpush.msra.mxu0 0.0
        %227 = vmatpush.msra.mxu0 0.0
        %228 = vmatpush.msra.mxu0 0.0
        %229 = vmatpush.msra.mxu0 0.0
        %230 = vmatpush.msra.mxu0 0.0
        %231 = vmatpush.msra.mxu0 0.0
        %232 = vmatpush.msra.mxu0 %v214
        %233 = vmatpush.msra.mxu0 %v212
        %234 = vmatpush.msra.mxu0 %v210
        %235 = vmatpush.msra.mxu0 %v208
        %236 = vmatmul.f32.gmra.mxu0 %v218
        %v237 = vpop.f32.mrf.mxu0
        %v238 = vadd.f32 0.0, %v237
        %239 = vdwg.mxu0
        %240 = vmatpush.msra.mxu0 0.0
        %241 = vmatpush.msra.mxu0 0.0
        %242 = vmatpush.msra.mxu0 0.0
        %243 = vmatpush.msra.mxu0 0.0
        %244 = vmatpush.msra.mxu0 0.0
        %245 = vmatpush.msra.mxu0 0.0
        %246 = vmatpush.msra.mxu0 0.0
        %247 = vmatpush.msra.mxu0 0.0
        %248 = vmatpush.msra.mxu0 0.0
        %249 = vmatpush.msra.mxu0 0.0
        %250 = vmatpush.msra.mxu0 0.0
        %251 = vmatpush.msra.mxu0 0.0
        %252 = vmatpush.msra.mxu0 %v215
        %253 = vmatpush.msra.mxu0 %v213
        %254 = vmatpush.msra.mxu0 %v211
        %255 = vmatpush.msra.mxu0 %v209
        %256 = vmatmul.f32.gmra.mxu0 %v218
        %v257 = vpop.f32.mrf.mxu0
        %v258 = vadd.f32 0.0, %v257
        %259 = vdwg.mxu0
        %vm260 = vcmp.ge.f32.partialorder %v238, 0.0
        %vm261 = vcmp.ge.f32.partialorder %v258, 0.0
        %v262 = vmul.f32 %v238, 0.1
        %v263 = vmul.f32 %v258, 0.1
        %v264 = vsel %vm260, %v238, %v262
        %v265 = vsel %vm261, %v258, %v263
        %v266 = vld [vmem:[%s2] sm:$0xff]
        %vm267 = vcmask 31744
        %v269 = vsel %vm267, %v266, 0
        %vm271 = vcmask 1043456
        %v273 = vsel %vm271, %v264, 0
        %v276 = vsel %vm271, %v265, 0
        %278 = vmatpush.msra.mxu0 0.0
        %279 = vmatpush.msra.mxu0 0.0
        %280 = vmatpush.msra.mxu0 0.0
        %281 = vmatpush.msra.mxu0 0.0
        %282 = vmatpush.msra.mxu0 0.0
        %283 = vmatpush.msra.mxu0 0.0
        %284 = vmatpush.msra.mxu0 0.0
        %285 = vmatpush.msra.mxu0 0.0
        %286 = vmatpush.msra.mxu0 0.0
        %287 = vmatpush.msra.mxu0 0.0
        %288 = vmatpush.msra.mxu0 0.0
        %289 = vmatpush.msra.mxu0 0.0
        %290 = vmatpush.msra.mxu0 0.0
        %291 = vmatpush.msra.mxu0 0.0
        %292 = vmatpush.msra.mxu0 0.0
        %293 = vmatpush.msra.mxu0 %v273
        %294 = vmatmul.f32.gmra.mxu0 %v269
        %v295 = vpop.f32.mrf.mxu0
        %v296 = vadd.f32 0.0, %v295
        %297 = vdwg.mxu0
        %298 = vmatpush.msra.mxu0 0.0
        %299 = vmatpush.msra.mxu0 0.0
        %300 = vmatpush.msra.mxu0 0.0
        %301 = vmatpush.msra.mxu0 0.0
        %302 = vmatpush.msra.mxu0 0.0
        %303 = vmatpush.msra.mxu0 0.0
        %304 = vmatpush.msra.mxu0 0.0
        %305 = vmatpush.msra.mxu0 0.0
        %306 = vmatpush.msra.mxu0 0.0
        %307 = vmatpush.msra.mxu0 0.0
        %308 = vmatpush.msra.mxu0 0.0
        %309 = vmatpush.msra.mxu0 0.0
        %310 = vmatpush.msra.mxu0 0.0
        %311 = vmatpush.msra.mxu0 0.0
        %312 = vmatpush.msra.mxu0 0.0
        %313 = vmatpush.msra.mxu0 %v276
        %314 = vmatmul.f32.gmra.mxu0 %v269
        %v315 = vpop.f32.mrf.mxu0
        %v316 = vadd.f32 0.0, %v315
        %317 = vdwg.mxu0
        %vm318 = vcmp.ge.f32.partialorder %v296, 0.0
        %vm319 = vcmp.ge.f32.partialorder %v316, 0.0
        %v320 = vmul.f32 %v296, 0.1
        %v321 = vmul.f32 %v316, 0.1
        %v322 = vsel %vm318, %v296, %v320
        %v323 = vsel %vm319, %v316, %v321
        %324 = vst [vmem:[%s205] sm:$0xff] %v322
        %325 = vst [vmem:[%s205 + $0x8] sm:$0xff] %v323
        %s326 = smul.u32 2, %s14
        %p327 = scmp.lt.s32.totalorder %s326, 3
        %s328 = scalar_select %p327, %s326, 3
        %s329 = smul.addr %s328, 8
        %s330 = scalar_lea.vmem %s3, %s329
        // Predicated region
        $region56: #{disentg_block_forward.4} parent=50 // pred_check
          %p331 = pneg %p100
        $region57: #{disentg_block_forward.4} parent=50 // pred_check_branch
          %333 = sbr.rel (%p331) target = $region59
        $region58: #{disentg_block_forward.4} parent=50 // pred_region
          %s334 = smul.u32 2, %s14
        $region59: #{disentg_block_forward.4} parent=50 // pred_fallthru
          _
      $region51: #{disentg_block_forward.4} parent=5 // pred_fallthru
        _
      %p335 = scmp.le.s32.totalorder 2, %s9
      // Predicated region
      $region60: #{disentg_block_forward.4} parent=5 // pred_check
        %p336 = pneg %p335
      $region61: #{disentg_block_forward.4} parent=5 // pred_check_branch
        %338 = sbr.rel (%p336) target = $region63
      $region62: #{disentg_block_forward.4} parent=5 // pred_region
        %s339 = ssub.s32 %s9, 2
        // Predicated region
        $region64: #{disentg_block_forward.4} parent=62 // pred_check
          %p340 = pneg %p106
        $region65: #{disentg_block_forward.4} parent=62 // pred_check_branch
          %342 = sbr.rel (%p340) target = $region67
        $region66: #{disentg_block_forward.4} parent=62 // pred_region
          %s343 = smul.u32 2, %s15
          %p344 = scmp.lt.s32.totalorder %s343, 3
          %s345 = scalar_select %p344, %s343, 3
          %s346 = smul.addr %s345, 8
          %s347 = scalar_lea.vmem %s3, %s346
        $region67: #{disentg_block_forward.4} parent=62 // pred_fallthru
          _
      $region63: #{disentg_block_forward.4} parent=5 // pred_fallthru
        _
    $region6: #{disentg_block_forward.4} parent=1 // loop_footer
      %s13 = sadd.s32 1, %s9
    $region7: #{disentg_block_forward.4} parent=1 // loop_footer_branch
      %8 = sbr.rel target = $region3
    $region8: #{disentg_block_forward.4} parent=1 // loop_exit
      _

// kernel: disentg_block_forward.3
$region0: #{disentg_block_forward.3}
  #allocation0 [shape = 'u32[]', space=smem, size = 0x4, offset = 0x4, fixed_abs, tag = 'smem constant byte address 0x4 - core index']
  #allocation1 [shape = 'u32[72,128]{1,0:T(1,128)}', space=vmem, size = 0x9000, scoped, tag = 'internal scratch']
  %s0 = inlined_call_operand.vmem [shape: f32[32,128], index: 0, kind: input, shape index: {}]
  %s1 = inlined_call_operand.vmem [shape: f32[2,32], index: 1, kind: input, shape index: {}]
  %s2 = inlined_call_operand.vmem [shape: f32[8,2], index: 2, kind: input, shape index: {}]
  %s3 = inlined_call_operand.vmem [shape: f32[8,128], index: 3, kind: output, shape index: {}]
  %s4 = sld [smem:[#allocation0]]
  $region22: #{disentg_block_forward.3} parent=0
    _
  %s6 = ssub.s32 1, %s4
  %s7 = scalar_select 0, %s6, %s4
  // Predicated region
  $region2: #{disentg_block_forward.3} parent=0 // pred_check
    _
  $region3: #{disentg_block_forward.3} parent=0 // pred_check_branch
    %9 = sbr.rel (0) target = $region5
  $region4: #{disentg_block_forward.3} parent=0 // pred_region
    _
  $region5: #{disentg_block_forward.3} parent=0 // pred_fallthru
    _
  // Predicated region
  $region6: #{disentg_block_forward.3} parent=0 // pred_check
    _
  $region7: #{disentg_block_forward.3} parent=0 // pred_check_branch
    %11 = sbr.rel (0) target = $region9
  $region8: #{disentg_block_forward.3} parent=0 // pred_region
    _
  $region9: #{disentg_block_forward.3} parent=0 // pred_fallthru
    _
  // Predicated region
  $region10: #{disentg_block_forward.3} parent=0 // pred_check
    _
  $region11: #{disentg_block_forward.3} parent=0 // pred_check_branch
    %13 = sbr.rel (0) target = $region13
  $region12: #{disentg_block_forward.3} parent=0 // pred_region
    _
  $region13: #{disentg_block_forward.3} parent=0 // pred_fallthru
    _
  %v14 = vld [vmem:[%s1] sm:$0x3]
  %v15 = vld [vmem:[%s0] sm:$0xff]
  %v16 = vld [vmem:[%s0 + $0x8] sm:$0xff]
  %v17 = vld [vmem:[%s0 + $0x10] sm:$0xff]
  %v18 = vld [vmem:[%s0 + $0x18] sm:$0xff]
  %vm19 = vcmask 261120
  %v21 = vsel %vm19, %v14, 0
  %23 = vmatpush.msra.mxu0 0.0
  %24 = vmatpush.msra.mxu0 0.0
  %25 = vmatpush.msra.mxu0 0.0
  %26 = vmatpush.msra.mxu0 0.0
  %27 = vmatpush.msra.mxu0 0.0
  %28 = vmatpush.msra.mxu0 0.0
  %29 = vmatpush.msra.mxu0 0.0
  %30 = vmatpush.msra.mxu0 0.0
  %31 = vmatpush.msra.mxu0 0.0
  %32 = vmatpush.msra.mxu0 0.0
  %33 = vmatpush.msra.mxu0 0.0
  %34 = vmatpush.msra.mxu0 0.0
  %35 = vmatpush.msra.mxu0 %v18
  %36 = vmatpush.msra.mxu0 %v17
  %37 = vmatpush.msra.mxu0 %v16
  %38 = vmatpush.msra.mxu0 %v15
  %39 = vmatmul.f32.gmra.mxu0 %v21
  %v40 = vpop.f32.mrf.mxu0
  %v41 = vadd.f32 0.0, %v40
  %42 = vdwg.mxu0
  %vm43 = vcmp.ge.f32.partialorder %v41, 0.0
  %v44 = vmul.f32 %v41, 0.1
  %v45 = vsel %vm43, %v41, %v44
  %v46 = vld [vmem:[%s2] sm:$0xff]
  %vm47 = vcmask 15360
  %v49 = vsel %vm47, %v46, 0
  %vm51 = vcmask 1041408
  %v53 = vsel %vm51, %v45, 0
  %55 = vmatpush.msra.mxu0 0.0
  %56 = vmatpush.msra.mxu0 0.0
  %57 = vmatpush.msra.mxu0 0.0
  %58 = vmatpush.msra.mxu0 0.0
  %59 = vmatpush.msra.mxu0 0.0
  %60 = vmatpush.msra.mxu0 0.0
  %61 = vmatpush.msra.mxu0 0.0
  %62 = vmatpush.msra.mxu0 0.0
  %63 = vmatpush.msra.mxu0 0.0
  %64 = vmatpush.msra.mxu0 0.0
  %65 = vmatpush.msra.mxu0 0.0
  %66 = vmatpush.msra.mxu0 0.0
  %67 = vmatpush.msra.mxu0 0.0
  %68 = vmatpush.msra.mxu0 0.0
  %69 = vmatpush.msra.mxu0 0.0
  %70 = vmatpush.msra.mxu0 %v53
  %71 = vmatmul.f32.gmra.mxu0 %v49
  %v72 = vpop.f32.mrf.mxu0
  %v73 = vadd.f32 0.0, %v72
  %74 = vdwg.mxu0
  %vm75 = vcmp.ge.f32.partialorder %v73, 0.0
  %v76 = vmul.f32 %v73, 0.1
  %v77 = vsel %vm75, %v73, %v76
  %78 = vst [vmem:[%s3] sm:$0xff] %v77
  // Predicated region
  $region14: #{disentg_block_forward.3} parent=0 // pred_check
    _
  $region15: #{disentg_block_forward.3} parent=0 // pred_check_branch
    %80 = sbr.rel (0) target = $region17
  $region16: #{disentg_block_forward.3} parent=0 // pred_region
    _
  $region17: #{disentg_block_forward.3} parent=0 // pred_fallthru
    _
  // Predicated region
  $region18: #{disentg_block_forward.3} parent=0 // pred_check
    _
  $region19: #{disentg_block_forward.3} parent=0 // pred_check_branch
    %82 = sbr.rel (0) target = $region21
  $region20: #{disentg_block_forward.3} parent=0 // pred_region
    _
  $region21: #{disentg_block_forward.3} parent=0 // pred_fallthru
    _

// kernel: disentg_block_forward.5
$region0: #{disentg_block_forward.5}
  #allocation0 [shape = 'u32[]', space=smem, size = 0x4, offset = 0x4, fixed_abs, tag = 'smem constant byte address 0x4 - core index']
  #allocation1 [shape = 'u32[72,128]{1,0:T(1,128)}', space=vmem, size = 0x9000, scoped, tag = 'internal scratch']
  #allocation2 [shape = 'f32[20,20,8]{2,1,0:T(8,128)}', space=vmem, size = 0x3c000, scoped, tag = 'scratch operand']
  #allocation3 [shape = 'f32[256,72]{1,0:T(8,128)}', space=vmem, size = 0x20000, scoped, tag = 'scratch operand']
  %s0 = inlined_call_operand.vmem [shape: f32[2,20,20,8], index: 0, kind: input, shape index: {}]
  %s1 = inlined_call_operand.vmem [shape: f32[2,16,16,2], index: 1, kind: input, shape index: {}]
  %s2 = inlined_call_operand.vmem [shape: f32[2,16,16,4], index: 2, kind: input, shape index: {}]
  %s3 = inlined_call_operand.vmem [shape: f32[2,16,16,4], index: 3, kind: input, shape index: {}]
  %s4 = inlined_call_operand.vmem [shape: f32[72,8], index: 4, kind: input, shape index: {}]
  %s5 = inlined_call_operand.vmem [shape: f32[72,8], index: 5, kind: input, shape index: {}]
  %s6 = inlined_call_operand.vmem [shape: f32[18,8], index: 6, kind: input, shape index: {}]
  %s7 = inlined_call_operand.vmem [shape: f32[72,8], index: 7, kind: input, shape index: {}]
  %s8 = inlined_call_operand.vmem [shape: f32[2,16,16,8], index: 8, kind: output, shape index: {}]
  %s9 = sld [smem:[#allocation0]]
  $region65: #{disentg_block_forward.5} parent=0
    _
  %s11 = ssub.s32 1, %s9
  %s12 = scalar_select 0, %s11, %s9
  loop: start=0, step=1, limit=4
  $region2: #{disentg_block_forward.5} parent=0 // loop_pre_header
    _
  $region3: #{disentg_block_forward.5} parent=0 // loop_header
    %s14 = sphi 0, %s18
    %p15 = scmp.ge.s32.totalorder %s14, 4
    %s24 = sphi 0, %s26
    %s27 = sphi 0, %s24
    %s28 = sphi 0, %s27
    %s44 = sphi 0, %s28
    %s50 = sphi 0, %s52
    %s53 = sphi 0, %s50
    %s54 = sphi 0, %s53
    %s70 = sphi 0, %s54
    %s76 = sphi 0, %s78
    %s79 = sphi 0, %s76
    %s80 = sphi 0, %s79
    %s96 = sphi 0, %s80
    %s102 = sphi 0, %s104
    %s105 = sphi 0, %s102
    %s106 = sphi 0, %s105
    %s122 = sphi 0, %s106
    %s126 = sphi 0, %s126
    %s128 = sphi 0, %s126
    %s129 = sphi 0, %s128
    %s143 = sphi 0, %s129
    %s147 = sphi 0, %s147
    %s149 = sphi 0, %s147
    %s150 = sphi 0, %s149
    %s164 = sphi 0, %s150
    %s168 = sphi 0, %s168
    %s170 = sphi 0, %s168
    %s171 = sphi 0, %s170
    %s185 = sphi 0, %s171
    %s189 = sphi 0, %s189
    %s191 = sphi 0, %s189
    %s192 = sphi 0, %s191
    %s206 = sphi 0, %s192
    %s212 = sphi 0, %s214
    %s215 = sphi 0, %s212
    %s216 = sphi 0, %s215
    %s232 = sphi 0, %s216
  $region4: #{disentg_block_forward.5} parent=0 // loop_header_branch
    %17 = sbr.rel (%p15) target = $region8
  $region5: #{disentg_block_forward.5} parent=0 // loop_body
    %s19 = ssub.s32 %s14, 1
    %s20 = ssub.s32 %s14, 2
    %s21 = sadd.s32 %s14, 1
    %s22 = ssub.s32 %s14, %s21
    %p23 = scmp.eq.s32.totalorder %s22, 0
    %s25 = sadd.s32 %s24, 1
    %s26 = scalar_select %p23, %s24, %s25
    %p29 = pneg %p23
    %p30 = scmp.eq.s32.totalorder %s14, 1
    %p31 = por %p29, %p30
    %p32 = scmp.ne.s32.totalorder %s24, %s27
    %p33 = scmp.eq.s32.totalorder %s14, 0
    %p34 = por %p32, %p33
    %p35 = scmp.ne.s32.totalorder %s24, %s27
    %p36 = scmp.eq.s32.totalorder %s19, 1
    %p37 = por %p35, %p36
    %p38 = scmp.ne.s32.totalorder %s27, %s28
    %p39 = scmp.eq.s32.totalorder %s19, 0
    %p40 = por %p38, %p39
    %p41 = scmp.ne.s32.totalorder %s27, %s28
    %p42 = scmp.eq.s32.totalorder %s20, 1
    %p43 = por %p41, %p42
    %p45 = scmp.ne.s32.totalorder %s28, %s44
    %p46 = scmp.eq.s32.totalorder %s20, 0
    %p47 = por %p45, %p46
    %s48 = ssub.s32 %s14, %s21
    %p49 = scmp.eq.s32.totalorder %s48, 0
    %s51 = sadd.s32 %s50, 1
    %s52 = scalar_select %p49, %s50, %s51
    %p55 = pneg %p49
    %p56 = scmp.eq.s32.totalorder %s14, 1
    %p57 = por %p55, %p56
    %p58 = scmp.ne.s32.totalorder %s50, %s53
    %p59 = scmp.eq.s32.totalorder %s14, 0
    %p60 = por %p58, %p59
    %p61 = scmp.ne.s32.totalorder %s50, %s53
    %p62 = scmp.eq.s32.totalorder %s19, 1
    %p63 = por %p61, %p62
    %p64 = scmp.ne.s32.totalorder %s53, %s54
    %p65 = scmp.eq.s32.totalorder %s19, 0
    %p66 = por %p64, %p65
    %p67 = scmp.ne.s32.totalorder %s53, %s54
    %p68 = scmp.eq.s32.totalorder %s20, 1
    %p69 = por %p67, %p68
    %p71 = scmp.ne.s32.totalorder %s54, %s70
    %p72 = scmp.eq.s32.totalorder %s20, 0
    %p73 = por %p71, %p72
    %s74 = ssub.s32 %s14, %s21
    %p75 = scmp.eq.s32.totalorder %s74, 0
    %s77 = sadd.s32 %s76, 1
    %s78 = scalar_select %p75, %s76, %s77
    %p81 = pneg %p75
    %p82 = scmp.eq.s32.totalorder %s14, 1
    %p83 = por %p81, %p82
    %p84 = scmp.ne.s32.totalorder %s76, %s79
    %p85 = scmp.eq.s32.totalorder %s14, 0
    %p86 = por %p84, %p85
    %p87 = scmp.ne.s32.totalorder %s76, %s79
    %p88 = scmp.eq.s32.totalorder %s19, 1
    %p89 = por %p87, %p88
    %p90 = scmp.ne.s32.totalorder %s79, %s80
    %p91 = scmp.eq.s32.totalorder %s19, 0
    %p92 = por %p90, %p91
    %p93 = scmp.ne.s32.totalorder %s79, %s80
    %p94 = scmp.eq.s32.totalorder %s20, 1
    %p95 = por %p93, %p94
    %p97 = scmp.ne.s32.totalorder %s80, %s96
    %p98 = scmp.eq.s32.totalorder %s20, 0
    %p99 = por %p97, %p98
    %s100 = ssub.s32 %s14, %s21
    %p101 = scmp.eq.s32.totalorder %s100, 0
    %s103 = sadd.s32 %s102, 1
    %s104 = scalar_select %p101, %s102, %s103
    %p107 = pneg %p101
    %p108 = scmp.eq.s32.totalorder %s14, 1
    %p109 = por %p107, %p108
    %p110 = scmp.ne.s32.totalorder %s102, %s105
    %p111 = scmp.eq.s32.totalorder %s14, 0
    %p112 = por %p110, %p111
    %p113 = scmp.ne.s32.totalorder %s102, %s105
    %p114 = scmp.eq.s32.totalorder %s19, 1
    %p115 = por %p113, %p114
    %p116 = scmp.ne.s32.totalorder %s105, %s106
    %p117 = scmp.eq.s32.totalorder %s19, 0
    %p118 = por %p116, %p117
    %p119 = scmp.ne.s32.totalorder %s105, %s106
    %p120 = scmp.eq.s32.totalorder %s20, 1
    %p121 = por %p119, %p120
    %p123 = scmp.ne.s32.totalorder %s106, %s122
    %p124 = scmp.eq.s32.totalorder %s20, 0
    %p125 = por %p123, %p124
    %s127 = sadd.s32 %s126, 1
    %p130 = scmp.eq.s32.totalorder %s14, 1
    %p131 = scmp.ne.s32.totalorder %s126, %s128
    %p132 = scmp.eq.s32.totalorder %s14, 0
    %p133 = por %p131, %p132
    %p134 = scmp.ne.s32.totalorder %s126, %s128
    %p135 = scmp.eq.s32.totalorder %s19, 1
    %p136 = por %p134, %p135
    %p137 = scmp.ne.s32.totalorder %s128, %s129
    %p138 = scmp.eq.s32.totalorder %s19, 0
    %p139 = por %p137, %p138
    %p140 = scmp.ne.s32.totalorder %s128, %s129
    %p141 = scmp.eq.s32.totalorder %s20, 1
    %p142 = por %p140, %p141
    %p144 = scmp.ne.s32.totalorder %s129, %s143
    %p145 = scmp.eq.s32.totalorder %s20, 0
    %p146 = por %p144, %p145
    %s148 = sadd.s32 %s147, 1
    %p151 = scmp.eq.s32.totalorder %s14, 1
    %p152 = scmp.ne.s32.totalorder %s147, %s149
    %p153 = scmp.eq.s32.totalorder %s14, 0
    %p154 = por %p152, %p153
    %p155 = scmp.ne.s32.totalorder %s147, %s149
    %p156 = scmp.eq.s32.totalorder %s19, 1
    %p157 = por %p155, %p156
    %p158 = scmp.ne.s32.totalorder %s149, %s150
    %p159 = scmp.eq.s32.totalorder %s19, 0
    %p160 = por %p158, %p159
    %p161 = scmp.ne.s32.totalorder %s149, %s150
    %p162 = scmp.eq.s32.totalorder %s20, 1
    %p163 = por %p161, %p162
    %p165 = scmp.ne.s32.totalorder %s150, %s164
    %p166 = scmp.eq.s32.totalorder %s20, 0
    %p167 = por %p165, %p166
    %s169 = sadd.s32 %s168, 1
    %p172 = scmp.eq.s32.totalorder %s14, 1
    %p173 = scmp.ne.s32.totalorder %s168, %s170
    %p174 = scmp.eq.s32.totalorder %s14, 0
    %p175 = por %p173, %p174
    %p176 = scmp.ne.s32.totalorder %s168, %s170
    %p177 = scmp.eq.s32.totalorder %s19, 1
    %p178 = por %p176, %p177
    %p179 = scmp.ne.s32.totalorder %s170, %s171
    %p180 = scmp.eq.s32.totalorder %s19, 0
    %p181 = por %p179, %p180
    %p182 = scmp.ne.s32.totalorder %s170, %s171
    %p183 = scmp.eq.s32.totalorder %s20, 1
    %p184 = por %p182, %p183
    %p186 = scmp.ne.s32.totalorder %s171, %s185
    %p187 = scmp.eq.s32.totalorder %s20, 0
    %p188 = por %p186, %p187
    %s190 = sadd.s32 %s189, 1
    %p193 = scmp.eq.s32.totalorder %s14, 1
    %p194 = scmp.ne.s32.totalorder %s189, %s191
    %p195 = scmp.eq.s32.totalorder %s14, 0
    %p196 = por %p194, %p195
    %p197 = scmp.ne.s32.totalorder %s189, %s191
    %p198 = scmp.eq.s32.totalorder %s19, 1
    %p199 = por %p197, %p198
    %p200 = scmp.ne.s32.totalorder %s191, %s192
    %p201 = scmp.eq.s32.totalorder %s19, 0
    %p202 = por %p200, %p201
    %p203 = scmp.ne.s32.totalorder %s191, %s192
    %p204 = scmp.eq.s32.totalorder %s20, 1
    %p205 = por %p203, %p204
    %p207 = scmp.ne.s32.totalorder %s192, %s206
    %p208 = scmp.eq.s32.totalorder %s20, 0
    %p209 = por %p207, %p208
    %s210 = ssub.s32 %s14, %s21
    %p211 = scmp.eq.s32.totalorder %s210, 0
    %s213 = sadd.s32 %s212, 1
    %s214 = scalar_select %p211, %s212, %s213
    %p217 = pneg %p211
    %p218 = scmp.eq.s32.totalorder %s14, 1
    %p219 = por %p217, %p218
    %p220 = scmp.ne.s32.totalorder %s212, %s215
    %p221 = scmp.eq.s32.totalorder %s14, 0
    %p222 = por %p220, %p221
    %p223 = scmp.ne.s32.totalorder %s212, %s215
    %p224 = scmp.eq.s32.totalorder %s19, 1
    %p225 = por %p223, %p224
    %p226 = scmp.ne.s32.totalorder %s215, %s216
    %p227 = scmp.eq.s32.totalorder %s19, 0
    %p228 = por %p226, %p227
    %p229 = scmp.ne.s32.totalorder %s215, %s216
    %p230 = scmp.eq.s32.totalorder %s20, 1
    %p231 = por %p229, %p230
    %p233 = scmp.ne.s32.totalorder %s216, %s232
    %p234 = scmp.eq.s32.totalorder %s20, 0
    %p235 = por %p233, %p234
    %p236 = scmp.le.s32.totalorder 1, %s14
    %p237 = scmp.lt.s32.totalorder %s14, 3
    %p238 = pnand %p236, %p237
    %p239 = pneg %p238
    // Predicated region
    $region9: #{disentg_block_forward.5} parent=5 // pred_check
      _
    $region10: #{disentg_block_forward.5} parent=5 // pred_check_branch
      %241 = sbr.rel (%p238) target = $region12
    $region11: #{disentg_block_forward.5} parent=5 // pred_region
      %s242 = ssub.s32 %s14, 1
      // Predicated region
      $region13: #{disentg_block_forward.5} parent=11 // pred_check
        %p243 = pneg %p139
      $region14: #{disentg_block_forward.5} parent=11 // pred_check_branch
        %245 = sbr.rel (%p243) target = $region16
      $region15: #{disentg_block_forward.5} parent=11 // pred_region
        _
      $region16: #{disentg_block_forward.5} parent=11 // pred_fallthru
        _
      // Predicated region
      $region17: #{disentg_block_forward.5} parent=11 // pred_check
        %p246 = pneg %p160
      $region18: #{disentg_block_forward.5} parent=11 // pred_check_branch
        %248 = sbr.rel (%p246) target = $region20
      $region19: #{disentg_block_forward.5} parent=11 // pred_region
        _
      $region20: #{disentg_block_forward.5} parent=11 // pred_fallthru
        _
      // Predicated region
      $region21: #{disentg_block_forward.5} parent=11 // pred_check
        %p249 = pneg %p181
      $region22: #{disentg_block_forward.5} parent=11 // pred_check_branch
        %251 = sbr.rel (%p249) target = $region24
      $region23: #{disentg_block_forward.5} parent=11 // pred_region
        _
      $region24: #{disentg_block_forward.5} parent=11 // pred_fallthru
        _
      // Predicated region
      $region25: #{disentg_block_forward.5} parent=11 // pred_check
        %p252 = pneg %p202
      $region26: #{disentg_block_forward.5} parent=11 // pred_check_branch
        %254 = sbr.rel (%p252) target = $region28
      $region27: #{disentg_block_forward.5} parent=11 // pred_region
        _
      $region28: #{disentg_block_forward.5} parent=11 // pred_fallthru
        _
    $region12: #{disentg_block_forward.5} parent=5 // pred_fallthru
      _
    %p255 = scmp.lt.s32.totalorder %s14, 2
    // Predicated region
    $region29: #{disentg_block_forward.5} parent=5 // pred_check
      %p256 = pneg %p255
    $region30: #{disentg_block_forward.5} parent=5 // pred_check_branch
      %258 = sbr.rel (%p256) target = $region32
    $region31: #{disentg_block_forward.5} parent=5 // pred_region
      // Predicated region
      $region33: #{disentg_block_forward.5} parent=31 // pred_check
        %p259 = pneg %p34
      $region34: #{disentg_block_forward.5} parent=31 // pred_check_branch
        %261 = sbr.rel (%p259) target = $region36
      $region35: #{disentg_block_forward.5} parent=31 // pred_region
        %p262 = scmp.lt.s32.totalorder %s14, 1
        %s263 = scalar_select %p262, %s14, 1
        %s264 = smul.addr %s263, 60
        %s265 = smul.addr %s264, 8
        %s266 = scalar_lea.vmem %s0, %s265
      $region36: #{disentg_block_forward.5} parent=31 // pred_fallthru
        _
      // Predicated region
      $region37: #{disentg_block_forward.5} parent=31 // pred_check
        %p267 = pneg %p60
      $region38: #{disentg_block_forward.5} parent=31 // pred_check_branch
        %269 = sbr.rel (%p267) target = $region40
      $region39: #{disentg_block_forward.5} parent=31 // pred_region
        %p270 = scmp.lt.s32.totalorder %s14, 1
        %s271 = scalar_select %p270, %s14, 1
        %s272 = smul.addr %s271, 32
        %s273 = smul.addr %s272, 8
        %s274 = scalar_lea.vmem %s1, %s273
      $region40: #{disentg_block_forward.5} parent=31 // pred_fallthru
        _
      // Predicated region
      $region41: #{disentg_block_forward.5} parent=31 // pred_check
        %p275 = pneg %p86
      $region42: #{disentg_block_forward.5} parent=31 // pred_check_branch
        %277 = sbr.rel (%p275) target = $region44
      $region43: #{disentg_block_forward.5} parent=31 // pred_region
        %p278 = scmp.lt.s32.totalorder %s14, 1
        %s279 = scalar_select %p278, %s14, 1
        %s280 = smul.addr %s279, 32
        %s281 = smul.addr %s280, 8
        %s282 = scalar_lea.vmem %s2, %s281
      $region44: #{disentg_block_forward.5} parent=31 // pred_fallthru
        _
      // Predicated region
      $region45: #{disentg_block_forward.5} parent=31 // pred_check
        %p283 = pneg %p112
      $region46: #{disentg_block_forward.5} parent=31 // pred_check_branch
        %285 = sbr.rel (%p283) target = $region48
      $region47: #{disentg_block_forward.5} parent=31 // pred_region
        %p286 = scmp.lt.s32.totalorder %s14, 1
        %s287 = scalar_select %p286, %s14, 1
        %s288 = smul.addr %s287, 32
        %s289 = smul.addr %s288, 8
        %s290 = scalar_lea.vmem %s3, %s289
      $region48: #{disentg_block_forward.5} parent=31 // pred_fallthru
        _
    $region32: #{disentg_block_forward.5} parent=5 // pred_fallthru
      _
    %p291 = scmp.le.s32.totalorder 1, %s14
    %p292 = scmp.lt.s32.totalorder %s14, 3
    %p293 = pnand %p291, %p292
    %p294 = pneg %p293
    // Predicated region
    $region49: #{disentg_block_forward.5} parent=5 // pred_check
      _
    $region50: #{disentg_block_forward.5} parent=5 // pred_check_branch
      %296 = sbr.rel (%p293) target = $region52
    $region51: #{disentg_block_forward.5} parent=5 // pred_region
      %s297 = ssub.s32 %s14, 1
      %p298 = scmp.lt.s32.totalorder %s19, 1
      %s299 = scalar_select %p298, %s19, 1
      %s300 = smul.addr %s299, 60
      %s301 = smul.addr %s300, 8
      %s302 = scalar_lea.vmem %s0, %s301
      %p303 = pneg %p40
      %p304 = pneg %p37
      %p305 = scmp.lt.s32.totalorder %s19, 1
      %s306 = scalar_select %p305, %s19, 1
      %s307 = smul.addr %s306, 32
      %s308 = smul.addr %s307, 8
      %s309 = scalar_lea.vmem %s1, %s308
      %p310 = pneg %p66
      %p311 = pneg %p63
      %p312 = scmp.lt.s32.totalorder %s19, 1
      %s313 = scalar_select %p312, %s19, 1
      %s314 = smul.addr %s313, 32
      %s315 = smul.addr %s314, 8
      %s316 = scalar_lea.vmem %s2, %s315
      %p317 = pneg %p92
      %p318 = pneg %p89
      %p319 = scmp.lt.s32.totalorder %s19, 1
      %s320 = scalar_select %p319, %s19, 1
      %s321 = smul.addr %s320, 32
      %s322 = smul.addr %s321, 8
      %s323 = scalar_lea.vmem %s3, %s322
      %p324 = pneg %p118
      %p325 = pneg %p115
      %p326 = pneg %p139
      %p327 = pneg %p136
      %p328 = pneg %p160
      %p329 = pneg %p157
      %p330 = pneg %p181
      %p331 = pneg %p178
      %p332 = pneg %p202
      %p333 = pneg %p199
      %p334 = pneg %p228
      %p335 = pneg %p225
      %p336 = scmp.lt.s32.totalorder %s19, 1
      %s337 = scalar_select %p336, %s19, 1
      %s338 = smul.addr %s337, 32
      %s339 = smul.addr %s338, 8
      %s340 = scalar_lea.vmem %s8, %s339
      %p341 = scmp.lt.s32.totalorder %s19, 1
      %s342 = scalar_select %p341, %s19, 1
      %s343 = smul.addr %s342, 60
      %s344 = smul.addr %s343, 8
      %s345 = scalar_lea.vmem %s0, %s344
      %p346 = scmp.lt.s32.totalorder %s19, 1
      %s347 = scalar_select %p346, %s19, 1
      %s348 = smul.addr %s347, 32
      %s349 = smul.addr %s348, 8
      %s350 = scalar_lea.vmem %s1, %s349
      %p351 = scmp.lt.s32.totalorder %s19, 1
      %s352 = scalar_select %p351, %s19, 1
      %s353 = smul.addr %s352, 32
      %s354 = smul.addr %s353, 8
      %s355 = scalar_lea.vmem %s2, %s354
      %p356 = scmp.lt.s32.totalorder %s19, 1
      %s357 = scalar_select %p356, %s19, 1
      %s358 = smul.addr %s357, 32
      %s359 = smul.addr %s358, 8
      %s360 = scalar_lea.vmem %s3, %s359
      %p361 = scmp.lt.s32.totalorder %s19, 1
      %s362 = scalar_select %p361, %s19, 1
      %s363 = smul.addr %s362, 32
      %s364 = smul.addr %s363, 8
      %s365 = scalar_lea.vmem %s8, %s364
      %v366 = vld [vmem:[%s345] sm:$0xff]
      %v367 = vld [vmem:[%s345 + $0x8] sm:$0xff]
      %v368 = vld [vmem:[%s345 + $0x18] sm:$0xff]
      %v369 = vld [vmem:[%s345 + $0x20] sm:$0xff]
      %v370 = vld [vmem:[%s345 + $0x30] sm:$0xff]
      %v371 = vld [vmem:[%s345 + $0x38] sm:$0xff]
      %v372 = vld [vmem:[%s345 + $0x48] sm:$0xff]
      %v373 = vld [vmem:[%s345 + $0x50] sm:$0xff]
      %v374 = vld [vmem:[%s345 + $0x60] sm:$0xff]
      %v375 = vld [vmem:[%s345 + $0x68] sm:$0xff]
      %v376 = vld [vmem:[%s345 + $0x78] sm:$0xff]
      %v377 = vld [vmem:[%s345 + $0x80] sm:$0xff]
      %v378 = vld [vmem:[%s345 + $0x90] sm:$0xff]
      %v379 = vld [vmem:[%s345 + $0x98] sm:$0xff]
      %v380 = vld [vmem:[%s345 + $0xa8] sm:$0xff]
      %v381 = vld [vmem:[%s345 + $0xb0] sm:$0xff]
      %v382 = vld [vmem:[%s345 + $0xc0] sm:$0xff]
      %v383 = vld [vmem:[%s345 + $0xc8] sm:$0xff]
      %v384 = vld [vmem:[%s345 + $0xd8] sm:$0xff]
      %v385 = vld [vmem:[%s345 + $0xe0] sm:$0xff]
      %v386 = vld [vmem:[%s345 + $0xf0] sm:$0xff]
      %v387 = vld [vmem:[%s345 + $0xf8] sm:$0xff]
      %v388 = vld [vmem:[%s345 + $0x108] sm:$0xff]
      %v389 = vld [vmem:[%s345 + $0x110] sm:$0xff]
      %v390 = vld [vmem:[%s345 + $0x120] sm:$0xff]
      %v391 = vld [vmem:[%s345 + $0x128] sm:$0xff]
      %v392 = vld [vmem:[%s345 + $0x138] sm:$0xff]
      %v393 = vld [vmem:[%s345 + $0x140] sm:$0xff]
      %v394 = vld [vmem:[%s345 + $0x150] sm:$0xff]
      %v395 = vld [vmem:[%s345 + $0x158] sm:$0xff]
      %v396 = vld [vmem:[%s345 + $0x168] sm:$0xff]
      %v397 = vld [vmem:[%s345 + $0x170] sm:$0xff]
      %vm398 = vcmask 64512
      %399 = vst.msk [vmem:[#allocation3] sm:$0xff] %vm398, %v366
      %400 = vst.msk [vmem:[#allocation3 + $0x8] sm:$0xff] %vm398, %v367
      %401 = vst.msk [vmem:[#allocation3 + $0x10] sm:$0xff] %vm398, %v368
      %402 = vst.msk [vmem:[#allocation3 + $0x18] sm:$0xff] %vm398, %v369
      %403 = vst.msk [vmem:[#allocation3 + $0x20] sm:$0xff] %vm398, %v370
      %404 = vst.msk [vmem:[#allocation3 + $0x28] sm:$0xff] %vm398, %v371
      %405 = vst.msk [vmem:[#allocation3 + $0x30] sm:$0xff] %vm398, %v372
      %406 = vst.msk [vmem:[#allocation3 + $0x38] sm:$0xff] %vm398, %v373
      %407 = vst.msk [vmem:[#allocation3 + $0x40] sm:$0xff] %vm398, %v374
      %408 = vst.msk [vmem:[#allocation3 + $0x48] sm:$0xff] %vm398, %v375
      %409 = vst.msk [vmem:[#allocation3 + $0x50] sm:$0xff] %vm398, %v376
      %410 = vst.msk [vmem:[#allocation3 + $0x58] sm:$0xff] %vm398, %v377
      %411 = vst.msk [vmem:[#allocation3 + $0x60] sm:$0xff] %vm398, %v378
      %412 = vst.msk [vmem:[#allocation3 + $0x68] sm:$0xff] %vm398, %v379
      %413 = vst.msk [vmem:[#allocation3 + $0x70] sm:$0xff] %vm398, %v380
      %414 = vst.msk [vmem:[#allocation3 + $0x78] sm:$0xff] %vm398, %v381
      %415 = vst.msk [vmem:[#allocation3 + $0x80] sm:$0xff] %vm398, %v382
      %416 = vst.msk [vmem:[#allocation3 + $0x88] sm:$0xff] %vm398, %v383
      %417 = vst.msk [vmem:[#allocation3 + $0x90] sm:$0xff] %vm398, %v384
      %418 = vst.msk [vmem:[#allocation3 + $0x98] sm:$0xff] %vm398, %v385
      %419 = vst.msk [vmem:[#allocation3 + $0xa0] sm:$0xff] %vm398, %v386
      %420 = vst.msk [vmem:[#allocation3 + $0xa8] sm:$0xff] %vm398, %v387
      %421 = vst.msk [vmem:[#allocation3 + $0xb0] sm:$0xff] %vm398, %v388
      %422 = vst.msk [vmem:[#allocation3 + $0xb8] sm:$0xff] %vm398, %v389
      %423 = vst.msk [vmem:[#allocation3 + $0xc0] sm:$0xff] %vm398, %v390
      %424 = vst.msk [vmem:[#allocation3 + $0xc8] sm:$0xff] %vm398, %v391
      %425 = vst.msk [vmem:[#allocation3 + $0xd0] sm:$0xff] %vm398, %v392
      %426 = vst.msk [vmem:[#allocation3 + $0xd8] sm:$0xff] %vm398, %v393
      %427 = vst.msk [vmem:[#allocation3 + $0xe0] sm:$0xff] %vm398, %v394
      %428 = vst.msk [vmem:[#allocation3 + $0xe8] sm:$0xff] %vm398, %v395
      %429 = vst.msk [vmem:[#allocation3 + $0xf0] sm:$0xff] %vm398, %v396
      %430 = vst.msk [vmem:[#allocation3 + $0xf8] sm:$0xff] %vm398, %v397
      %v431 = vld [vmem:[%s345 + $0x2] sm:$0xff]
      %v432 = vld [vmem:[%s345 + $0xa] sm:$0xff]
      %v433 = vld [vmem:[%s345 + $0x1a] sm:$0xff]
      %v434 = vld [vmem:[%s345 + $0x22] sm:$0xff]
      %v435 = vld [vmem:[%s345 + $0x32] sm:$0xff]
      %v436 = vld [vmem:[%s345 + $0x3a] sm:$0xff]
      %v437 = vld [vmem:[%s345 + $0x4a] sm:$0xff]
      %v438 = vld [vmem:[%s345 + $0x52] sm:$0xff]
      %v439 = vld [vmem:[%s345 + $0x62] sm:$0xff]
      %v440 = vld [vmem:[%s345 + $0x6a] sm:$0xff]
      %v441 = vld [vmem:[%s345 + $0x7a] sm:$0xff]
      %v442 = vld [vmem:[%s345 + $0x82] sm:$0xff]
      %v443 = vld [vmem:[%s345 + $0x92] sm:$0xff]
      %v444 = vld [vmem:[%s345 + $0x9a] sm:$0xff]
      %v445 = vld [vmem:[%s345 + $0xaa] sm:$0xff]
      %v446 = vld [vmem:[%s345 + $0xb2] sm:$0xff]
      %v447 = vld [vmem:[%s345 + $0xc2] sm:$0xff]
      %v448 = vld [vmem:[%s345 + $0xca] sm:$0xff]
      %v449 = vld [vmem:[%s345 + $0xda] sm:$0xff]
      %v450 = vld [vmem:[%s345 + $0xe2] sm:$0xff]
      %v451 = vld [vmem:[%s345 + $0xf2] sm:$0xff]
      %v452 = vld [vmem:[%s345 + $0xfa] sm:$0xff]
      %v453 = vld [vmem:[%s345 + $0x10a] sm:$0xff]
      %v454 = vld [vmem:[%s345 + $0x112] sm:$0xff]
      %v455 = vld [vmem:[%s345 + $0x122] sm:$0xff]
      %v456 = vld [vmem:[%s345 + $0x12a] sm:$0xff]
      %v457 = vld [vmem:[%s345 + $0x13a] sm:$0xff]
      %v458 = vld [vmem:[%s345 + $0x142] sm:$0xff]
      %v459 = vld [vmem:[%s345 + $0x152] sm:$0xff]
      %v460 = vld [vmem:[%s345 + $0x15a] sm:$0xff]
      %v461 = vld [vmem:[%s345 + $0x16a] sm:$0xff]
      %v462 = vld [vmem:[%s345 + $0x172] sm:$0xff]
      %495 = vrot.lane.b32.xlu0 %v431, 8
      %v496 = vpop.permute.xlu0 %495
      %497 = vrot.lane.b32.xlu0 %v432, 8
      %v498 = vpop.permute.xlu0 %497
      %499 = vrot.lane.b32.xlu0 %v433, 8
      %v500 = vpop.permute.xlu0 %499
      %501 = vrot.lane.b32.xlu0 %v434, 8
      %v502 = vpop.permute.xlu0 %501
      %503 = vrot.lane.b32.xlu0 %v435, 8
      %v504 = vpop.permute.xlu0 %503
      %505 = vrot.lane.b32.xlu0 %v436, 8
      %v506 = vpop.permute.xlu0 %505
      %507 = vrot.lane.b32.xlu0 %v437, 8
      %v508 = vpop.permute.xlu0 %507
      %509 = vrot.lane.b32.xlu0 %v438, 8
      %v510 = vpop.permute.xlu0 %509
      %511 = vrot.lane.b32.xlu0 %v439, 8
      %v512 = vpop.permute.xlu0 %511
      %513 = vrot.lane.b32.xlu0 %v440, 8
      %v514 = vpop.permute.xlu0 %513
      %515 = vrot.lane.b32.xlu0 %v441, 8
      %v516 = vpop.permute.xlu0 %515
      %517 = vrot.lane.b32.xlu0 %v442, 8
      %v518 = vpop.permute.xlu0 %517
      %519 = vrot.lane.b32.xlu0 %v443, 8
      %v520 = vpop.permute.xlu0 %519
      %521 = vrot.lane.b32.xlu0 %v444, 8
      %v522 = vpop.permute.xlu0 %521
      %523 = vrot.lane.b32.xlu0 %v445, 8
      %v524 = vpop.permute.xlu0 %523
      %525 = vrot.lane.b32.xlu0 %v446, 8
      %v526 = vpop.permute.xlu0 %525
      %527 = vrot.lane.b32.xlu0 %v447, 8
      %v528 = vpop.permute.xlu0 %527
      %529 = vrot.lane.b32.xlu0 %v448, 8
      %v530 = vpop.permute.xlu0 %529
      %531 = vrot.lane.b32.xlu0 %v449, 8
      %v532 = vpop.permute.xlu0 %531
      %533 = vrot.lane.b32.xlu0 %v450, 8
      %v534 = vpop.permute.xlu0 %533
      %535 = vrot.lane.b32.xlu0 %v451, 8
      %v536 = vpop.permute.xlu0 %535
      %537 = vrot.lane.b32.xlu0 %v452, 8
      %v538 = vpop.permute.xlu0 %537
      %539 = vrot.lane.b32.xlu0 %v453, 8
      %v540 = vpop.permute.xlu0 %539
      %541 = vrot.lane.b32.xlu0 %v454, 8
      %v542 = vpop.permute.xlu0 %541
      %543 = vrot.lane.b32.xlu0 %v455, 8
      %v544 = vpop.permute.xlu0 %543
      %545 = vrot.lane.b32.xlu0 %v456, 8
      %v546 = vpop.permute.xlu0 %545
      %547 = vrot.lane.b32.xlu0 %v457, 8
      %v548 = vpop.permute.xlu0 %547
      %549 = vrot.lane.b32.xlu0 %v458, 8
      %v550 = vpop.permute.xlu0 %549
      %551 = vrot.lane.b32.xlu0 %v459, 8
      %v552 = vpop.permute.xlu0 %551
      %553 = vrot.lane.b32.xlu0 %v460, 8
      %v554 = vpop.permute.xlu0 %553
      %555 = vrot.lane.b32.xlu0 %v461, 8
      %v556 = vpop.permute.xlu0 %555
      %557 = vrot.lane.b32.xlu0 %v462, 8
      %v558 = vpop.permute.xlu0 %557
      %vm591 = vcmask 130112
      %592 = vst.msk [vmem:[#allocation3] sm:$0xff] %vm591, %v496
      %593 = vst.msk [vmem:[#allocation3 + $0x8] sm:$0xff] %vm591, %v498
      %594 = vst.msk [vmem:[#allocation3 + $0x10] sm:$0xff] %vm591, %v500
      %595 = vst.msk [vmem:[#allocation3 + $0x18] sm:$0xff] %vm591, %v502
      %596 = vst.msk [vmem:[#allocation3 + $0x20] sm:$0xff] %vm591, %v504
      %597 = vst.msk [vmem:[#allocation3 + $0x28] sm:$0xff] %vm591, %v506
      %598 = vst.msk [vmem:[#allocation3 + $0x30] sm:$0xff] %vm591, %v508
      %599 = vst.msk [vmem:[#allocation3 + $0x38] sm:$0xff] %vm591, %v510
      %600 = vst.msk [vmem:[#allocation3 + $0x40] sm:$0xff] %vm591, %v512
      %601 = vst.msk [vmem:[#allocation3 + $0x48] sm:$0xff] %vm591, %v514
      %602 = vst.msk [vmem:[#allocation3 + $0x50] sm:$0xff] %vm591, %v516
      %603 = vst.msk [vmem:[#allocation3 + $0x58] sm:$0xff] %vm591, %v518
      %604 = vst.msk [vmem:[#allocation3 + $0x60] sm:$0xff] %vm591, %v520
      %605 = vst.msk [vmem:[#allocation3 + $0x68] sm:$0xff] %vm591, %v522
      %606 = vst.msk [vmem:[#allocation3 + $0x70] sm:$0xff] %vm591, %v524
      %607 = vst.msk [vmem:[#allocation3 + $0x78] sm:$0xff] %vm591, %v526
      %608 = vst.msk [vmem:[#allocation3 + $0x80] sm:$0xff] %vm591, %v528
      %609 = vst.msk [vmem:[#allocation3 + $0x88] sm:$0xff] %vm591, %v530
      %610 = vst.msk [vmem:[#allocation3 + $0x90] sm:$0xff] %vm591, %v532
      %611 = vst.msk [vmem:[#allocation3 + $0x98] sm:$0xff] %vm591, %v534
      %612 = vst.msk [vmem:[#allocation3 + $0xa0] sm:$0xff] %vm591, %v536
      %613 = vst.msk [vmem:[#allocation3 + $0xa8] sm:$0xff] %vm591, %v538
      %614 = vst.msk [vmem:[#allocation3 + $0xb0] sm:$0xff] %vm591, %v540
      %615 = vst.msk [vmem:[#allocation3 + $0xb8] sm:$0xff] %vm591, %v542
      %616 = vst.msk [vmem:[#allocation3 + $0xc0] sm:$0xff] %vm591, %v544
      %617 = vst.msk [vmem:[#allocation3 + $0xc8] sm:$0xff] %vm591, %v546
      %618 = vst.msk [vmem:[#allocation3 + $0xd0] sm:$0xff] %vm591, %v548
      %619 = vst.msk [vmem:[#allocation3 + $0xd8] sm:$0xff] %vm591, %v550
      %620 = vst.msk [vmem:[#allocation3 + $0xe0] sm:$0xff] %vm591, %v552
      %621 = vst.msk [vmem:[#allocation3 + $0xe8] sm:$0xff] %vm591, %v554
      %622 = vst.msk [vmem:[#allocation3 + $0xf0] sm:$0xff] %vm591, %v556
      %623 = vst.msk [vmem:[#allocation3 + $0xf8] sm:$0xff] %vm591, %v558
      %v624 = vld [vmem:[%s345 + $0x4] sm:$0xff]
      %v625 = vld [vmem:[%s345 + $0xc] sm:$0xff]
      %v626 = vld [vmem:[%s345 + $0x1c] sm:$0xff]
      %v627 = vld [vmem:[%s345 + $0x24] sm:$0xff]
      %v628 = vld [vmem:[%s345 + $0x34] sm:$0xff]
      %v629 = vld [vmem:[%s345 + $0x3c] sm:$0xff]
      %v630 = vld [vmem:[%s345 + $0x4c] sm:$0xff]
      %v631 = vld [vmem:[%s345 + $0x54] sm:$0xff]
      %v632 = vld [vmem:[%s345 + $0x64] sm:$0xff]
      %v633 = vld [vmem:[%s345 + $0x6c] sm:$0xff]
      %v634 = vld [vmem:[%s345 + $0x7c] sm:$0xff]
      %v635 = vld [vmem:[%s345 + $0x84] sm:$0xff]
      %v636 = vld [vmem:[%s345 + $0x94] sm:$0xff]
      %v637 = vld [vmem:[%s345 + $0x9c] sm:$0xff]
      %v638 = vld [vmem:[%s345 + $0xac] sm:$0xff]
      %v639 = vld [vmem:[%s345 + $0xb4] sm:$0xff]
      %v640 = vld [vmem:[%s345 + $0xc4] sm:$0xff]
      %v641 = vld [vmem:[%s345 + $0xcc] sm:$0xff]
      %v642 = vld [vmem:[%s345 + $0xdc] sm:$0xff]
      %v643 = vld [vmem:[%s345 + $0xe4] sm:$0xff]
      %v644 = vld [vmem:[%s345 + $0xf4] sm:$0xff]
      %v645 = vld [vmem:[%s345 + $0xfc] sm:$0xff]
      %v646 = vld [vmem:[%s345 + $0x10c] sm:$0xff]
      %v647 = vld [vmem:[%s345 + $0x114] sm:$0xff]
      %v648 = vld [vmem:[%s345 + $0x124] sm:$0xff]
      %v649 = vld [vmem:[%s345 + $0x12c] sm:$0xff]
      %v650 = vld [vmem:[%s345 + $0x13c] sm:$0xff]
      %v651 = vld [vmem:[%s345 + $0x144] sm:$0xff]
      %v652 = vld [vmem:[%s345 + $0x154] sm:$0xff]
      %v653 = vld [vmem:[%s345 + $0x15c] sm:$0xff]
      %v654 = vld [vmem:[%s345 + $0x16c] sm:$0xff]
      %v655 = vld [vmem:[%s345 + $0x174] sm:$0xff]
      %688 = vrot.lane.b32.xlu0 %v624, 16
      %v689 = vpop.permute.xlu0 %688
      %690 = vrot.lane.b32.xlu0 %v625, 16
      %v691 = vpop.permute.xlu0 %690
      %692 = vrot.lane.b32.xlu0 %v626, 16
      %v693 = vpop.permute.xlu0 %692
      %694 = vrot.lane.b32.xlu0 %v627, 16
      %v695 = vpop.permute.xlu0 %694
      %696 = vrot.lane.b32.xlu0 %v628, 16
      %v697 = vpop.permute.xlu0 %696
      %698 = vrot.lane.b32.xlu0 %v629, 16
      %v699 = vpop.permute.xlu0 %698
      %700 = vrot.lane.b32.xlu0 %v630, 16
      %v701 = vpop.permute.xlu0 %700
      %702 = vrot.lane.b32.xlu0 %v631, 16
      %v703 = vpop.permute.xlu0 %702
      %704 = vrot.lane.b32.xlu0 %v632, 16
      %v705 = vpop.permute.xlu0 %704
      %706 = vrot.lane.b32.xlu0 %v633, 16
      %v707 = vpop.permute.xlu0 %706
      %708 = vrot.lane.b32.xlu0 %v634, 16
      %v709 = vpop.permute.xlu0 %708
      %710 = vrot.lane.b32.xlu0 %v635, 16
      %v711 = vpop.permute.xlu0 %710
      %712 = vrot.lane.b32.xlu0 %v636, 16
      %v713 = vpop.permute.xlu0 %712
      %714 = vrot.lane.b32.xlu0 %v637, 16
      %v715 = vpop.permute.xlu0 %714
      %716 = vrot.lane.b32.xlu0 %v638, 16
      %v717 = vpop.permute.xlu0 %716
      %718 = vrot.lane.b32.xlu0 %v639, 16
      %v719 = vpop.permute.xlu0 %718
      %720 = vrot.lane.b32.xlu0 %v640, 16
      %v721 = vpop.permute.xlu0 %720
      %722 = vrot.lane.b32.xlu0 %v641, 16
      %v723 = vpop.permute.xlu0 %722
      %724 = vrot.lane.b32.xlu0 %v642, 16
      %v725 = vpop.permute.xlu0 %724
      %726 = vrot.lane.b32.xlu0 %v643, 16
      %v727 = vpop.permute.xlu0 %726
      %728 = vrot.lane.b32.xlu0 %v644, 16
      %v729 = vpop.permute.xlu0 %728
      %730 = vrot.lane.b32.xlu0 %v645, 16
      %v731 = vpop.permute.xlu0 %730
      %732 = vrot.lane.b32.xlu0 %v646, 16
      %v733 = vpop.permute.xlu0 %732
      %734 = vrot.lane.b32.xlu0 %v647, 16
      %v735 = vpop.permute.xlu0 %734
      %736 = vrot.lane.b32.xlu0 %v648, 16
      %v737 = vpop.permute.xlu0 %736
      %738 = vrot.lane.b32.xlu0 %v649, 16
      %v739 = vpop.permute.xlu0 %738
      %740 = vrot.lane.b32.xlu0 %v650, 16
      %v741 = vpop.permute.xlu0 %740
      %742 = vrot.lane.b32.xlu0 %v651, 16
      %v743 = vpop.permute.xlu0 %742
      %744 = vrot.lane.b32.xlu0 %v652, 16
      %v745 = vpop.permute.xlu0 %744
      %746 = vrot.lane.b32.xlu0 %v653, 16
      %v747 = vpop.permute.xlu0 %746
      %748 = vrot.lane.b32.xlu0 %v654, 16
      %v749 = vpop.permute.xlu0 %748
      %750 = vrot.lane.b32.xlu0 %v655, 16
      %v751 = vpop.permute.xlu0 %750
      %vm784 = vcmask 195712
      %785 = vst.msk [vmem:[#allocation3] sm:$0xff] %vm784, %v689
      %786 = vst.msk [vmem:[#allocation3 + $0x8] sm:$0xff] %vm784, %v691
      %787 = vst.msk [vmem:[#allocation3 + $0x10] sm:$0xff] %vm784, %v693
      %788 = vst.msk [vmem:[#allocation3 + $0x18] sm:$0xff] %vm784, %v695
      %789 = vst.msk [vmem:[#allocation3 + $0x20] sm:$0xff] %vm784, %v697
      %790 = vst.msk [vmem:[#allocation3 + $0x28] sm:$0xff] %vm784, %v699
      %791 = vst.msk [vmem:[#allocation3 + $0x30] sm:$0xff] %vm784, %v701
      %792 = vst.msk [vmem:[#allocation3 + $0x38] sm:$0xff] %vm784, %v703
      %793 = vst.msk [vmem:[#allocation3 + $0x40] sm:$0xff] %vm784, %v705
      %794 = vst.msk [vmem:[#allocation3 + $0x48] sm:$0xff] %vm784, %v707
      %795 = vst.msk [vmem:[#allocation3 + $0x50] sm:$0xff] %vm784, %v709
      %796 = vst.msk [vmem:[#allocation3 + $0x58] sm:$0xff] %vm784, %v711
      %797 = vst.msk [vmem:[#allocation3 + $0x60] sm:$0xff] %vm784, %v713
      %798 = vst.msk [vmem:[#allocation3 + $0x68] sm:$0xff] %vm784, %v715
      %799 = vst.msk [vmem:[#allocation3 + $0x70] sm:$0xff] %vm784, %v717
      %800 = vst.msk [vmem:[#allocation3 + $0x78] sm:$0xff] %vm784, %v719
      %801 = vst.msk [vmem:[#allocation3 + $0x80] sm:$0xff] %vm784, %v721
      %802 = vst.msk [vmem:[#allocation3 + $0x88] sm:$0xff] %vm784, %v723
      %803 = vst.msk [vmem:[#allocation3 + $0x90] sm:$0xff] %vm784, %v725
      %804 = vst.msk [vmem:[#allocation3 + $0x98] sm:$0xff] %vm784, %v727
      %805 = vst.msk [vmem:[#allocation3 + $0xa0] sm:$0xff] %vm784, %v729
      %806 = vst.msk [vmem:[#allocation3 + $0xa8] sm:$0xff] %vm784, %v731
      %807 = vst.msk [vmem:[#allocation3 + $0xb0] sm:$0xff] %vm784, %v733
      %808 = vst.msk [vmem:[#allocation3 + $0xb8] sm:$0xff] %vm784, %v735
      %809 = vst.msk [vmem:[#allocation3 + $0xc0] sm:$0xff] %vm784, %v737
      %810 = vst.msk [vmem:[#allocation3 + $0xc8] sm:$0xff] %vm784, %v739
      %811 = vst.msk [vmem:[#allocation3 + $0xd0] sm:$0xff] %vm784, %v741
      %812 = vst.msk [vmem:[#allocation3 + $0xd8] sm:$0xff] %vm784, %v743
      %813 = vst.msk [vmem:[#allocation3 + $0xe0] sm:$0xff] %vm784, %v745
      %814 = vst.msk [vmem:[#allocation3 + $0xe8] sm:$0xff] %vm784, %v747
      %815 = vst.msk [vmem:[#allocation3 + $0xf0] sm:$0xff] %vm784, %v749
      %816 = vst.msk [vmem:[#allocation3 + $0xf8] sm:$0xff] %vm784, %v751
      %s817 = scalar_lea.vmem %s345, 48
      %v818 = vld [vmem:[%s817] sm:$0xff]
      %v819 = vld [vmem:[%s817 + $0x8] sm:$0xff]
      %v820 = vld [vmem:[%s817 + $0x18] sm:$0xff]
      %v821 = vld [vmem:[%s817 + $0x20] sm:$0xff]
      %v822 = vld [vmem:[%s817 + $0x30] sm:$0xff]
      %v823 = vld [vmem:[%s817 + $0x38] sm:$0xff]
      %v824 = vld [vmem:[%s817 + $0x48] sm:$0xff]
      %v825 = vld [vmem:[%s817 + $0x50] sm:$0xff]
      %v826 = vld [vmem:[%s817 + $0x60] sm:$0xff]
      %v827 = vld [vmem:[%s817 + $0x68] sm:$0xff]
      %v828 = vld [vmem:[%s817 + $0x78] sm:$0xff]
      %v829 = vld [vmem:[%s817 + $0x80] sm:$0xff]
      %v830 = vld [vmem:[%s817 + $0x90] sm:$0xff]
      %v831 = vld [vmem:[%s817 + $0x98] sm:$0xff]
      %v832 = vld [vmem:[%s817 + $0xa8] sm:$0xff]
      %v833 = vld [vmem:[%s817 + $0xb0] sm:$0xff]
      %v834 = vld [vmem:[%s817 + $0xc0] sm:$0xff]
      %v835 = vld [vmem:[%s817 + $0xc8] sm:$0xff]
      %v836 = vld [vmem:[%s817 + $0xd8] sm:$0xff]
      %v837 = vld [vmem:[%s817 + $0xe0] sm:$0xff]
      %v838 = vld [vmem:[%s817 + $0xf0] sm:$0xff]
      %v839 = vld [vmem:[%s817 + $0xf8] sm:$0xff]
      %v840 = vld [vmem:[%s817 + $0x108] sm:$0xff]
      %v841 = vld [vmem:[%s817 + $0x110] sm:$0xff]
      %v842 = vld [vmem:[%s817 + $0x120] sm:$0xff]
      %v843 = vld [vmem:[%s817 + $0x128] sm:$0xff]
      %v844 = vld [vmem:[%s817 + $0x138] sm:$0xff]
      %v845 = vld [vmem:[%s817 + $0x140] sm:$0xff]
      %v846 = vld [vmem:[%s817 + $0x150] sm:$0xff]
      %v847 = vld [vmem:[%s817 + $0x158] sm:$0xff]
      %v848 = vld [vmem:[%s817 + $0x168] sm:$0xff]
      %v849 = vld [vmem:[%s817 + $0x170] sm:$0xff]
      %882 = vrot.lane.b32.xlu0 %v818, 24
      %v883 = vpop.permute.xlu0 %882
      %884 = vrot.lane.b32.xlu0 %v819, 24
      %v885 = vpop.permute.xlu0 %884
      %886 = vrot.lane.b32.xlu0 %v820, 24
      %v887 = vpop.permute.xlu0 %886
      %888 = vrot.lane.b32.xlu0 %v821, 24
      %v889 = vpop.permute.xlu0 %888
      %890 = vrot.lane.b32.xlu0 %v822, 24
      %v891 = vpop.permute.xlu0 %890
      %892 = vrot.lane.b32.xlu0 %v823, 24
      %v893 = vpop.permute.xlu0 %892
      %894 = vrot.lane.b32.xlu0 %v824, 24
      %v895 = vpop.permute.xlu0 %894
      %896 = vrot.lane.b32.xlu0 %v825, 24
      %v897 = vpop.permute.xlu0 %896
      %898 = vrot.lane.b32.xlu0 %v826, 24
      %v899 = vpop.permute.xlu0 %898
      %900 = vrot.lane.b32.xlu0 %v827, 24
      %v901 = vpop.permute.xlu0 %900
      %902 = vrot.lane.b32.xlu0 %v828, 24
      %v903 = vpop.permute.xlu0 %902
      %904 = vrot.lane.b32.xlu0 %v829, 24
      %v905 = vpop.permute.xlu0 %904
      %906 = vrot.lane.b32.xlu0 %v830, 24
      %v907 = vpop.permute.xlu0 %906
      %908 = vrot.lane.b32.xlu0 %v831, 24
      %v909 = vpop.permute.xlu0 %908
      %910 = vrot.lane.b32.xlu0 %v832, 24
      %v911 = vpop.permute.xlu0 %910
      %912 = vrot.lane.b32.xlu0 %v833, 24
      %v913 = vpop.permute.xlu0 %912
      %914 = vrot.lane.b32.xlu0 %v834, 24
      %v915 = vpop.permute.xlu0 %914
      %916 = vrot.lane.b32.xlu0 %v835, 24
      %v917 = vpop.permute.xlu0 %916
      %918 = vrot.lane.b32.xlu0 %v836, 24
      %v919 = vpop.permute.xlu0 %918
      %920 = vrot.lane.b32.xlu0 %v837, 24
      %v921 = vpop.permute.xlu0 %920
      %922 = vrot.lane.b32.xlu0 %v838, 24
      %v923 = vpop.permute.xlu0 %922
      %924 = vrot.lane.b32.xlu0 %v839, 24
      %v925 = vpop.permute.xlu0 %924
      %926 = vrot.lane.b32.xlu0 %v840, 24
      %v927 = vpop.permute.xlu0 %926
      %928 = vrot.lane.b32.xlu0 %v841, 24
      %v929 = vpop.permute.xlu0 %928
      %930 = vrot.lane.b32.xlu0 %v842, 24
      %v931 = vpop.permute.xlu0 %930
      %932 = vrot.lane.b32.xlu0 %v843, 24
      %v933 = vpop.permute.xlu0 %932
      %934 = vrot.lane.b32.xlu0 %v844, 24
      %v935 = vpop.permute.xlu0 %934
      %936 = vrot.lane.b32.xlu0 %v845, 24
      %v937 = vpop.permute.xlu0 %936
      %938 = vrot.lane.b32.xlu0 %v846, 24
      %v939 = vpop.permute.xlu0 %938
      %940 = vrot.lane.b32.xlu0 %v847, 24
      %v941 = vpop.permute.xlu0 %940
      %942 = vrot.lane.b32.xlu0 %v848, 24
      %v943 = vpop.permute.xlu0 %942
      %944 = vrot.lane.b32.xlu0 %v849, 24
      %v945 = vpop.permute.xlu0 %944
      %vm978 = vcmask 261312
      %979 = vst.msk [vmem:[#allocation3] sm:$0xff] %vm978, %v883
      %980 = vst.msk [vmem:[#allocation3 + $0x8] sm:$0xff] %vm978, %v885
      %981 = vst.msk [vmem:[#allocation3 + $0x10] sm:$0xff] %vm978, %v887
      %982 = vst.msk [vmem:[#allocation3 + $0x18] sm:$0xff] %vm978, %v889
      %983 = vst.msk [vmem:[#allocation3 + $0x20] sm:$0xff] %vm978, %v891
      %984 = vst.msk [vmem:[#allocation3 + $0x28] sm:$0xff] %vm978, %v893
      %985 = vst.msk [vmem:[#allocation3 + $0x30] sm:$0xff] %vm978, %v895
      %986 = vst.msk [vmem:[#allocation3 + $0x38] sm:$0xff] %vm978, %v897
      %987 = vst.msk [vmem:[#allocation3 + $0x40] sm:$0xff] %vm978, %v899
      %988 = vst.msk [vmem:[#allocation3 + $0x48] sm:$0xff] %vm978, %v901
      %989 = vst.msk [vmem:[#allocation3 + $0x50] sm:$0xff] %vm978, %v903
      %990 = vst.msk [vmem:[#allocation3 + $0x58] sm:$0xff] %vm978, %v905
      %991 = vst.msk [vmem:[#allocation3 + $0x60] sm:$0xff] %vm978, %v907
      %992 = vst.msk [vmem:[#allocation3 + $0x68] sm:$0xff] %vm978, %v909
      %993 = vst.msk [vmem:[#allocation3 + $0x70] sm:$0xff] %vm978, %v911
      %994 = vst.msk [vmem:[#allocation3 + $0x78] sm:$0xff] %vm978, %v913
      %995 = vst.msk [vmem:[#allocation3 + $0x80] sm:$0xff] %vm978, %v915
      %996 = vst.msk [vmem:[#allocation3 + $0x88] sm:$0xff] %vm978, %v917
      %997 = vst.msk [vmem:[#allocation3 + $0x90] sm:$0xff] %vm978, %v919
      %998 = vst.msk [vmem:[#allocation3 + $0x98] sm:$0xff] %vm978, %v921
      %999 = vst.msk [vmem:[#allocation3 + $0xa0] sm:$0xff] %vm978, %v923
      %1000 = vst.msk [vmem:[#allocation3 + $0xa8] sm:$0xff] %vm978, %v925
      %1001 = vst.msk [vmem:[#allocation3 + $0xb0] sm:$0xff] %vm978, %v927
      %1002 = vst.msk [vmem:[#allocation3 + $0xb8] sm:$0xff] %vm978, %v929
      %1003 = vst.msk [vmem:[#allocation3 + $0xc0] sm:$0xff] %vm978, %v931
      %1004 = vst.msk [vmem:[#allocation3 + $0xc8] sm:$0xff] %vm978, %v933
      %1005 = vst.msk [vmem:[#allocation3 + $0xd0] sm:$0xff] %vm978, %v935
      %1006 = vst.msk [vmem:[#allocation3 + $0xd8] sm:$0xff] %vm978, %v937
      %1007 = vst.msk [vmem:[#allocation3 + $0xe0] sm:$0xff] %vm978, %v939
      %1008 = vst.msk [vmem:[#allocation3 + $0xe8] sm:$0xff] %vm978, %v941
      %1009 = vst.msk [vmem:[#allocation3 + $0xf0] sm:$0xff] %vm978, %v943
      %1010 = vst.msk [vmem:[#allocation3 + $0xf8] sm:$0xff] %vm978, %v945
      %v1011 = vld [vmem:[%s817 + $0x2] sm:$0xff]
      %v1012 = vld [vmem:[%s817 + $0xa] sm:$0xff]
      %v1013 = vld [vmem:[%s817 + $0x1a] sm:$0xff]
      %v1014 = vld [vmem:[%s817 + $0x22] sm:$0xff]
      %v1015 = vld [vmem:[%s817 + $0x32] sm:$0xff]
      %v1016 = vld [vmem:[%s817 + $0x3a] sm:$0xff]
      %v1017 = vld [vmem:[%s817 + $0x4a] sm:$0xff]
      %v1018 = vld [vmem:[%s817 + $0x52] sm:$0xff]
      %v1019 = vld [vmem:[%s817 + $0x62] sm:$0xff]
      %v1020 = vld [vmem:[%s817 + $0x6a] sm:$0xff]
      %v1021 = vld [vmem:[%s817 + $0x7a] sm:$0xff]
      %v1022 = vld [vmem:[%s817 + $0x82] sm:$0xff]
      %v1023 = vld [vmem:[%s817 + $0x92] sm:$0xff]
      %v1024 = vld [vmem:[%s817 + $0x9a] sm:$0xff]
      %v1025 = vld [vmem:[%s817 + $0xaa] sm:$0xff]
      %v1026 = vld [vmem:[%s817 + $0xb2] sm:$0xff]
      %v1027 = vld [vmem:[%s817 + $0xc2] sm:$0xff]
      %v1028 = vld [vmem:[%s817 + $0xca] sm:$0xff]
      %v1029 = vld [vmem:[%s817 + $0xda] sm:$0xff]
      %v1030 = vld [vmem:[%s817 + $0xe2] sm:$0xff]
      %v1031 = vld [vmem:[%s817 + $0xf2] sm:$0xff]
      %v1032 = vld [vmem:[%s817 + $0xfa] sm:$0xff]
      %v1033 = vld [vmem:[%s817 + $0x10a] sm:$0xff]
      %v1034 = vld [vmem:[%s817 + $0x112] sm:$0xff]
      %v1035 = vld [vmem:[%s817 + $0x122] sm:$0xff]
      %v1036 = vld [vmem:[%s817 + $0x12a] sm:$0xff]
      %v1037 = vld [vmem:[%s817 + $0x13a] sm:$0xff]
      %v1038 = vld [vmem:[%s817 + $0x142] sm:$0xff]
      %v1039 = vld [vmem:[%s817 + $0x152] sm:$0xff]
      %v1040 = vld [vmem:[%s817 + $0x15a] sm:$0xff]
      %v1041 = vld [vmem:[%s817 + $0x16a] sm:$0xff]
      %v1042 = vld [vmem:[%s817 + $0x172] sm:$0xff]
      %1075 = vrot.lane.b32.xlu0 %v1011, 32
      %v1076 = vpop.permute.xlu0 %1075
      %1077 = vrot.lane.b32.xlu0 %v1012, 32
      %v1078 = vpop.permute.xlu0 %1077
      %1079 = vrot.lane.b32.xlu0 %v1013, 32
      %v1080 = vpop.permute.xlu0 %1079
      %1081 = vrot.lane.b32.xlu0 %v1014, 32
      %v1082 = vpop.permute.xlu0 %1081
      %1083 = vrot.lane.b32.xlu0 %v1015, 32
      %v1084 = vpop.permute.xlu0 %1083
      %1085 = vrot.lane.b32.xlu0 %v1016, 32
      %v1086 = vpop.permute.xlu0 %1085
      %1087 = vrot.lane.b32.xlu0 %v1017, 32
      %v1088 = vpop.permute.xlu0 %1087
      %1089 = vrot.lane.b32.xlu0 %v1018, 32
      %v1090 = vpop.permute.xlu0 %1089
      %1091 = vrot.lane.b32.xlu0 %v1019, 32
      %v1092 = vpop.permute.xlu0 %1091
      %1093 = vrot.lane.b32.xlu0 %v1020, 32
      %v1094 = vpop.permute.xlu0 %1093
      %1095 = vrot.lane.b32.xlu0 %v1021, 32
      %v1096 = vpop.permute.xlu0 %1095
      %1097 = vrot.lane.b32.xlu0 %v1022, 32
      %v1098 = vpop.permute.xlu0 %1097
      %1099 = vrot.lane.b32.xlu0 %v1023, 32
      %v1100 = vpop.permute.xlu0 %1099
      %1101 = vrot.lane.b32.xlu0 %v1024, 32
      %v1102 = vpop.permute.xlu0 %1101
      %1103 = vrot.lane.b32.xlu0 %v1025, 32
      %v1104 = vpop.permute.xlu0 %1103
      %1105 = vrot.lane.b32.xlu0 %v1026, 32
      %v1106 = vpop.permute.xlu0 %1105
      %1107 = vrot.lane.b32.xlu0 %v1027, 32
      %v1108 = vpop.permute.xlu0 %1107
      %1109 = vrot.lane.b32.xlu0 %v1028, 32
      %v1110 = vpop.permute.xlu0 %1109
      %1111 = vrot.lane.b32.xlu0 %v1029, 32
      %v1112 = vpop.permute.xlu0 %1111
      %1113 = vrot.lane.b32.xlu0 %v1030, 32
      %v1114 = vpop.permute.xlu0 %1113
      %1115 = vrot.lane.b32.xlu0 %v1031, 32
      %v1116 = vpop.permute.xlu0 %1115
      %1117 = vrot.lane.b32.xlu0 %v1032, 32
      %v1118 = vpop.permute.xlu0 %1117
      %1119 = vrot.lane.b32.xlu0 %v1033, 32
      %v1120 = vpop.permute.xlu0 %1119
      %1121 = vrot.lane.b32.xlu0 %v1034, 32
      %v1122 = vpop.permute.xlu0 %1121
      %1123 = vrot.lane.b32.xlu0 %v1035, 32
      %v1124 = vpop.permute.xlu0 %1123
      %1125 = vrot.lane.b32.xlu0 %v1036, 32
      %v1126 = vpop.permute.xlu0 %1125
      %1127 = vrot.lane.b32.xlu0 %v1037, 32
      %v1128 = vpop.permute.xlu0 %1127
      %1129 = vrot.lane.b32.xlu0 %v1038, 32
      %v1130 = vpop.permute.xlu0 %1129
      %1131 = vrot.lane.b32.xlu0 %v1039, 32
      %v1132 = vpop.permute.xlu0 %1131
      %1133 = vrot.lane.b32.xlu0 %v1040, 32
      %v1134 = vpop.permute.xlu0 %1133
      %1135 = vrot.lane.b32.xlu0 %v1041, 32
      %v1136 = vpop.permute.xlu0 %1135
      %1137 = vrot.lane.b32.xlu0 %v1042, 32
      %v1138 = vpop.permute.xlu0 %1137
      %vm1171 = vcmask 326912
      %1172 = vst.msk [vmem:[#allocation3] sm:$0xff] %vm1171, %v1076
      %1173 = vst.msk [vmem:[#allocation3 + $0x8] sm:$0xff] %vm1171, %v1078
      %1174 = vst.msk [vmem:[#allocation3 + $0x10] sm:$0xff] %vm1171, %v1080
      %1175 = vst.msk [vmem:[#allocation3 + $0x18] sm:$0xff] %vm1171, %v1082
      %1176 = vst.msk [vmem:[#allocation3 + $0x20] sm:$0xff] %vm1171, %v1084
      %1177 = vst.msk [vmem:[#allocation3 + $0x28] sm:$0xff] %vm1171, %v1086
      %1178 = vst.msk [vmem:[#allocation3 + $0x30] sm:$0xff] %vm1171, %v1088
      %1179 = vst.msk [vmem:[#allocation3 + $0x38] sm:$0xff] %vm1171, %v1090
      %1180 = vst.msk [vmem:[#allocation3 + $0x40] sm:$0xff] %vm1171, %v1092
      %1181 = vst.msk [vmem:[#allocation3 + $0x48] sm:$0xff] %vm1171, %v1094
      %1182 = vst.msk [vmem:[#allocation3 + $0x50] sm:$0xff] %vm1171, %v1096
      %1183 = vst.msk [vmem:[#allocation3 + $0x58] sm:$0xff] %vm1171, %v1098
      %1184 = vst.msk [vmem:[#allocation3 + $0x60] sm:$0xff] %vm1171, %v1100
      %1185 = vst.msk [vmem:[#allocation3 + $0x68] sm:$0xff] %vm1171, %v1102
      %1186 = vst.msk [vmem:[#allocation3 + $0x70] sm:$0xff] %vm1171, %v1104
      %1187 = vst.msk [vmem:[#allocation3 + $0x78] sm:$0xff] %vm1171, %v1106
      %1188 = vst.msk [vmem:[#allocation3 + $0x80] sm:$0xff] %vm1171, %v1108
      %1189 = vst.msk [vmem:[#allocation3 + $0x88] sm:$0xff] %vm1171, %v1110
      %1190 = vst.msk [vmem:[#allocation3 + $0x90] sm:$0xff] %vm1171, %v1112
      %1191 = vst.msk [vmem:[#allocation3 + $0x98] sm:$0xff] %vm1171, %v1114
      %1192 = vst.msk [vmem:[#allocation3 + $0xa0] sm:$0xff] %vm1171, %v1116
      %1193 = vst.msk [vmem:[#allocation3 + $0xa8] sm:$0xff] %vm1171, %v1118
      %1194 = vst.msk [vmem:[#allocation3 + $0xb0] sm:$0xff] %vm1171, %v1120
      %1195 = vst.msk [vmem:[#allocation3 + $0xb8] sm:$0xff] %vm1171, %v1122
      %1196 = vst.msk [vmem:[#allocation3 + $0xc0] sm:$0xff] %vm1171, %v1124
      %1197 = vst.msk [vmem:[#allocation3 + $0xc8] sm:$0xff] %vm1171, %v1126
      %1198 = vst.msk [vmem:[#allocation3 + $0xd0] sm:$0xff] %vm1171, %v1128
      %1199 = vst.msk [vmem:[#allocation3 + $0xd8] sm:$0xff] %vm1171, %v1130
      %1200 = vst.msk [vmem:[#allocation3 + $0xe0] sm:$0xff] %vm1171, %v1132
      %1201 = vst.msk [vmem:[#allocation3 + $0xe8] sm:$0xff] %vm1171, %v1134
      %1202 = vst.msk [vmem:[#allocation3 + $0xf0] sm:$0xff] %vm1171, %v1136
      %1203 = vst.msk [vmem:[#allocation3 + $0xf8] sm:$0xff] %vm1171, %v1138
      %v1204 = vld [vmem:[%s817 + $0x4] sm:$0xff]
      %v1205 = vld [vmem:[%s817 + $0xc] sm:$0xff]
      %v1206 = vld [vmem:[%s817 + $0x1c] sm:$0xff]
      %v1207 = vld [vmem:[%s817 + $0x24] sm:$0xff]
      %v1208 = vld [vmem:[%s817 + $0x34] sm:$0xff]
      %v1209 = vld [vmem:[%s817 + $0x3c] sm:$0xff]
      %v1210 = vld [vmem:[%s817 + $0x4c] sm:$0xff]
      %v1211 = vld [vmem:[%s817 + $0x54] sm:$0xff]
      %v1212 = vld [vmem:[%s817 + $0x64] sm:$0xff]
      %v1213 = vld [vmem:[%s817 + $0x6c] sm:$0xff]
      %v1214 = vld [vmem:[%s817 + $0x7c] sm:$0xff]
      %v1215 = vld [vmem:[%s817 + $0x84] sm:$0xff]
      %v1216 = vld [vmem:[%s817 + $0x94] sm:$0xff]
      %v1217 = vld [vmem:[%s817 + $0x9c] sm:$0xff]
      %v1218 = vld [vmem:[%s817 + $0xac] sm:$0xff]
      %v1219 = vld [vmem:[%s817 + $0xb4] sm:$0xff]
      %v1220 = vld [vmem:[%s817 + $0xc4] sm:$0xff]
      %v1221 = vld [vmem:[%s817 + $0xcc] sm:$0xff]
      %v1222 = vld [vmem:[%s817 + $0xdc] sm:$0xff]
      %v1223 = vld [vmem:[%s817 + $0xe4] sm:$0xff]
      %v1224 = vld [vmem:[%s817 + $0xf4] sm:$0xff]
      %v1225 = vld [vmem:[%s817 + $0xfc] sm:$0xff]
      %v1226 = vld [vmem:[%s817 + $0x10c] sm:$0xff]
      %v1227 = vld [vmem:[%s817 + $0x114] sm:$0xff]
      %v1228 = vld [vmem:[%s817 + $0x124] sm:$0xff]
      %v1229 = vld [vmem:[%s817 + $0x12c] sm:$0xff]
      %v1230 = vld [vmem:[%s817 + $0x13c] sm:$0xff]
      %v1231 = vld [vmem:[%s817 + $0x144] sm:$0xff]
      %v1232 = vld [vmem:[%s817 + $0x154] sm:$0xff]
      %v1233 = vld [vmem:[%s817 + $0x15c] sm:$0xff]
      %v1234 = vld [vmem:[%s817 + $0x16c] sm:$0xff]
      %v1235 = vld [vmem:[%s817 + $0x174] sm:$0xff]
      %1268 = vrot.lane.b32.xlu0 %v1204, 40
      %v1269 = vpop.permute.xlu0 %1268
      %1270 = vrot.lane.b32.xlu0 %v1205, 40
      %v1271 = vpop.permute.xlu0 %1270
      %1272 = vrot.lane.b32.xlu0 %v1206, 40
      %v1273 = vpop.permute.xlu0 %1272
      %1274 = vrot.lane.b32.xlu0 %v1207, 40
      %v1275 = vpop.permute.xlu0 %1274
      %1276 = vrot.lane.b32.xlu0 %v1208, 40
      %v1277 = vpop.permute.xlu0 %1276
      %1278 = vrot.lane.b32.xlu0 %v1209, 40
      %v1279 = vpop.permute.xlu0 %1278
      %1280 = vrot.lane.b32.xlu0 %v1210, 40
      %v1281 = vpop.permute.xlu0 %1280
      %1282 = vrot.lane.b32.xlu0 %v1211, 40
      %v1283 = vpop.permute.xlu0 %1282
      %1284 = vrot.lane.b32.xlu0 %v1212, 40
      %v1285 = vpop.permute.xlu0 %1284
      %1286 = vrot.lane.b32.xlu0 %v1213, 40
      %v1287 = vpop.permute.xlu0 %1286
      %1288 = vrot.lane.b32.xlu0 %v1214, 40
      %v1289 = vpop.permute.xlu0 %1288
      %1290 = vrot.lane.b32.xlu0 %v1215, 40
      %v1291 = vpop.permute.xlu0 %1290
      %1292 = vrot.lane.b32.xlu0 %v1216, 40
      %v1293 = vpop.permute.xlu0 %1292
      %1294 = vrot.lane.b32.xlu0 %v1217, 40
      %v1295 = vpop.permute.xlu0 %1294
      %1296 = vrot.lane.b32.xlu0 %v1218, 40
      %v1297 = vpop.permute.xlu0 %1296
      %1298 = vrot.lane.b32.xlu0 %v1219, 40
      %v1299 = vpop.permute.xlu0 %1298
      %1300 = vrot.lane.b32.xlu0 %v1220, 40
      %v1301 = vpop.permute.xlu0 %1300
      %1302 = vrot.lane.b32.xlu0 %v1221, 40
      %v1303 = vpop.permute.xlu0 %1302
      %1304 = vrot.lane.b32.xlu0 %v1222, 40
      %v1305 = vpop.permute.xlu0 %1304
      %1306 = vrot.lane.b32.xlu0 %v1223, 40
      %v1307 = vpop.permute.xlu0 %1306
      %1308 = vrot.lane.b32.xlu0 %v1224, 40
      %v1309 = vpop.permute.xlu0 %1308
      %1310 = vrot.lane.b32.xlu0 %v1225, 40
      %v1311 = vpop.permute.xlu0 %1310
      %1312 = vrot.lane.b32.xlu0 %v1226, 40
      %v1313 = vpop.permute.xlu0 %1312
      %1314 = vrot.lane.b32.xlu0 %v1227, 40
      %v1315 = vpop.permute.xlu0 %1314
      %1316 = vrot.lane.b32.xlu0 %v1228, 40
      %v1317 = vpop.permute.xlu0 %1316
      %1318 = vrot.lane.b32.xlu0 %v1229, 40
      %v1319 = vpop.permute.xlu0 %1318
      %1320 = vrot.lane.b32.xlu0 %v1230, 40
      %v1321 = vpop.permute.xlu0 %1320
      %1322 = vrot.lane.b32.xlu0 %v1231, 40
      %v1323 = vpop.permute.xlu0 %1322
      %1324 = vrot.lane.b32.xlu0 %v1232, 40
      %v1325 = vpop.permute.xlu0 %1324
      %1326 = vrot.lane.b32.xlu0 %v1233, 40
      %v1327 = vpop.permute.xlu0 %1326
      %1328 = vrot.lane.b32.xlu0 %v1234, 40
      %v1329 = vpop.permute.xlu0 %1328
      %1330 = vrot.lane.b32.xlu0 %v1235, 40
      %v1331 = vpop.permute.xlu0 %1330
      %vm1364 = vcmask 392512
      %1365 = vst.msk [vmem:[#allocation3] sm:$0xff] %vm1364, %v1269
      %1366 = vst.msk [vmem:[#allocation3 + $0x8] sm:$0xff] %vm1364, %v1271
      %1367 = vst.msk [vmem:[#allocation3 + $0x10] sm:$0xff] %vm1364, %v1273
      %1368 = vst.msk [vmem:[#allocation3 + $0x18] sm:$0xff] %vm1364, %v1275
      %1369 = vst.msk [vmem:[#allocation3 + $0x20] sm:$0xff] %vm1364, %v1277
      %1370 = vst.msk [vmem:[#allocation3 + $0x28] sm:$0xff] %vm1364, %v1279
      %1371 = vst.msk [vmem:[#allocation3 + $0x30] sm:$0xff] %vm1364, %v1281
      %1372 = vst.msk [vmem:[#allocation3 + $0x38] sm:$0xff] %vm1364, %v1283
      %1373 = vst.msk [vmem:[#allocation3 + $0x40] sm:$0xff] %vm1364, %v1285
      %1374 = vst.msk [vmem:[#allocation3 + $0x48] sm:$0xff] %vm1364, %v1287
      %1375 = vst.msk [vmem:[#allocation3 + $0x50] sm:$0xff] %vm1364, %v1289
      %1376 = vst.msk [vmem:[#allocation3 + $0x58] sm:$0xff] %vm1364, %v1291
      %1377 = vst.msk [vmem:[#allocation3 + $0x60] sm:$0xff] %vm1364, %v1293
      %1378 = vst.msk [vmem:[#allocation3 + $0x68] sm:$0xff] %vm1364, %v1295
      %1379 = vst.msk [vmem:[#allocation3 + $0x70] sm:$0xff] %vm1364, %v1297
      %1380 = vst.msk [vmem:[#allocation3 + $0x78] sm:$0xff] %vm1364, %v1299
      %1381 = vst.msk [vmem:[#allocation3 + $0x80] sm:$0xff] %vm1364, %v1301
      %1382 = vst.msk [vmem:[#allocation3 + $0x88] sm:$0xff] %vm1364, %v1303
      %1383 = vst.msk [vmem:[#allocation3 + $0x90] sm:$0xff] %vm1364, %v1305
      %1384 = vst.msk [vmem:[#allocation3 + $0x98] sm:$0xff] %vm1364, %v1307
      %1385 = vst.msk [vmem:[#allocation3 + $0xa0] sm:$0xff] %vm1364, %v1309
      %1386 = vst.msk [vmem:[#allocation3 + $0xa8] sm:$0xff] %vm1364, %v1311
      %1387 = vst.msk [vmem:[#allocation3 + $0xb0] sm:$0xff] %vm1364, %v1313
      %1388 = vst.msk [vmem:[#allocation3 + $0xb8] sm:$0xff] %vm1364, %v1315
      %1389 = vst.msk [vmem:[#allocation3 + $0xc0] sm:$0xff] %vm1364, %v1317
      %1390 = vst.msk [vmem:[#allocation3 + $0xc8] sm:$0xff] %vm1364, %v1319
      %1391 = vst.msk [vmem:[#allocation3 + $0xd0] sm:$0xff] %vm1364, %v1321
      %1392 = vst.msk [vmem:[#allocation3 + $0xd8] sm:$0xff] %vm1364, %v1323
      %1393 = vst.msk [vmem:[#allocation3 + $0xe0] sm:$0xff] %vm1364, %v1325
      %1394 = vst.msk [vmem:[#allocation3 + $0xe8] sm:$0xff] %vm1364, %v1327
      %1395 = vst.msk [vmem:[#allocation3 + $0xf0] sm:$0xff] %vm1364, %v1329
      %1396 = vst.msk [vmem:[#allocation3 + $0xf8] sm:$0xff] %vm1364, %v1331
      %s1397 = scalar_lea.vmem %s345, 96
      %v1398 = vld [vmem:[%s1397] sm:$0xff]
      %v1399 = vld [vmem:[%s1397 + $0x8] sm:$0xff]
      %v1400 = vld [vmem:[%s1397 + $0x18] sm:$0xff]
      %v1401 = vld [vmem:[%s1397 + $0x20] sm:$0xff]
      %v1402 = vld [vmem:[%s1397 + $0x30] sm:$0xff]
      %v1403 = vld [vmem:[%s1397 + $0x38] sm:$0xff]
      %v1404 = vld [vmem:[%s1397 + $0x48] sm:$0xff]
      %v1405 = vld [vmem:[%s1397 + $0x50] sm:$0xff]
      %v1406 = vld [vmem:[%s1397 + $0x60] sm:$0xff]
      %v1407 = vld [vmem:[%s1397 + $0x68] sm:$0xff]
      %v1408 = vld [vmem:[%s1397 + $0x78] sm:$0xff]
      %v1409 = vld [vmem:[%s1397 + $0x80] sm:$0xff]
      %v1410 = vld [vmem:[%s1397 + $0x90] sm:$0xff]
      %v1411 = vld [vmem:[%s1397 + $0x98] sm:$0xff]
      %v1412 = vld [vmem:[%s1397 + $0xa8] sm:$0xff]
      %v1413 = vld [vmem:[%s1397 + $0xb0] sm:$0xff]
      %v1414 = vld [vmem:[%s1397 + $0xc0] sm:$0xff]
      %v1415 = vld [vmem:[%s1397 + $0xc8] sm:$0xff]
      %v1416 = vld [vmem:[%s1397 + $0xd8] sm:$0xff]
      %v1417 = vld [vmem:[%s1397 + $0xe0] sm:$0xff]
      %v1418 = vld [vmem:[%s1397 + $0xf0] sm:$0xff]
      %v1419 = vld [vmem:[%s1397 + $0xf8] sm:$0xff]
      %v1420 = vld [vmem:[%s1397 + $0x108] sm:$0xff]
      %v1421 = vld [vmem:[%s1397 + $0x110] sm:$0xff]
      %v1422 = vld [vmem:[%s1397 + $0x120] sm:$0xff]
      %v1423 = vld [vmem:[%s1397 + $0x128] sm:$0xff]
      %v1424 = vld [vmem:[%s1397 + $0x138] sm:$0xff]
      %v1425 = vld [vmem:[%s1397 + $0x140] sm:$0xff]
      %v1426 = vld [vmem:[%s1397 + $0x150] sm:$0xff]
      %v1427 = vld [vmem:[%s1397 + $0x158] sm:$0xff]
      %v1428 = vld [vmem:[%s1397 + $0x168] sm:$0xff]
      %v1429 = vld [vmem:[%s1397 + $0x170] sm:$0xff]
      %1462 = vrot.lane.b32.xlu0 %v1398, 48
      %v1463 = vpop.permute.xlu0 %1462
      %1464 = vrot.lane.b32.xlu0 %v1399, 48
      %v1465 = vpop.permute.xlu0 %1464
      %1466 = vrot.lane.b32.xlu0 %v1400, 48
      %v1467 = vpop.permute.xlu0 %1466
      %1468 = vrot.lane.b32.xlu0 %v1401, 48
      %v1469 = vpop.permute.xlu0 %1468
      %1470 = vrot.lane.b32.xlu0 %v1402, 48
      %v1471 = vpop.permute.xlu0 %1470
      %1472 = vrot.lane.b32.xlu0 %v1403, 48
      %v1473 = vpop.permute.xlu0 %1472
      %1474 = vrot.lane.b32.xlu0 %v1404, 48
      %v1475 = vpop.permute.xlu0 %1474
      %1476 = vrot.lane.b32.xlu0 %v1405, 48
      %v1477 = vpop.permute.xlu0 %1476
      %1478 = vrot.lane.b32.xlu0 %v1406, 48
      %v1479 = vpop.permute.xlu0 %1478
      %1480 = vrot.lane.b32.xlu0 %v1407, 48
      %v1481 = vpop.permute.xlu0 %1480
      %1482 = vrot.lane.b32.xlu0 %v1408, 48
      %v1483 = vpop.permute.xlu0 %1482
      %1484 = vrot.lane.b32.xlu0 %v1409, 48
      %v1485 = vpop.permute.xlu0 %1484
      %1486 = vrot.lane.b32.xlu0 %v1410, 48
      %v1487 = vpop.permute.xlu0 %1486
      %1488 = vrot.lane.b32.xlu0 %v1411, 48
      %v1489 = vpop.permute.xlu0 %1488
      %1490 = vrot.lane.b32.xlu0 %v1412, 48
      %v1491 = vpop.permute.xlu0 %1490
      %1492 = vrot.lane.b32.xlu0 %v1413, 48
      %v1493 = vpop.permute.xlu0 %1492
      %1494 = vrot.lane.b32.xlu0 %v1414, 48
      %v1495 = vpop.permute.xlu0 %1494
      %1496 = vrot.lane.b32.xlu0 %v1415, 48
      %v1497 = vpop.permute.xlu0 %1496
      %1498 = vrot.lane.b32.xlu0 %v1416, 48
      %v1499 = vpop.permute.xlu0 %1498
      %1500 = vrot.lane.b32.xlu0 %v1417, 48
      %v1501 = vpop.permute.xlu0 %1500
      %1502 = vrot.lane.b32.xlu0 %v1418, 48
      %v1503 = vpop.permute.xlu0 %1502
      %1504 = vrot.lane.b32.xlu0 %v1419, 48
      %v1505 = vpop.permute.xlu0 %1504
      %1506 = vrot.lane.b32.xlu0 %v1420, 48
      %v1507 = vpop.permute.xlu0 %1506
      %1508 = vrot.lane.b32.xlu0 %v1421, 48
      %v1509 = vpop.permute.xlu0 %1508
      %1510 = vrot.lane.b32.xlu0 %v1422, 48
      %v1511 = vpop.permute.xlu0 %1510
      %1512 = vrot.lane.b32.xlu0 %v1423, 48
      %v1513 = vpop.permute.xlu0 %1512
      %1514 = vrot.lane.b32.xlu0 %v1424, 48
      %v1515 = vpop.permute.xlu0 %1514
      %1516 = vrot.lane.b32.xlu0 %v1425, 48
      %v1517 = vpop.permute.xlu0 %1516
      %1518 = vrot.lane.b32.xlu0 %v1426, 48
      %v1519 = vpop.permute.xlu0 %1518
      %1520 = vrot.lane.b32.xlu0 %v1427, 48
      %v1521 = vpop.permute.xlu0 %1520
      %1522 = vrot.lane.b32.xlu0 %v1428, 48
      %v1523 = vpop.permute.xlu0 %1522
      %1524 = vrot.lane.b32.xlu0 %v1429, 48
      %v1525 = vpop.permute.xlu0 %1524
      %vm1558 = vcmask 458112
      %1559 = vst.msk [vmem:[#allocation3] sm:$0xff] %vm1558, %v1463
      %1560 = vst.msk [vmem:[#allocation3 + $0x8] sm:$0xff] %vm1558, %v1465
      %1561 = vst.msk [vmem:[#allocation3 + $0x10] sm:$0xff] %vm1558, %v1467
      %1562 = vst.msk [vmem:[#allocation3 + $0x18] sm:$0xff] %vm1558, %v1469
      %1563 = vst.msk [vmem:[#allocation3 + $0x20] sm:$0xff] %vm1558, %v1471
      %1564 = vst.msk [vmem:[#allocation3 + $0x28] sm:$0xff] %vm1558, %v1473
      %1565 = vst.msk [vmem:[#allocation3 + $0x30] sm:$0xff] %vm1558, %v1475
      %1566 = vst.msk [vmem:[#allocation3 + $0x38] sm:$0xff] %vm1558, %v1477
      %1567 = vst.msk [vmem:[#allocation3 + $0x40] sm:$0xff] %vm1558, %v1479
      %1568 = vst.msk [vmem:[#allocation3 + $0x48] sm:$0xff] %vm1558, %v1481
      %1569 = vst.msk [vmem:[#allocation3 + $0x50] sm:$0xff] %vm1558, %v1483
      %1570 = vst.msk [vmem:[#allocation3 + $0x58] sm:$0xff] %vm1558, %v1485
      %1571 = vst.msk [vmem:[#allocation3 + $0x60] sm:$0xff] %vm1558, %v1487
      %1572 = vst.msk [vmem:[#allocation3 + $0x68] sm:$0xff] %vm1558, %v1489
      %1573 = vst.msk [vmem:[#allocation3 + $0x70] sm:$0xff] %vm1558, %v1491
      %1574 = vst.msk [vmem:[#allocation3 + $0x78] sm:$0xff] %vm1558, %v1493
      %1575 = vst.msk [vmem:[#allocation3 + $0x80] sm:$0xff] %vm1558, %v1495
      %1576 = vst.msk [vmem:[#allocation3 + $0x88] sm:$0xff] %vm1558, %v1497
      %1577 = vst.msk [vmem:[#allocation3 + $0x90] sm:$0xff] %vm1558, %v1499
      %1578 = vst.msk [vmem:[#allocation3 + $0x98] sm:$0xff] %vm1558, %v1501
      %1579 = vst.msk [vmem:[#allocation3 + $0xa0] sm:$0xff] %vm1558, %v1503
      %1580 = vst.msk [vmem:[#allocation3 + $0xa8] sm:$0xff] %vm1558, %v1505
      %1581 = vst.msk [vmem:[#allocation3 + $0xb0] sm:$0xff] %vm1558, %v1507
      %1582 = vst.msk [vmem:[#allocation3 + $0xb8] sm:$0xff] %vm1558, %v1509
      %1583 = vst.msk [vmem:[#allocation3 + $0xc0] sm:$0xff] %vm1558, %v1511
      %1584 = vst.msk [vmem:[#allocation3 + $0xc8] sm:$0xff] %vm1558, %v1513
      %1585 = vst.msk [vmem:[#allocation3 + $0xd0] sm:$0xff] %vm1558, %v1515
      %1586 = vst.msk [vmem:[#allocation3 + $0xd8] sm:$0xff] %vm1558, %v1517
      %1587 = vst.msk [vmem:[#allocation3 + $0xe0] sm:$0xff] %vm1558, %v1519
      %1588 = vst.msk [vmem:[#allocation3 + $0xe8] sm:$0xff] %vm1558, %v1521
      %1589 = vst.msk [vmem:[#allocation3 + $0xf0] sm:$0xff] %vm1558, %v1523
      %1590 = vst.msk [vmem:[#allocation3 + $0xf8] sm:$0xff] %vm1558, %v1525
      %v1591 = vld [vmem:[%s1397 + $0x2] sm:$0xff]
      %v1592 = vld [vmem:[%s1397 + $0xa] sm:$0xff]
      %v1593 = vld [vmem:[%s1397 + $0x1a] sm:$0xff]
      %v1594 = vld [vmem:[%s1397 + $0x22] sm:$0xff]
      %v1595 = vld [vmem:[%s1397 + $0x32] sm:$0xff]
      %v1596 = vld [vmem:[%s1397 + $0x3a] sm:$0xff]
      %v1597 = vld [vmem:[%s1397 + $0x4a] sm:$0xff]
      %v1598 = vld [vmem:[%s1397 + $0x52] sm:$0xff]
      %v1599 = vld [vmem:[%s1397 + $0x62] sm:$0xff]
      %v1600 = vld [vmem:[%s1397 + $0x6a] sm:$0xff]
      %v1601 = vld [vmem:[%s1397 + $0x7a] sm:$0xff]
      %v1602 = vld [vmem:[%s1397 + $0x82] sm:$0xff]
      %v1603 = vld [vmem:[%s1397 + $0x92] sm:$0xff]
      %v1604 = vld [vmem:[%s1397 + $0x9a] sm:$0xff]
      %v1605 = vld [vmem:[%s1397 + $0xaa] sm:$0xff]
      %v1606 = vld [vmem:[%s1397 + $0xb2] sm:$0xff]
      %v1607 = vld [vmem:[%s1397 + $0xc2] sm:$0xff]
      %v1608 = vld [vmem:[%s1397 + $0xca] sm:$0xff]
      %v1609 = vld [vmem:[%s1397 + $0xda] sm:$0xff]
      %v1610 = vld [vmem:[%s1397 + $0xe2] sm:$0xff]
      %v1611 = vld [vmem:[%s1397 + $0xf2] sm:$0xff]
      %v1612 = vld [vmem:[%s1397 + $0xfa] sm:$0xff]
      %v1613 = vld [vmem:[%s1397 + $0x10a] sm:$0xff]
      %v1614 = vld [vmem:[%s1397 + $0x112] sm:$0xff]
      %v1615 = vld [vmem:[%s1397 + $0x122] sm:$0xff]
      %v1616 = vld [vmem:[%s1397 + $0x12a] sm:$0xff]
      %v1617 = vld [vmem:[%s1397 + $0x13a] sm:$0xff]
      %v1618 = vld [vmem:[%s1397 + $0x142] sm:$0xff]
      %v1619 = vld [vmem:[%s1397 + $0x152] sm:$0xff]
      %v1620 = vld [vmem:[%s1397 + $0x15a] sm:$0xff]
      %v1621 = vld [vmem:[%s1397 + $0x16a] sm:$0xff]
      %v1622 = vld [vmem:[%s1397 + $0x172] sm:$0xff]
      %1655 = vrot.lane.b32.xlu0 %v1591, 56
      %v1656 = vpop.permute.xlu0 %1655
      %1657 = vrot.lane.b32.xlu0 %v1592, 56
      %v1658 = vpop.permute.xlu0 %1657
      %1659 = vrot.lane.b32.xlu0 %v1593, 56
      %v1660 = vpop.permute.xlu0 %1659
      %1661 = vrot.lane.b32.xlu0 %v1594, 56
      %v1662 = vpop.permute.xlu0 %1661
      %1663 = vrot.lane.b32.xlu0 %v1595, 56
      %v1664 = vpop.permute.xlu0 %1663
      %1665 = vrot.lane.b32.xlu0 %v1596, 56
      %v1666 = vpop.permute.xlu0 %1665
      %1667 = vrot.lane.b32.xlu0 %v1597, 56
      %v1668 = vpop.permute.xlu0 %1667
      %1669 = vrot.lane.b32.xlu0 %v1598, 56
      %v1670 = vpop.permute.xlu0 %1669
      %1671 = vrot.lane.b32.xlu0 %v1599, 56
      %v1672 = vpop.permute.xlu0 %1671
      %1673 = vrot.lane.b32.xlu0 %v1600, 56
      %v1674 = vpop.permute.xlu0 %1673
      %1675 = vrot.lane.b32.xlu0 %v1601, 56
      %v1676 = vpop.permute.xlu0 %1675
      %1677 = vrot.lane.b32.xlu0 %v1602, 56
      %v1678 = vpop.permute.xlu0 %1677
      %1679 = vrot.lane.b32.xlu0 %v1603, 56
      %v1680 = vpop.permute.xlu0 %1679
      %1681 = vrot.lane.b32.xlu0 %v1604, 56
      %v1682 = vpop.permute.xlu0 %1681
      %1683 = vrot.lane.b32.xlu0 %v1605, 56
      %v1684 = vpop.permute.xlu0 %1683
      %1685 = vrot.lane.b32.xlu0 %v1606, 56
      %v1686 = vpop.permute.xlu0 %1685
      %1687 = vrot.lane.b32.xlu0 %v1607, 56
      %v1688 = vpop.permute.xlu0 %1687
      %1689 = vrot.lane.b32.xlu0 %v1608, 56
      %v1690 = vpop.permute.xlu0 %1689
      %1691 = vrot.lane.b32.xlu0 %v1609, 56
      %v1692 = vpop.permute.xlu0 %1691
      %1693 = vrot.lane.b32.xlu0 %v1610, 56
      %v1694 = vpop.permute.xlu0 %1693
      %1695 = vrot.lane.b32.xlu0 %v1611, 56
      %v1696 = vpop.permute.xlu0 %1695
      %1697 = vrot.lane.b32.xlu0 %v1612, 56
      %v1698 = vpop.permute.xlu0 %1697
      %1699 = vrot.lane.b32.xlu0 %v1613, 56
      %v1700 = vpop.permute.xlu0 %1699
      %1701 = vrot.lane.b32.xlu0 %v1614, 56
      %v1702 = vpop.permute.xlu0 %1701
      %1703 = vrot.lane.b32.xlu0 %v1615, 56
      %v1704 = vpop.permute.xlu0 %1703
      %1705 = vrot.lane.b32.xlu0 %v1616, 56
      %v1706 = vpop.permute.xlu0 %1705
      %1707 = vrot.lane.b32.xlu0 %v1617, 56
      %v1708 = vpop.permute.xlu0 %1707
      %1709 = vrot.lane.b32.xlu0 %v1618, 56
      %v1710 = vpop.permute.xlu0 %1709
      %1711 = vrot.lane.b32.xlu0 %v1619, 56
      %v1712 = vpop.permute.xlu0 %1711
      %1713 = vrot.lane.b32.xlu0 %v1620, 56
      %v1714 = vpop.permute.xlu0 %1713
      %1715 = vrot.lane.b32.xlu0 %v1621, 56
      %v1716 = vpop.permute.xlu0 %1715
      %1717 = vrot.lane.b32.xlu0 %v1622, 56
      %v1718 = vpop.permute.xlu0 %1717
      %vm1751 = vcmask 523712
      %1752 = vst.msk [vmem:[#allocation3] sm:$0xff] %vm1751, %v1656
      %1753 = vst.msk [vmem:[#allocation3 + $0x8] sm:$0xff] %vm1751, %v1658
      %1754 = vst.msk [vmem:[#allocation3 + $0x10] sm:$0xff] %vm1751, %v1660
      %1755 = vst.msk [vmem:[#allocation3 + $0x18] sm:$0xff] %vm1751, %v1662
      %1756 = vst.msk [vmem:[#allocation3 + $0x20] sm:$0xff] %vm1751, %v1664
      %1757 = vst.msk [vmem:[#allocation3 + $0x28] sm:$0xff] %vm1751, %v1666
      %1758 = vst.msk [vmem:[#allocation3 + $0x30] sm:$0xff] %vm1751, %v1668
      %1759 = vst.msk [vmem:[#allocation3 + $0x38] sm:$0xff] %vm1751, %v1670
      %1760 = vst.msk [vmem:[#allocation3 + $0x40] sm:$0xff] %vm1751, %v1672
      %1761 = vst.msk [vmem:[#allocation3 + $0x48] sm:$0xff] %vm1751, %v1674
      %1762 = vst.msk [vmem:[#allocation3 + $0x50] sm:$0xff] %vm1751, %v1676
      %1763 = vst.msk [vmem:[#allocation3 + $0x58] sm:$0xff] %vm1751, %v1678
      %1764 = vst.msk [vmem:[#allocation3 + $0x60] sm:$0xff] %vm1751, %v1680
      %1765 = vst.msk [vmem:[#allocation3 + $0x68] sm:$0xff] %vm1751, %v1682
      %1766 = vst.msk [vmem:[#allocation3 + $0x70] sm:$0xff] %vm1751, %v1684
      %1767 = vst.msk [vmem:[#allocation3 + $0x78] sm:$0xff] %vm1751, %v1686
      %1768 = vst.msk [vmem:[#allocation3 + $0x80] sm:$0xff] %vm1751, %v1688
      %1769 = vst.msk [vmem:[#allocation3 + $0x88] sm:$0xff] %vm1751, %v1690
      %1770 = vst.msk [vmem:[#allocation3 + $0x90] sm:$0xff] %vm1751, %v1692
      %1771 = vst.msk [vmem:[#allocation3 + $0x98] sm:$0xff] %vm1751, %v1694
      %1772 = vst.msk [vmem:[#allocation3 + $0xa0] sm:$0xff] %vm1751, %v1696
      %1773 = vst.msk [vmem:[#allocation3 + $0xa8] sm:$0xff] %vm1751, %v1698
      %1774 = vst.msk [vmem:[#allocation3 + $0xb0] sm:$0xff] %vm1751, %v1700
      %1775 = vst.msk [vmem:[#allocation3 + $0xb8] sm:$0xff] %vm1751, %v1702
      %1776 = vst.msk [vmem:[#allocation3 + $0xc0] sm:$0xff] %vm1751, %v1704
      %1777 = vst.msk [vmem:[#allocation3 + $0xc8] sm:$0xff] %vm1751, %v1706
      %1778 = vst.msk [vmem:[#allocation3 + $0xd0] sm:$0xff] %vm1751, %v1708
      %1779 = vst.msk [vmem:[#allocation3 + $0xd8] sm:$0xff] %vm1751, %v1710
      %1780 = vst.msk [vmem:[#allocation3 + $0xe0] sm:$0xff] %vm1751, %v1712
      %1781 = vst.msk [vmem:[#allocation3 + $0xe8] sm:$0xff] %vm1751, %v1714
      %1782 = vst.msk [vmem:[#allocation3 + $0xf0] sm:$0xff] %vm1751, %v1716
      %1783 = vst.msk [vmem:[#allocation3 + $0xf8] sm:$0xff] %vm1751, %v1718
      %v1784 = vld [vmem:[%s1397 + $0x4] sm:$0xff]
      %v1785 = vld [vmem:[%s1397 + $0xc] sm:$0xff]
      %v1786 = vld [vmem:[%s1397 + $0x1c] sm:$0xff]
      %v1787 = vld [vmem:[%s1397 + $0x24] sm:$0xff]
      %v1788 = vld [vmem:[%s1397 + $0x34] sm:$0xff]
      %v1789 = vld [vmem:[%s1397 + $0x3c] sm:$0xff]
      %v1790 = vld [vmem:[%s1397 + $0x4c] sm:$0xff]
      %v1791 = vld [vmem:[%s1397 + $0x54] sm:$0xff]
      %v1792 = vld [vmem:[%s1397 + $0x64] sm:$0xff]
      %v1793 = vld [vmem:[%s1397 + $0x6c] sm:$0xff]
      %v1794 = vld [vmem:[%s1397 + $0x7c] sm:$0xff]
      %v1795 = vld [vmem:[%s1397 + $0x84] sm:$0xff]
      %v1796 = vld [vmem:[%s1397 + $0x94] sm:$0xff]
      %v1797 = vld [vmem:[%s1397 + $0x9c] sm:$0xff]
      %v1798 = vld [vmem:[%s1397 + $0xac] sm:$0xff]
      %v1799 = vld [vmem:[%s1397 + $0xb4] sm:$0xff]
      %v1800 = vld [vmem:[%s1397 + $0xc4] sm:$0xff]
      %v1801 = vld [vmem:[%s1397 + $0xcc] sm:$0xff]
      %v1802 = vld [vmem:[%s1397 + $0xdc] sm:$0xff]
      %v1803 = vld [vmem:[%s1397 + $0xe4] sm:$0xff]
      %v1804 = vld [vmem:[%s1397 + $0xf4] sm:$0xff]
      %v1805 = vld [vmem:[%s1397 + $0xfc] sm:$0xff]
      %v1806 = vld [vmem:[%s1397 + $0x10c] sm:$0xff]
      %v1807 = vld [vmem:[%s1397 + $0x114] sm:$0xff]
      %v1808 = vld [vmem:[%s1397 + $0x124] sm:$0xff]
      %v1809 = vld [vmem:[%s1397 + $0x12c] sm:$0xff]
      %v1810 = vld [vmem:[%s1397 + $0x13c] sm:$0xff]
      %v1811 = vld [vmem:[%s1397 + $0x144] sm:$0xff]
      %v1812 = vld [vmem:[%s1397 + $0x154] sm:$0xff]
      %v1813 = vld [vmem:[%s1397 + $0x15c] sm:$0xff]
      %v1814 = vld [vmem:[%s1397 + $0x16c] sm:$0xff]
      %v1815 = vld [vmem:[%s1397 + $0x174] sm:$0xff]
      %1848 = vrot.lane.b32.xlu0 %v1784, 64
      %v1849 = vpop.permute.xlu0 %1848
      %1850 = vrot.lane.b32.xlu0 %v1785, 64
      %v1851 = vpop.permute.xlu0 %1850
      %1852 = vrot.lane.b32.xlu0 %v1786, 64
      %v1853 = vpop.permute.xlu0 %1852
      %1854 = vrot.lane.b32.xlu0 %v1787, 64
      %v1855 = vpop.permute.xlu0 %1854
      %1856 = vrot.lane.b32.xlu0 %v1788, 64
      %v1857 = vpop.permute.xlu0 %1856
      %1858 = vrot.lane.b32.xlu0 %v1789, 64
      %v1859 = vpop.permute.xlu0 %1858
      %1860 = vrot.lane.b32.xlu0 %v1790, 64
      %v1861 = vpop.permute.xlu0 %1860
      %1862 = vrot.lane.b32.xlu0 %v1791, 64
      %v1863 = vpop.permute.xlu0 %1862
      %1864 = vrot.lane.b32.xlu0 %v1792, 64
      %v1865 = vpop.permute.xlu0 %1864
      %1866 = vrot.lane.b32.xlu0 %v1793, 64
      %v1867 = vpop.permute.xlu0 %1866
      %1868 = vrot.lane.b32.xlu0 %v1794, 64
      %v1869 = vpop.permute.xlu0 %1868
      %1870 = vrot.lane.b32.xlu0 %v1795, 64
      %v1871 = vpop.permute.xlu0 %1870
      %1872 = vrot.lane.b32.xlu0 %v1796, 64
      %v1873 = vpop.permute.xlu0 %1872
      %1874 = vrot.lane.b32.xlu0 %v1797, 64
      %v1875 = vpop.permute.xlu0 %1874
      %1876 = vrot.lane.b32.xlu0 %v1798, 64
      %v1877 = vpop.permute.xlu0 %1876
      %1878 = vrot.lane.b32.xlu0 %v1799, 64
      %v1879 = vpop.permute.xlu0 %1878
      %1880 = vrot.lane.b32.xlu0 %v1800, 64
      %v1881 = vpop.permute.xlu0 %1880
      %1882 = vrot.lane.b32.xlu0 %v1801, 64
      %v1883 = vpop.permute.xlu0 %1882
      %1884 = vrot.lane.b32.xlu0 %v1802, 64
      %v1885 = vpop.permute.xlu0 %1884
      %1886 = vrot.lane.b32.xlu0 %v1803, 64
      %v1887 = vpop.permute.xlu0 %1886
      %1888 = vrot.lane.b32.xlu0 %v1804, 64
      %v1889 = vpop.permute.xlu0 %1888
      %1890 = vrot.lane.b32.xlu0 %v1805, 64
      %v1891 = vpop.permute.xlu0 %1890
      %1892 = vrot.lane.b32.xlu0 %v1806, 64
      %v1893 = vpop.permute.xlu0 %1892
      %1894 = vrot.lane.b32.xlu0 %v1807, 64
      %v1895 = vpop.permute.xlu0 %1894
      %1896 = vrot.lane.b32.xlu0 %v1808, 64
      %v1897 = vpop.permute.xlu0 %1896
      %1898 = vrot.lane.b32.xlu0 %v1809, 64
      %v1899 = vpop.permute.xlu0 %1898
      %1900 = vrot.lane.b32.xlu0 %v1810, 64
      %v1901 = vpop.permute.xlu0 %1900
      %1902 = vrot.lane.b32.xlu0 %v1811, 64
      %v1903 = vpop.permute.xlu0 %1902
      %1904 = vrot.lane.b32.xlu0 %v1812, 64
      %v1905 = vpop.permute.xlu0 %1904
      %1906 = vrot.lane.b32.xlu0 %v1813, 64
      %v1907 = vpop.permute.xlu0 %1906
      %1908 = vrot.lane.b32.xlu0 %v1814, 64
      %v1909 = vpop.permute.xlu0 %1908
      %1910 = vrot.lane.b32.xlu0 %v1815, 64
      %v1911 = vpop.permute.xlu0 %1910
      %vm1944 = vcmask 589312
      %1945 = vst.msk [vmem:[#allocation3] sm:$0xff] %vm1944, %v1849
      %1946 = vst.msk [vmem:[#allocation3 + $0x8] sm:$0xff] %vm1944, %v1851
      %1947 = vst.msk [vmem:[#allocation3 + $0x10] sm:$0xff] %vm1944, %v1853
      %1948 = vst.msk [vmem:[#allocation3 + $0x18] sm:$0xff] %vm1944, %v1855
      %1949 = vst.msk [vmem:[#allocation3 + $0x20] sm:$0xff] %vm1944, %v1857
      %1950 = vst.msk [vmem:[#allocation3 + $0x28] sm:$0xff] %vm1944, %v1859
      %1951 = vst.msk [vmem:[#allocation3 + $0x30] sm:$0xff] %vm1944, %v1861
      %1952 = vst.msk [vmem:[#allocation3 + $0x38] sm:$0xff] %vm1944, %v1863
      %1953 = vst.msk [vmem:[#allocation3 + $0x40] sm:$0xff] %vm1944, %v1865
      %1954 = vst.msk [vmem:[#allocation3 + $0x48] sm:$0xff] %vm1944, %v1867
      %1955 = vst.msk [vmem:[#allocation3 + $0x50] sm:$0xff] %vm1944, %v1869
      %1956 = vst.msk [vmem:[#allocation3 + $0x58] sm:$0xff] %vm1944, %v1871
      %1957 = vst.msk [vmem:[#allocation3 + $0x60] sm:$0xff] %vm1944, %v1873
      %1958 = vst.msk [vmem:[#allocation3 + $0x68] sm:$0xff] %vm1944, %v1875
      %1959 = vst.msk [vmem:[#allocation3 + $0x70] sm:$0xff] %vm1944, %v1877
      %1960 = vst.msk [vmem:[#allocation3 + $0x78] sm:$0xff] %vm1944, %v1879
      %1961 = vst.msk [vmem:[#allocation3 + $0x80] sm:$0xff] %vm1944, %v1881
      %1962 = vst.msk [vmem:[#allocation3 + $0x88] sm:$0xff] %vm1944, %v1883
      %1963 = vst.msk [vmem:[#allocation3 + $0x90] sm:$0xff] %vm1944, %v1885
      %1964 = vst.msk [vmem:[#allocation3 + $0x98] sm:$0xff] %vm1944, %v1887
      %1965 = vst.msk [vmem:[#allocation3 + $0xa0] sm:$0xff] %vm1944, %v1889
      %1966 = vst.msk [vmem:[#allocation3 + $0xa8] sm:$0xff] %vm1944, %v1891
      %1967 = vst.msk [vmem:[#allocation3 + $0xb0] sm:$0xff] %vm1944, %v1893
      %1968 = vst.msk [vmem:[#allocation3 + $0xb8] sm:$0xff] %vm1944, %v1895
      %1969 = vst.msk [vmem:[#allocation3 + $0xc0] sm:$0xff] %vm1944, %v1897
      %1970 = vst.msk [vmem:[#allocation3 + $0xc8] sm:$0xff] %vm1944, %v1899
      %1971 = vst.msk [vmem:[#allocation3 + $0xd0] sm:$0xff] %vm1944, %v1901
      %1972 = vst.msk [vmem:[#allocation3 + $0xd8] sm:$0xff] %vm1944, %v1903
      %1973 = vst.msk [vmem:[#allocation3 + $0xe0] sm:$0xff] %vm1944, %v1905
      %1974 = vst.msk [vmem:[#allocation3 + $0xe8] sm:$0xff] %vm1944, %v1907
      %1975 = vst.msk [vmem:[#allocation3 + $0xf0] sm:$0xff] %vm1944, %v1909
      %1976 = vst.msk [vmem:[#allocation3 + $0xf8] sm:$0xff] %vm1944, %v1911
      %v1977 = vld [vmem:[#allocation3] sm:$0xff]
      %v1978 = vld [vmem:[#allocation3 + $0x8] sm:$0xff]
      %v1979 = vld [vmem:[#allocation3 + $0x10] sm:$0xff]
      %v1980 = vld [vmem:[#allocation3 + $0x18] sm:$0xff]
      %v1981 = vld [vmem:[#allocation3 + $0x20] sm:$0xff]
      %v1982 = vld [vmem:[#allocation3 + $0x28] sm:$0xff]
      %v1983 = vld [vmem:[#allocation3 + $0x30] sm:$0xff]
      %v1984 = vld [vmem:[#allocation3 + $0x38] sm:$0xff]
      %v1985 = vld [vmem:[#allocation3 + $0x40] sm:$0xff]
      %v1986 = vld [vmem:[#allocation3 + $0x48] sm:$0xff]
      %v1987 = vld [vmem:[#allocation3 + $0x50] sm:$0xff]
      %v1988 = vld [vmem:[#allocation3 + $0x58] sm:$0xff]
      %v1989 = vld [vmem:[#allocation3 + $0x60] sm:$0xff]
      %v1990 = vld [vmem:[#allocation3 + $0x68] sm:$0xff]
      %v1991 = vld [vmem:[#allocation3 + $0x70] sm:$0xff]
      %v1992 = vld [vmem:[#allocation3 + $0x78] sm:$0xff]
      %v1993 = vld [vmem:[#allocation3 + $0x80] sm:$0xff]
      %v1994 = vld [vmem:[#allocation3 + $0x88] sm:$0xff]
      %v1995 = vld [vmem:[#allocation3 + $0x90] sm:$0xff]
      %v1996 = vld [vmem:[#allocation3 + $0x98] sm:$0xff]
      %v1997 = vld [vmem:[#allocation3 + $0xa0] sm:$0xff]
      %v1998 = vld [vmem:[#allocation3 + $0xa8] sm:$0xff]
      %v1999 = vld [vmem:[#allocation3 + $0xb0] sm:$0xff]
      %v2000 = vld [vmem:[#allocation3 + $0xb8] sm:$0xff]
      %v2001 = vld [vmem:[#allocation3 + $0xc0] sm:$0xff]
      %v2002 = vld [vmem:[#allocation3 + $0xc8] sm:$0xff]
      %v2003 = vld [vmem:[#allocation3 + $0xd0] sm:$0xff]
      %v2004 = vld [vmem:[#allocation3 + $0xd8] sm:$0xff]
      %v2005 = vld [vmem:[#allocation3 + $0xe0] sm:$0xff]
      %v2006 = vld [vmem:[#allocation3 + $0xe8] sm:$0xff]
      %v2007 = vld [vmem:[#allocation3 + $0xf0] sm:$0xff]
      %v2008 = vld [vmem:[#allocation3 + $0xf8] sm:$0xff]
      %v2009 = vld [vmem:[%s4] sm:$0xff]
      %v2010 = vld [vmem:[%s4 + $0x8] sm:$0xff]
      %v2011 = vld [vmem:[%s4 + $0x10] sm:$0xff]
      %v2012 = vld [vmem:[%s4 + $0x18] sm:$0xff]
      %v2013 = vld [vmem:[%s4 + $0x20] sm:$0xff]
      %v2014 = vld [vmem:[%s4 + $0x28] sm:$0xff]
      %v2015 = vld [vmem:[%s4 + $0x30] sm:$0xff]
      %v2016 = vld [vmem:[%s4 + $0x38] sm:$0xff]
      %v2017 = vld [vmem:[%s4 + $0x40] sm:$0xff]
      %vm2018 = vcmask 588800
      %v2020 = vsel %vm2018, %v1977, 0
      %v2023 = vsel %vm2018, %v1978, 0
      %v2026 = vsel %vm2018, %v1979, 0
      %v2029 = vsel %vm2018, %v1980, 0
      %v2032 = vsel %vm2018, %v1981, 0
      %v2035 = vsel %vm2018, %v1982, 0
      %v2038 = vsel %vm2018, %v1983, 0
      %v2041 = vsel %vm2018, %v1984, 0
      %v2044 = vsel %vm2018, %v1985, 0
      %v2047 = vsel %vm2018, %v1986, 0
      %v2050 = vsel %vm2018, %v1987, 0
      %v2053 = vsel %vm2018, %v1988, 0
      %v2056 = vsel %vm2018, %v1989, 0
      %v2059 = vsel %vm2018, %v1990, 0
      %v2062 = vsel %vm2018, %v1991, 0
      %v2065 = vsel %vm2018, %v1992, 0
      %v2068 = vsel %vm2018, %v1993, 0
      %v2071 = vsel %vm2018, %v1994, 0
      %v2074 = vsel %vm2018, %v1995, 0
      %v2077 = vsel %vm2018, %v1996, 0
      %v2080 = vsel %vm2018, %v1997, 0
      %v2083 = vsel %vm2018, %v1998, 0
      %v2086 = vsel %vm2018, %v1999, 0
      %v2089 = vsel %vm2018, %v2000, 0
      %v2092 = vsel %vm2018, %v2001, 0
      %v2095 = vsel %vm2018, %v2002, 0
      %v2098 = vsel %vm2018, %v2003, 0
      %v2101 = vsel %vm2018, %v2004, 0
      %v2104 = vsel %vm2018, %v2005, 0
      %v2107 = vsel %vm2018, %v2006, 0
      %v2110 = vsel %vm2018, %v2007, 0
      %v2113 = vsel %vm2018, %v2008, 0
      %2115 = vmatpush.msra.mxu0 0.0
      %2116 = vmatpush.msra.mxu0 0.0
      %2117 = vmatpush.msra.mxu0 0.0
      %2118 = vmatpush.msra.mxu0 0.0
      %2119 = vmatpush.msra.mxu0 0.0
      %2120 = vmatpush.msra.mxu0 0.0
      %2121 = vmatpush.msra.mxu0 0.0
      %2122 = vmatpush.msra.mxu0 %v2017
      %2123 = vmatpush.msra.mxu0 %v2016
      %2124 = vmatpush.msra.mxu0 %v2015
      %2125 = vmatpush.msra.mxu0 %v2014
      %2126 = vmatpush.msra.mxu0 %v2013
      %2127 = vmatpush.msra.mxu0 %v2012
      %2128 = vmatpush.msra.mxu0 %v2011
      %2129 = vmatpush.msra.mxu0 %v2010
      %2130 = vmatpush.msra.mxu0 %v2009
      %2131 = vmatmul.f32.gmra.mxu0 %v2020
      %v2132 = vpop.f32.mrf.mxu0
      %v2133 = vadd.f32 0.0, %v2132
      %2134 = vmatmul.f32.gmra.mxu0 %v2023
      %v2135 = vpop.f32.mrf.mxu0
      %v2136 = vadd.f32 0.0, %v2135
      %2137 = vmatmul.f32.gmra.mxu0 %v2026
      %v2138 = vpop.f32.mrf.mxu0
      %v2139 = vadd.f32 0.0, %v2138
      %2140 = vmatmul.f32.gmra.mxu0 %v2029
      %v2141 = vpop.f32.mrf.mxu0
      %v2142 = vadd.f32 0.0, %v2141
      %2143 = vmatmul.f32.gmra.mxu0 %v2032
      %v2144 = vpop.f32.mrf.mxu0
      %v2145 = vadd.f32 0.0, %v2144
      %2146 = vmatmul.f32.gmra.mxu0 %v2035
      %v2147 = vpop.f32.mrf.mxu0
      %v2148 = vadd.f32 0.0, %v2147
      %2149 = vmatmul.f32.gmra.mxu0 %v2038
      %v2150 = vpop.f32.mrf.mxu0
      %v2151 = vadd.f32 0.0, %v2150
      %2152 = vmatmul.f32.gmra.mxu0 %v2041
      %v2153 = vpop.f32.mrf.mxu0
      %v2154 = vadd.f32 0.0, %v2153
      %2155 = vmatmul.f32.gmra.mxu0 %v2044
      %v2156 = vpop.f32.mrf.mxu0
      %v2157 = vadd.f32 0.0, %v2156
      %2158 = vmatmul.f32.gmra.mxu0 %v2047
      %v2159 = vpop.f32.mrf.mxu0
      %v2160 = vadd.f32 0.0, %v2159
      %2161 = vmatmul.f32.gmra.mxu0 %v2050
      %v2162 = vpop.f32.mrf.mxu0
      %v2163 = vadd.f32 0.0, %v2162
      %2164 = vmatmul.f32.gmra.mxu0 %v2053
      %v2165 = vpop.f32.mrf.mxu0
      %v2166 = vadd.f32 0.0, %v2165
      %2167 = vmatmul.f32.gmra.mxu0 %v2056
      %v2168 = vpop.f32.mrf.mxu0
      %v2169 = vadd.f32 0.0, %v2168
      %2170 = vmatmul.f32.gmra.mxu0 %v2059
      %v2171 = vpop.f32.mrf.mxu0
      %v2172 = vadd.f32 0.0, %v2171
      %2173 = vmatmul.f32.gmra.mxu0 %v2062
      %v2174 = vpop.f32.mrf.mxu0
      %v2175 = vadd.f32 0.0, %v2174
      %2176 = vmatmul.f32.gmra.mxu0 %v2065
      %v2177 = vpop.f32.mrf.mxu0
      %v2178 = vadd.f32 0.0, %v2177
      %2179 = vmatmul.f32.gmra.mxu0 %v2068
      %v2180 = vpop.f32.mrf.mxu0
      %v2181 = vadd.f32 0.0, %v2180
      %2182 = vmatmul.f32.gmra.mxu0 %v2071
      %v2183 = vpop.f32.mrf.mxu0
      %v2184 = vadd.f32 0.0, %v2183
      %2185 = vmatmul.f32.gmra.mxu0 %v2074
      %v2186 = vpop.f32.mrf.mxu0
      %v2187 = vadd.f32 0.0, %v2186
      %2188 = vmatmul.f32.gmra.mxu0 %v2077
      %v2189 = vpop.f32.mrf.mxu0
      %v2190 = vadd.f32 0.0, %v2189
      %2191 = vmatmul.f32.gmra.mxu0 %v2080
      %v2192 = vpop.f32.mrf.mxu0
      %v2193 = vadd.f32 0.0, %v2192
      %2194 = vmatmul.f32.gmra.mxu0 %v2083
      %v2195 = vpop.f32.mrf.mxu0
      %v2196 = vadd.f32 0.0, %v2195
      %2197 = vmatmul.f32.gmra.mxu0 %v2086
      %v2198 = vpop.f32.mrf.mxu0
      %v2199 = vadd.f32 0.0, %v2198
      %2200 = vmatmul.f32.gmra.mxu0 %v2089
      %v2201 = vpop.f32.mrf.mxu0
      %v2202 = vadd.f32 0.0, %v2201
      %2203 = vmatmul.f32.gmra.mxu0 %v2092
      %v2204 = vpop.f32.mrf.mxu0
      %v2205 = vadd.f32 0.0, %v2204
      %2206 = vmatmul.f32.gmra.mxu0 %v2095
      %v2207 = vpop.f32.mrf.mxu0
      %v2208 = vadd.f32 0.0, %v2207
      %2209 = vmatmul.f32.gmra.mxu0 %v2098
      %v2210 = vpop.f32.mrf.mxu0
      %v2211 = vadd.f32 0.0, %v2210
      %2212 = vmatmul.f32.gmra.mxu0 %v2101
      %v2213 = vpop.f32.mrf.mxu0
      %v2214 = vadd.f32 0.0, %v2213
      %2215 = vmatmul.f32.gmra.mxu0 %v2104
      %v2216 = vpop.f32.mrf.mxu0
      %v2217 = vadd.f32 0.0, %v2216
      %2218 = vmatmul.f32.gmra.mxu0 %v2107
      %v2219 = vpop.f32.mrf.mxu0
      %v2220 = vadd.f32 0.0, %v2219
      %2221 = vmatmul.f32.gmra.mxu0 %v2110
      %v2222 = vpop.f32.mrf.mxu0
      %v2223 = vadd.f32 0.0, %v2222
      %2224 = vmatmul.f32.gmra.mxu0 %v2113
      %v2225 = vpop.f32.mrf.mxu0
      %v2226 = vadd.f32 0.0, %v2225
      %2227 = vdwg.mxu0
      %vm2228 = vcmp.ge.f32.partialorder %v2133, 0.0
      %vm2229 = vcmp.ge.f32.partialorder %v2136, 0.0
      %vm2230 = vcmp.ge.f32.partialorder %v2139, 0.0
      %vm2231 = vcmp.ge.f32.partialorder %v2142, 0.0
      %vm2232 = vcmp.ge.f32.partialorder %v2145, 0.0
      %vm2233 = vcmp.ge.f32.partialorder %v2148, 0.0
      %vm2234 = vcmp.ge.f32.partialorder %v2151, 0.0
      %vm2235 = vcmp.ge.f32.partialorder %v2154, 0.0
      %vm2236 = vcmp.ge.f32.partialorder %v2157, 0.0
      %vm2237 = vcmp.ge.f32.partialorder %v2160, 0.0
      %vm2238 = vcmp.ge.f32.partialorder %v2163, 0.0
      %vm2239 = vcmp.ge.f32.partialorder %v2166, 0.0
      %vm2240 = vcmp.ge.f32.partialorder %v2169, 0.0
      %vm2241 = vcmp.ge.f32.partialorder %v2172, 0.0
      %vm2242 = vcmp.ge.f32.partialorder %v2175, 0.0
      %vm2243 = vcmp.ge.f32.partialorder %v2178, 0.0
      %vm2244 = vcmp.ge.f32.partialorder %v2181, 0.0
      %vm2245 = vcmp.ge.f32.partialorder %v2184, 0.0
      %vm2246 = vcmp.ge.f32.partialorder %v2187, 0.0
      %vm2247 = vcmp.ge.f32.partialorder %v2190, 0.0
      %vm2248 = vcmp.ge.f32.partialorder %v2193, 0.0
      %vm2249 = vcmp.ge.f32.partialorder %v2196, 0.0
      %vm2250 = vcmp.ge.f32.partialorder %v2199, 0.0
      %vm2251 = vcmp.ge.f32.partialorder %v2202, 0.0
      %vm2252 = vcmp.ge.f32.partialorder %v2205, 0.0
      %vm2253 = vcmp.ge.f32.partialorder %v2208, 0.0
      %vm2254 = vcmp.ge.f32.partialorder %v2211, 0.0
      %vm2255 = vcmp.ge.f32.partialorder %v2214, 0.0
      %vm2256 = vcmp.ge.f32.partialorder %v2217, 0.0
      %vm2257 = vcmp.ge.f32.partialorder %v2220, 0.0
      %vm2258 = vcmp.ge.f32.partialorder %v2223, 0.0
      %vm2259 = vcmp.ge.f32.partialorder %v2226, 0.0
      %v2260 = vmul.f32 %v2133, 0.1
      %v2261 = vmul.f32 %v2136, 0.1
      %v2262 = vmul.f32 %v2139, 0.1
      %v2263 = vmul.f32 %v2142, 0.1
      %v2264 = vmul.f32 %v2145, 0.1
      %v2265 = vmul.f32 %v2148, 0.1
      %v2266 = vmul.f32 %v2151, 0.1
      %v2267 = vmul.f32 %v2154, 0.1
      %v2268 = vmul.f32 %v2157, 0.1
      %v2269 = vmul.f32 %v2160, 0.1
      %v2270 = vmul.f32 %v2163, 0.1
      %v2271 = vmul.f32 %v2166, 0.1
      %v2272 = vmul.f32 %v2169, 0.1
      %v2273 = vmul.f32 %v2172, 0.1
      %v2274 = vmul.f32 %v2175, 0.1
      %v2275 = vmul.f32 %v2178, 0.1
      %v2276 = vmul.f32 %v2181, 0.1
      %v2277 = vmul.f32 %v2184, 0.1
      %v2278 = vmul.f32 %v2187, 0.1
      %v2279 = vmul.f32 %v2190, 0.1
      %v2280 = vmul.f32 %v2193, 0.1
      %v2281 = vmul.f32 %v2196, 0.1
      %v2282 = vmul.f32 %v2199, 0.1
      %v2283 = vmul.f32 %v2202, 0.1
      %v2284 = vmul.f32 %v2205, 0.1
      %v2285 = vmul.f32 %v2208, 0.1
      %v2286 = vmul.f32 %v2211, 0.1
      %v2287 = vmul.f32 %v2214, 0.1
      %v2288 = vmul.f32 %v2217, 0.1
      %v2289 = vmul.f32 %v2220, 0.1
      %v2290 = vmul.f32 %v2223, 0.1
      %v2291 = vmul.f32 %v2226, 0.1
      %v2292 = vsel %vm2228, %v2133, %v2260
      %v2293 = vsel %vm2229, %v2136, %v2261
      %v2294 = vsel %vm2230, %v2139, %v2262
      %v2295 = vsel %vm2231, %v2142, %v2263
      %v2296 = vsel %vm2232, %v2145, %v2264
      %v2297 = vsel %vm2233, %v2148, %v2265
      %v2298 = vsel %vm2234, %v2151, %v2266
      %v2299 = vsel %vm2235, %v2154, %v2267
      %v2300 = vsel %vm2236, %v2157, %v2268
      %v2301 = vsel %vm2237, %v2160, %v2269
      %v2302 = vsel %vm2238, %v2163, %v2270
      %v2303 = vsel %vm2239, %v2166, %v2271
      %v2304 = vsel %vm2240, %v2169, %v2272
      %v2305 = vsel %vm2241, %v2172, %v2273
      %v2306 = vsel %vm2242, %v2175, %v2274
      %v2307 = vsel %vm2243, %v2178, %v2275
      %v2308 = vsel %vm2244, %v2181, %v2276
      %v2309 = vsel %vm2245, %v2184, %v2277
      %v2310 = vsel %vm2246, %v2187, %v2278
      %v2311 = vsel %vm2247, %v2190, %v2279
      %v2312 = vsel %vm2248, %v2193, %v2280
      %v2313 = vsel %vm2249, %v2196, %v2281
      %v2314 = vsel %vm2250, %v2199, %v2282
      %v2315 = vsel %vm2251, %v2202, %v2283
      %v2316 = vsel %vm2252, %v2205, %v2284
      %v2317 = vsel %vm2253, %v2208, %v2285
      %v2318 = vsel %vm2254, %v2211, %v2286
      %v2319 = vsel %vm2255, %v2214, %v2287
      %v2320 = vsel %vm2256, %v2217, %v2288
      %v2321 = vsel %vm2257, %v2220, %v2289
      %v2322 = vsel %vm2258, %v2223, %v2290
      %v2323 = vsel %vm2259, %v2226, %v2291
      %2324 = vst.msk [vmem:[#allocation2] sm:$0xff] %vm398, 0.0
      %2325 = vst.msk [vmem:[#allocation2 + $0x8] sm:$0xff] %vm398, 0.0
      %vm2326 = vcmask 60416
      %2327 = vst.msk [vmem:[#allocation2 + $0x10] sm:$0xf] %vm2326, 0.0
      %2328 = vst.msk [vmem:[#allocation2 + $0x18] sm:$0xff] %vm398, 0.0
      %2329 = vst.msk [vmem:[#allocation2 + $0x20] sm:$0xff] %vm398, 0.0
      %2330 = vst.msk [vmem:[#allocation2 + $0x28] sm:$0xf] %vm2326, 0.0
      %s2331 = scalar_lea.vmem [#allocation2], 432
      %2332 = vst.msk [vmem:[%s2331] sm:$0xff] %vm398, 0.0
      %2333 = vst.msk [vmem:[%s2331 + $0x8] sm:$0xff] %vm398, 0.0
      %2334 = vst.msk [vmem:[%s2331 + $0x10] sm:$0xf] %vm2326, 0.0
      %2335 = vst.msk [vmem:[%s2331 + $0x18] sm:$0xff] %vm398, 0.0
      %2336 = vst.msk [vmem:[%s2331 + $0x20] sm:$0xff] %vm398, 0.0
      %2337 = vst.msk [vmem:[%s2331 + $0x28] sm:$0xf] %vm2326, 0.0
      %s2338 = scalar_lea.vmem [#allocation2], 48
      %vm2339 = vcmask 58368
      %2340 = vst.msk [vmem:[%s2338] sm:$0x3] %vm2339, 0.0
      %2341 = vst.msk [vmem:[%s2338 + $0x18] sm:$0x3] %vm2339, 0.0
      %2342 = vst.msk [vmem:[%s2338 + $0x30] sm:$0x3] %vm2339, 0.0
      %2343 = vst.msk [vmem:[%s2338 + $0x48] sm:$0x3] %vm2339, 0.0
      %2344 = vst.msk [vmem:[%s2338 + $0x60] sm:$0x3] %vm2339, 0.0
      %2345 = vst.msk [vmem:[%s2338 + $0x78] sm:$0x3] %vm2339, 0.0
      %2346 = vst.msk [vmem:[%s2338 + $0x90] sm:$0x3] %vm2339, 0.0
      %2347 = vst.msk [vmem:[%s2338 + $0xa8] sm:$0x3] %vm2339, 0.0
      %2348 = vst.msk [vmem:[%s2338 + $0xc0] sm:$0x3] %vm2339, 0.0
      %2349 = vst.msk [vmem:[%s2338 + $0xd8] sm:$0x3] %vm2339, 0.0
      %2350 = vst.msk [vmem:[%s2338 + $0xf0] sm:$0x3] %vm2339, 0.0
      %2351 = vst.msk [vmem:[%s2338 + $0x108] sm:$0x3] %vm2339, 0.0
      %2352 = vst.msk [vmem:[%s2338 + $0x120] sm:$0x3] %vm2339, 0.0
      %2353 = vst.msk [vmem:[%s2338 + $0x138] sm:$0x3] %vm2339, 0.0
      %2354 = vst.msk [vmem:[%s2338 + $0x150] sm:$0x3] %vm2339, 0.0
      %2355 = vst.msk [vmem:[%s2338 + $0x168] sm:$0x3] %vm2339, 0.0
      %2356 = vst.msk [vmem:[%s2338 + $0x12] sm:$0x3] %vm2339, 0.0
      %2357 = vst.msk [vmem:[%s2338 + $0x2a] sm:$0x3] %vm2339, 0.0
      %2358 = vst.msk [vmem:[%s2338 + $0x42] sm:$0x3] %vm2339, 0.0
      %2359 = vst.msk [vmem:[%s2338 + $0x5a] sm:$0x3] %vm2339, 0.0
      %2360 = vst.msk [vmem:[%s2338 + $0x72] sm:$0x3] %vm2339, 0.0
      %2361 = vst.msk [vmem:[%s2338 + $0x8a] sm:$0x3] %vm2339, 0.0
      %2362 = vst.msk [vmem:[%s2338 + $0xa2] sm:$0x3] %vm2339, 0.0
      %2363 = vst.msk [vmem:[%s2338 + $0xba] sm:$0x3] %vm2339, 0.0
      %2364 = vst.msk [vmem:[%s2338 + $0xd2] sm:$0x3] %vm2339, 0.0
      %2365 = vst.msk [vmem:[%s2338 + $0xea] sm:$0x3] %vm2339, 0.0
      %2366 = vst.msk [vmem:[%s2338 + $0x102] sm:$0x3] %vm2339, 0.0
      %2367 = vst.msk [vmem:[%s2338 + $0x11a] sm:$0x3] %vm2339, 0.0
      %2368 = vst.msk [vmem:[%s2338 + $0x132] sm:$0x3] %vm2339, 0.0
      %2369 = vst.msk [vmem:[%s2338 + $0x14a] sm:$0x3] %vm2339, 0.0
      %2370 = vst.msk [vmem:[%s2338 + $0x162] sm:$0x3] %vm2339, 0.0
      %2371 = vst.msk [vmem:[%s2338 + $0x17a] sm:$0x3] %vm2339, 0.0
      %2372 = vst.msk [vmem:[%s2338 + $0x2] sm:$0xff] %vm398, %v2292
      %2373 = vst.msk [vmem:[%s2338 + $0xa] sm:$0xff] %vm398, %v2293
      %2374 = vst.msk [vmem:[%s2338 + $0x1a] sm:$0xff] %vm398, %v2294
      %2375 = vst.msk [vmem:[%s2338 + $0x22] sm:$0xff] %vm398, %v2295
      %2376 = vst.msk [vmem:[%s2338 + $0x32] sm:$0xff] %vm398, %v2296
      %2377 = vst.msk [vmem:[%s2338 + $0x3a] sm:$0xff] %vm398, %v2297
      %2378 = vst.msk [vmem:[%s2338 + $0x4a] sm:$0xff] %vm398, %v2298
      %2379 = vst.msk [vmem:[%s2338 + $0x52] sm:$0xff] %vm398, %v2299
      %2380 = vst.msk [vmem:[%s2338 + $0x62] sm:$0xff] %vm398, %v2300
      %2381 = vst.msk [vmem:[%s2338 + $0x6a] sm:$0xff] %vm398, %v2301
      %2382 = vst.msk [vmem:[%s2338 + $0x7a] sm:$0xff] %vm398, %v2302
      %2383 = vst.msk [vmem:[%s2338 + $0x82] sm:$0xff] %vm398, %v2303
      %2384 = vst.msk [vmem:[%s2338 + $0x92] sm:$0xff] %vm398, %v2304
      %2385 = vst.msk [vmem:[%s2338 + $0x9a] sm:$0xff] %vm398, %v2305
      %2386 = vst.msk [vmem:[%s2338 + $0xaa] sm:$0xff] %vm398, %v2306
      %2387 = vst.msk [vmem:[%s2338 + $0xb2] sm:$0xff] %vm398, %v2307
      %2388 = vst.msk [vmem:[%s2338 + $0xc2] sm:$0xff] %vm398, %v2308
      %2389 = vst.msk [vmem:[%s2338 + $0xca] sm:$0xff] %vm398, %v2309
      %2390 = vst.msk [vmem:[%s2338 + $0xda] sm:$0xff] %vm398, %v2310
      %2391 = vst.msk [vmem:[%s2338 + $0xe2] sm:$0xff] %vm398, %v2311
      %2392 = vst.msk [vmem:[%s2338 + $0xf2] sm:$0xff] %vm398, %v2312
      %2393 = vst.msk [vmem:[%s2338 + $0xfa] sm:$0xff] %vm398, %v2313
      %2394 = vst.msk [vmem:[%s2338 + $0x10a] sm:$0xff] %vm398, %v2314
      %2395 = vst.msk [vmem:[%s2338 + $0x112] sm:$0xff] %vm398, %v2315
      %2396 = vst.msk [vmem:[%s2338 + $0x122] sm:$0xff] %vm398, %v2316
      %2397 = vst.msk [vmem:[%s2338 + $0x12a] sm:$0xff] %vm398, %v2317
      %2398 = vst.msk [vmem:[%s2338 + $0x13a] sm:$0xff] %vm398, %v2318
      %2399 = vst.msk [vmem:[%s2338 + $0x142] sm:$0xff] %vm398, %v2319
      %2400 = vst.msk [vmem:[%s2338 + $0x152] sm:$0xff] %vm398, %v2320
      %2401 = vst.msk [vmem:[%s2338 + $0x15a] sm:$0xff] %vm398, %v2321
      %2402 = vst.msk [vmem:[%s2338 + $0x16a] sm:$0xff] %vm398, %v2322
      %2403 = vst.msk [vmem:[%s2338 + $0x172] sm:$0xff] %vm398, %v2323
      %v2404 = vld [vmem:[#allocation2] sm:$0xff]
      %v2405 = vld [vmem:[#allocation2 + $0x8] sm:$0xff]
      %v2406 = vld [vmem:[#allocation2 + $0x18] sm:$0xff]
      %v2407 = vld [vmem:[#allocation2 + $0x20] sm:$0xff]
      %v2408 = vld [vmem:[#allocation2 + $0x30] sm:$0xff]
      %v2409 = vld [vmem:[#allocation2 + $0x38] sm:$0xff]
      %v2410 = vld [vmem:[#allocation2 + $0x48] sm:$0xff]
      %v2411 = vld [vmem:[#allocation2 + $0x50] sm:$0xff]
      %v2412 = vld [vmem:[#allocation2 + $0x60] sm:$0xff]
      %v2413 = vld [vmem:[#allocation2 + $0x68] sm:$0xff]
      %v2414 = vld [vmem:[#allocation2 + $0x78] sm:$0xff]
      %v2415 = vld [vmem:[#allocation2 + $0x80] sm:$0xff]
      %v2416 = vld [vmem:[#allocation2 + $0x90] sm:$0xff]
      %v2417 = vld [vmem:[#allocation2 + $0x98] sm:$0xff]
      %v2418 = vld [vmem:[#allocation2 + $0xa8] sm:$0xff]
      %v2419 = vld [vmem:[#allocation2 + $0xb0] sm:$0xff]
      %v2420 = vld [vmem:[#allocation2 + $0xc0] sm:$0xff]
      %v2421 = vld [vmem:[#allocation2 + $0xc8] sm:$0xff]
      %v2422 = vld [vmem:[#allocation2 + $0xd8] sm:$0xff]
      %v2423 = vld [vmem:[#allocation2 + $0xe0] sm:$0xff]
      %v2424 = vld [vmem:[#allocation2 + $0xf0] sm:$0xff]
      %v2425 = vld [vmem:[#allocation2 + $0xf8] sm:$0xff]
      %v2426 = vld [vmem:[#allocation2 + $0x108] sm:$0xff]
      %v2427 = vld [vmem:[#allocation2 + $0x110] sm:$0xff]
      %v2428 = vld [vmem:[#allocation2 + $0x120] sm:$0xff]
      %v2429 = vld [vmem:[#allocation2 + $0x128] sm:$0xff]
      %v2430 = vld [vmem:[#allocation2 + $0x138] sm:$0xff]
      %v2431 = vld [vmem:[#allocation2 + $0x140] sm:$0xff]
      %v2432 = vld [vmem:[#allocation2 + $0x150] sm:$0xff]
      %v2433 = vld [vmem:[#allocation2 + $0x158] sm:$0xff]
      %v2434 = vld [vmem:[#allocation2 + $0x168] sm:$0xff]
      %v2435 = vld [vmem:[#allocation2 + $0x170] sm:$0xff]
      %2436 = vst.msk [vmem:[#allocation3] sm:$0xff] %vm398, %v2404
      %2437 = vst.msk [vmem:[#allocation3 + $0x8] sm:$0xff] %vm398, %v2405
      %2438 = vst.msk [vmem:[#allocation3 + $0x10] sm:$0xff] %vm398, %v2406
      %2439 = vst.msk [vmem:[#allocation3 + $0x18] sm:$0xff] %vm398, %v2407
      %2440 = vst.msk [vmem:[#allocation3 + $0x20] sm:$0xff] %vm398, %v2408
      %2441 = vst.msk [vmem:[#allocation3 + $0x28] sm:$0xff] %vm398, %v2409
      %2442 = vst.msk [vmem:[#allocation3 + $0x30] sm:$0xff] %vm398, %v2410
      %2443 = vst.msk [vmem:[#allocation3 + $0x38] sm:$0xff] %vm398, %v2411
      %2444 = vst.msk [vmem:[#allocation3 + $0x40] sm:$0xff] %vm398, %v2412
      %2445 = vst.msk [vmem:[#allocation3 + $0x48] sm:$0xff] %vm398, %v2413
      %2446 = vst.msk [vmem:[#allocation3 + $0x50] sm:$0xff] %vm398, %v2414
      %2447 = vst.msk [vmem:[#allocation3 + $0x58] sm:$0xff] %vm398, %v2415
      %2448 = vst.msk [vmem:[#allocation3 + $0x60] sm:$0xff] %vm398, %v2416
      %2449 = vst.msk [vmem:[#allocation3 + $0x68] sm:$0xff] %vm398, %v2417
      %2450 = vst.msk [vmem:[#allocation3 + $0x70] sm:$0xff] %vm398, %v2418
      %2451 = vst.msk [vmem:[#allocation3 + $0x78] sm:$0xff] %vm398, %v2419
      %2452 = vst.msk [vmem:[#allocation3 + $0x80] sm:$0xff] %vm398, %v2420
      %2453 = vst.msk [vmem:[#allocation3 + $0x88] sm:$0xff] %vm398, %v2421
      %2454 = vst.msk [vmem:[#allocation3 + $0x90] sm:$0xff] %vm398, %v2422
      %2455 = vst.msk [vmem:[#allocation3 + $0x98] sm:$0xff] %vm398, %v2423
      %2456 = vst.msk [vmem:[#allocation3 + $0xa0] sm:$0xff] %vm398, %v2424
      %2457 = vst.msk [vmem:[#allocation3 + $0xa8] sm:$0xff] %vm398, %v2425
      %2458 = vst.msk [vmem:[#allocation3 + $0xb0] sm:$0xff] %vm398, %v2426
      %2459 = vst.msk [vmem:[#allocation3 + $0xb8] sm:$0xff] %vm398, %v2427
      %2460 = vst.msk [vmem:[#allocation3 + $0xc0] sm:$0xff] %vm398, %v2428
      %2461 = vst.msk [vmem:[#allocation3 + $0xc8] sm:$0xff] %vm398, %v2429
      %2462 = vst.msk [vmem:[#allocation3 + $0xd0] sm:$0xff] %vm398, %v2430
      %2463 = vst.msk [vmem:[#allocation3 + $0xd8] sm:$0xff] %vm398, %v2431
      %2464 = vst.msk [vmem:[#allocation3 + $0xe0] sm:$0xff] %vm398, %v2432
      %2465 = vst.msk [vmem:[#allocation3 + $0xe8] sm:$0xff] %vm398, %v2433
      %2466 = vst.msk [vmem:[#allocation3 + $0xf0] sm:$0xff] %vm398, %v2434
      %2467 = vst.msk [vmem:[#allocation3 + $0xf8] sm:$0xff] %vm398, %v2435
      %v2468 = vld [vmem:[#allocation2 + $0x2] sm:$0xff]
      %v2469 = vld [vmem:[#allocation2 + $0xa] sm:$0xff]
      %v2470 = vld [vmem:[#allocation2 + $0x1a] sm:$0xff]
      %v2471 = vld [vmem:[#allocation2 + $0x22] sm:$0xff]
      %v2472 = vld [vmem:[#allocation2 + $0x32] sm:$0xff]
      %v2473 = vld [vmem:[#allocation2 + $0x3a] sm:$0xff]
      %v2474 = vld [vmem:[#allocation2 + $0x4a] sm:$0xff]
      %v2475 = vld [vmem:[#allocation2 + $0x52] sm:$0xff]
      %v2476 = vld [vmem:[#allocation2 + $0x62] sm:$0xff]
      %v2477 = vld [vmem:[#allocation2 + $0x6a] sm:$0xff]
      %v2478 = vld [vmem:[#allocation2 + $0x7a] sm:$0xff]
      %v2479 = vld [vmem:[#allocation2 + $0x82] sm:$0xff]
      %v2480 = vld [vmem:[#allocation2 + $0x92] sm:$0xff]
      %v2481 = vld [vmem:[#allocation2 + $0x9a] sm:$0xff]
      %v2482 = vld [vmem:[#allocation2 + $0xaa] sm:$0xff]
      %v2483 = vld [vmem:[#allocation2 + $0xb2] sm:$0xff]
      %v2484 = vld [vmem:[#allocation2 + $0xc2] sm:$0xff]
      %v2485 = vld [vmem:[#allocation2 + $0xca] sm:$0xff]
      %v2486 = vld [vmem:[#allocation2 + $0xda] sm:$0xff]
      %v2487 = vld [vmem:[#allocation2 + $0xe2] sm:$0xff]
      %v2488 = vld [vmem:[#allocation2 + $0xf2] sm:$0xff]
      %v2489 = vld [vmem:[#allocation2 + $0xfa] sm:$0xff]
      %v2490 = vld [vmem:[#allocation2 + $0x10a] sm:$0xff]
      %v2491 = vld [vmem:[#allocation2 + $0x112] sm:$0xff]
      %v2492 = vld [vmem:[#allocation2 + $0x122] sm:$0xff]
      %v2493 = vld [vmem:[#allocation2 + $0x12a] sm:$0xff]
      %v2494 = vld [vmem:[#allocation2 + $0x13a] sm:$0xff]
      %v2495 = vld [vmem:[#allocation2 + $0x142] sm:$0xff]
      %v2496 = vld [vmem:[#allocation2 + $0x152] sm:$0xff]
      %v2497 = vld [vmem:[#allocation2 + $0x15a] sm:$0xff]
      %v2498 = vld [vmem:[#allocation2 + $0x16a] sm:$0xff]
      %v2499 = vld [vmem:[#allocation2 + $0x172] sm:$0xff]
      %2532 = vrot.lane.b32.xlu0 %v2468, 8
      %v2533 = vpop.permute.xlu0 %2532
      %2534 = vrot.lane.b32.xlu0 %v2469, 8
      %v2535 = vpop.permute.xlu0 %2534
      %2536 = vrot.lane.b32.xlu0 %v2470, 8
      %v2537 = vpop.permute.xlu0 %2536
      %2538 = vrot.lane.b32.xlu0 %v2471, 8
      %v2539 = vpop.permute.xlu0 %2538
      %2540 = vrot.lane.b32.xlu0 %v2472, 8
      %v2541 = vpop.permute.xlu0 %2540
      %2542 = vrot.lane.b32.xlu0 %v2473, 8
      %v2543 = vpop.permute.xlu0 %2542
      %2544 = vrot.lane.b32.xlu0 %v2474, 8
      %v2545 = vpop.permute.xlu0 %2544
      %2546 = vrot.lane.b32.xlu0 %v2475, 8
      %v2547 = vpop.permute.xlu0 %2546
      %2548 = vrot.lane.b32.xlu0 %v2476, 8
      %v2549 = vpop.permute.xlu0 %2548
      %2550 = vrot.lane.b32.xlu0 %v2477, 8
      %v2551 = vpop.permute.xlu0 %2550
      %2552 = vrot.lane.b32.xlu0 %v2478, 8
      %v2553 = vpop.permute.xlu0 %2552
      %2554 = vrot.lane.b32.xlu0 %v2479, 8
      %v2555 = vpop.permute.xlu0 %2554
      %2556 = vrot.lane.b32.xlu0 %v2480, 8
      %v2557 = vpop.permute.xlu0 %2556
      %2558 = vrot.lane.b32.xlu0 %v2481, 8
      %v2559 = vpop.permute.xlu0 %2558
      %2560 = vrot.lane.b32.xlu0 %v2482, 8
      %v2561 = vpop.permute.xlu0 %2560
      %2562 = vrot.lane.b32.xlu0 %v2483, 8
      %v2563 = vpop.permute.xlu0 %2562
      %2564 = vrot.lane.b32.xlu0 %v2484, 8
      %v2565 = vpop.permute.xlu0 %2564
      %2566 = vrot.lane.b32.xlu0 %v2485, 8
      %v2567 = vpop.permute.xlu0 %2566
      %2568 = vrot.lane.b32.xlu0 %v2486, 8
      %v2569 = vpop.permute.xlu0 %2568
      %2570 = vrot.lane.b32.xlu0 %v2487, 8
      %v2571 = vpop.permute.xlu0 %2570
      %2572 = vrot.lane.b32.xlu0 %v2488, 8
      %v2573 = vpop.permute.xlu0 %2572
      %2574 = vrot.lane.b32.xlu0 %v2489, 8
      %v2575 = vpop.permute.xlu0 %2574
      %2576 = vrot.lane.b32.xlu0 %v2490, 8
      %v2577 = vpop.permute.xlu0 %2576
      %2578 = vrot.lane.b32.xlu0 %v2491, 8
      %v2579 = vpop.permute.xlu0 %2578
      %2580 = vrot.lane.b32.xlu0 %v2492, 8
      %v2581 = vpop.permute.xlu0 %2580
      %2582 = vrot.lane.b32.xlu0 %v2493, 8
      %v2583 = vpop.permute.xlu0 %2582
      %2584 = vrot.lane.b32.xlu0 %v2494, 8
      %v2585 = vpop.permute.xlu0 %2584
      %2586 = vrot.lane.b32.xlu0 %v2495, 8
      %v2587 = vpop.permute.xlu0 %2586
      %2588 = vrot.lane.b32.xlu0 %v2496, 8
      %v2589 = vpop.permute.xlu0 %2588
      %2590 = vrot.lane.b32.xlu0 %v2497, 8
      %v2591 = vpop.permute.xlu0 %2590
      %2592 = vrot.lane.b32.xlu0 %v2498, 8
      %v2593 = vpop.permute.xlu0 %2592
      %2594 = vrot.lane.b32.xlu0 %v2499, 8
      %v2595 = vpop.permute.xlu0 %2594
      %2628 = vst.msk [vmem:[#allocation3] sm:$0xff] %vm591, %v2533
      %2629 = vst.msk [vmem:[#allocation3 + $0x8] sm:$0xff] %vm591, %v2535
      %2630 = vst.msk [vmem:[#allocation3 + $0x10] sm:$0xff] %vm591, %v2537
      %2631 = vst.msk [vmem:[#allocation3 + $0x18] sm:$0xff] %vm591, %v2539
      %2632 = vst.msk [vmem:[#allocation3 + $0x20] sm:$0xff] %vm591, %v2541
      %2633 = vst.msk [vmem:[#allocation3 + $0x28] sm:$0xff] %vm591, %v2543
      %2634 = vst.msk [vmem:[#allocation3 + $0x30] sm:$0xff] %vm591, %v2545
      %2635 = vst.msk [vmem:[#allocation3 + $0x38] sm:$0xff] %vm591, %v2547
      %2636 = vst.msk [vmem:[#allocation3 + $0x40] sm:$0xff] %vm591, %v2549
      %2637 = vst.msk [vmem:[#allocation3 + $0x48] sm:$0xff] %vm591, %v2551
      %2638 = vst.msk [vmem:[#allocation3 + $0x50] sm:$0xff] %vm591, %v2553
      %2639 = vst.msk [vmem:[#allocation3 + $0x58] sm:$0xff] %vm591, %v2555
      %2640 = vst.msk [vmem:[#allocation3 + $0x60] sm:$0xff] %vm591, %v2557
      %2641 = vst.msk [vmem:[#allocation3 + $0x68] sm:$0xff] %vm591, %v2559
      %2642 = vst.msk [vmem:[#allocation3 + $0x70] sm:$0xff] %vm591, %v2561
      %2643 = vst.msk [vmem:[#allocation3 + $0x78] sm:$0xff] %vm591, %v2563
      %2644 = vst.msk [vmem:[#allocation3 + $0x80] sm:$0xff] %vm591, %v2565
      %2645 = vst.msk [vmem:[#allocation3 + $0x88] sm:$0xff] %vm591, %v2567
      %2646 = vst.msk [vmem:[#allocation3 + $0x90] sm:$0xff] %vm591, %v2569
      %2647 = vst.msk [vmem:[#allocation3 + $0x98] sm:$0xff] %vm591, %v2571
      %2648 = vst.msk [vmem:[#allocation3 + $0xa0] sm:$0xff] %vm591, %v2573
      %2649 = vst.msk [vmem:[#allocation3 + $0xa8] sm:$0xff] %vm591, %v2575
      %2650 = vst.msk [vmem:[#allocation3 + $0xb0] sm:$0xff] %vm591, %v2577
      %2651 = vst.msk [vmem:[#allocation3 + $0xb8] sm:$0xff] %vm591, %v2579
      %2652 = vst.msk [vmem:[#allocation3 + $0xc0] sm:$0xff] %vm591, %v2581
      %2653 = vst.msk [vmem:[#allocation3 + $0xc8] sm:$0xff] %vm591, %v2583
      %2654 = vst.msk [vmem:[#allocation3 + $0xd0] sm:$0xff] %vm591, %v2585
      %2655 = vst.msk [vmem:[#allocation3 + $0xd8] sm:$0xff] %vm591, %v2587
      %2656 = vst.msk [vmem:[#allocation3 + $0xe0] sm:$0xff] %vm591, %v2589
      %2657 = vst.msk [vmem:[#allocation3 + $0xe8] sm:$0xff] %vm591, %v2591
      %2658 = vst.msk [vmem:[#allocation3 + $0xf0] sm:$0xff] %vm591, %v2593
      %2659 = vst.msk [vmem:[#allocation3 + $0xf8] sm:$0xff] %vm591, %v2595
      %v2660 = vld [vmem:[#allocation2 + $0x4] sm:$0xff]
      %v2661 = vld [vmem:[#allocation2 + $0xc] sm:$0xff]
      %v2662 = vld [vmem:[#allocation2 + $0x1c] sm:$0xff]
      %v2663 = vld [vmem:[#allocation2 + $0x24] sm:$0xff]
      %v2664 = vld [vmem:[#allocation2 + $0x34] sm:$0xff]
      %v2665 = vld [vmem:[#allocation2 + $0x3c] sm:$0xff]
      %v2666 = vld [vmem:[#allocation2 + $0x4c] sm:$0xff]
      %v2667 = vld [vmem:[#allocation2 + $0x54] sm:$0xff]
      %v2668 = vld [vmem:[#allocation2 + $0x64] sm:$0xff]
      %v2669 = vld [vmem:[#allocation2 + $0x6c] sm:$0xff]
      %v2670 = vld [vmem:[#allocation2 + $0x7c] sm:$0xff]
      %v2671 = vld [vmem:[#allocation2 + $0x84] sm:$0xff]
      %v2672 = vld [vmem:[#allocation2 + $0x94] sm:$0xff]
      %v2673 = vld [vmem:[#allocation2 + $0x9c] sm:$0xff]
      %v2674 = vld [vmem:[#allocation2 + $0xac] sm:$0xff]
      %v2675 = vld [vmem:[#allocation2 + $0xb4] sm:$0xff]
      %v2676 = vld [vmem:[#allocation2 + $0xc4] sm:$0xff]
      %v2677 = vld [vmem:[#allocation2 + $0xcc] sm:$0xff]
      %v2678 = vld [vmem:[#allocation2 + $0xdc] sm:$0xff]
      %v2679 = vld [vmem:[#allocation2 + $0xe4] sm:$0xff]
      %v2680 = vld [vmem:[#allocation2 + $0xf4] sm:$0xff]
      %v2681 = vld [vmem:[#allocation2 + $0xfc] sm:$0xff]
      %v2682 = vld [vmem:[#allocation2 + $0x10c] sm:$0xff]
      %v2683 = vld [vmem:[#allocation2 + $0x114] sm:$0xff]
      %v2684 = vld [vmem:[#allocation2 + $0x124] sm:$0xff]
      %v2685 = vld [vmem:[#allocation2 + $0x12c] sm:$0xff]
      %v2686 = vld [vmem:[#allocation2 + $0x13c] sm:$0xff]
      %v2687 = vld [vmem:[#allocation2 + $0x144] sm:$0xff]
      %v2688 = vld [vmem:[#allocation2 + $0x154] sm:$0xff]
      %v2689 = vld [vmem:[#allocation2 + $0x15c] sm:$0xff]
      %v2690 = vld [vmem:[#allocation2 + $0x16c] sm:$0xff]
      %v2691 = vld [vmem:[#allocation2 + $0x174] sm:$0xff]
      %2724 = vrot.lane.b32.xlu0 %v2660, 16
      %v2725 = vpop.permute.xlu0 %2724
      %2726 = vrot.lane.b32.xlu0 %v2661, 16
      %v2727 = vpop.permute.xlu0 %2726
      %2728 = vrot.lane.b32.xlu0 %v2662, 16
      %v2729 = vpop.permute.xlu0 %2728
      %2730 = vrot.lane.b32.xlu0 %v2663, 16
      %v2731 = vpop.permute.xlu0 %2730
      %2732 = vrot.lane.b32.xlu0 %v2664, 16
      %v2733 = vpop.permute.xlu0 %2732
      %2734 = vrot.lane.b32.xlu0 %v2665, 16
      %v2735 = vpop.permute.xlu0 %2734
      %2736 = vrot.lane.b32.xlu0 %v2666, 16
      %v2737 = vpop.permute.xlu0 %2736
      %2738 = vrot.lane.b32.xlu0 %v2667, 16
      %v2739 = vpop.permute.xlu0 %2738
      %2740 = vrot.lane.b32.xlu0 %v2668, 16
      %v2741 = vpop.permute.xlu0 %2740
      %2742 = vrot.lane.b32.xlu0 %v2669, 16
      %v2743 = vpop.permute.xlu0 %2742
      %2744 = vrot.lane.b32.xlu0 %v2670, 16
      %v2745 = vpop.permute.xlu0 %2744
      %2746 = vrot.lane.b32.xlu0 %v2671, 16
      %v2747 = vpop.permute.xlu0 %2746
      %2748 = vrot.lane.b32.xlu0 %v2672, 16
      %v2749 = vpop.permute.xlu0 %2748
      %2750 = vrot.lane.b32.xlu0 %v2673, 16
      %v2751 = vpop.permute.xlu0 %2750
      %2752 = vrot.lane.b32.xlu0 %v2674, 16
      %v2753 = vpop.permute.xlu0 %2752
      %2754 = vrot.lane.b32.xlu0 %v2675, 16
      %v2755 = vpop.permute.xlu0 %2754
      %2756 = vrot.lane.b32.xlu0 %v2676, 16
      %v2757 = vpop.permute.xlu0 %2756
      %2758 = vrot.lane.b32.xlu0 %v2677, 16
      %v2759 = vpop.permute.xlu0 %2758
      %2760 = vrot.lane.b32.xlu0 %v2678, 16
      %v2761 = vpop.permute.xlu0 %2760
      %2762 = vrot.lane.b32.xlu0 %v2679, 16
      %v2763 = vpop.permute.xlu0 %2762
      %2764 = vrot.lane.b32.xlu0 %v2680, 16
      %v2765 = vpop.permute.xlu0 %2764
      %2766 = vrot.lane.b32.xlu0 %v2681, 16
      %v2767 = vpop.permute.xlu0 %2766
      %2768 = vrot.lane.b32.xlu0 %v2682, 16
      %v2769 = vpop.permute.xlu0 %2768
      %2770 = vrot.lane.b32.xlu0 %v2683, 16
      %v2771 = vpop.permute.xlu0 %2770
      %2772 = vrot.lane.b32.xlu0 %v2684, 16
      %v2773 = vpop.permute.xlu0 %2772
      %2774 = vrot.lane.b32.xlu0 %v2685, 16
      %v2775 = vpop.permute.xlu0 %2774
      %2776 = vrot.lane.b32.xlu0 %v2686, 16
      %v2777 = vpop.permute.xlu0 %2776
      %2778 = vrot.lane.b32.xlu0 %v2687, 16
      %v2779 = vpop.permute.xlu0 %2778
      %2780 = vrot.lane.b32.xlu0 %v2688, 16
      %v2781 = vpop.permute.xlu0 %2780
      %2782 = vrot.lane.b32.xlu0 %v2689, 16
      %v2783 = vpop.permute.xlu0 %2782
      %2784 = vrot.lane.b32.xlu0 %v2690, 16
      %v2785 = vpop.permute.xlu0 %2784
      %2786 = vrot.lane.b32.xlu0 %v2691, 16
      %v2787 = vpop.permute.xlu0 %2786
      %2820 = vst.msk [vmem:[#allocation3] sm:$0xff] %vm784, %v2725
      %2821 = vst.msk [vmem:[#allocation3 + $0x8] sm:$0xff] %vm784, %v2727
      %2822 = vst.msk [vmem:[#allocation3 + $0x10] sm:$0xff] %vm784, %v2729
      %2823 = vst.msk [vmem:[#allocation3 + $0x18] sm:$0xff] %vm784, %v2731
      %2824 = vst.msk [vmem:[#allocation3 + $0x20] sm:$0xff] %vm784, %v2733
      %2825 = vst.msk [vmem:[#allocation3 + $0x28] sm:$0xff] %vm784, %v2735
      %2826 = vst.msk [vmem:[#allocation3 + $0x30] sm:$0xff] %vm784, %v2737
      %2827 = vst.msk [vmem:[#allocation3 + $0x38] sm:$0xff] %vm784, %v2739
      %2828 = vst.msk [vmem:[#allocation3 + $0x40] sm:$0xff] %vm784, %v2741
      %2829 = vst.msk [vmem:[#allocation3 + $0x48] sm:$0xff] %vm784, %v2743
      %2830 = vst.msk [vmem:[#allocation3 + $0x50] sm:$0xff] %vm784, %v2745
      %2831 = vst.msk [vmem:[#allocation3 + $0x58] sm:$0xff] %vm784, %v2747
      %2832 = vst.msk [vmem:[#allocation3 + $0x60] sm:$0xff] %vm784, %v2749
      %2833 = vst.msk [vmem:[#allocation3 + $0x68] sm:$0xff] %vm784, %v2751
      %2834 = vst.msk [vmem:[#allocation3 + $0x70] sm:$0xff] %vm784, %v2753
      %2835 = vst.msk [vmem:[#allocation3 + $0x78] sm:$0xff] %vm784, %v2755
      %2836 = vst.msk [vmem:[#allocation3 + $0x80] sm:$0xff] %vm784, %v2757
      %2837 = vst.msk [vmem:[#allocation3 + $0x88] sm:$0xff] %vm784, %v2759
      %2838 = vst.msk [vmem:[#allocation3 + $0x90] sm:$0xff] %vm784, %v2761
      %2839 = vst.msk [vmem:[#allocation3 + $0x98] sm:$0xff] %vm784, %v2763
      %2840 = vst.msk [vmem:[#allocation3 + $0xa0] sm:$0xff] %vm784, %v2765
      %2841 = vst.msk [vmem:[#allocation3 + $0xa8] sm:$0xff] %vm784, %v2767
      %2842 = vst.msk [vmem:[#allocation3 + $0xb0] sm:$0xff] %vm784, %v2769
      %2843 = vst.msk [vmem:[#allocation3 + $0xb8] sm:$0xff] %vm784, %v2771
      %2844 = vst.msk [vmem:[#allocation3 + $0xc0] sm:$0xff] %vm784, %v2773
      %2845 = vst.msk [vmem:[#allocation3 + $0xc8] sm:$0xff] %vm784, %v2775
      %2846 = vst.msk [vmem:[#allocation3 + $0xd0] sm:$0xff] %vm784, %v2777
      %2847 = vst.msk [vmem:[#allocation3 + $0xd8] sm:$0xff] %vm784, %v2779
      %2848 = vst.msk [vmem:[#allocation3 + $0xe0] sm:$0xff] %vm784, %v2781
      %2849 = vst.msk [vmem:[#allocation3 + $0xe8] sm:$0xff] %vm784, %v2783
      %2850 = vst.msk [vmem:[#allocation3 + $0xf0] sm:$0xff] %vm784, %v2785
      %2851 = vst.msk [vmem:[#allocation3 + $0xf8] sm:$0xff] %vm784, %v2787
      %v2852 = vld [vmem:[%s2338] sm:$0xff]
      %v2853 = vld [vmem:[%s2338 + $0x8] sm:$0xff]
      %v2854 = vld [vmem:[%s2338 + $0x18] sm:$0xff]
      %v2855 = vld [vmem:[%s2338 + $0x20] sm:$0xff]
      %v2856 = vld [vmem:[%s2338 + $0x30] sm:$0xff]
      %v2857 = vld [vmem:[%s2338 + $0x38] sm:$0xff]
      %v2858 = vld [vmem:[%s2338 + $0x48] sm:$0xff]
      %v2859 = vld [vmem:[%s2338 + $0x50] sm:$0xff]
      %v2860 = vld [vmem:[%s2338 + $0x60] sm:$0xff]
      %v2861 = vld [vmem:[%s2338 + $0x68] sm:$0xff]
      %v2862 = vld [vmem:[%s2338 + $0x78] sm:$0xff]
      %v2863 = vld [vmem:[%s2338 + $0x80] sm:$0xff]
      %v2864 = vld [vmem:[%s2338 + $0x90] sm:$0xff]
      %v2865 = vld [vmem:[%s2338 + $0x98] sm:$0xff]
      %v2866 = vld [vmem:[%s2338 + $0xa8] sm:$0xff]
      %v2867 = vld [vmem:[%s2338 + $0xb0] sm:$0xff]
      %v2868 = vld [vmem:[%s2338 + $0xc0] sm:$0xff]
      %v2869 = vld [vmem:[%s2338 + $0xc8] sm:$0xff]
      %v2870 = vld [vmem:[%s2338 + $0xd8] sm:$0xff]
      %v2871 = vld [vmem:[%s2338 + $0xe0] sm:$0xff]
      %v2872 = vld [vmem:[%s2338 + $0xf0] sm:$0xff]
      %v2873 = vld [vmem:[%s2338 + $0xf8] sm:$0xff]
      %v2874 = vld [vmem:[%s2338 + $0x108] sm:$0xff]
      %v2875 = vld [vmem:[%s2338 + $0x110] sm:$0xff]
      %v2876 = vld [vmem:[%s2338 + $0x120] sm:$0xff]
      %v2877 = vld [vmem:[%s2338 + $0x128] sm:$0xff]
      %v2878 = vld [vmem:[%s2338 + $0x138] sm:$0xff]
      %v2879 = vld [vmem:[%s2338 + $0x140] sm:$0xff]
      %v2880 = vld [vmem:[%s2338 + $0x150] sm:$0xff]
      %v2881 = vld [vmem:[%s2338 + $0x158] sm:$0xff]
      %v2882 = vld [vmem:[%s2338 + $0x168] sm:$0xff]
      %v2883 = vld [vmem:[%s2338 + $0x170] sm:$0xff]
      %2916 = vrot.lane.b32.xlu0 %v2852, 24
      %v2917 = vpop.permute.xlu0 %2916
      %2918 = vrot.lane.b32.xlu0 %v2853, 24
      %v2919 = vpop.permute.xlu0 %2918
      %2920 = vrot.lane.b32.xlu0 %v2854, 24
      %v2921 = vpop.permute.xlu0 %2920
      %2922 = vrot.lane.b32.xlu0 %v2855, 24
      %v2923 = vpop.permute.xlu0 %2922
      %2924 = vrot.lane.b32.xlu0 %v2856, 24
      %v2925 = vpop.permute.xlu0 %2924
      %2926 = vrot.lane.b32.xlu0 %v2857, 24
      %v2927 = vpop.permute.xlu0 %2926
      %2928 = vrot.lane.b32.xlu0 %v2858, 24
      %v2929 = vpop.permute.xlu0 %2928
      %2930 = vrot.lane.b32.xlu0 %v2859, 24
      %v2931 = vpop.permute.xlu0 %2930
      %2932 = vrot.lane.b32.xlu0 %v2860, 24
      %v2933 = vpop.permute.xlu0 %2932
      %2934 = vrot.lane.b32.xlu0 %v2861, 24
      %v2935 = vpop.permute.xlu0 %2934
      %2936 = vrot.lane.b32.xlu0 %v2862, 24
      %v2937 = vpop.permute.xlu0 %2936
      %2938 = vrot.lane.b32.xlu0 %v2863, 24
      %v2939 = vpop.permute.xlu0 %2938
      %2940 = vrot.lane.b32.xlu0 %v2864, 24
      %v2941 = vpop.permute.xlu0 %2940
      %2942 = vrot.lane.b32.xlu0 %v2865, 24
      %v2943 = vpop.permute.xlu0 %2942
      %2944 = vrot.lane.b32.xlu0 %v2866, 24
      %v2945 = vpop.permute.xlu0 %2944
      %2946 = vrot.lane.b32.xlu0 %v2867, 24
      %v2947 = vpop.permute.xlu0 %2946
      %2948 = vrot.lane.b32.xlu0 %v2868, 24
      %v2949 = vpop.permute.xlu0 %2948
      %2950 = vrot.lane.b32.xlu0 %v2869, 24
      %v2951 = vpop.permute.xlu0 %2950
      %2952 = vrot.lane.b32.xlu0 %v2870, 24
      %v2953 = vpop.permute.xlu0 %2952
      %2954 = vrot.lane.b32.xlu0 %v2871, 24
      %v2955 = vpop.permute.xlu0 %2954
      %2956 = vrot.lane.b32.xlu0 %v2872, 24
      %v2957 = vpop.permute.xlu0 %2956
      %2958 = vrot.lane.b32.xlu0 %v2873, 24
      %v2959 = vpop.permute.xlu0 %2958
      %2960 = vrot.lane.b32.xlu0 %v2874, 24
      %v2961 = vpop.permute.xlu0 %2960
      %2962 = vrot.lane.b32.xlu0 %v2875, 24
      %v2963 = vpop.permute.xlu0 %2962
      %2964 = vrot.lane.b32.xlu0 %v2876, 24
      %v2965 = vpop.permute.xlu0 %2964
      %2966 = vrot.lane.b32.xlu0 %v2877, 24
      %v2967 = vpop.permute.xlu0 %2966
      %2968 = vrot.lane.b32.xlu0 %v2878, 24
      %v2969 = vpop.permute.xlu0 %2968
      %2970 = vrot.lane.b32.xlu0 %v2879, 24
      %v2971 = vpop.permute.xlu0 %2970
      %2972 = vrot.lane.b32.xlu0 %v2880, 24
      %v2973 = vpop.permute.xlu0 %2972
      %2974 = vrot.lane.b32.xlu0 %v2881, 24
      %v2975 = vpop.permute.xlu0 %2974
      %2976 = vrot.lane.b32.xlu0 %v2882, 24
      %v2977 = vpop.permute.xlu0 %2976
      %2978 = vrot.lane.b32.xlu0 %v2883, 24
      %v2979 = vpop.permute.xlu0 %2978
      %3012 = vst.msk [vmem:[#allocation3] sm:$0xff] %vm978, %v2917
      %3013 = vst.msk [vmem:[#allocation3 + $0x8] sm:$0xff] %vm978, %v2919
      %3014 = vst.msk [vmem:[#allocation3 + $0x10] sm:$0xff] %vm978, %v2921
      %3015 = vst.msk [vmem:[#allocation3 + $0x18] sm:$0xff] %vm978, %v2923
      %3016 = vst.msk [vmem:[#allocation3 + $0x20] sm:$0xff] %vm978, %v2925
      %3017 = vst.msk [vmem:[#allocation3 + $0x28] sm:$0xff] %vm978, %v2927
      %3018 = vst.msk [vmem:[#allocation3 + $0x30] sm:$0xff] %vm978, %v2929
      %3019 = vst.msk [vmem:[#allocation3 + $0x38] sm:$0xff] %vm978, %v2931
      %3020 = vst.msk [vmem:[#allocation3 + $0x40] sm:$0xff] %vm978, %v2933
      %3021 = vst.msk [vmem:[#allocation3 + $0x48] sm:$0xff] %vm978, %v2935
      %3022 = vst.msk [vmem:[#allocation3 + $0x50] sm:$0xff] %vm978, %v2937
      %3023 = vst.msk [vmem:[#allocation3 + $0x58] sm:$0xff] %vm978, %v2939
      %3024 = vst.msk [vmem:[#allocation3 + $0x60] sm:$0xff] %vm978, %v2941
      %3025 = vst.msk [vmem:[#allocation3 + $0x68] sm:$0xff] %vm978, %v2943
      %3026 = vst.msk [vmem:[#allocation3 + $0x70] sm:$0xff] %vm978, %v2945
      %3027 = vst.msk [vmem:[#allocation3 + $0x78] sm:$0xff] %vm978, %v2947
      %3028 = vst.msk [vmem:[#allocation3 + $0x80] sm:$0xff] %vm978, %v2949
      %3029 = vst.msk [vmem:[#allocation3 + $0x88] sm:$0xff] %vm978, %v2951
      %3030 = vst.msk [vmem:[#allocation3 + $0x90] sm:$0xff] %vm978, %v2953
      %3031 = vst.msk [vmem:[#allocation3 + $0x98] sm:$0xff] %vm978, %v2955
      %3032 = vst.msk [vmem:[#allocation3 + $0xa0] sm:$0xff] %vm978, %v2957
      %3033 = vst.msk [vmem:[#allocation3 + $0xa8] sm:$0xff] %vm978, %v2959
      %3034 = vst.msk [vmem:[#allocation3 + $0xb0] sm:$0xff] %vm978, %v2961
      %3035 = vst.msk [vmem:[#allocation3 + $0xb8] sm:$0xff] %vm978, %v2963
      %3036 = vst.msk [vmem:[#allocation3 + $0xc0] sm:$0xff] %vm978, %v2965
      %3037 = vst.msk [vmem:[#allocation3 + $0xc8] sm:$0xff] %vm978, %v2967
      %3038 = vst.msk [vmem:[#allocation3 + $0xd0] sm:$0xff] %vm978, %v2969
      %3039 = vst.msk [vmem:[#allocation3 + $0xd8] sm:$0xff] %vm978, %v2971
      %3040 = vst.msk [vmem:[#allocation3 + $0xe0] sm:$0xff] %vm978, %v2973
      %3041 = vst.msk [vmem:[#allocation3 + $0xe8] sm:$0xff] %vm978, %v2975
      %3042 = vst.msk [vmem:[#allocation3 + $0xf0] sm:$0xff] %vm978, %v2977
      %3043 = vst.msk [vmem:[#allocation3 + $0xf8] sm:$0xff] %vm978, %v2979
      %v3044 = vld [vmem:[%s2338 + $0x2] sm:$0xff]
      %v3045 = vld [vmem:[%s2338 + $0xa] sm:$0xff]
      %v3046 = vld [vmem:[%s2338 + $0x1a] sm:$0xff]
      %v3047 = vld [vmem:[%s2338 + $0x22] sm:$0xff]
      %v3048 = vld [vmem:[%s2338 + $0x32] sm:$0xff]
      %v3049 = vld [vmem:[%s2338 + $0x3a] sm:$0xff]
      %v3050 = vld [vmem:[%s2338 + $0x4a] sm:$0xff]
      %v3051 = vld [vmem:[%s2338 + $0x52] sm:$0xff]
      %v3052 = vld [vmem:[%s2338 + $0x62] sm:$0xff]
      %v3053 = vld [vmem:[%s2338 + $0x6a] sm:$0xff]
      %v3054 = vld [vmem:[%s2338 + $0x7a] sm:$0xff]
      %v3055 = vld [vmem:[%s2338 + $0x82] sm:$0xff]
      %v3056 = vld [vmem:[%s2338 + $0x92] sm:$0xff]
      %v3057 = vld [vmem:[%s2338 + $0x9a] sm:$0xff]
      %v3058 = vld [vmem:[%s2338 + $0xaa] sm:$0xff]
      %v3059 = vld [vmem:[%s2338 + $0xb2] sm:$0xff]
      %v3060 = vld [vmem:[%s2338 + $0xc2] sm:$0xff]
      %v3061 = vld [vmem:[%s2338 + $0xca] sm:$0xff]
      %v3062 = vld [vmem:[%s2338 + $0xda] sm:$0xff]
      %v3063 = vld [vmem:[%s2338 + $0xe2] sm:$0xff]
      %v3064 = vld [vmem:[%s2338 + $0xf2] sm:$0xff]
      %v3065 = vld [vmem:[%s2338 + $0xfa] sm:$0xff]
      %v3066 = vld [vmem:[%s2338 + $0x10a] sm:$0xff]
      %v3067 = vld [vmem:[%s2338 + $0x112] sm:$0xff]
      %v3068 = vld [vmem:[%s2338 + $0x122] sm:$0xff]
      %v3069 = vld [vmem:[%s2338 + $0x12a] sm:$0xff]
      %v3070 = vld [vmem:[%s2338 + $0x13a] sm:$0xff]
      %v3071 = vld [vmem:[%s2338 + $0x142] sm:$0xff]
      %v3072 = vld [vmem:[%s2338 + $0x152] sm:$0xff]
      %v3073 = vld [vmem:[%s2338 + $0x15a] sm:$0xff]
      %v3074 = vld [vmem:[%s2338 + $0x16a] sm:$0xff]
      %v3075 = vld [vmem:[%s2338 + $0x172] sm:$0xff]
      %3108 = vrot.lane.b32.xlu0 %v3044, 32
      %v3109 = vpop.permute.xlu0 %3108
      %3110 = vrot.lane.b32.xlu0 %v3045, 32
      %v3111 = vpop.permute.xlu0 %3110
      %3112 = vrot.lane.b32.xlu0 %v3046, 32
      %v3113 = vpop.permute.xlu0 %3112
      %3114 = vrot.lane.b32.xlu0 %v3047, 32
      %v3115 = vpop.permute.xlu0 %3114
      %3116 = vrot.lane.b32.xlu0 %v3048, 32
      %v3117 = vpop.permute.xlu0 %3116
      %3118 = vrot.lane.b32.xlu0 %v3049, 32
      %v3119 = vpop.permute.xlu0 %3118
      %3120 = vrot.lane.b32.xlu0 %v3050, 32
      %v3121 = vpop.permute.xlu0 %3120
      %3122 = vrot.lane.b32.xlu0 %v3051, 32
      %v3123 = vpop.permute.xlu0 %3122
      %3124 = vrot.lane.b32.xlu0 %v3052, 32
      %v3125 = vpop.permute.xlu0 %3124
      %3126 = vrot.lane.b32.xlu0 %v3053, 32
      %v3127 = vpop.permute.xlu0 %3126
      %3128 = vrot.lane.b32.xlu0 %v3054, 32
      %v3129 = vpop.permute.xlu0 %3128
      %3130 = vrot.lane.b32.xlu0 %v3055, 32
      %v3131 = vpop.permute.xlu0 %3130
      %3132 = vrot.lane.b32.xlu0 %v3056, 32
      %v3133 = vpop.permute.xlu0 %3132
      %3134 = vrot.lane.b32.xlu0 %v3057, 32
      %v3135 = vpop.permute.xlu0 %3134
      %3136 = vrot.lane.b32.xlu0 %v3058, 32
      %v3137 = vpop.permute.xlu0 %3136
      %3138 = vrot.lane.b32.xlu0 %v3059, 32
      %v3139 = vpop.permute.xlu0 %3138
      %3140 = vrot.lane.b32.xlu0 %v3060, 32
      %v3141 = vpop.permute.xlu0 %3140
      %3142 = vrot.lane.b32.xlu0 %v3061, 32
      %v3143 = vpop.permute.xlu0 %3142
      %3144 = vrot.lane.b32.xlu0 %v3062, 32
      %v3145 = vpop.permute.xlu0 %3144
      %3146 = vrot.lane.b32.xlu0 %v3063, 32
      %v3147 = vpop.permute.xlu0 %3146
      %3148 = vrot.lane.b32.xlu0 %v3064, 32
      %v3149 = vpop.permute.xlu0 %3148
      %3150 = vrot.lane.b32.xlu0 %v3065, 32
      %v3151 = vpop.permute.xlu0 %3150
      %3152 = vrot.lane.b32.xlu0 %v3066, 32
      %v3153 = vpop.permute.xlu0 %3152
      %3154 = vrot.lane.b32.xlu0 %v3067, 32
      %v3155 = vpop.permute.xlu0 %3154
      %3156 = vrot.lane.b32.xlu0 %v3068, 32
      %v3157 = vpop.permute.xlu0 %3156
      %3158 = vrot.lane.b32.xlu0 %v3069, 32
      %v3159 = vpop.permute.xlu0 %3158
      %3160 = vrot.lane.b32.xlu0 %v3070, 32
      %v3161 = vpop.permute.xlu0 %3160
      %3162 = vrot.lane.b32.xlu0 %v3071, 32
      %v3163 = vpop.permute.xlu0 %3162
      %3164 = vrot.lane.b32.xlu0 %v3072, 32
      %v3165 = vpop.permute.xlu0 %3164
      %3166 = vrot.lane.b32.xlu0 %v3073, 32
      %v3167 = vpop.permute.xlu0 %3166
      %3168 = vrot.lane.b32.xlu0 %v3074, 32
      %v3169 = vpop.permute.xlu0 %3168
      %3170 = vrot.lane.b32.xlu0 %v3075, 32
      %v3171 = vpop.permute.xlu0 %3170
      %3204 = vst.msk [vmem:[#allocation3] sm:$0xff] %vm1171, %v3109
      %3205 = vst.msk [vmem:[#allocation3 + $0x8] sm:$0xff] %vm1171, %v3111
      %3206 = vst.msk [vmem:[#allocation3 + $0x10] sm:$0xff] %vm1171, %v3113
      %3207 = vst.msk [vmem:[#allocation3 + $0x18] sm:$0xff] %vm1171, %v3115
      %3208 = vst.msk [vmem:[#allocation3 + $0x20] sm:$0xff] %vm1171, %v3117
      %3209 = vst.msk [vmem:[#allocation3 + $0x28] sm:$0xff] %vm1171, %v3119
      %3210 = vst.msk [vmem:[#allocation3 + $0x30] sm:$0xff] %vm1171, %v3121
      %3211 = vst.msk [vmem:[#allocation3 + $0x38] sm:$0xff] %vm1171, %v3123
      %3212 = vst.msk [vmem:[#allocation3 + $0x40] sm:$0xff] %vm1171, %v3125
      %3213 = vst.msk [vmem:[#allocation3 + $0x48] sm:$0xff] %vm1171, %v3127
      %3214 = vst.msk [vmem:[#allocation3 + $0x50] sm:$0xff] %vm1171, %v3129
      %3215 = vst.msk [vmem:[#allocation3 + $0x58] sm:$0xff] %vm1171, %v3131
      %3216 = vst.msk [vmem:[#allocation3 + $0x60] sm:$0xff] %vm1171, %v3133
      %3217 = vst.msk [vmem:[#allocation3 + $0x68] sm:$0xff] %vm1171, %v3135
      %3218 = vst.msk [vmem:[#allocation3 + $0x70] sm:$0xff] %vm1171, %v3137
      %3219 = vst.msk [vmem:[#allocation3 + $0x78] sm:$0xff] %vm1171, %v3139
      %3220 = vst.msk [vmem:[#allocation3 + $0x80] sm:$0xff] %vm1171, %v3141
      %3221 = vst.msk [vmem:[#allocation3 + $0x88] sm:$0xff] %vm1171, %v3143
      %3222 = vst.msk [vmem:[#allocation3 + $0x90] sm:$0xff] %vm1171, %v3145
      %3223 = vst.msk [vmem:[#allocation3 + $0x98] sm:$0xff] %vm1171, %v3147
      %3224 = vst.msk [vmem:[#allocation3 + $0xa0] sm:$0xff] %vm1171, %v3149
      %3225 = vst.msk [vmem:[#allocation3 + $0xa8] sm:$0xff] %vm1171, %v3151
      %3226 = vst.msk [vmem:[#allocation3 + $0xb0] sm:$0xff] %vm1171, %v3153
      %3227 = vst.msk [vmem:[#allocation3 + $0xb8] sm:$0xff] %vm1171, %v3155
      %3228 = vst.msk [vmem:[#allocation3 + $0xc0] sm:$0xff] %vm1171, %v3157
      %3229 = vst.msk [vmem:[#allocation3 + $0xc8] sm:$0xff] %vm1171, %v3159
      %3230 = vst.msk [vmem:[#allocation3 + $0xd0] sm:$0xff] %vm1171, %v3161
      %3231 = vst.msk [vmem:[#allocation3 + $0xd8] sm:$0xff] %vm1171, %v3163
      %3232 = vst.msk [vmem:[#allocation3 + $0xe0] sm:$0xff] %vm1171, %v3165
      %3233 = vst.msk [vmem:[#allocation3 + $0xe8] sm:$0xff] %vm1171, %v3167
      %3234 = vst.msk [vmem:[#allocation3 + $0xf0] sm:$0xff] %vm1171, %v3169
      %3235 = vst.msk [vmem:[#allocation3 + $0xf8] sm:$0xff] %vm1171, %v3171
      %v3236 = vld [vmem:[%s2338 + $0x4] sm:$0xff]
      %v3237 = vld [vmem:[%s2338 + $0xc] sm:$0xff]
      %v3238 = vld [vmem:[%s2338 + $0x1c] sm:$0xff]
      %v3239 = vld [vmem:[%s2338 + $0x24] sm:$0xff]
      %v3240 = vld [vmem:[%s2338 + $0x34] sm:$0xff]
      %v3241 = vld [vmem:[%s2338 + $0x3c] sm:$0xff]
      %v3242 = vld [vmem:[%s2338 + $0x4c] sm:$0xff]
      %v3243 = vld [vmem:[%s2338 + $0x54] sm:$0xff]
      %v3244 = vld [vmem:[%s2338 + $0x64] sm:$0xff]
      %v3245 = vld [vmem:[%s2338 + $0x6c] sm:$0xff]
      %v3246 = vld [vmem:[%s2338 + $0x7c] sm:$0xff]
      %v3247 = vld [vmem:[%s2338 + $0x84] sm:$0xff]
      %v3248 = vld [vmem:[%s2338 + $0x94] sm:$0xff]
      %v3249 = vld [vmem:[%s2338 + $0x9c] sm:$0xff]
      %v3250 = vld [vmem:[%s2338 + $0xac] sm:$0xff]
      %v3251 = vld [vmem:[%s2338 + $0xb4] sm:$0xff]
      %v3252 = vld [vmem:[%s2338 + $0xc4] sm:$0xff]
      %v3253 = vld [vmem:[%s2338 + $0xcc] sm:$0xff]
      %v3254 = vld [vmem:[%s2338 + $0xdc] sm:$0xff]
      %v3255 = vld [vmem:[%s2338 + $0xe4] sm:$0xff]
      %v3256 = vld [vmem:[%s2338 + $0xf4] sm:$0xff]
      %v3257 = vld [vmem:[%s2338 + $0xfc] sm:$0xff]
      %v3258 = vld [vmem:[%s2338 + $0x10c] sm:$0xff]
      %v3259 = vld [vmem:[%s2338 + $0x114] sm:$0xff]
      %v3260 = vld [vmem:[%s2338 + $0x124] sm:$0xff]
      %v3261 = vld [vmem:[%s2338 + $0x12c] sm:$0xff]
      %v3262 = vld [vmem:[%s2338 + $0x13c] sm:$0xff]
      %v3263 = vld [vmem:[%s2338 + $0x144] sm:$0xff]
      %v3264 = vld [vmem:[%s2338 + $0x154] sm:$0xff]
      %v3265 = vld [vmem:[%s2338 + $0x15c] sm:$0xff]
      %v3266 = vld [vmem:[%s2338 + $0x16c] sm:$0xff]
      %v3267 = vld [vmem:[%s2338 + $0x174] sm:$0xff]
      %3300 = vrot.lane.b32.xlu0 %v3236, 40
      %v3301 = vpop.permute.xlu0 %3300
      %3302 = vrot.lane.b32.xlu0 %v3237, 40
      %v3303 = vpop.permute.xlu0 %3302
      %3304 = vrot.lane.b32.xlu0 %v3238, 40
      %v3305 = vpop.permute.xlu0 %3304
      %3306 = vrot.lane.b32.xlu0 %v3239, 40
      %v3307 = vpop.permute.xlu0 %3306
      %3308 = vrot.lane.b32.xlu0 %v3240, 40
      %v3309 = vpop.permute.xlu0 %3308
      %3310 = vrot.lane.b32.xlu0 %v3241, 40
      %v3311 = vpop.permute.xlu0 %3310
      %3312 = vrot.lane.b32.xlu0 %v3242, 40
      %v3313 = vpop.permute.xlu0 %3312
      %3314 = vrot.lane.b32.xlu0 %v3243, 40
      %v3315 = vpop.permute.xlu0 %3314
      %3316 = vrot.lane.b32.xlu0 %v3244, 40
      %v3317 = vpop.permute.xlu0 %3316
      %3318 = vrot.lane.b32.xlu0 %v3245, 40
      %v3319 = vpop.permute.xlu0 %3318
      %3320 = vrot.lane.b32.xlu0 %v3246, 40
      %v3321 = vpop.permute.xlu0 %3320
      %3322 = vrot.lane.b32.xlu0 %v3247, 40
      %v3323 = vpop.permute.xlu0 %3322
      %3324 = vrot.lane.b32.xlu0 %v3248, 40
      %v3325 = vpop.permute.xlu0 %3324
      %3326 = vrot.lane.b32.xlu0 %v3249, 40
      %v3327 = vpop.permute.xlu0 %3326
      %3328 = vrot.lane.b32.xlu0 %v3250, 40
      %v3329 = vpop.permute.xlu0 %3328
      %3330 = vrot.lane.b32.xlu0 %v3251, 40
      %v3331 = vpop.permute.xlu0 %3330
      %3332 = vrot.lane.b32.xlu0 %v3252, 40
      %v3333 = vpop.permute.xlu0 %3332
      %3334 = vrot.lane.b32.xlu0 %v3253, 40
      %v3335 = vpop.permute.xlu0 %3334
      %3336 = vrot.lane.b32.xlu0 %v3254, 40
      %v3337 = vpop.permute.xlu0 %3336
      %3338 = vrot.lane.b32.xlu0 %v3255, 40
      %v3339 = vpop.permute.xlu0 %3338
      %3340 = vrot.lane.b32.xlu0 %v3256, 40
      %v3341 = vpop.permute.xlu0 %3340
      %3342 = vrot.lane.b32.xlu0 %v3257, 40
      %v3343 = vpop.permute.xlu0 %3342
      %3344 = vrot.lane.b32.xlu0 %v3258, 40
      %v3345 = vpop.permute.xlu0 %3344
      %3346 = vrot.lane.b32.xlu0 %v3259, 40
      %v3347 = vpop.permute.xlu0 %3346
      %3348 = vrot.lane.b32.xlu0 %v3260, 40
      %v3349 = vpop.permute.xlu0 %3348
      %3350 = vrot.lane.b32.xlu0 %v3261, 40
      %v3351 = vpop.permute.xlu0 %3350
      %3352 = vrot.lane.b32.xlu0 %v3262, 40
      %v3353 = vpop.permute.xlu0 %3352
      %3354 = vrot.lane.b32.xlu0 %v3263, 40
      %v3355 = vpop.permute.xlu0 %3354
      %3356 = vrot.lane.b32.xlu0 %v3264, 40
      %v3357 = vpop.permute.xlu0 %3356
      %3358 = vrot.lane.b32.xlu0 %v3265, 40
      %v3359 = vpop.permute.xlu0 %3358
      %3360 = vrot.lane.b32.xlu0 %v3266, 40
      %v3361 = vpop.permute.xlu0 %3360
      %3362 = vrot.lane.b32.xlu0 %v3267, 40
      %v3363 = vpop.permute.xlu0 %3362
      %3396 = vst.msk [vmem:[#allocation3] sm:$0xff] %vm1364, %v3301
      %3397 = vst.msk [vmem:[#allocation3 + $0x8] sm:$0xff] %vm1364, %v3303
      %3398 = vst.msk [vmem:[#allocation3 + $0x10] sm:$0xff] %vm1364, %v3305
      %3399 = vst.msk [vmem:[#allocation3 + $0x18] sm:$0xff] %vm1364, %v3307
      %3400 = vst.msk [vmem:[#allocation3 + $0x20] sm:$0xff] %vm1364, %v3309
      %3401 = vst.msk [vmem:[#allocation3 + $0x28] sm:$0xff] %vm1364, %v3311
      %3402 = vst.msk [vmem:[#allocation3 + $0x30] sm:$0xff] %vm1364, %v3313
      %3403 = vst.msk [vmem:[#allocation3 + $0x38] sm:$0xff] %vm1364, %v3315
      %3404 = vst.msk [vmem:[#allocation3 + $0x40] sm:$0xff] %vm1364, %v3317
      %3405 = vst.msk [vmem:[#allocation3 + $0x48] sm:$0xff] %vm1364, %v3319
      %3406 = vst.msk [vmem:[#allocation3 + $0x50] sm:$0xff] %vm1364, %v3321
      %3407 = vst.msk [vmem:[#allocation3 + $0x58] sm:$0xff] %vm1364, %v3323
      %3408 = vst.msk [vmem:[#allocation3 + $0x60] sm:$0xff] %vm1364, %v3325
      %3409 = vst.msk [vmem:[#allocation3 + $0x68] sm:$0xff] %vm1364, %v3327
      %3410 = vst.msk [vmem:[#allocation3 + $0x70] sm:$0xff] %vm1364, %v3329
      %3411 = vst.msk [vmem:[#allocation3 + $0x78] sm:$0xff] %vm1364, %v3331
      %3412 = vst.msk [vmem:[#allocation3 + $0x80] sm:$0xff] %vm1364, %v3333
      %3413 = vst.msk [vmem:[#allocation3 + $0x88] sm:$0xff] %vm1364, %v3335
      %3414 = vst.msk [vmem:[#allocation3 + $0x90] sm:$0xff] %vm1364, %v3337
      %3415 = vst.msk [vmem:[#allocation3 + $0x98] sm:$0xff] %vm1364, %v3339
      %3416 = vst.msk [vmem:[#allocation3 + $0xa0] sm:$0xff] %vm1364, %v3341
      %3417 = vst.msk [vmem:[#allocation3 + $0xa8] sm:$0xff] %vm1364, %v3343
      %3418 = vst.msk [vmem:[#allocation3 + $0xb0] sm:$0xff] %vm1364, %v3345
      %3419 = vst.msk [vmem:[#allocation3 + $0xb8] sm:$0xff] %vm1364, %v3347
      %3420 = vst.msk [vmem:[#allocation3 + $0xc0] sm:$0xff] %vm1364, %v3349
      %3421 = vst.msk [vmem:[#allocation3 + $0xc8] sm:$0xff] %vm1364, %v3351
      %3422 = vst.msk [vmem:[#allocation3 + $0xd0] sm:$0xff] %vm1364, %v3353
      %3423 = vst.msk [vmem:[#allocation3 + $0xd8] sm:$0xff] %vm1364, %v3355
      %3424 = vst.msk [vmem:[#allocation3 + $0xe0] sm:$0xff] %vm1364, %v3357
      %3425 = vst.msk [vmem:[#allocation3 + $0xe8] sm:$0xff] %vm1364, %v3359
      %3426 = vst.msk [vmem:[#allocation3 + $0xf0] sm:$0xff] %vm1364, %v3361
      %3427 = vst.msk [vmem:[#allocation3 + $0xf8] sm:$0xff] %vm1364, %v3363
      %s3428 = scalar_lea.vmem [#allocation2], 96
      %v3429 = vld [vmem:[%s3428] sm:$0xff]
      %v3430 = vld [vmem:[%s3428 + $0x8] sm:$0xff]
      %v3431 = vld [vmem:[%s3428 + $0x18] sm:$0xff]
      %v3432 = vld [vmem:[%s3428 + $0x20] sm:$0xff]
      %v3433 = vld [vmem:[%s3428 + $0x30] sm:$0xff]
      %v3434 = vld [vmem:[%s3428 + $0x38] sm:$0xff]
      %v3435 = vld [vmem:[%s3428 + $0x48] sm:$0xff]
      %v3436 = vld [vmem:[%s3428 + $0x50] sm:$0xff]
      %v3437 = vld [vmem:[%s3428 + $0x60] sm:$0xff]
      %v3438 = vld [vmem:[%s3428 + $0x68] sm:$0xff]
      %v3439 = vld [vmem:[%s3428 + $0x78] sm:$0xff]
      %v3440 = vld [vmem:[%s3428 + $0x80] sm:$0xff]
      %v3441 = vld [vmem:[%s3428 + $0x90] sm:$0xff]
      %v3442 = vld [vmem:[%s3428 + $0x98] sm:$0xff]
      %v3443 = vld [vmem:[%s3428 + $0xa8] sm:$0xff]
      %v3444 = vld [vmem:[%s3428 + $0xb0] sm:$0xff]
      %v3445 = vld [vmem:[%s3428 + $0xc0] sm:$0xff]
      %v3446 = vld [vmem:[%s3428 + $0xc8] sm:$0xff]
      %v3447 = vld [vmem:[%s3428 + $0xd8] sm:$0xff]
      %v3448 = vld [vmem:[%s3428 + $0xe0] sm:$0xff]
      %v3449 = vld [vmem:[%s3428 + $0xf0] sm:$0xff]
      %v3450 = vld [vmem:[%s3428 + $0xf8] sm:$0xff]
      %v3451 = vld [vmem:[%s3428 + $0x108] sm:$0xff]
      %v3452 = vld [vmem:[%s3428 + $0x110] sm:$0xff]
      %v3453 = vld [vmem:[%s3428 + $0x120] sm:$0xff]
      %v3454 = vld [vmem:[%s3428 + $0x128] sm:$0xff]
      %v3455 = vld [vmem:[%s3428 + $0x138] sm:$0xff]
      %v3456 = vld [vmem:[%s3428 + $0x140] sm:$0xff]
      %v3457 = vld [vmem:[%s3428 + $0x150] sm:$0xff]
      %v3458 = vld [vmem:[%s3428 + $0x158] sm:$0xff]
      %v3459 = vld [vmem:[%s3428 + $0x168] sm:$0xff]
      %v3460 = vld [vmem:[%s3428 + $0x170] sm:$0xff]
      %3493 = vrot.lane.b32.xlu0 %v3429, 48
      %v3494 = vpop.permute.xlu0 %3493
      %3495 = vrot.lane.b32.xlu0 %v3430, 48
      %v3496 = vpop.permute.xlu0 %3495
      %3497 = vrot.lane.b32.xlu0 %v3431, 48
      %v3498 = vpop.permute.xlu0 %3497
      %3499 = vrot.lane.b32.xlu0 %v3432, 48
      %v3500 = vpop.permute.xlu0 %3499
      %3501 = vrot.lane.b32.xlu0 %v3433, 48
      %v3502 = vpop.permute.xlu0 %3501
      %3503 = vrot.lane.b32.xlu0 %v3434, 48
      %v3504 = vpop.permute.xlu0 %3503
      %3505 = vrot.lane.b32.xlu0 %v3435, 48
      %v3506 = vpop.permute.xlu0 %3505
      %3507 = vrot.lane.b32.xlu0 %v3436, 48
      %v3508 = vpop.permute.xlu0 %3507
      %3509 = vrot.lane.b32.xlu0 %v3437, 48
      %v3510 = vpop.permute.xlu0 %3509
      %3511 = vrot.lane.b32.xlu0 %v3438, 48
      %v3512 = vpop.permute.xlu0 %3511
      %3513 = vrot.lane.b32.xlu0 %v3439, 48
      %v3514 = vpop.permute.xlu0 %3513
      %3515 = vrot.lane.b32.xlu0 %v3440, 48
      %v3516 = vpop.permute.xlu0 %3515
      %3517 = vrot.lane.b32.xlu0 %v3441, 48
      %v3518 = vpop.permute.xlu0 %3517
      %3519 = vrot.lane.b32.xlu0 %v3442, 48
      %v3520 = vpop.permute.xlu0 %3519
      %3521 = vrot.lane.b32.xlu0 %v3443, 48
      %v3522 = vpop.permute.xlu0 %3521
      %3523 = vrot.lane.b32.xlu0 %v3444, 48
      %v3524 = vpop.permute.xlu0 %3523
      %3525 = vrot.lane.b32.xlu0 %v3445, 48
      %v3526 = vpop.permute.xlu0 %3525
      %3527 = vrot.lane.b32.xlu0 %v3446, 48
      %v3528 = vpop.permute.xlu0 %3527
      %3529 = vrot.lane.b32.xlu0 %v3447, 48
      %v3530 = vpop.permute.xlu0 %3529
      %3531 = vrot.lane.b32.xlu0 %v3448, 48
      %v3532 = vpop.permute.xlu0 %3531
      %3533 = vrot.lane.b32.xlu0 %v3449, 48
      %v3534 = vpop.permute.xlu0 %3533
      %3535 = vrot.lane.b32.xlu0 %v3450, 48
      %v3536 = vpop.permute.xlu0 %3535
      %3537 = vrot.lane.b32.xlu0 %v3451, 48
      %v3538 = vpop.permute.xlu0 %3537
      %3539 = vrot.lane.b32.xlu0 %v3452, 48
      %v3540 = vpop.permute.xlu0 %3539
      %3541 = vrot.lane.b32.xlu0 %v3453, 48
      %v3542 = vpop.permute.xlu0 %3541
      %3543 = vrot.lane.b32.xlu0 %v3454, 48
      %v3544 = vpop.permute.xlu0 %3543
      %3545 = vrot.lane.b32.xlu0 %v3455, 48
      %v3546 = vpop.permute.xlu0 %3545
      %3547 = vrot.lane.b32.xlu0 %v3456, 48
      %v3548 = vpop.permute.xlu0 %3547
      %3549 = vrot.lane.b32.xlu0 %v3457, 48
      %v3550 = vpop.permute.xlu0 %3549
      %3551 = vrot.lane.b32.xlu0 %v3458, 48
      %v3552 = vpop.permute.xlu0 %3551
      %3553 = vrot.lane.b32.xlu0 %v3459, 48
      %v3554 = vpop.permute.xlu0 %3553
      %3555 = vrot.lane.b32.xlu0 %v3460, 48
      %v3556 = vpop.permute.xlu0 %3555
      %3589 = vst.msk [vmem:[#allocation3] sm:$0xff] %vm1558, %v3494
      %3590 = vst.msk [vmem:[#allocation3 + $0x8] sm:$0xff] %vm1558, %v3496
      %3591 = vst.msk [vmem:[#allocation3 + $0x10] sm:$0xff] %vm1558, %v3498
      %3592 = vst.msk [vmem:[#allocation3 + $0x18] sm:$0xff] %vm1558, %v3500
      %3593 = vst.msk [vmem:[#allocation3 + $0x20] sm:$0xff] %vm1558, %v3502
      %3594 = vst.msk [vmem:[#allocation3 + $0x28] sm:$0xff] %vm1558, %v3504
      %3595 = vst.msk [vmem:[#allocation3 + $0x30] sm:$0xff] %vm1558, %v3506
      %3596 = vst.msk [vmem:[#allocation3 + $0x38] sm:$0xff] %vm1558, %v3508
      %3597 = vst.msk [vmem:[#allocation3 + $0x40] sm:$0xff] %vm1558, %v3510
      %3598 = vst.msk [vmem:[#allocation3 + $0x48] sm:$0xff] %vm1558, %v3512
      %3599 = vst.msk [vmem:[#allocation3 + $0x50] sm:$0xff] %vm1558, %v3514
      %3600 = vst.msk [vmem:[#allocation3 + $0x58] sm:$0xff] %vm1558, %v3516
      %3601 = vst.msk [vmem:[#allocation3 + $0x60] sm:$0xff] %vm1558, %v3518
      %3602 = vst.msk [vmem:[#allocation3 + $0x68] sm:$0xff] %vm1558, %v3520
      %3603 = vst.msk [vmem:[#allocation3 + $0x70] sm:$0xff] %vm1558, %v3522
      %3604 = vst.msk [vmem:[#allocation3 + $0x78] sm:$0xff] %vm1558, %v3524
      %3605 = vst.msk [vmem:[#allocation3 + $0x80] sm:$0xff] %vm1558, %v3526
      %3606 = vst.msk [vmem:[#allocation3 + $0x88] sm:$0xff] %vm1558, %v3528
      %3607 = vst.msk [vmem:[#allocation3 + $0x90] sm:$0xff] %vm1558, %v3530
      %3608 = vst.msk [vmem:[#allocation3 + $0x98] sm:$0xff] %vm1558, %v3532
      %3609 = vst.msk [vmem:[#allocation3 + $0xa0] sm:$0xff] %vm1558, %v3534
      %3610 = vst.msk [vmem:[#allocation3 + $0xa8] sm:$0xff] %vm1558, %v3536
      %3611 = vst.msk [vmem:[#allocation3 + $0xb0] sm:$0xff] %vm1558, %v3538
      %3612 = vst.msk [vmem:[#allocation3 + $0xb8] sm:$0xff] %vm1558, %v3540
      %3613 = vst.msk [vmem:[#allocation3 + $0xc0] sm:$0xff] %vm1558, %v3542
      %3614 = vst.msk [vmem:[#allocation3 + $0xc8] sm:$0xff] %vm1558, %v3544
      %3615 = vst.msk [vmem:[#allocation3 + $0xd0] sm:$0xff] %vm1558, %v3546
      %3616 = vst.msk [vmem:[#allocation3 + $0xd8] sm:$0xff] %vm1558, %v3548
      %3617 = vst.msk [vmem:[#allocation3 + $0xe0] sm:$0xff] %vm1558, %v3550
      %3618 = vst.msk [vmem:[#allocation3 + $0xe8] sm:$0xff] %vm1558, %v3552
      %3619 = vst.msk [vmem:[#allocation3 + $0xf0] sm:$0xff] %vm1558, %v3554
      %3620 = vst.msk [vmem:[#allocation3 + $0xf8] sm:$0xff] %vm1558, %v3556
      %v3621 = vld [vmem:[%s3428 + $0x2] sm:$0xff]
      %v3622 = vld [vmem:[%s3428 + $0xa] sm:$0xff]
      %v3623 = vld [vmem:[%s3428 + $0x1a] sm:$0xff]
      %v3624 = vld [vmem:[%s3428 + $0x22] sm:$0xff]
      %v3625 = vld [vmem:[%s3428 + $0x32] sm:$0xff]
      %v3626 = vld [vmem:[%s3428 + $0x3a] sm:$0xff]
      %v3627 = vld [vmem:[%s3428 + $0x4a] sm:$0xff]
      %v3628 = vld [vmem:[%s3428 + $0x52] sm:$0xff]
      %v3629 = vld [vmem:[%s3428 + $0x62] sm:$0xff]
      %v3630 = vld [vmem:[%s3428 + $0x6a] sm:$0xff]
      %v3631 = vld [vmem:[%s3428 + $0x7a] sm:$0xff]
      %v3632 = vld [vmem:[%s3428 + $0x82] sm:$0xff]
      %v3633 = vld [vmem:[%s3428 + $0x92] sm:$0xff]
      %v3634 = vld [vmem:[%s3428 + $0x9a] sm:$0xff]
      %v3635 = vld [vmem:[%s3428 + $0xaa] sm:$0xff]
      %v3636 = vld [vmem:[%s3428 + $0xb2] sm:$0xff]
      %v3637 = vld [vmem:[%s3428 + $0xc2] sm:$0xff]
      %v3638 = vld [vmem:[%s3428 + $0xca] sm:$0xff]
      %v3639 = vld [vmem:[%s3428 + $0xda] sm:$0xff]
      %v3640 = vld [vmem:[%s3428 + $0xe2] sm:$0xff]
      %v3641 = vld [vmem:[%s3428 + $0xf2] sm:$0xff]
      %v3642 = vld [vmem:[%s3428 + $0xfa] sm:$0xff]
      %v3643 = vld [vmem:[%s3428 + $0x10a] sm:$0xff]
      %v3644 = vld [vmem:[%s3428 + $0x112] sm:$0xff]
      %v3645 = vld [vmem:[%s3428 + $0x122] sm:$0xff]
      %v3646 = vld [vmem:[%s3428 + $0x12a] sm:$0xff]
      %v3647 = vld [vmem:[%s3428 + $0x13a] sm:$0xff]
      %v3648 = vld [vmem:[%s3428 + $0x142] sm:$0xff]
      %v3649 = vld [vmem:[%s3428 + $0x152] sm:$0xff]
      %v3650 = vld [vmem:[%s3428 + $0x15a] sm:$0xff]
      %v3651 = vld [vmem:[%s3428 + $0x16a] sm:$0xff]
      %v3652 = vld [vmem:[%s3428 + $0x172] sm:$0xff]
      %3685 = vrot.lane.b32.xlu0 %v3621, 56
      %v3686 = vpop.permute.xlu0 %3685
      %3687 = vrot.lane.b32.xlu0 %v3622, 56
      %v3688 = vpop.permute.xlu0 %3687
      %3689 = vrot.lane.b32.xlu0 %v3623, 56
      %v3690 = vpop.permute.xlu0 %3689
      %3691 = vrot.lane.b32.xlu0 %v3624, 56
      %v3692 = vpop.permute.xlu0 %3691
      %3693 = vrot.lane.b32.xlu0 %v3625, 56
      %v3694 = vpop.permute.xlu0 %3693
      %3695 = vrot.lane.b32.xlu0 %v3626, 56
      %v3696 = vpop.permute.xlu0 %3695
      %3697 = vrot.lane.b32.xlu0 %v3627, 56
      %v3698 = vpop.permute.xlu0 %3697
      %3699 = vrot.lane.b32.xlu0 %v3628, 56
      %v3700 = vpop.permute.xlu0 %3699
      %3701 = vrot.lane.b32.xlu0 %v3629, 56
      %v3702 = vpop.permute.xlu0 %3701
      %3703 = vrot.lane.b32.xlu0 %v3630, 56
      %v3704 = vpop.permute.xlu0 %3703
      %3705 = vrot.lane.b32.xlu0 %v3631, 56
      %v3706 = vpop.permute.xlu0 %3705
      %3707 = vrot.lane.b32.xlu0 %v3632, 56
      %v3708 = vpop.permute.xlu0 %3707
      %3709 = vrot.lane.b32.xlu0 %v3633, 56
      %v3710 = vpop.permute.xlu0 %3709
      %3711 = vrot.lane.b32.xlu0 %v3634, 56
      %v3712 = vpop.permute.xlu0 %3711
      %3713 = vrot.lane.b32.xlu0 %v3635, 56
      %v3714 = vpop.permute.xlu0 %3713
      %3715 = vrot.lane.b32.xlu0 %v3636, 56
      %v3716 = vpop.permute.xlu0 %3715
      %3717 = vrot.lane.b32.xlu0 %v3637, 56
      %v3718 = vpop.permute.xlu0 %3717
      %3719 = vrot.lane.b32.xlu0 %v3638, 56
      %v3720 = vpop.permute.xlu0 %3719
      %3721 = vrot.lane.b32.xlu0 %v3639, 56
      %v3722 = vpop.permute.xlu0 %3721
      %3723 = vrot.lane.b32.xlu0 %v3640, 56
      %v3724 = vpop.permute.xlu0 %3723
      %3725 = vrot.lane.b32.xlu0 %v3641, 56
      %v3726 = vpop.permute.xlu0 %3725
      %3727 = vrot.lane.b32.xlu0 %v3642, 56
      %v3728 = vpop.permute.xlu0 %3727
      %3729 = vrot.lane.b32.xlu0 %v3643, 56
      %v3730 = vpop.permute.xlu0 %3729
      %3731 = vrot.lane.b32.xlu0 %v3644, 56
      %v3732 = vpop.permute.xlu0 %3731
      %3733 = vrot.lane.b32.xlu0 %v3645, 56
      %v3734 = vpop.permute.xlu0 %3733
      %3735 = vrot.lane.b32.xlu0 %v3646, 56
      %v3736 = vpop.permute.xlu0 %3735
      %3737 = vrot.lane.b32.xlu0 %v3647, 56
      %v3738 = vpop.permute.xlu0 %3737
      %3739 = vrot.lane.b32.xlu0 %v3648, 56
      %v3740 = vpop.permute.xlu0 %3739
      %3741 = vrot.lane.b32.xlu0 %v3649, 56
      %v3742 = vpop.permute.xlu0 %3741
      %3743 = vrot.lane.b32.xlu0 %v3650, 56
      %v3744 = vpop.permute.xlu0 %3743
      %3745 = vrot.lane.b32.xlu0 %v3651, 56
      %v3746 = vpop.permute.xlu0 %3745
      %3747 = vrot.lane.b32.xlu0 %v3652, 56
      %v3748 = vpop.permute.xlu0 %3747
      %3781 = vst.msk [vmem:[#allocation3] sm:$0xff] %vm1751, %v3686
      %3782 = vst.msk [vmem:[#allocation3 + $0x8] sm:$0xff] %vm1751, %v3688
      %3783 = vst.msk [vmem:[#allocation3 + $0x10] sm:$0xff] %vm1751, %v3690
      %3784 = vst.msk [vmem:[#allocation3 + $0x18] sm:$0xff] %vm1751, %v3692
      %3785 = vst.msk [vmem:[#allocation3 + $0x20] sm:$0xff] %vm1751, %v3694
      %3786 = vst.msk [vmem:[#allocation3 + $0x28] sm:$0xff] %vm1751, %v3696
      %3787 = vst.msk [vmem:[#allocation3 + $0x30] sm:$0xff] %vm1751, %v3698
      %3788 = vst.msk [vmem:[#allocation3 + $0x38] sm:$0xff] %vm1751, %v3700
      %3789 = vst.msk [vmem:[#allocation3 + $0x40] sm:$0xff] %vm1751, %v3702
      %3790 = vst.msk [vmem:[#allocation3 + $0x48] sm:$0xff] %vm1751, %v3704
      %3791 = vst.msk [vmem:[#allocation3 + $0x50] sm:$0xff] %vm1751, %v3706
      %3792 = vst.msk [vmem:[#allocation3 + $0x58] sm:$0xff] %vm1751, %v3708
      %3793 = vst.msk [vmem:[#allocation3 + $0x60] sm:$0xff] %vm1751, %v3710
      %3794 = vst.msk [vmem:[#allocation3 + $0x68] sm:$0xff] %vm1751, %v3712
      %3795 = vst.msk [vmem:[#allocation3 + $0x70] sm:$0xff] %vm1751, %v3714
      %3796 = vst.msk [vmem:[#allocation3 + $0x78] sm:$0xff] %vm1751, %v3716
      %3797 = vst.msk [vmem:[#allocation3 + $0x80] sm:$0xff] %vm1751, %v3718
      %3798 = vst.msk [vmem:[#allocation3 + $0x88] sm:$0xff] %vm1751, %v3720
      %3799 = vst.msk [vmem:[#allocation3 + $0x90] sm:$0xff] %vm1751, %v3722
      %3800 = vst.msk [vmem:[#allocation3 + $0x98] sm:$0xff] %vm1751, %v3724
      %3801 = vst.msk [vmem:[#allocation3 + $0xa0] sm:$0xff] %vm1751, %v3726
      %3802 = vst.msk [vmem:[#allocation3 + $0xa8] sm:$0xff] %vm1751, %v3728
      %3803 = vst.msk [vmem:[#allocation3 + $0xb0] sm:$0xff] %vm1751, %v3730
      %3804 = vst.msk [vmem:[#allocation3 + $0xb8] sm:$0xff] %vm1751, %v3732
      %3805 = vst.msk [vmem:[#allocation3 + $0xc0] sm:$0xff] %vm1751, %v3734
      %3806 = vst.msk [vmem:[#allocation3 + $0xc8] sm:$0xff] %vm1751, %v3736
      %3807 = vst.msk [vmem:[#allocation3 + $0xd0] sm:$0xff] %vm1751, %v3738
      %3808 = vst.msk [vmem:[#allocation3 + $0xd8] sm:$0xff] %vm1751, %v3740
      %3809 = vst.msk [vmem:[#allocation3 + $0xe0] sm:$0xff] %vm1751, %v3742
      %3810 = vst.msk [vmem:[#allocation3 + $0xe8] sm:$0xff] %vm1751, %v3744
      %3811 = vst.msk [vmem:[#allocation3 + $0xf0] sm:$0xff] %vm1751, %v3746
      %3812 = vst.msk [vmem:[#allocation3 + $0xf8] sm:$0xff] %vm1751, %v3748
      %v3813 = vld [vmem:[%s3428 + $0x4] sm:$0xff]
      %v3814 = vld [vmem:[%s3428 + $0xc] sm:$0xff]
      %v3815 = vld [vmem:[%s3428 + $0x1c] sm:$0xff]
      %v3816 = vld [vmem:[%s3428 + $0x24] sm:$0xff]
      %v3817 = vld [vmem:[%s3428 + $0x34] sm:$0xff]
      %v3818 = vld [vmem:[%s3428 + $0x3c] sm:$0xff]
      %v3819 = vld [vmem:[%s3428 + $0x4c] sm:$0xff]
      %v3820 = vld [vmem:[%s3428 + $0x54] sm:$0xff]
      %v3821 = vld [vmem:[%s3428 + $0x64] sm:$0xff]
      %v3822 = vld [vmem:[%s3428 + $0x6c] sm:$0xff]
      %v3823 = vld [vmem:[%s3428 + $0x7c] sm:$0xff]
      %v3824 = vld [vmem:[%s3428 + $0x84] sm:$0xff]
      %v3825 = vld [vmem:[%s3428 + $0x94] sm:$0xff]
      %v3826 = vld [vmem:[%s3428 + $0x9c] sm:$0xff]
      %v3827 = vld [vmem:[%s3428 + $0xac] sm:$0xff]
      %v3828 = vld [vmem:[%s3428 + $0xb4] sm:$0xff]
      %v3829 = vld [vmem:[%s3428 + $0xc4] sm:$0xff]
      %v3830 = vld [vmem:[%s3428 + $0xcc] sm:$0xff]
      %v3831 = vld [vmem:[%s3428 + $0xdc] sm:$0xff]
      %v3832 = vld [vmem:[%s3428 + $0xe4] sm:$0xff]
      %v3833 = vld [vmem:[%s3428 + $0xf4] sm:$0xff]
      %v3834 = vld [vmem:[%s3428 + $0xfc] sm:$0xff]
      %v3835 = vld [vmem:[%s3428 + $0x10c] sm:$0xff]
      %v3836 = vld [vmem:[%s3428 + $0x114] sm:$0xff]
      %v3837 = vld [vmem:[%s3428 + $0x124] sm:$0xff]
      %v3838 = vld [vmem:[%s3428 + $0x12c] sm:$0xff]
      %v3839 = vld [vmem:[%s3428 + $0x13c] sm:$0xff]
      %v3840 = vld [vmem:[%s3428 + $0x144] sm:$0xff]
      %v3841 = vld [vmem:[%s3428 + $0x154] sm:$0xff]
      %v3842 = vld [vmem:[%s3428 + $0x15c] sm:$0xff]
      %v3843 = vld [vmem:[%s3428 + $0x16c] sm:$0xff]
      %v3844 = vld [vmem:[%s3428 + $0x174] sm:$0xff]
      %3877 = vrot.lane.b32.xlu0 %v3813, 64
      %v3878 = vpop.permute.xlu0 %3877
      %3879 = vrot.lane.b32.xlu0 %v3814, 64
      %v3880 = vpop.permute.xlu0 %3879
      %3881 = vrot.lane.b32.xlu0 %v3815, 64
      %v3882 = vpop.permute.xlu0 %3881
      %3883 = vrot.lane.b32.xlu0 %v3816, 64
      %v3884 = vpop.permute.xlu0 %3883
      %3885 = vrot.lane.b32.xlu0 %v3817, 64
      %v3886 = vpop.permute.xlu0 %3885
      %3887 = vrot.lane.b32.xlu0 %v3818, 64
      %v3888 = vpop.permute.xlu0 %3887
      %3889 = vrot.lane.b32.xlu0 %v3819, 64
      %v3890 = vpop.permute.xlu0 %3889
      %3891 = vrot.lane.b32.xlu0 %v3820, 64
      %v3892 = vpop.permute.xlu0 %3891
      %3893 = vrot.lane.b32.xlu0 %v3821, 64
      %v3894 = vpop.permute.xlu0 %3893
      %3895 = vrot.lane.b32.xlu0 %v3822, 64
      %v3896 = vpop.permute.xlu0 %3895
      %3897 = vrot.lane.b32.xlu0 %v3823, 64
      %v3898 = vpop.permute.xlu0 %3897
      %3899 = vrot.lane.b32.xlu0 %v3824, 64
      %v3900 = vpop.permute.xlu0 %3899
      %3901 = vrot.lane.b32.xlu0 %v3825, 64
      %v3902 = vpop.permute.xlu0 %3901
      %3903 = vrot.lane.b32.xlu0 %v3826, 64
      %v3904 = vpop.permute.xlu0 %3903
      %3905 = vrot.lane.b32.xlu0 %v3827, 64
      %v3906 = vpop.permute.xlu0 %3905
      %3907 = vrot.lane.b32.xlu0 %v3828, 64
      %v3908 = vpop.permute.xlu0 %3907
      %3909 = vrot.lane.b32.xlu0 %v3829, 64
      %v3910 = vpop.permute.xlu0 %3909
      %3911 = vrot.lane.b32.xlu0 %v3830, 64
      %v3912 = vpop.permute.xlu0 %3911
      %3913 = vrot.lane.b32.xlu0 %v3831, 64
      %v3914 = vpop.permute.xlu0 %3913
      %3915 = vrot.lane.b32.xlu0 %v3832, 64
      %v3916 = vpop.permute.xlu0 %3915
      %3917 = vrot.lane.b32.xlu0 %v3833, 64
      %v3918 = vpop.permute.xlu0 %3917
      %3919 = vrot.lane.b32.xlu0 %v3834, 64
      %v3920 = vpop.permute.xlu0 %3919
      %3921 = vrot.lane.b32.xlu0 %v3835, 64
      %v3922 = vpop.permute.xlu0 %3921
      %3923 = vrot.lane.b32.xlu0 %v3836, 64
      %v3924 = vpop.permute.xlu0 %3923
      %3925 = vrot.lane.b32.xlu0 %v3837, 64
      %v3926 = vpop.permute.xlu0 %3925
      %3927 = vrot.lane.b32.xlu0 %v3838, 64
      %v3928 = vpop.permute.xlu0 %3927
      %3929 = vrot.lane.b32.xlu0 %v3839, 64
      %v3930 = vpop.permute.xlu0 %3929
      %3931 = vrot.lane.b32.xlu0 %v3840, 64
      %v3932 = vpop.permute.xlu0 %3931
      %3933 = vrot.lane.b32.xlu0 %v3841, 64
      %v3934 = vpop.permute.xlu0 %3933
      %3935 = vrot.lane.b32.xlu0 %v3842, 64
      %v3936 = vpop.permute.xlu0 %3935
      %3937 = vrot.lane.b32.xlu0 %v3843, 64
      %v3938 = vpop.permute.xlu0 %3937
      %3939 = vrot.lane.b32.xlu0 %v3844, 64
      %v3940 = vpop.permute.xlu0 %3939
      %3973 = vst.msk [vmem:[#allocation3] sm:$0xff] %vm1944, %v3878
      %3974 = vst.msk [vmem:[#allocation3 + $0x8] sm:$0xff] %vm1944, %v3880
      %3975 = vst.msk [vmem:[#allocation3 + $0x10] sm:$0xff] %vm1944, %v3882
      %3976 = vst.msk [vmem:[#allocation3 + $0x18] sm:$0xff] %vm1944, %v3884
      %3977 = vst.msk [vmem:[#allocation3 + $0x20] sm:$0xff] %vm1944, %v3886
      %3978 = vst.msk [vmem:[#allocation3 + $0x28] sm:$0xff] %vm1944, %v3888
      %3979 = vst.msk [vmem:[#allocation3 + $0x30] sm:$0xff] %vm1944, %v3890
      %3980 = vst.msk [vmem:[#allocation3 + $0x38] sm:$0xff] %vm1944, %v3892
      %3981 = vst.msk [vmem:[#allocation3 + $0x40] sm:$0xff] %vm1944, %v3894
      %3982 = vst.msk [vmem:[#allocation3 + $0x48] sm:$0xff] %vm1944, %v3896
      %3983 = vst.msk [vmem:[#allocation3 + $0x50] sm:$0xff] %vm1944, %v3898
      %3984 = vst.msk [vmem:[#allocation3 + $0x58] sm:$0xff] %vm1944, %v3900
      %3985 = vst.msk [vmem:[#allocation3 + $0x60] sm:$0xff] %vm1944, %v3902
      %3986 = vst.msk [vmem:[#allocation3 + $0x68] sm:$0xff] %vm1944, %v3904
      %3987 = vst.msk [vmem:[#allocation3 + $0x70] sm:$0xff] %vm1944, %v3906
      %3988 = vst.msk [vmem:[#allocation3 + $0x78] sm:$0xff] %vm1944, %v3908
      %3989 = vst.msk [vmem:[#allocation3 + $0x80] sm:$0xff] %vm1944, %v3910
      %3990 = vst.msk [vmem:[#allocation3 + $0x88] sm:$0xff] %vm1944, %v3912
      %3991 = vst.msk [vmem:[#allocation3 + $0x90] sm:$0xff] %vm1944, %v3914
      %3992 = vst.msk [vmem:[#allocation3 + $0x98] sm:$0xff] %vm1944, %v3916
      %3993 = vst.msk [vmem:[#allocation3 + $0xa0] sm:$0xff] %vm1944, %v3918
      %3994 = vst.msk [vmem:[#allocation3 + $0xa8] sm:$0xff] %vm1944, %v3920
      %3995 = vst.msk [vmem:[#allocation3 + $0xb0] sm:$0xff] %vm1944, %v3922
      %3996 = vst.msk [vmem:[#allocation3 + $0xb8] sm:$0xff] %vm1944, %v3924
      %3997 = vst.msk [vmem:[#allocation3 + $0xc0] sm:$0xff] %vm1944, %v3926
      %3998 = vst.msk [vmem:[#allocation3 + $0xc8] sm:$0xff] %vm1944, %v3928
      %3999 = vst.msk [vmem:[#allocation3 + $0xd0] sm:$0xff] %vm1944, %v3930
      %4000 = vst.msk [vmem:[#allocation3 + $0xd8] sm:$0xff] %vm1944, %v3932
      %4001 = vst.msk [vmem:[#allocation3 + $0xe0] sm:$0xff] %vm1944, %v3934
      %4002 = vst.msk [vmem:[#allocation3 + $0xe8] sm:$0xff] %vm1944, %v3936
      %4003 = vst.msk [vmem:[#allocation3 + $0xf0] sm:$0xff] %vm1944, %v3938
      %4004 = vst.msk [vmem:[#allocation3 + $0xf8] sm:$0xff] %vm1944, %v3940
      %v4005 = vld [vmem:[#allocation3] sm:$0xff]
      %v4006 = vld [vmem:[#allocation3 + $0x8] sm:$0xff]
      %v4007 = vld [vmem:[#allocation3 + $0x10] sm:$0xff]
      %v4008 = vld [vmem:[#allocation3 + $0x18] sm:$0xff]
      %v4009 = vld [vmem:[#allocation3 + $0x20] sm:$0xff]
      %v4010 = vld [vmem:[#allocation3 + $0x28] sm:$0xff]
      %v4011 = vld [vmem:[#allocation3 + $0x30] sm:$0xff]
      %v4012 = vld [vmem:[#allocation3 + $0x38] sm:$0xff]
      %v4013 = vld [vmem:[#allocation3 + $0x40] sm:$0xff]
      %v4014 = vld [vmem:[#allocation3 + $0x48] sm:$0xff]
      %v4015 = vld [vmem:[#allocation3 + $0x50] sm:$0xff]
      %v4016 = vld [vmem:[#allocation3 + $0x58] sm:$0xff]
      %v4017 = vld [vmem:[#allocation3 + $0x60] sm:$0xff]
      %v4018 = vld [vmem:[#allocation3 + $0x68] sm:$0xff]
      %v4019 = vld [vmem:[#allocation3 + $0x70] sm:$0xff]
      %v4020 = vld [vmem:[#allocation3 + $0x78] sm:$0xff]
      %v4021 = vld [vmem:[#allocation3 + $0x80] sm:$0xff]
      %v4022 = vld [vmem:[#allocation3 + $0x88] sm:$0xff]
      %v4023 = vld [vmem:[#allocation3 + $0x90] sm:$0xff]
      %v4024 = vld [vmem:[#allocation3 + $0x98] sm:$0xff]
      %v4025 = vld [vmem:[#allocation3 + $0xa0] sm:$0xff]
      %v4026 = vld [vmem:[#allocation3 + $0xa8] sm:$0xff]
      %v4027 = vld [vmem:[#allocation3 + $0xb0] sm:$0xff]
      %v4028 = vld [vmem:[#allocation3 + $0xb8] sm:$0xff]
      %v4029 = vld [vmem:[#allocation3 + $0xc0] sm:$0xff]
      %v4030 = vld [vmem:[#allocation3 + $0xc8] sm:$0xff]
      %v4031 = vld [vmem:[#allocation3 + $0xd0] sm:$0xff]
      %v4032 = vld [vmem:[#allocation3 + $0xd8] sm:$0xff]
      %v4033 = vld [vmem:[#allocation3 + $0xe0] sm:$0xff]
      %v4034 = vld [vmem:[#allocation3 + $0xe8] sm:$0xff]
      %v4035 = vld [vmem:[#allocation3 + $0xf0] sm:$0xff]
      %v4036 = vld [vmem:[#allocation3 + $0xf8] sm:$0xff]
      %v4037 = vld [vmem:[%s5] sm:$0xff]
      %v4038 = vld [vmem:[%s5 + $0x8] sm:$0xff]
      %v4039 = vld [vmem:[%s5 + $0x10] sm:$0xff]
      %v4040 = vld [vmem:[%s5 + $0x18] sm:$0xff]
      %v4041 = vld [vmem:[%s5 + $0x20] sm:$0xff]
      %v4042 = vld [vmem:[%s5 + $0x28] sm:$0xff]
      %v4043 = vld [vmem:[%s5 + $0x30] sm:$0xff]
      %v4044 = vld [vmem:[%s5 + $0x38] sm:$0xff]
      %v4045 = vld [vmem:[%s5 + $0x40] sm:$0xff]
      %v4047 = vsel %vm2018, %v4005, 0
      %v4050 = vsel %vm2018, %v4006, 0
      %v4053 = vsel %vm2018, %v4007, 0
      %v4056 = vsel %vm2018, %v4008, 0
      %v4059 = vsel %vm2018, %v4009, 0
      %v4062 = vsel %vm2018, %v4010, 0
      %v4065 = vsel %vm2018, %v4011, 0
      %v4068 = vsel %vm2018, %v4012, 0
      %v4071 = vsel %vm2018, %v4013, 0
      %v4074 = vsel %vm2018, %v4014, 0
      %v4077 = vsel %vm2018, %v4015, 0
      %v4080 = vsel %vm2018, %v4016, 0
      %v4083 = vsel %vm2018, %v4017, 0
      %v4086 = vsel %vm2018, %v4018, 0
      %v4089 = vsel %vm2018, %v4019, 0
      %v4092 = vsel %vm2018, %v4020, 0
      %v4095 = vsel %vm2018, %v4021, 0
      %v4098 = vsel %vm2018, %v4022, 0
      %v4101 = vsel %vm2018, %v4023, 0
      %v4104 = vsel %vm2018, %v4024, 0
      %v4107 = vsel %vm2018, %v4025, 0
      %v4110 = vsel %vm2018, %v4026, 0
      %v4113 = vsel %vm2018, %v4027, 0
      %v4116 = vsel %vm2018, %v4028, 0
      %v4119 = vsel %vm2018, %v4029, 0
      %v4122 = vsel %vm2018, %v4030, 0
      %v4125 = vsel %vm2018, %v4031, 0
      %v4128 = vsel %vm2018, %v4032, 0
      %v4131 = vsel %vm2018, %v4033, 0
      %v4134 = vsel %vm2018, %v4034, 0
      %v4137 = vsel %vm2018, %v4035, 0
      %v4140 = vsel %vm2018, %v4036, 0
      %4142 = vmatpush.msra.mxu0 0.0
      %4143 = vmatpush.msra.mxu0 0.0
      %4144 = vmatpush.msra.mxu0 0.0
      %4145 = vmatpush.msra.mxu0 0.0
      %4146 = vmatpush.msra.mxu0 0.0
      %4147 = vmatpush.msra.mxu0 0.0
      %4148 = vmatpush.msra.mxu0 0.0
      %4149 = vmatpush.msra.mxu0 %v4045
      %4150 = vmatpush.msra.mxu0 %v4044
      %4151 = vmatpush.msra.mxu0 %v4043
      %4152 = vmatpush.msra.mxu0 %v4042
      %4153 = vmatpush.msra.mxu0 %v4041
      %4154 = vmatpush.msra.mxu0 %v4040
      %4155 = vmatpush.msra.mxu0 %v4039
      %4156 = vmatpush.msra.mxu0 %v4038
      %4157 = vmatpush.msra.mxu0 %v4037
      %4158 = vmatmul.f32.gmra.mxu0 %v4047
      %v4159 = vpop.f32.mrf.mxu0
      %v4160 = vadd.f32 0.0, %v4159
      %4161 = vmatmul.f32.gmra.mxu0 %v4050
      %v4162 = vpop.f32.mrf.mxu0
      %v4163 = vadd.f32 0.0, %v4162
      %4164 = vmatmul.f32.gmra.mxu0 %v4053
      %v4165 = vpop.f32.mrf.mxu0
      %v4166 = vadd.f32 0.0, %v4165
      %4167 = vmatmul.f32.gmra.mxu0 %v4056
      %v4168 = vpop.f32.mrf.mxu0
      %v4169 = vadd.f32 0.0, %v4168
      %4170 = vmatmul.f32.gmra.mxu0 %v4059
      %v4171 = vpop.f32.mrf.mxu0
      %v4172 = vadd.f32 0.0, %v4171
      %4173 = vmatmul.f32.gmra.mxu0 %v4062
      %v4174 = vpop.f32.mrf.mxu0
      %v4175 = vadd.f32 0.0, %v4174
      %4176 = vmatmul.f32.gmra.mxu0 %v4065
      %v4177 = vpop.f32.mrf.mxu0
      %v4178 = vadd.f32 0.0, %v4177
      %4179 = vmatmul.f32.gmra.mxu0 %v4068
      %v4180 = vpop.f32.mrf.mxu0
      %v4181 = vadd.f32 0.0, %v4180
      %4182 = vmatmul.f32.gmra.mxu0 %v4071
      %v4183 = vpop.f32.mrf.mxu0
      %v4184 = vadd.f32 0.0, %v4183
      %4185 = vmatmul.f32.gmra.mxu0 %v4074
      %v4186 = vpop.f32.mrf.mxu0
      %v4187 = vadd.f32 0.0, %v4186
      %4188 = vmatmul.f32.gmra.mxu0 %v4077
      %v4189 = vpop.f32.mrf.mxu0
      %v4190 = vadd.f32 0.0, %v4189
      %4191 = vmatmul.f32.gmra.mxu0 %v4080
      %v4192 = vpop.f32.mrf.mxu0
      %v4193 = vadd.f32 0.0, %v4192
      %4194 = vmatmul.f32.gmra.mxu0 %v4083
      %v4195 = vpop.f32.mrf.mxu0
      %v4196 = vadd.f32 0.0, %v4195
      %4197 = vmatmul.f32.gmra.mxu0 %v4086
      %v4198 = vpop.f32.mrf.mxu0
      %v4199 = vadd.f32 0.0, %v4198
      %4200 = vmatmul.f32.gmra.mxu0 %v4089
      %v4201 = vpop.f32.mrf.mxu0
      %v4202 = vadd.f32 0.0, %v4201
      %4203 = vmatmul.f32.gmra.mxu0 %v4092
      %v4204 = vpop.f32.mrf.mxu0
      %v4205 = vadd.f32 0.0, %v4204
      %4206 = vmatmul.f32.gmra.mxu0 %v4095
      %v4207 = vpop.f32.mrf.mxu0
      %v4208 = vadd.f32 0.0, %v4207
      %4209 = vmatmul.f32.gmra.mxu0 %v4098
      %v4210 = vpop.f32.mrf.mxu0
      %v4211 = vadd.f32 0.0, %v4210
      %4212 = vmatmul.f32.gmra.mxu0 %v4101
      %v4213 = vpop.f32.mrf.mxu0
      %v4214 = vadd.f32 0.0, %v4213
      %4215 = vmatmul.f32.gmra.mxu0 %v4104
      %v4216 = vpop.f32.mrf.mxu0
      %v4217 = vadd.f32 0.0, %v4216
      %4218 = vmatmul.f32.gmra.mxu0 %v4107
      %v4219 = vpop.f32.mrf.mxu0
      %v4220 = vadd.f32 0.0, %v4219
      %4221 = vmatmul.f32.gmra.mxu0 %v4110
      %v4222 = vpop.f32.mrf.mxu0
      %v4223 = vadd.f32 0.0, %v4222
      %4224 = vmatmul.f32.gmra.mxu0 %v4113
      %v4225 = vpop.f32.mrf.mxu0
      %v4226 = vadd.f32 0.0, %v4225
      %4227 = vmatmul.f32.gmra.mxu0 %v4116
      %v4228 = vpop.f32.mrf.mxu0
      %v4229 = vadd.f32 0.0, %v4228
      %4230 = vmatmul.f32.gmra.mxu0 %v4119
      %v4231 = vpop.f32.mrf.mxu0
      %v4232 = vadd.f32 0.0, %v4231
      %4233 = vmatmul.f32.gmra.mxu0 %v4122
      %v4234 = vpop.f32.mrf.mxu0
      %v4235 = vadd.f32 0.0, %v4234
      %4236 = vmatmul.f32.gmra.mxu0 %v4125
      %v4237 = vpop.f32.mrf.mxu0
      %v4238 = vadd.f32 0.0, %v4237
      %4239 = vmatmul.f32.gmra.mxu0 %v4128
      %v4240 = vpop.f32.mrf.mxu0
      %v4241 = vadd.f32 0.0, %v4240
      %4242 = vmatmul.f32.gmra.mxu0 %v4131
      %v4243 = vpop.f32.mrf.mxu0
      %v4244 = vadd.f32 0.0, %v4243
      %4245 = vmatmul.f32.gmra.mxu0 %v4134
      %v4246 = vpop.f32.mrf.mxu0
      %v4247 = vadd.f32 0.0, %v4246
      %4248 = vmatmul.f32.gmra.mxu0 %v4137
      %v4249 = vpop.f32.mrf.mxu0
      %v4250 = vadd.f32 0.0, %v4249
      %4251 = vmatmul.f32.gmra.mxu0 %v4140
      %v4252 = vpop.f32.mrf.mxu0
      %v4253 = vadd.f32 0.0, %v4252
      %4254 = vdwg.mxu0
      %vm4255 = vcmp.ge.f32.partialorder %v4160, 0.0
      %vm4256 = vcmp.ge.f32.partialorder %v4163, 0.0
      %vm4257 = vcmp.ge.f32.partialorder %v4166, 0.0
      %vm4258 = vcmp.ge.f32.partialorder %v4169, 0.0
      %vm4259 = vcmp.ge.f32.partialorder %v4172, 0.0
      %vm4260 = vcmp.ge.f32.partialorder %v4175, 0.0
      %vm4261 = vcmp.ge.f32.partialorder %v4178, 0.0
      %vm4262 = vcmp.ge.f32.partialorder %v4181, 0.0
      %vm4263 = vcmp.ge.f32.partialorder %v4184, 0.0
      %vm4264 = vcmp.ge.f32.partialorder %v4187, 0.0
      %vm4265 = vcmp.ge.f32.partialorder %v4190, 0.0
      %vm4266 = vcmp.ge.f32.partialorder %v4193, 0.0
      %vm4267 = vcmp.ge.f32.partialorder %v4196, 0.0
      %vm4268 = vcmp.ge.f32.partialorder %v4199, 0.0
      %vm4269 = vcmp.ge.f32.partialorder %v4202, 0.0
      %vm4270 = vcmp.ge.f32.partialorder %v4205, 0.0
      %vm4271 = vcmp.ge.f32.partialorder %v4208, 0.0
      %vm4272 = vcmp.ge.f32.partialorder %v4211, 0.0
      %vm4273 = vcmp.ge.f32.partialorder %v4214, 0.0
      %vm4274 = vcmp.ge.f32.partialorder %v4217, 0.0
      %vm4275 = vcmp.ge.f32.partialorder %v4220, 0.0
      %vm4276 = vcmp.ge.f32.partialorder %v4223, 0.0
      %vm4277 = vcmp.ge.f32.partialorder %v4226, 0.0
      %vm4278 = vcmp.ge.f32.partialorder %v4229, 0.0
      %vm4279 = vcmp.ge.f32.partialorder %v4232, 0.0
      %vm4280 = vcmp.ge.f32.partialorder %v4235, 0.0
      %vm4281 = vcmp.ge.f32.partialorder %v4238, 0.0
      %vm4282 = vcmp.ge.f32.partialorder %v4241, 0.0
      %vm4283 = vcmp.ge.f32.partialorder %v4244, 0.0
      %vm4284 = vcmp.ge.f32.partialorder %v4247, 0.0
      %vm4285 = vcmp.ge.f32.partialorder %v4250, 0.0
      %vm4286 = vcmp.ge.f32.partialorder %v4253, 0.0
      %v4287 = vmul.f32 %v4160, 0.1
      %v4288 = vmul.f32 %v4163, 0.1
      %v4289 = vmul.f32 %v4166, 0.1
      %v4290 = vmul.f32 %v4169, 0.1
      %v4291 = vmul.f32 %v4172, 0.1
      %v4292 = vmul.f32 %v4175, 0.1
      %v4293 = vmul.f32 %v4178, 0.1
      %v4294 = vmul.f32 %v4181, 0.1
      %v4295 = vmul.f32 %v4184, 0.1
      %v4296 = vmul.f32 %v4187, 0.1
      %v4297 = vmul.f32 %v4190, 0.1
      %v4298 = vmul.f32 %v4193, 0.1
      %v4299 = vmul.f32 %v4196, 0.1
      %v4300 = vmul.f32 %v4199, 0.1
      %v4301 = vmul.f32 %v4202, 0.1
      %v4302 = vmul.f32 %v4205, 0.1
      %v4303 = vmul.f32 %v4208, 0.1
      %v4304 = vmul.f32 %v4211, 0.1
      %v4305 = vmul.f32 %v4214, 0.1
      %v4306 = vmul.f32 %v4217, 0.1
      %v4307 = vmul.f32 %v4220, 0.1
      %v4308 = vmul.f32 %v4223, 0.1
      %v4309 = vmul.f32 %v4226, 0.1
      %v4310 = vmul.f32 %v4229, 0.1
      %v4311 = vmul.f32 %v4232, 0.1
      %v4312 = vmul.f32 %v4235, 0.1
      %v4313 = vmul.f32 %v4238, 0.1
      %v4314 = vmul.f32 %v4241, 0.1
      %v4315 = vmul.f32 %v4244, 0.1
      %v4316 = vmul.f32 %v4247, 0.1
      %v4317 = vmul.f32 %v4250, 0.1
      %v4318 = vmul.f32 %v4253, 0.1
      %v4319 = vsel %vm4255, %v4160, %v4287
      %v4320 = vsel %vm4256, %v4163, %v4288
      %v4321 = vsel %vm4257, %v4166, %v4289
      %v4322 = vsel %vm4258, %v4169, %v4290
      %v4323 = vsel %vm4259, %v4172, %v4291
      %v4324 = vsel %vm4260, %v4175, %v4292
      %v4325 = vsel %vm4261, %v4178, %v4293
      %v4326 = vsel %vm4262, %v4181, %v4294
      %v4327 = vsel %vm4263, %v4184, %v4295
      %v4328 = vsel %vm4264, %v4187, %v4296
      %v4329 = vsel %vm4265, %v4190, %v4297
      %v4330 = vsel %vm4266, %v4193, %v4298
      %v4331 = vsel %vm4267, %v4196, %v4299
      %v4332 = vsel %vm4268, %v4199, %v4300
      %v4333 = vsel %vm4269, %v4202, %v4301
      %v4334 = vsel %vm4270, %v4205, %v4302
      %v4335 = vsel %vm4271, %v4208, %v4303
      %v4336 = vsel %vm4272, %v4211, %v4304
      %v4337 = vsel %vm4273, %v4214, %v4305
      %v4338 = vsel %vm4274, %v4217, %v4306
      %v4339 = vsel %vm4275, %v4220, %v4307
      %v4340 = vsel %vm4276, %v4223, %v4308
      %v4341 = vsel %vm4277, %v4226, %v4309
      %v4342 = vsel %vm4278, %v4229, %v4310
      %v4343 = vsel %vm4279, %v4232, %v4311
      %v4344 = vsel %vm4280, %v4235, %v4312
      %v4345 = vsel %vm4281, %v4238, %v4313
      %v4346 = vsel %vm4282, %v4241, %v4314
      %v4347 = vsel %vm4283, %v4244, %v4315
      %v4348 = vsel %vm4284, %v4247, %v4316
      %v4349 = vsel %vm4285, %v4250, %v4317
      %v4350 = vsel %vm4286, %v4253, %v4318
      %4351 = vst.msk [vmem:[#allocation3] sm:$0xff] %vm398, %v4319
      %4352 = vst.msk [vmem:[#allocation3 + $0x8] sm:$0xff] %vm398, %v4320
      %4353 = vst.msk [vmem:[#allocation3 + $0x10] sm:$0xff] %vm398, %v4321
      %4354 = vst.msk [vmem:[#allocation3 + $0x18] sm:$0xff] %vm398, %v4322
      %4355 = vst.msk [vmem:[#allocation3 + $0x20] sm:$0xff] %vm398, %v4323
      %4356 = vst.msk [vmem:[#allocation3 + $0x28] sm:$0xff] %vm398, %v4324
      %4357 = vst.msk [vmem:[#allocation3 + $0x30] sm:$0xff] %vm398, %v4325
      %4358 = vst.msk [vmem:[#allocation3 + $0x38] sm:$0xff] %vm398, %v4326
      %4359 = vst.msk [vmem:[#allocation3 + $0x40] sm:$0xff] %vm398, %v4327
      %4360 = vst.msk [vmem:[#allocation3 + $0x48] sm:$0xff] %vm398, %v4328
      %4361 = vst.msk [vmem:[#allocation3 + $0x50] sm:$0xff] %vm398, %v4329
      %4362 = vst.msk [vmem:[#allocation3 + $0x58] sm:$0xff] %vm398, %v4330
      %4363 = vst.msk [vmem:[#allocation3 + $0x60] sm:$0xff] %vm398, %v4331
      %4364 = vst.msk [vmem:[#allocation3 + $0x68] sm:$0xff] %vm398, %v4332
      %4365 = vst.msk [vmem:[#allocation3 + $0x70] sm:$0xff] %vm398, %v4333
      %4366 = vst.msk [vmem:[#allocation3 + $0x78] sm:$0xff] %vm398, %v4334
      %4367 = vst.msk [vmem:[#allocation3 + $0x80] sm:$0xff] %vm398, %v4335
      %4368 = vst.msk [vmem:[#allocation3 + $0x88] sm:$0xff] %vm398, %v4336
      %4369 = vst.msk [vmem:[#allocation3 + $0x90] sm:$0xff] %vm398, %v4337
      %4370 = vst.msk [vmem:[#allocation3 + $0x98] sm:$0xff] %vm398, %v4338
      %4371 = vst.msk [vmem:[#allocation3 + $0xa0] sm:$0xff] %vm398, %v4339
      %4372 = vst.msk [vmem:[#allocation3 + $0xa8] sm:$0xff] %vm398, %v4340
      %4373 = vst.msk [vmem:[#allocation3 + $0xb0] sm:$0xff] %vm398, %v4341
      %4374 = vst.msk [vmem:[#allocation3 + $0xb8] sm:$0xff] %vm398, %v4342
      %4375 = vst.msk [vmem:[#allocation3 + $0xc0] sm:$0xff] %vm398, %v4343
      %4376 = vst.msk [vmem:[#allocation3 + $0xc8] sm:$0xff] %vm398, %v4344
      %4377 = vst.msk [vmem:[#allocation3 + $0xd0] sm:$0xff] %vm398, %v4345
      %4378 = vst.msk [vmem:[#allocation3 + $0xd8] sm:$0xff] %vm398, %v4346
      %4379 = vst.msk [vmem:[#allocation3 + $0xe0] sm:$0xff] %vm398, %v4347
      %4380 = vst.msk [vmem:[#allocation3 + $0xe8] sm:$0xff] %vm398, %v4348
      %4381 = vst.msk [vmem:[#allocation3 + $0xf0] sm:$0xff] %vm398, %v4349
      %4382 = vst.msk [vmem:[#allocation3 + $0xf8] sm:$0xff] %vm398, %v4350
      %v4383 = vld [vmem:[%s350] sm:$0xff]
      %v4384 = vld [vmem:[%s350 + $0x8] sm:$0xff]
      %v4385 = vld [vmem:[%s350 + $0x10] sm:$0xff]
      %v4386 = vld [vmem:[%s350 + $0x18] sm:$0xff]
      %v4387 = vld [vmem:[%s350 + $0x20] sm:$0xff]
      %v4388 = vld [vmem:[%s350 + $0x28] sm:$0xff]
      %v4389 = vld [vmem:[%s350 + $0x30] sm:$0xff]
      %v4390 = vld [vmem:[%s350 + $0x38] sm:$0xff]
      %v4391 = vld [vmem:[%s350 + $0x40] sm:$0xff]
      %v4392 = vld [vmem:[%s350 + $0x48] sm:$0xff]
      %v4393 = vld [vmem:[%s350 + $0x50] sm:$0xff]
      %v4394 = vld [vmem:[%s350 + $0x58] sm:$0xff]
      %v4395 = vld [vmem:[%s350 + $0x60] sm:$0xff]
      %v4396 = vld [vmem:[%s350 + $0x68] sm:$0xff]
      %v4397 = vld [vmem:[%s350 + $0x70] sm:$0xff]
      %v4398 = vld [vmem:[%s350 + $0x78] sm:$0xff]
      %v4399 = vld [vmem:[%s350 + $0x80] sm:$0xff]
      %v4400 = vld [vmem:[%s350 + $0x88] sm:$0xff]
      %v4401 = vld [vmem:[%s350 + $0x90] sm:$0xff]
      %v4402 = vld [vmem:[%s350 + $0x98] sm:$0xff]
      %v4403 = vld [vmem:[%s350 + $0xa0] sm:$0xff]
      %v4404 = vld [vmem:[%s350 + $0xa8] sm:$0xff]
      %v4405 = vld [vmem:[%s350 + $0xb0] sm:$0xff]
      %v4406 = vld [vmem:[%s350 + $0xb8] sm:$0xff]
      %v4407 = vld [vmem:[%s350 + $0xc0] sm:$0xff]
      %v4408 = vld [vmem:[%s350 + $0xc8] sm:$0xff]
      %v4409 = vld [vmem:[%s350 + $0xd0] sm:$0xff]
      %v4410 = vld [vmem:[%s350 + $0xd8] sm:$0xff]
      %v4411 = vld [vmem:[%s350 + $0xe0] sm:$0xff]
      %v4412 = vld [vmem:[%s350 + $0xe8] sm:$0xff]
      %v4413 = vld [vmem:[%s350 + $0xf0] sm:$0xff]
      %v4414 = vld [vmem:[%s350 + $0xf8] sm:$0xff]
      %4447 = vrot.lane.b32.xlu0 %v4383, 8
      %v4448 = vpop.permute.xlu0 %4447
      %4449 = vrot.lane.b32.xlu0 %v4384, 8
      %v4450 = vpop.permute.xlu0 %4449
      %4451 = vrot.lane.b32.xlu0 %v4385, 8
      %v4452 = vpop.permute.xlu0 %4451
      %4453 = vrot.lane.b32.xlu0 %v4386, 8
      %v4454 = vpop.permute.xlu0 %4453
      %4455 = vrot.lane.b32.xlu0 %v4387, 8
      %v4456 = vpop.permute.xlu0 %4455
      %4457 = vrot.lane.b32.xlu0 %v4388, 8
      %v4458 = vpop.permute.xlu0 %4457
      %4459 = vrot.lane.b32.xlu0 %v4389, 8
      %v4460 = vpop.permute.xlu0 %4459
      %4461 = vrot.lane.b32.xlu0 %v4390, 8
      %v4462 = vpop.permute.xlu0 %4461
      %4463 = vrot.lane.b32.xlu0 %v4391, 8
      %v4464 = vpop.permute.xlu0 %4463
      %4465 = vrot.lane.b32.xlu0 %v4392, 8
      %v4466 = vpop.permute.xlu0 %4465
      %4467 = vrot.lane.b32.xlu0 %v4393, 8
      %v4468 = vpop.permute.xlu0 %4467
      %4469 = vrot.lane.b32.xlu0 %v4394, 8
      %v4470 = vpop.permute.xlu0 %4469
      %4471 = vrot.lane.b32.xlu0 %v4395, 8
      %v4472 = vpop.permute.xlu0 %4471
      %4473 = vrot.lane.b32.xlu0 %v4396, 8
      %v4474 = vpop.permute.xlu0 %4473
      %4475 = vrot.lane.b32.xlu0 %v4397, 8
      %v4476 = vpop.permute.xlu0 %4475
      %4477 = vrot.lane.b32.xlu0 %v4398, 8
      %v4478 = vpop.permute.xlu0 %4477
      %4479 = vrot.lane.b32.xlu0 %v4399, 8
      %v4480 = vpop.permute.xlu0 %4479
      %4481 = vrot.lane.b32.xlu0 %v4400, 8
      %v4482 = vpop.permute.xlu0 %4481
      %4483 = vrot.lane.b32.xlu0 %v4401, 8
      %v4484 = vpop.permute.xlu0 %4483
      %4485 = vrot.lane.b32.xlu0 %v4402, 8
      %v4486 = vpop.permute.xlu0 %4485
      %4487 = vrot.lane.b32.xlu0 %v4403, 8
      %v4488 = vpop.permute.xlu0 %4487
      %4489 = vrot.lane.b32.xlu0 %v4404, 8
      %v4490 = vpop.permute.xlu0 %4489
      %4491 = vrot.lane.b32.xlu0 %v4405, 8
      %v4492 = vpop.permute.xlu0 %4491
      %4493 = vrot.lane.b32.xlu0 %v4406, 8
      %v4494 = vpop.permute.xlu0 %4493
      %4495 = vrot.lane.b32.xlu0 %v4407, 8
      %v4496 = vpop.permute.xlu0 %4495
      %4497 = vrot.lane.b32.xlu0 %v4408, 8
      %v4498 = vpop.permute.xlu0 %4497
      %4499 = vrot.lane.b32.xlu0 %v4409, 8
      %v4500 = vpop.permute.xlu0 %4499
      %4501 = vrot.lane.b32.xlu0 %v4410, 8
      %v4502 = vpop.permute.xlu0 %4501
      %4503 = vrot.lane.b32.xlu0 %v4411, 8
      %v4504 = vpop.permute.xlu0 %4503
      %4505 = vrot.lane.b32.xlu0 %v4412, 8
      %v4506 = vpop.permute.xlu0 %4505
      %4507 = vrot.lane.b32.xlu0 %v4413, 8
      %v4508 = vpop.permute.xlu0 %4507
      %4509 = vrot.lane.b32.xlu0 %v4414, 8
      %v4510 = vpop.permute.xlu0 %4509
      %vm4543 = vcmask 80960
      %4544 = vst.msk [vmem:[#allocation3] sm:$0xff] %vm4543, %v4448
      %4545 = vst.msk [vmem:[#allocation3 + $0x8] sm:$0xff] %vm4543, %v4450
      %4546 = vst.msk [vmem:[#allocation3 + $0x10] sm:$0xff] %vm4543, %v4452
      %4547 = vst.msk [vmem:[#allocation3 + $0x18] sm:$0xff] %vm4543, %v4454
      %4548 = vst.msk [vmem:[#allocation3 + $0x20] sm:$0xff] %vm4543, %v4456
      %4549 = vst.msk [vmem:[#allocation3 + $0x28] sm:$0xff] %vm4543, %v4458
      %4550 = vst.msk [vmem:[#allocation3 + $0x30] sm:$0xff] %vm4543, %v4460
      %4551 = vst.msk [vmem:[#allocation3 + $0x38] sm:$0xff] %vm4543, %v4462
      %4552 = vst.msk [vmem:[#allocation3 + $0x40] sm:$0xff] %vm4543, %v4464
      %4553 = vst.msk [vmem:[#allocation3 + $0x48] sm:$0xff] %vm4543, %v4466
      %4554 = vst.msk [vmem:[#allocation3 + $0x50] sm:$0xff] %vm4543, %v4468
      %4555 = vst.msk [vmem:[#allocation3 + $0x58] sm:$0xff] %vm4543, %v4470
      %4556 = vst.msk [vmem:[#allocation3 + $0x60] sm:$0xff] %vm4543, %v4472
      %4557 = vst.msk [vmem:[#allocation3 + $0x68] sm:$0xff] %vm4543, %v4474
      %4558 = vst.msk [vmem:[#allocation3 + $0x70] sm:$0xff] %vm4543, %v4476
      %4559 = vst.msk [vmem:[#allocation3 + $0x78] sm:$0xff] %vm4543, %v4478
      %4560 = vst.msk [vmem:[#allocation3 + $0x80] sm:$0xff] %vm4543, %v4480
      %4561 = vst.msk [vmem:[#allocation3 + $0x88] sm:$0xff] %vm4543, %v4482
      %4562 = vst.msk [vmem:[#allocation3 + $0x90] sm:$0xff] %vm4543, %v4484
      %4563 = vst.msk [vmem:[#allocation3 + $0x98] sm:$0xff] %vm4543, %v4486
      %4564 = vst.msk [vmem:[#allocation3 + $0xa0] sm:$0xff] %vm4543, %v4488
      %4565 = vst.msk [vmem:[#allocation3 + $0xa8] sm:$0xff] %vm4543, %v4490
      %4566 = vst.msk [vmem:[#allocation3 + $0xb0] sm:$0xff] %vm4543, %v4492
      %4567 = vst.msk [vmem:[#allocation3 + $0xb8] sm:$0xff] %vm4543, %v4494
      %4568 = vst.msk [vmem:[#allocation3 + $0xc0] sm:$0xff] %vm4543, %v4496
      %4569 = vst.msk [vmem:[#allocation3 + $0xc8] sm:$0xff] %vm4543, %v4498
      %4570 = vst.msk [vmem:[#allocation3 + $0xd0] sm:$0xff] %vm4543, %v4500
      %4571 = vst.msk [vmem:[#allocation3 + $0xd8] sm:$0xff] %vm4543, %v4502
      %4572 = vst.msk [vmem:[#allocation3 + $0xe0] sm:$0xff] %vm4543, %v4504
      %4573 = vst.msk [vmem:[#allocation3 + $0xe8] sm:$0xff] %vm4543, %v4506
      %4574 = vst.msk [vmem:[#allocation3 + $0xf0] sm:$0xff] %vm4543, %v4508
      %4575 = vst.msk [vmem:[#allocation3 + $0xf8] sm:$0xff] %vm4543, %v4510
      %v4576 = vld [vmem:[%s355] sm:$0xff]
      %v4577 = vld [vmem:[%s355 + $0x8] sm:$0xff]
      %v4578 = vld [vmem:[%s355 + $0x10] sm:$0xff]
      %v4579 = vld [vmem:[%s355 + $0x18] sm:$0xff]
      %v4580 = vld [vmem:[%s355 + $0x20] sm:$0xff]
      %v4581 = vld [vmem:[%s355 + $0x28] sm:$0xff]
      %v4582 = vld [vmem:[%s355 + $0x30] sm:$0xff]
      %v4583 = vld [vmem:[%s355 + $0x38] sm:$0xff]
      %v4584 = vld [vmem:[%s355 + $0x40] sm:$0xff]
      %v4585 = vld [vmem:[%s355 + $0x48] sm:$0xff]
      %v4586 = vld [vmem:[%s355 + $0x50] sm:$0xff]
      %v4587 = vld [vmem:[%s355 + $0x58] sm:$0xff]
      %v4588 = vld [vmem:[%s355 + $0x60] sm:$0xff]
      %v4589 = vld [vmem:[%s355 + $0x68] sm:$0xff]
      %v4590 = vld [vmem:[%s355 + $0x70] sm:$0xff]
      %v4591 = vld [vmem:[%s355 + $0x78] sm:$0xff]
      %v4592 = vld [vmem:[%s355 + $0x80] sm:$0xff]
      %v4593 = vld [vmem:[%s355 + $0x88] sm:$0xff]
      %v4594 = vld [vmem:[%s355 + $0x90] sm:$0xff]
      %v4595 = vld [vmem:[%s355 + $0x98] sm:$0xff]
      %v4596 = vld [vmem:[%s355 + $0xa0] sm:$0xff]
      %v4597 = vld [vmem:[%s355 + $0xa8] sm:$0xff]
      %v4598 = vld [vmem:[%s355 + $0xb0] sm:$0xff]
      %v4599 = vld [vmem:[%s355 + $0xb8] sm:$0xff]
      %v4600 = vld [vmem:[%s355 + $0xc0] sm:$0xff]
      %v4601 = vld [vmem:[%s355 + $0xc8] sm:$0xff]
      %v4602 = vld [vmem:[%s355 + $0xd0] sm:$0xff]
      %v4603 = vld [vmem:[%s355 + $0xd8] sm:$0xff]
      %v4604 = vld [vmem:[%s355 + $0xe0] sm:$0xff]
      %v4605 = vld [vmem:[%s355 + $0xe8] sm:$0xff]
      %v4606 = vld [vmem:[%s355 + $0xf0] sm:$0xff]
      %v4607 = vld [vmem:[%s355 + $0xf8] sm:$0xff]
      %4640 = vrot.lane.b32.xlu0 %v4576, 10
      %v4641 = vpop.permute.xlu0 %4640
      %4642 = vrot.lane.b32.xlu0 %v4577, 10
      %v4643 = vpop.permute.xlu0 %4642
      %4644 = vrot.lane.b32.xlu0 %v4578, 10
      %v4645 = vpop.permute.xlu0 %4644
      %4646 = vrot.lane.b32.xlu0 %v4579, 10
      %v4647 = vpop.permute.xlu0 %4646
      %4648 = vrot.lane.b32.xlu0 %v4580, 10
      %v4649 = vpop.permute.xlu0 %4648
      %4650 = vrot.lane.b32.xlu0 %v4581, 10
      %v4651 = vpop.permute.xlu0 %4650
      %4652 = vrot.lane.b32.xlu0 %v4582, 10
      %v4653 = vpop.permute.xlu0 %4652
      %4654 = vrot.lane.b32.xlu0 %v4583, 10
      %v4655 = vpop.permute.xlu0 %4654
      %4656 = vrot.lane.b32.xlu0 %v4584, 10
      %v4657 = vpop.permute.xlu0 %4656
      %4658 = vrot.lane.b32.xlu0 %v4585, 10
      %v4659 = vpop.permute.xlu0 %4658
      %4660 = vrot.lane.b32.xlu0 %v4586, 10
      %v4661 = vpop.permute.xlu0 %4660
      %4662 = vrot.lane.b32.xlu0 %v4587, 10
      %v4663 = vpop.permute.xlu0 %4662
      %4664 = vrot.lane.b32.xlu0 %v4588, 10
      %v4665 = vpop.permute.xlu0 %4664
      %4666 = vrot.lane.b32.xlu0 %v4589, 10
      %v4667 = vpop.permute.xlu0 %4666
      %4668 = vrot.lane.b32.xlu0 %v4590, 10
      %v4669 = vpop.permute.xlu0 %4668
      %4670 = vrot.lane.b32.xlu0 %v4591, 10
      %v4671 = vpop.permute.xlu0 %4670
      %4672 = vrot.lane.b32.xlu0 %v4592, 10
      %v4673 = vpop.permute.xlu0 %4672
      %4674 = vrot.lane.b32.xlu0 %v4593, 10
      %v4675 = vpop.permute.xlu0 %4674
      %4676 = vrot.lane.b32.xlu0 %v4594, 10
      %v4677 = vpop.permute.xlu0 %4676
      %4678 = vrot.lane.b32.xlu0 %v4595, 10
      %v4679 = vpop.permute.xlu0 %4678
      %4680 = vrot.lane.b32.xlu0 %v4596, 10
      %v4681 = vpop.permute.xlu0 %4680
      %4682 = vrot.lane.b32.xlu0 %v4597, 10
      %v4683 = vpop.permute.xlu0 %4682
      %4684 = vrot.lane.b32.xlu0 %v4598, 10
      %v4685 = vpop.permute.xlu0 %4684
      %4686 = vrot.lane.b32.xlu0 %v4599, 10
      %v4687 = vpop.permute.xlu0 %4686
      %4688 = vrot.lane.b32.xlu0 %v4600, 10
      %v4689 = vpop.permute.xlu0 %4688
      %4690 = vrot.lane.b32.xlu0 %v4601, 10
      %v4691 = vpop.permute.xlu0 %4690
      %4692 = vrot.lane.b32.xlu0 %v4602, 10
      %v4693 = vpop.permute.xlu0 %4692
      %4694 = vrot.lane.b32.xlu0 %v4603, 10
      %v4695 = vpop.permute.xlu0 %4694
      %4696 = vrot.lane.b32.xlu0 %v4604, 10
      %v4697 = vpop.permute.xlu0 %4696
      %4698 = vrot.lane.b32.xlu0 %v4605, 10
      %v4699 = vpop.permute.xlu0 %4698
      %4700 = vrot.lane.b32.xlu0 %v4606, 10
      %v4701 = vpop.permute.xlu0 %4700
      %4702 = vrot.lane.b32.xlu0 %v4607, 10
      %v4703 = vpop.permute.xlu0 %4702
      %vm4736 = vcmask 113744
      %4737 = vst.msk [vmem:[#allocation3] sm:$0xff] %vm4736, %v4641
      %4738 = vst.msk [vmem:[#allocation3 + $0x8] sm:$0xff] %vm4736, %v4643
      %4739 = vst.msk [vmem:[#allocation3 + $0x10] sm:$0xff] %vm4736, %v4645
      %4740 = vst.msk [vmem:[#allocation3 + $0x18] sm:$0xff] %vm4736, %v4647
      %4741 = vst.msk [vmem:[#allocation3 + $0x20] sm:$0xff] %vm4736, %v4649
      %4742 = vst.msk [vmem:[#allocation3 + $0x28] sm:$0xff] %vm4736, %v4651
      %4743 = vst.msk [vmem:[#allocation3 + $0x30] sm:$0xff] %vm4736, %v4653
      %4744 = vst.msk [vmem:[#allocation3 + $0x38] sm:$0xff] %vm4736, %v4655
      %4745 = vst.msk [vmem:[#allocation3 + $0x40] sm:$0xff] %vm4736, %v4657
      %4746 = vst.msk [vmem:[#allocation3 + $0x48] sm:$0xff] %vm4736, %v4659
      %4747 = vst.msk [vmem:[#allocation3 + $0x50] sm:$0xff] %vm4736, %v4661
      %4748 = vst.msk [vmem:[#allocation3 + $0x58] sm:$0xff] %vm4736, %v4663
      %4749 = vst.msk [vmem:[#allocation3 + $0x60] sm:$0xff] %vm4736, %v4665
      %4750 = vst.msk [vmem:[#allocation3 + $0x68] sm:$0xff] %vm4736, %v4667
      %4751 = vst.msk [vmem:[#allocation3 + $0x70] sm:$0xff] %vm4736, %v4669
      %4752 = vst.msk [vmem:[#allocation3 + $0x78] sm:$0xff] %vm4736, %v4671
      %4753 = vst.msk [vmem:[#allocation3 + $0x80] sm:$0xff] %vm4736, %v4673
      %4754 = vst.msk [vmem:[#allocation3 + $0x88] sm:$0xff] %vm4736, %v4675
      %4755 = vst.msk [vmem:[#allocation3 + $0x90] sm:$0xff] %vm4736, %v4677
      %4756 = vst.msk [vmem:[#allocation3 + $0x98] sm:$0xff] %vm4736, %v4679
      %4757 = vst.msk [vmem:[#allocation3 + $0xa0] sm:$0xff] %vm4736, %v4681
      %4758 = vst.msk [vmem:[#allocation3 + $0xa8] sm:$0xff] %vm4736, %v4683
      %4759 = vst.msk [vmem:[#allocation3 + $0xb0] sm:$0xff] %vm4736, %v4685
      %4760 = vst.msk [vmem:[#allocation3 + $0xb8] sm:$0xff] %vm4736, %v4687
      %4761 = vst.msk [vmem:[#allocation3 + $0xc0] sm:$0xff] %vm4736, %v4689
      %4762 = vst.msk [vmem:[#allocation3 + $0xc8] sm:$0xff] %vm4736, %v4691
      %4763 = vst.msk [vmem:[#allocation3 + $0xd0] sm:$0xff] %vm4736, %v4693
      %4764 = vst.msk [vmem:[#allocation3 + $0xd8] sm:$0xff] %vm4736, %v4695
      %4765 = vst.msk [vmem:[#allocation3 + $0xe0] sm:$0xff] %vm4736, %v4697
      %4766 = vst.msk [vmem:[#allocation3 + $0xe8] sm:$0xff] %vm4736, %v4699
      %4767 = vst.msk [vmem:[#allocation3 + $0xf0] sm:$0xff] %vm4736, %v4701
      %4768 = vst.msk [vmem:[#allocation3 + $0xf8] sm:$0xff] %vm4736, %v4703
      %v4769 = vld [vmem:[%s360] sm:$0xff]
      %v4770 = vld [vmem:[%s360 + $0x8] sm:$0xff]
      %v4771 = vld [vmem:[%s360 + $0x10] sm:$0xff]
      %v4772 = vld [vmem:[%s360 + $0x18] sm:$0xff]
      %v4773 = vld [vmem:[%s360 + $0x20] sm:$0xff]
      %v4774 = vld [vmem:[%s360 + $0x28] sm:$0xff]
      %v4775 = vld [vmem:[%s360 + $0x30] sm:$0xff]
      %v4776 = vld [vmem:[%s360 + $0x38] sm:$0xff]
      %v4777 = vld [vmem:[%s360 + $0x40] sm:$0xff]
      %v4778 = vld [vmem:[%s360 + $0x48] sm:$0xff]
      %v4779 = vld [vmem:[%s360 + $0x50] sm:$0xff]
      %v4780 = vld [vmem:[%s360 + $0x58] sm:$0xff]
      %v4781 = vld [vmem:[%s360 + $0x60] sm:$0xff]
      %v4782 = vld [vmem:[%s360 + $0x68] sm:$0xff]
      %v4783 = vld [vmem:[%s360 + $0x70] sm:$0xff]
      %v4784 = vld [vmem:[%s360 + $0x78] sm:$0xff]
      %v4785 = vld [vmem:[%s360 + $0x80] sm:$0xff]
      %v4786 = vld [vmem:[%s360 + $0x88] sm:$0xff]
      %v4787 = vld [vmem:[%s360 + $0x90] sm:$0xff]
      %v4788 = vld [vmem:[%s360 + $0x98] sm:$0xff]
      %v4789 = vld [vmem:[%s360 + $0xa0] sm:$0xff]
      %v4790 = vld [vmem:[%s360 + $0xa8] sm:$0xff]
      %v4791 = vld [vmem:[%s360 + $0xb0] sm:$0xff]
      %v4792 = vld [vmem:[%s360 + $0xb8] sm:$0xff]
      %v4793 = vld [vmem:[%s360 + $0xc0] sm:$0xff]
      %v4794 = vld [vmem:[%s360 + $0xc8] sm:$0xff]
      %v4795 = vld [vmem:[%s360 + $0xd0] sm:$0xff]
      %v4796 = vld [vmem:[%s360 + $0xd8] sm:$0xff]
      %v4797 = vld [vmem:[%s360 + $0xe0] sm:$0xff]
      %v4798 = vld [vmem:[%s360 + $0xe8] sm:$0xff]
      %v4799 = vld [vmem:[%s360 + $0xf0] sm:$0xff]
      %v4800 = vld [vmem:[%s360 + $0xf8] sm:$0xff]
      %4833 = vrot.lane.b32.xlu0 %v4769, 14
      %v4834 = vpop.permute.xlu0 %4833
      %4835 = vrot.lane.b32.xlu0 %v4770, 14
      %v4836 = vpop.permute.xlu0 %4835
      %4837 = vrot.lane.b32.xlu0 %v4771, 14
      %v4838 = vpop.permute.xlu0 %4837
      %4839 = vrot.lane.b32.xlu0 %v4772, 14
      %v4840 = vpop.permute.xlu0 %4839
      %4841 = vrot.lane.b32.xlu0 %v4773, 14
      %v4842 = vpop.permute.xlu0 %4841
      %4843 = vrot.lane.b32.xlu0 %v4774, 14
      %v4844 = vpop.permute.xlu0 %4843
      %4845 = vrot.lane.b32.xlu0 %v4775, 14
      %v4846 = vpop.permute.xlu0 %4845
      %4847 = vrot.lane.b32.xlu0 %v4776, 14
      %v4848 = vpop.permute.xlu0 %4847
      %4849 = vrot.lane.b32.xlu0 %v4777, 14
      %v4850 = vpop.permute.xlu0 %4849
      %4851 = vrot.lane.b32.xlu0 %v4778, 14
      %v4852 = vpop.permute.xlu0 %4851
      %4853 = vrot.lane.b32.xlu0 %v4779, 14
      %v4854 = vpop.permute.xlu0 %4853
      %4855 = vrot.lane.b32.xlu0 %v4780, 14
      %v4856 = vpop.permute.xlu0 %4855
      %4857 = vrot.lane.b32.xlu0 %v4781, 14
      %v4858 = vpop.permute.xlu0 %4857
      %4859 = vrot.lane.b32.xlu0 %v4782, 14
      %v4860 = vpop.permute.xlu0 %4859
      %4861 = vrot.lane.b32.xlu0 %v4783, 14
      %v4862 = vpop.permute.xlu0 %4861
      %4863 = vrot.lane.b32.xlu0 %v4784, 14
      %v4864 = vpop.permute.xlu0 %4863
      %4865 = vrot.lane.b32.xlu0 %v4785, 14
      %v4866 = vpop.permute.xlu0 %4865
      %4867 = vrot.lane.b32.xlu0 %v4786, 14
      %v4868 = vpop.permute.xlu0 %4867
      %4869 = vrot.lane.b32.xlu0 %v4787, 14
      %v4870 = vpop.permute.xlu0 %4869
      %4871 = vrot.lane.b32.xlu0 %v4788, 14
      %v4872 = vpop.permute.xlu0 %4871
      %4873 = vrot.lane.b32.xlu0 %v4789, 14
      %v4874 = vpop.permute.xlu0 %4873
      %4875 = vrot.lane.b32.xlu0 %v4790, 14
      %v4876 = vpop.permute.xlu0 %4875
      %4877 = vrot.lane.b32.xlu0 %v4791, 14
      %v4878 = vpop.permute.xlu0 %4877
      %4879 = vrot.lane.b32.xlu0 %v4792, 14
      %v4880 = vpop.permute.xlu0 %4879
      %4881 = vrot.lane.b32.xlu0 %v4793, 14
      %v4882 = vpop.permute.xlu0 %4881
      %4883 = vrot.lane.b32.xlu0 %v4794, 14
      %v4884 = vpop.permute.xlu0 %4883
      %4885 = vrot.lane.b32.xlu0 %v4795, 14
      %v4886 = vpop.permute.xlu0 %4885
      %4887 = vrot.lane.b32.xlu0 %v4796, 14
      %v4888 = vpop.permute.xlu0 %4887
      %4889 = vrot.lane.b32.xlu0 %v4797, 14
      %v4890 = vpop.permute.xlu0 %4889
      %4891 = vrot.lane.b32.xlu0 %v4798, 14
      %v4892 = vpop.permute.xlu0 %4891
      %4893 = vrot.lane.b32.xlu0 %v4799, 14
      %v4894 = vpop.permute.xlu0 %4893
      %4895 = vrot.lane.b32.xlu0 %v4800, 14
      %v4896 = vpop.permute.xlu0 %4895
      %vm4929 = vcmask 146544
      %4930 = vst.msk [vmem:[#allocation3] sm:$0xff] %vm4929, %v4834
      %4931 = vst.msk [vmem:[#allocation3 + $0x8] sm:$0xff] %vm4929, %v4836
      %4932 = vst.msk [vmem:[#allocation3 + $0x10] sm:$0xff] %vm4929, %v4838
      %4933 = vst.msk [vmem:[#allocation3 + $0x18] sm:$0xff] %vm4929, %v4840
      %4934 = vst.msk [vmem:[#allocation3 + $0x20] sm:$0xff] %vm4929, %v4842
      %4935 = vst.msk [vmem:[#allocation3 + $0x28] sm:$0xff] %vm4929, %v4844
      %4936 = vst.msk [vmem:[#allocation3 + $0x30] sm:$0xff] %vm4929, %v4846
      %4937 = vst.msk [vmem:[#allocation3 + $0x38] sm:$0xff] %vm4929, %v4848
      %4938 = vst.msk [vmem:[#allocation3 + $0x40] sm:$0xff] %vm4929, %v4850
      %4939 = vst.msk [vmem:[#allocation3 + $0x48] sm:$0xff] %vm4929, %v4852
      %4940 = vst.msk [vmem:[#allocation3 + $0x50] sm:$0xff] %vm4929, %v4854
      %4941 = vst.msk [vmem:[#allocation3 + $0x58] sm:$0xff] %vm4929, %v4856
      %4942 = vst.msk [vmem:[#allocation3 + $0x60] sm:$0xff] %vm4929, %v4858
      %4943 = vst.msk [vmem:[#allocation3 + $0x68] sm:$0xff] %vm4929, %v4860
      %4944 = vst.msk [vmem:[#allocation3 + $0x70] sm:$0xff] %vm4929, %v4862
      %4945 = vst.msk [vmem:[#allocation3 + $0x78] sm:$0xff] %vm4929, %v4864
      %4946 = vst.msk [vmem:[#allocation3 + $0x80] sm:$0xff] %vm4929, %v4866
      %4947 = vst.msk [vmem:[#allocation3 + $0x88] sm:$0xff] %vm4929, %v4868
      %4948 = vst.msk [vmem:[#allocation3 + $0x90] sm:$0xff] %vm4929, %v4870
      %4949 = vst.msk [vmem:[#allocation3 + $0x98] sm:$0xff] %vm4929, %v4872
      %4950 = vst.msk [vmem:[#allocation3 + $0xa0] sm:$0xff] %vm4929, %v4874
      %4951 = vst.msk [vmem:[#allocation3 + $0xa8] sm:$0xff] %vm4929, %v4876
      %4952 = vst.msk [vmem:[#allocation3 + $0xb0] sm:$0xff] %vm4929, %v4878
      %4953 = vst.msk [vmem:[#allocation3 + $0xb8] sm:$0xff] %vm4929, %v4880
      %4954 = vst.msk [vmem:[#allocation3 + $0xc0] sm:$0xff] %vm4929, %v4882
      %4955 = vst.msk [vmem:[#allocation3 + $0xc8] sm:$0xff] %vm4929, %v4884
      %4956 = vst.msk [vmem:[#allocation3 + $0xd0] sm:$0xff] %vm4929, %v4886
      %4957 = vst.msk [vmem:[#allocation3 + $0xd8] sm:$0xff] %vm4929, %v4888
      %4958 = vst.msk [vmem:[#allocation3 + $0xe0] sm:$0xff] %vm4929, %v4890
      %4959 = vst.msk [vmem:[#allocation3 + $0xe8] sm:$0xff] %vm4929, %v4892
      %4960 = vst.msk [vmem:[#allocation3 + $0xf0] sm:$0xff] %vm4929, %v4894
      %4961 = vst.msk [vmem:[#allocation3 + $0xf8] sm:$0xff] %vm4929, %v4896
      %v4962 = vld [vmem:[#allocation3] sm:$0xff]
      %v4963 = vld [vmem:[#allocation3 + $0x8] sm:$0xff]
      %v4964 = vld [vmem:[#allocation3 + $0x10] sm:$0xff]
      %v4965 = vld [vmem:[#allocation3 + $0x18] sm:$0xff]
      %v4966 = vld [vmem:[#allocation3 + $0x20] sm:$0xff]
      %v4967 = vld [vmem:[#allocation3 + $0x28] sm:$0xff]
      %v4968 = vld [vmem:[#allocation3 + $0x30] sm:$0xff]
      %v4969 = vld [vmem:[#allocation3 + $0x38] sm:$0xff]
      %v4970 = vld [vmem:[#allocation3 + $0x40] sm:$0xff]
      %v4971 = vld [vmem:[#allocation3 + $0x48] sm:$0xff]
      %v4972 = vld [vmem:[#allocation3 + $0x50] sm:$0xff]
      %v4973 = vld [vmem:[#allocation3 + $0x58] sm:$0xff]
      %v4974 = vld [vmem:[#allocation3 + $0x60] sm:$0xff]
      %v4975 = vld [vmem:[#allocation3 + $0x68] sm:$0xff]
      %v4976 = vld [vmem:[#allocation3 + $0x70] sm:$0xff]
      %v4977 = vld [vmem:[#allocation3 + $0x78] sm:$0xff]
      %v4978 = vld [vmem:[#allocation3 + $0x80] sm:$0xff]
      %v4979 = vld [vmem:[#allocation3 + $0x88] sm:$0xff]
      %v4980 = vld [vmem:[#allocation3 + $0x90] sm:$0xff]
      %v4981 = vld [vmem:[#allocation3 + $0x98] sm:$0xff]
      %v4982 = vld [vmem:[#allocation3 + $0xa0] sm:$0xff]
      %v4983 = vld [vmem:[#allocation3 + $0xa8] sm:$0xff]
      %v4984 = vld [vmem:[#allocation3 + $0xb0] sm:$0xff]
      %v4985 = vld [vmem:[#allocation3 + $0xb8] sm:$0xff]
      %v4986 = vld [vmem:[#allocation3 + $0xc0] sm:$0xff]
      %v4987 = vld [vmem:[#allocation3 + $0xc8] sm:$0xff]
      %v4988 = vld [vmem:[#allocation3 + $0xd0] sm:$0xff]
      %v4989 = vld [vmem:[#allocation3 + $0xd8] sm:$0xff]
      %v4990 = vld [vmem:[#allocation3 + $0xe0] sm:$0xff]
      %v4991 = vld [vmem:[#allocation3 + $0xe8] sm:$0xff]
      %v4992 = vld [vmem:[#allocation3 + $0xf0] sm:$0xff]
      %v4993 = vld [vmem:[#allocation3 + $0xf8] sm:$0xff]
      %v4994 = vld [vmem:[%s6] sm:$0xff]
      %v4995 = vld [vmem:[%s6 + $0x8] sm:$0xff]
      %v4996 = vld [vmem:[%s6 + $0x10] sm:$0x3]
      %vm4997 = vcmask 146432
      %v4999 = vsel %vm4997, %v4962, 0
      %v5002 = vsel %vm4997, %v4963, 0
      %v5005 = vsel %vm4997, %v4964, 0
      %v5008 = vsel %vm4997, %v4965, 0
      %v5011 = vsel %vm4997, %v4966, 0
      %v5014 = vsel %vm4997, %v4967, 0
      %v5017 = vsel %vm4997, %v4968, 0
      %v5020 = vsel %vm4997, %v4969, 0
      %v5023 = vsel %vm4997, %v4970, 0
      %v5026 = vsel %vm4997, %v4971, 0
      %v5029 = vsel %vm4997, %v4972, 0
      %v5032 = vsel %vm4997, %v4973, 0
      %v5035 = vsel %vm4997, %v4974, 0
      %v5038 = vsel %vm4997, %v4975, 0
      %v5041 = vsel %vm4997, %v4976, 0
      %v5044 = vsel %vm4997, %v4977, 0
      %v5047 = vsel %vm4997, %v4978, 0
      %v5050 = vsel %vm4997, %v4979, 0
      %v5053 = vsel %vm4997, %v4980, 0
      %v5056 = vsel %vm4997, %v4981, 0
      %v5059 = vsel %vm4997, %v4982, 0
      %v5062 = vsel %vm4997, %v4983, 0
      %v5065 = vsel %vm4997, %v4984, 0
      %v5068 = vsel %vm4997, %v4985, 0
      %v5071 = vsel %vm4997, %v4986, 0
      %v5074 = vsel %vm4997, %v4987, 0
      %v5077 = vsel %vm4997, %v4988, 0
      %v5080 = vsel %vm4997, %v4989, 0
      %v5083 = vsel %vm4997, %v4990, 0
      %v5086 = vsel %vm4997, %v4991, 0
      %v5089 = vsel %vm4997, %v4992, 0
      %v5092 = vsel %vm4997, %v4993, 0
      %vm5094 = vcmask 1041408
      %v5096 = vsel %vm5094, %v4996, 0
      %5098 = vmatpush.msra.mxu0 0.0
      %5099 = vmatpush.msra.mxu0 0.0
      %5100 = vmatpush.msra.mxu0 0.0
      %5101 = vmatpush.msra.mxu0 0.0
      %5102 = vmatpush.msra.mxu0 0.0
      %5103 = vmatpush.msra.mxu0 0.0
      %5104 = vmatpush.msra.mxu0 0.0
      %5105 = vmatpush.msra.mxu0 0.0
      %5106 = vmatpush.msra.mxu0 0.0
      %5107 = vmatpush.msra.mxu0 0.0
      %5108 = vmatpush.msra.mxu0 0.0
      %5109 = vmatpush.msra.mxu0 0.0
      %5110 = vmatpush.msra.mxu0 0.0
      %5111 = vmatpush.msra.mxu0 %v5096
      %5112 = vmatpush.msra.mxu0 %v4995
      %5113 = vmatpush.msra.mxu0 %v4994
      %5114 = vmatmul.f32.gmra.mxu0 %v4999
      %v5115 = vpop.f32.mrf.mxu0
      %v5116 = vadd.f32 0.0, %v5115
      %5117 = vmatmul.f32.gmra.mxu0 %v5002
      %v5118 = vpop.f32.mrf.mxu0
      %v5119 = vadd.f32 0.0, %v5118
      %5120 = vmatmul.f32.gmra.mxu0 %v5005
      %v5121 = vpop.f32.mrf.mxu0
      %v5122 = vadd.f32 0.0, %v5121
      %5123 = vmatmul.f32.gmra.mxu0 %v5008
      %v5124 = vpop.f32.mrf.mxu0
      %v5125 = vadd.f32 0.0, %v5124
      %5126 = vmatmul.f32.gmra.mxu0 %v5011
      %v5127 = vpop.f32.mrf.mxu0
      %v5128 = vadd.f32 0.0, %v5127
      %5129 = vmatmul.f32.gmra.mxu0 %v5014
      %v5130 = vpop.f32.mrf.mxu0
      %v5131 = vadd.f32 0.0, %v5130
      %5132 = vmatmul.f32.gmra.mxu0 %v5017
      %v5133 = vpop.f32.mrf.mxu0
      %v5134 = vadd.f32 0.0, %v5133
      %5135 = vmatmul.f32.gmra.mxu0 %v5020
      %v5136 = vpop.f32.mrf.mxu0
      %v5137 = vadd.f32 0.0, %v5136
      %5138 = vmatmul.f32.gmra.mxu0 %v5023
      %v5139 = vpop.f32.mrf.mxu0
      %v5140 = vadd.f32 0.0, %v5139
      %5141 = vmatmul.f32.gmra.mxu0 %v5026
      %v5142 = vpop.f32.mrf.mxu0
      %v5143 = vadd.f32 0.0, %v5142
      %5144 = vmatmul.f32.gmra.mxu0 %v5029
      %v5145 = vpop.f32.mrf.mxu0
      %v5146 = vadd.f32 0.0, %v5145
      %5147 = vmatmul.f32.gmra.mxu0 %v5032
      %v5148 = vpop.f32.mrf.mxu0
      %v5149 = vadd.f32 0.0, %v5148
      %5150 = vmatmul.f32.gmra.mxu0 %v5035
      %v5151 = vpop.f32.mrf.mxu0
      %v5152 = vadd.f32 0.0, %v5151
      %5153 = vmatmul.f32.gmra.mxu0 %v5038
      %v5154 = vpop.f32.mrf.mxu0
      %v5155 = vadd.f32 0.0, %v5154
      %5156 = vmatmul.f32.gmra.mxu0 %v5041
      %v5157 = vpop.f32.mrf.mxu0
      %v5158 = vadd.f32 0.0, %v5157
      %5159 = vmatmul.f32.gmra.mxu0 %v5044
      %v5160 = vpop.f32.mrf.mxu0
      %v5161 = vadd.f32 0.0, %v5160
      %5162 = vmatmul.f32.gmra.mxu0 %v5047
      %v5163 = vpop.f32.mrf.mxu0
      %v5164 = vadd.f32 0.0, %v5163
      %5165 = vmatmul.f32.gmra.mxu0 %v5050
      %v5166 = vpop.f32.mrf.mxu0
      %v5167 = vadd.f32 0.0, %v5166
      %5168 = vmatmul.f32.gmra.mxu0 %v5053
      %v5169 = vpop.f32.mrf.mxu0
      %v5170 = vadd.f32 0.0, %v5169
      %5171 = vmatmul.f32.gmra.mxu0 %v5056
      %v5172 = vpop.f32.mrf.mxu0
      %v5173 = vadd.f32 0.0, %v5172
      %5174 = vmatmul.f32.gmra.mxu0 %v5059
      %v5175 = vpop.f32.mrf.mxu0
      %v5176 = vadd.f32 0.0, %v5175
      %5177 = vmatmul.f32.gmra.mxu0 %v5062
      %v5178 = vpop.f32.mrf.mxu0
      %v5179 = vadd.f32 0.0, %v5178
      %5180 = vmatmul.f32.gmra.mxu0 %v5065
      %v5181 = vpop.f32.mrf.mxu0
      %v5182 = vadd.f32 0.0, %v5181
      %5183 = vmatmul.f32.gmra.mxu0 %v5068
      %v5184 = vpop.f32.mrf.mxu0
      %v5185 = vadd.f32 0.0, %v5184
      %5186 = vmatmul.f32.gmra.mxu0 %v5071
      %v5187 = vpop.f32.mrf.mxu0
      %v5188 = vadd.f32 0.0, %v5187
      %5189 = vmatmul.f32.gmra.mxu0 %v5074
      %v5190 = vpop.f32.mrf.mxu0
      %v5191 = vadd.f32 0.0, %v5190
      %5192 = vmatmul.f32.gmra.mxu0 %v5077
      %v5193 = vpop.f32.mrf.mxu0
      %v5194 = vadd.f32 0.0, %v5193
      %5195 = vmatmul.f32.gmra.mxu0 %v5080
      %v5196 = vpop.f32.mrf.mxu0
      %v5197 = vadd.f32 0.0, %v5196
      %5198 = vmatmul.f32.gmra.mxu0 %v5083
      %v5199 = vpop.f32.mrf.mxu0
      %v5200 = vadd.f32 0.0, %v5199
      %5201 = vmatmul.f32.gmra.mxu0 %v5086
      %v5202 = vpop.f32.mrf.mxu0
      %v5203 = vadd.f32 0.0, %v5202
      %5204 = vmatmul.f32.gmra.mxu0 %v5089
      %v5205 = vpop.f32.mrf.mxu0
      %v5206 = vadd.f32 0.0, %v5205
      %5207 = vmatmul.f32.gmra.mxu0 %v5092
      %v5208 = vpop.f32.mrf.mxu0
      %v5209 = vadd.f32 0.0, %v5208
      %5210 = vdwg.mxu0
      %vm5211 = vcmp.ge.f32.partialorder %v5116, 0.0
      %vm5212 = vcmp.ge.f32.partialorder %v5119, 0.0
      %vm5213 = vcmp.ge.f32.partialorder %v5122, 0.0
      %vm5214 = vcmp.ge.f32.partialorder %v5125, 0.0
      %vm5215 = vcmp.ge.f32.partialorder %v5128, 0.0
      %vm5216 = vcmp.ge.f32.partialorder %v5131, 0.0
      %vm5217 = vcmp.ge.f32.partialorder %v5134, 0.0
      %vm5218 = vcmp.ge.f32.partialorder %v5137, 0.0
      %vm5219 = vcmp.ge.f32.partialorder %v5140, 0.0
      %vm5220 = vcmp.ge.f32.partialorder %v5143, 0.0
      %vm5221 = vcmp.ge.f32.partialorder %v5146, 0.0
      %vm5222 = vcmp.ge.f32.partialorder %v5149, 0.0
      %vm5223 = vcmp.ge.f32.partialorder %v5152, 0.0
      %vm5224 = vcmp.ge.f32.partialorder %v5155, 0.0
      %vm5225 = vcmp.ge.f32.partialorder %v5158, 0.0
      %vm5226 = vcmp.ge.f32.partialorder %v5161, 0.0
      %vm5227 = vcmp.ge.f32.partialorder %v5164, 0.0
      %vm5228 = vcmp.ge.f32.partialorder %v5167, 0.0
      %vm5229 = vcmp.ge.f32.partialorder %v5170, 0.0
      %vm5230 = vcmp.ge.f32.partialorder %v5173, 0.0
      %vm5231 = vcmp.ge.f32.partialorder %v5176, 0.0
      %vm5232 = vcmp.ge.f32.partialorder %v5179, 0.0
      %vm5233 = vcmp.ge.f32.partialorder %v5182, 0.0
      %vm5234 = vcmp.ge.f32.partialorder %v5185, 0.0
      %vm5235 = vcmp.ge.f32.partialorder %v5188, 0.0
      %vm5236 = vcmp.ge.f32.partialorder %v5191, 0.0
      %vm5237 = vcmp.ge.f32.partialorder %v5194, 0.0
      %vm5238 = vcmp.ge.f32.partialorder %v5197, 0.0
      %vm5239 = vcmp.ge.f32.partialorder %v5200, 0.0
      %vm5240 = vcmp.ge.f32.partialorder %v5203, 0.0
      %vm5241 = vcmp.ge.f32.partialorder %v5206, 0.0
      %vm5242 = vcmp.ge.f32.partialorder %v5209, 0.0
      %v5243 = vmul.f32 %v5116, 0.1
      %v5244 = vmul.f32 %v5119, 0.1
      %v5245 = vmul.f32 %v5122, 0.1
      %v5246 = vmul.f32 %v5125, 0.1
      %v5247 = vmul.f32 %v5128, 0.1
      %v5248 = vmul.f32 %v5131, 0.1
      %v5249 = vmul.f32 %v5134, 0.1
      %v5250 = vmul.f32 %v5137, 0.1
      %v5251 = vmul.f32 %v5140, 0.1
      %v5252 = vmul.f32 %v5143, 0.1
      %v5253 = vmul.f32 %v5146, 0.1
      %v5254 = vmul.f32 %v5149, 0.1
      %v5255 = vmul.f32 %v5152, 0.1
      %v5256 = vmul.f32 %v5155, 0.1
      %v5257 = vmul.f32 %v5158, 0.1
      %v5258 = vmul.f32 %v5161, 0.1
      %v5259 = vmul.f32 %v5164, 0.1
      %v5260 = vmul.f32 %v5167, 0.1
      %v5261 = vmul.f32 %v5170, 0.1
      %v5262 = vmul.f32 %v5173, 0.1
      %v5263 = vmul.f32 %v5176, 0.1
      %v5264 = vmul.f32 %v5179, 0.1
      %v5265 = vmul.f32 %v5182, 0.1
      %v5266 = vmul.f32 %v5185, 0.1
      %v5267 = vmul.f32 %v5188, 0.1
      %v5268 = vmul.f32 %v5191, 0.1
      %v5269 = vmul.f32 %v5194, 0.1
      %v5270 = vmul.f32 %v5197, 0.1
      %v5271 = vmul.f32 %v5200, 0.1
      %v5272 = vmul.f32 %v5203, 0.1
      %v5273 = vmul.f32 %v5206, 0.1
      %v5274 = vmul.f32 %v5209, 0.1
      %v5275 = vsel %vm5211, %v5116, %v5243
      %v5276 = vsel %vm5212, %v5119, %v5244
      %v5277 = vsel %vm5213, %v5122, %v5245
      %v5278 = vsel %vm5214, %v5125, %v5246
      %v5279 = vsel %vm5215, %v5128, %v5247
      %v5280 = vsel %vm5216, %v5131, %v5248
      %v5281 = vsel %vm5217, %v5134, %v5249
      %v5282 = vsel %vm5218, %v5137, %v5250
      %v5283 = vsel %vm5219, %v5140, %v5251
      %v5284 = vsel %vm5220, %v5143, %v5252
      %v5285 = vsel %vm5221, %v5146, %v5253
      %v5286 = vsel %vm5222, %v5149, %v5254
      %v5287 = vsel %vm5223, %v5152, %v5255
      %v5288 = vsel %vm5224, %v5155, %v5256
      %v5289 = vsel %vm5225, %v5158, %v5257
      %v5290 = vsel %vm5226, %v5161, %v5258
      %v5291 = vsel %vm5227, %v5164, %v5259
      %v5292 = vsel %vm5228, %v5167, %v5260
      %v5293 = vsel %vm5229, %v5170, %v5261
      %v5294 = vsel %vm5230, %v5173, %v5262
      %v5295 = vsel %vm5231, %v5176, %v5263
      %v5296 = vsel %vm5232, %v5179, %v5264
      %v5297 = vsel %vm5233, %v5182, %v5265
      %v5298 = vsel %vm5234, %v5185, %v5266
      %v5299 = vsel %vm5235, %v5188, %v5267
      %v5300 = vsel %vm5236, %v5191, %v5268
      %v5301 = vsel %vm5237, %v5194, %v5269
      %v5302 = vsel %vm5238, %v5197, %v5270
      %v5303 = vsel %vm5239, %v5200, %v5271
      %v5304 = vsel %vm5240, %v5203, %v5272
      %v5305 = vsel %vm5241, %v5206, %v5273
      %v5306 = vsel %vm5242, %v5209, %v5274
      %5307 = vst.msk [vmem:[%s2338 + $0x2] sm:$0xff] %vm398, %v5275
      %5308 = vst.msk [vmem:[%s2338 + $0xa] sm:$0xff] %vm398, %v5276
      %5309 = vst.msk [vmem:[%s2338 + $0x1a] sm:$0xff] %vm398, %v5277
      %5310 = vst.msk [vmem:[%s2338 + $0x22] sm:$0xff] %vm398, %v5278
      %5311 = vst.msk [vmem:[%s2338 + $0x32] sm:$0xff] %vm398, %v5279
      %5312 = vst.msk [vmem:[%s2338 + $0x3a] sm:$0xff] %vm398, %v5280
      %5313 = vst.msk [vmem:[%s2338 + $0x4a] sm:$0xff] %vm398, %v5281
      %5314 = vst.msk [vmem:[%s2338 + $0x52] sm:$0xff] %vm398, %v5282
      %5315 = vst.msk [vmem:[%s2338 + $0x62] sm:$0xff] %vm398, %v5283
      %5316 = vst.msk [vmem:[%s2338 + $0x6a] sm:$0xff] %vm398, %v5284
      %5317 = vst.msk [vmem:[%s2338 + $0x7a] sm:$0xff] %vm398, %v5285
      %5318 = vst.msk [vmem:[%s2338 + $0x82] sm:$0xff] %vm398, %v5286
      %5319 = vst.msk [vmem:[%s2338 + $0x92] sm:$0xff] %vm398, %v5287
      %5320 = vst.msk [vmem:[%s2338 + $0x9a] sm:$0xff] %vm398, %v5288
      %5321 = vst.msk [vmem:[%s2338 + $0xaa] sm:$0xff] %vm398, %v5289
      %5322 = vst.msk [vmem:[%s2338 + $0xb2] sm:$0xff] %vm398, %v5290
      %5323 = vst.msk [vmem:[%s2338 + $0xc2] sm:$0xff] %vm398, %v5291
      %5324 = vst.msk [vmem:[%s2338 + $0xca] sm:$0xff] %vm398, %v5292
      %5325 = vst.msk [vmem:[%s2338 + $0xda] sm:$0xff] %vm398, %v5293
      %5326 = vst.msk [vmem:[%s2338 + $0xe2] sm:$0xff] %vm398, %v5294
      %5327 = vst.msk [vmem:[%s2338 + $0xf2] sm:$0xff] %vm398, %v5295
      %5328 = vst.msk [vmem:[%s2338 + $0xfa] sm:$0xff] %vm398, %v5296
      %5329 = vst.msk [vmem:[%s2338 + $0x10a] sm:$0xff] %vm398, %v5297
      %5330 = vst.msk [vmem:[%s2338 + $0x112] sm:$0xff] %vm398, %v5298
      %5331 = vst.msk [vmem:[%s2338 + $0x122] sm:$0xff] %vm398, %v5299
      %5332 = vst.msk [vmem:[%s2338 + $0x12a] sm:$0xff] %vm398, %v5300
      %5333 = vst.msk [vmem:[%s2338 + $0x13a] sm:$0xff] %vm398, %v5301
      %5334 = vst.msk [vmem:[%s2338 + $0x142] sm:$0xff] %vm398, %v5302
      %5335 = vst.msk [vmem:[%s2338 + $0x152] sm:$0xff] %vm398, %v5303
      %5336 = vst.msk [vmem:[%s2338 + $0x15a] sm:$0xff] %vm398, %v5304
      %5337 = vst.msk [vmem:[%s2338 + $0x16a] sm:$0xff] %vm398, %v5305
      %5338 = vst.msk [vmem:[%s2338 + $0x172] sm:$0xff] %vm398, %v5306
      %v5339 = vld [vmem:[#allocation2] sm:$0xff]
      %v5340 = vld [vmem:[#allocation2 + $0x8] sm:$0xff]
      %v5341 = vld [vmem:[#allocation2 + $0x18] sm:$0xff]
      %v5342 = vld [vmem:[#allocation2 + $0x20] sm:$0xff]
      %v5343 = vld [vmem:[#allocation2 + $0x30] sm:$0xff]
      %v5344 = vld [vmem:[#allocation2 + $0x38] sm:$0xff]
      %v5345 = vld [vmem:[#allocation2 + $0x48] sm:$0xff]
      %v5346 = vld [vmem:[#allocation2 + $0x50] sm:$0xff]
      %v5347 = vld [vmem:[#allocation2 + $0x60] sm:$0xff]
      %v5348 = vld [vmem:[#allocation2 + $0x68] sm:$0xff]
      %v5349 = vld [vmem:[#allocation2 + $0x78] sm:$0xff]
      %v5350 = vld [vmem:[#allocation2 + $0x80] sm:$0xff]
      %v5351 = vld [vmem:[#allocation2 + $0x90] sm:$0xff]
      %v5352 = vld [vmem:[#allocation2 + $0x98] sm:$0xff]
      %v5353 = vld [vmem:[#allocation2 + $0xa8] sm:$0xff]
      %v5354 = vld [vmem:[#allocation2 + $0xb0] sm:$0xff]
      %v5355 = vld [vmem:[#allocation2 + $0xc0] sm:$0xff]
      %v5356 = vld [vmem:[#allocation2 + $0xc8] sm:$0xff]
      %v5357 = vld [vmem:[#allocation2 + $0xd8] sm:$0xff]
      %v5358 = vld [vmem:[#allocation2 + $0xe0] sm:$0xff]
      %v5359 = vld [vmem:[#allocation2 + $0xf0] sm:$0xff]
      %v5360 = vld [vmem:[#allocation2 + $0xf8] sm:$0xff]
      %v5361 = vld [vmem:[#allocation2 + $0x108] sm:$0xff]
      %v5362 = vld [vmem:[#allocation2 + $0x110] sm:$0xff]
      %v5363 = vld [vmem:[#allocation2 + $0x120] sm:$0xff]
      %v5364 = vld [vmem:[#allocation2 + $0x128] sm:$0xff]
      %v5365 = vld [vmem:[#allocation2 + $0x138] sm:$0xff]
      %v5366 = vld [vmem:[#allocation2 + $0x140] sm:$0xff]
      %v5367 = vld [vmem:[#allocation2 + $0x150] sm:$0xff]
      %v5368 = vld [vmem:[#allocation2 + $0x158] sm:$0xff]
      %v5369 = vld [vmem:[#allocation2 + $0x168] sm:$0xff]
      %v5370 = vld [vmem:[#allocation2 + $0x170] sm:$0xff]
      %5371 = vst.msk [vmem:[#allocation3] sm:$0xff] %vm398, %v5339
      %5372 = vst.msk [vmem:[#allocation3 + $0x8] sm:$0xff] %vm398, %v5340
      %5373 = vst.msk [vmem:[#allocation3 + $0x10] sm:$0xff] %vm398, %v5341
      %5374 = vst.msk [vmem:[#allocation3 + $0x18] sm:$0xff] %vm398, %v5342
      %5375 = vst.msk [vmem:[#allocation3 + $0x20] sm:$0xff] %vm398, %v5343
      %5376 = vst.msk [vmem:[#allocation3 + $0x28] sm:$0xff] %vm398, %v5344
      %5377 = vst.msk [vmem:[#allocation3 + $0x30] sm:$0xff] %vm398, %v5345
      %5378 = vst.msk [vmem:[#allocation3 + $0x38] sm:$0xff] %vm398, %v5346
      %5379 = vst.msk [vmem:[#allocation3 + $0x40] sm:$0xff] %vm398, %v5347
      %5380 = vst.msk [vmem:[#allocation3 + $0x48] sm:$0xff] %vm398, %v5348
      %5381 = vst.msk [vmem:[#allocation3 + $0x50] sm:$0xff] %vm398, %v5349
      %5382 = vst.msk [vmem:[#allocation3 + $0x58] sm:$0xff] %vm398, %v5350
      %5383 = vst.msk [vmem:[#allocation3 + $0x60] sm:$0xff] %vm398, %v5351
      %5384 = vst.msk [vmem:[#allocation3 + $0x68] sm:$0xff] %vm398, %v5352
      %5385 = vst.msk [vmem:[#allocation3 + $0x70] sm:$0xff] %vm398, %v5353
      %5386 = vst.msk [vmem:[#allocation3 + $0x78] sm:$0xff] %vm398, %v5354
      %5387 = vst.msk [vmem:[#allocation3 + $0x80] sm:$0xff] %vm398, %v5355
      %5388 = vst.msk [vmem:[#allocation3 + $0x88] sm:$0xff] %vm398, %v5356
      %5389 = vst.msk [vmem:[#allocation3 + $0x90] sm:$0xff] %vm398, %v5357
      %5390 = vst.msk [vmem:[#allocation3 + $0x98] sm:$0xff] %vm398, %v5358
      %5391 = vst.msk [vmem:[#allocation3 + $0xa0] sm:$0xff] %vm398, %v5359
      %5392 = vst.msk [vmem:[#allocation3 + $0xa8] sm:$0xff] %vm398, %v5360
      %5393 = vst.msk [vmem:[#allocation3 + $0xb0] sm:$0xff] %vm398, %v5361
      %5394 = vst.msk [vmem:[#allocation3 + $0xb8] sm:$0xff] %vm398, %v5362
      %5395 = vst.msk [vmem:[#allocation3 + $0xc0] sm:$0xff] %vm398, %v5363
      %5396 = vst.msk [vmem:[#allocation3 + $0xc8] sm:$0xff] %vm398, %v5364
      %5397 = vst.msk [vmem:[#allocation3 + $0xd0] sm:$0xff] %vm398, %v5365
      %5398 = vst.msk [vmem:[#allocation3 + $0xd8] sm:$0xff] %vm398, %v5366
      %5399 = vst.msk [vmem:[#allocation3 + $0xe0] sm:$0xff] %vm398, %v5367
      %5400 = vst.msk [vmem:[#allocation3 + $0xe8] sm:$0xff] %vm398, %v5368
      %5401 = vst.msk [vmem:[#allocation3 + $0xf0] sm:$0xff] %vm398, %v5369
      %5402 = vst.msk [vmem:[#allocation3 + $0xf8] sm:$0xff] %vm398, %v5370
      %v5403 = vld [vmem:[#allocation2 + $0x2] sm:$0xff]
      %v5404 = vld [vmem:[#allocation2 + $0xa] sm:$0xff]
      %v5405 = vld [vmem:[#allocation2 + $0x1a] sm:$0xff]
      %v5406 = vld [vmem:[#allocation2 + $0x22] sm:$0xff]
      %v5407 = vld [vmem:[#allocation2 + $0x32] sm:$0xff]
      %v5408 = vld [vmem:[#allocation2 + $0x3a] sm:$0xff]
      %v5409 = vld [vmem:[#allocation2 + $0x4a] sm:$0xff]
      %v5410 = vld [vmem:[#allocation2 + $0x52] sm:$0xff]
      %v5411 = vld [vmem:[#allocation2 + $0x62] sm:$0xff]
      %v5412 = vld [vmem:[#allocation2 + $0x6a] sm:$0xff]
      %v5413 = vld [vmem:[#allocation2 + $0x7a] sm:$0xff]
      %v5414 = vld [vmem:[#allocation2 + $0x82] sm:$0xff]
      %v5415 = vld [vmem:[#allocation2 + $0x92] sm:$0xff]
      %v5416 = vld [vmem:[#allocation2 + $0x9a] sm:$0xff]
      %v5417 = vld [vmem:[#allocation2 + $0xaa] sm:$0xff]
      %v5418 = vld [vmem:[#allocation2 + $0xb2] sm:$0xff]
      %v5419 = vld [vmem:[#allocation2 + $0xc2] sm:$0xff]
      %v5420 = vld [vmem:[#allocation2 + $0xca] sm:$0xff]
      %v5421 = vld [vmem:[#allocation2 + $0xda] sm:$0xff]
      %v5422 = vld [vmem:[#allocation2 + $0xe2] sm:$0xff]
      %v5423 = vld [vmem:[#allocation2 + $0xf2] sm:$0xff]
      %v5424 = vld [vmem:[#allocation2 + $0xfa] sm:$0xff]
      %v5425 = vld [vmem:[#allocation2 + $0x10a] sm:$0xff]
      %v5426 = vld [vmem:[#allocation2 + $0x112] sm:$0xff]
      %v5427 = vld [vmem:[#allocation2 + $0x122] sm:$0xff]
      %v5428 = vld [vmem:[#allocation2 + $0x12a] sm:$0xff]
      %v5429 = vld [vmem:[#allocation2 + $0x13a] sm:$0xff]
      %v5430 = vld [vmem:[#allocation2 + $0x142] sm:$0xff]
      %v5431 = vld [vmem:[#allocation2 + $0x152] sm:$0xff]
      %v5432 = vld [vmem:[#allocation2 + $0x15a] sm:$0xff]
      %v5433 = vld [vmem:[#allocation2 + $0x16a] sm:$0xff]
      %v5434 = vld [vmem:[#allocation2 + $0x172] sm:$0xff]
      %5467 = vrot.lane.b32.xlu0 %v5403, 8
      %v5468 = vpop.permute.xlu0 %5467
      %5469 = vrot.lane.b32.xlu0 %v5404, 8
      %v5470 = vpop.permute.xlu0 %5469
      %5471 = vrot.lane.b32.xlu0 %v5405, 8
      %v5472 = vpop.permute.xlu0 %5471
      %5473 = vrot.lane.b32.xlu0 %v5406, 8
      %v5474 = vpop.permute.xlu0 %5473
      %5475 = vrot.lane.b32.xlu0 %v5407, 8
      %v5476 = vpop.permute.xlu0 %5475
      %5477 = vrot.lane.b32.xlu0 %v5408, 8
      %v5478 = vpop.permute.xlu0 %5477
      %5479 = vrot.lane.b32.xlu0 %v5409, 8
      %v5480 = vpop.permute.xlu0 %5479
      %5481 = vrot.lane.b32.xlu0 %v5410, 8
      %v5482 = vpop.permute.xlu0 %5481
      %5483 = vrot.lane.b32.xlu0 %v5411, 8
      %v5484 = vpop.permute.xlu0 %5483
      %5485 = vrot.lane.b32.xlu0 %v5412, 8
      %v5486 = vpop.permute.xlu0 %5485
      %5487 = vrot.lane.b32.xlu0 %v5413, 8
      %v5488 = vpop.permute.xlu0 %5487
      %5489 = vrot.lane.b32.xlu0 %v5414, 8
      %v5490 = vpop.permute.xlu0 %5489
      %5491 = vrot.lane.b32.xlu0 %v5415, 8
      %v5492 = vpop.permute.xlu0 %5491
      %5493 = vrot.lane.b32.xlu0 %v5416, 8
      %v5494 = vpop.permute.xlu0 %5493
      %5495 = vrot.lane.b32.xlu0 %v5417, 8
      %v5496 = vpop.permute.xlu0 %5495
      %5497 = vrot.lane.b32.xlu0 %v5418, 8
      %v5498 = vpop.permute.xlu0 %5497
      %5499 = vrot.lane.b32.xlu0 %v5419, 8
      %v5500 = vpop.permute.xlu0 %5499
      %5501 = vrot.lane.b32.xlu0 %v5420, 8
      %v5502 = vpop.permute.xlu0 %5501
      %5503 = vrot.lane.b32.xlu0 %v5421, 8
      %v5504 = vpop.permute.xlu0 %5503
      %5505 = vrot.lane.b32.xlu0 %v5422, 8
      %v5506 = vpop.permute.xlu0 %5505
      %5507 = vrot.lane.b32.xlu0 %v5423, 8
      %v5508 = vpop.permute.xlu0 %5507
      %5509 = vrot.lane.b32.xlu0 %v5424, 8
      %v5510 = vpop.permute.xlu0 %5509
      %5511 = vrot.lane.b32.xlu0 %v5425, 8
      %v5512 = vpop.permute.xlu0 %5511
      %5513 = vrot.lane.b32.xlu0 %v5426, 8
      %v5514 = vpop.permute.xlu0 %5513
      %5515 = vrot.lane.b32.xlu0 %v5427, 8
      %v5516 = vpop.permute.xlu0 %5515
      %5517 = vrot.lane.b32.xlu0 %v5428, 8
      %v5518 = vpop.permute.xlu0 %5517
      %5519 = vrot.lane.b32.xlu0 %v5429, 8
      %v5520 = vpop.permute.xlu0 %5519
      %5521 = vrot.lane.b32.xlu0 %v5430, 8
      %v5522 = vpop.permute.xlu0 %5521
      %5523 = vrot.lane.b32.xlu0 %v5431, 8
      %v5524 = vpop.permute.xlu0 %5523
      %5525 = vrot.lane.b32.xlu0 %v5432, 8
      %v5526 = vpop.permute.xlu0 %5525
      %5527 = vrot.lane.b32.xlu0 %v5433, 8
      %v5528 = vpop.permute.xlu0 %5527
      %5529 = vrot.lane.b32.xlu0 %v5434, 8
      %v5530 = vpop.permute.xlu0 %5529
      %5563 = vst.msk [vmem:[#allocation3] sm:$0xff] %vm591, %v5468
      %5564 = vst.msk [vmem:[#allocation3 + $0x8] sm:$0xff] %vm591, %v5470
      %5565 = vst.msk [vmem:[#allocation3 + $0x10] sm:$0xff] %vm591, %v5472
      %5566 = vst.msk [vmem:[#allocation3 + $0x18] sm:$0xff] %vm591, %v5474
      %5567 = vst.msk [vmem:[#allocation3 + $0x20] sm:$0xff] %vm591, %v5476
      %5568 = vst.msk [vmem:[#allocation3 + $0x28] sm:$0xff] %vm591, %v5478
      %5569 = vst.msk [vmem:[#allocation3 + $0x30] sm:$0xff] %vm591, %v5480
      %5570 = vst.msk [vmem:[#allocation3 + $0x38] sm:$0xff] %vm591, %v5482
      %5571 = vst.msk [vmem:[#allocation3 + $0x40] sm:$0xff] %vm591, %v5484
      %5572 = vst.msk [vmem:[#allocation3 + $0x48] sm:$0xff] %vm591, %v5486
      %5573 = vst.msk [vmem:[#allocation3 + $0x50] sm:$0xff] %vm591, %v5488
      %5574 = vst.msk [vmem:[#allocation3 + $0x58] sm:$0xff] %vm591, %v5490
      %5575 = vst.msk [vmem:[#allocation3 + $0x60] sm:$0xff] %vm591, %v5492
      %5576 = vst.msk [vmem:[#allocation3 + $0x68] sm:$0xff] %vm591, %v5494
      %5577 = vst.msk [vmem:[#allocation3 + $0x70] sm:$0xff] %vm591, %v5496
      %5578 = vst.msk [vmem:[#allocation3 + $0x78] sm:$0xff] %vm591, %v5498
      %5579 = vst.msk [vmem:[#allocation3 + $0x80] sm:$0xff] %vm591, %v5500
      %5580 = vst.msk [vmem:[#allocation3 + $0x88] sm:$0xff] %vm591, %v5502
      %5581 = vst.msk [vmem:[#allocation3 + $0x90] sm:$0xff] %vm591, %v5504
      %5582 = vst.msk [vmem:[#allocation3 + $0x98] sm:$0xff] %vm591, %v5506
      %5583 = vst.msk [vmem:[#allocation3 + $0xa0] sm:$0xff] %vm591, %v5508
      %5584 = vst.msk [vmem:[#allocation3 + $0xa8] sm:$0xff] %vm591, %v5510
      %5585 = vst.msk [vmem:[#allocation3 + $0xb0] sm:$0xff] %vm591, %v5512
      %5586 = vst.msk [vmem:[#allocation3 + $0xb8] sm:$0xff] %vm591, %v5514
      %5587 = vst.msk [vmem:[#allocation3 + $0xc0] sm:$0xff] %vm591, %v5516
      %5588 = vst.msk [vmem:[#allocation3 + $0xc8] sm:$0xff] %vm591, %v5518
      %5589 = vst.msk [vmem:[#allocation3 + $0xd0] sm:$0xff] %vm591, %v5520
      %5590 = vst.msk [vmem:[#allocation3 + $0xd8] sm:$0xff] %vm591, %v5522
      %5591 = vst.msk [vmem:[#allocation3 + $0xe0] sm:$0xff] %vm591, %v5524
      %5592 = vst.msk [vmem:[#allocation3 + $0xe8] sm:$0xff] %vm591, %v5526
      %5593 = vst.msk [vmem:[#allocation3 + $0xf0] sm:$0xff] %vm591, %v5528
      %5594 = vst.msk [vmem:[#allocation3 + $0xf8] sm:$0xff] %vm591, %v5530
      %v5595 = vld [vmem:[#allocation2 + $0x4] sm:$0xff]
      %v5596 = vld [vmem:[#allocation2 + $0xc] sm:$0xff]
      %v5597 = vld [vmem:[#allocation2 + $0x1c] sm:$0xff]
      %v5598 = vld [vmem:[#allocation2 + $0x24] sm:$0xff]
      %v5599 = vld [vmem:[#allocation2 + $0x34] sm:$0xff]
      %v5600 = vld [vmem:[#allocation2 + $0x3c] sm:$0xff]
      %v5601 = vld [vmem:[#allocation2 + $0x4c] sm:$0xff]
      %v5602 = vld [vmem:[#allocation2 + $0x54] sm:$0xff]
      %v5603 = vld [vmem:[#allocation2 + $0x64] sm:$0xff]
      %v5604 = vld [vmem:[#allocation2 + $0x6c] sm:$0xff]
      %v5605 = vld [vmem:[#allocation2 + $0x7c] sm:$0xff]
      %v5606 = vld [vmem:[#allocation2 + $0x84] sm:$0xff]
      %v5607 = vld [vmem:[#allocation2 + $0x94] sm:$0xff]
      %v5608 = vld [vmem:[#allocation2 + $0x9c] sm:$0xff]
      %v5609 = vld [vmem:[#allocation2 + $0xac] sm:$0xff]
      %v5610 = vld [vmem:[#allocation2 + $0xb4] sm:$0xff]
      %v5611 = vld [vmem:[#allocation2 + $0xc4] sm:$0xff]
      %v5612 = vld [vmem:[#allocation2 + $0xcc] sm:$0xff]
      %v5613 = vld [vmem:[#allocation2 + $0xdc] sm:$0xff]
      %v5614 = vld [vmem:[#allocation2 + $0xe4] sm:$0xff]
      %v5615 = vld [vmem:[#allocation2 + $0xf4] sm:$0xff]
      %v5616 = vld [vmem:[#allocation2 + $0xfc] sm:$0xff]
      %v5617 = vld [vmem:[#allocation2 + $0x10c] sm:$0xff]
      %v5618 = vld [vmem:[#allocation2 + $0x114] sm:$0xff]
      %v5619 = vld [vmem:[#allocation2 + $0x124] sm:$0xff]
      %v5620 = vld [vmem:[#allocation2 + $0x12c] sm:$0xff]
      %v5621 = vld [vmem:[#allocation2 + $0x13c] sm:$0xff]
      %v5622 = vld [vmem:[#allocation2 + $0x144] sm:$0xff]
      %v5623 = vld [vmem:[#allocation2 + $0x154] sm:$0xff]
      %v5624 = vld [vmem:[#allocation2 + $0x15c] sm:$0xff]
      %v5625 = vld [vmem:[#allocation2 + $0x16c] sm:$0xff]
      %v5626 = vld [vmem:[#allocation2 + $0x174] sm:$0xff]
      %5659 = vrot.lane.b32.xlu0 %v5595, 16
      %v5660 = vpop.permute.xlu0 %5659
      %5661 = vrot.lane.b32.xlu0 %v5596, 16
      %v5662 = vpop.permute.xlu0 %5661
      %5663 = vrot.lane.b32.xlu0 %v5597, 16
      %v5664 = vpop.permute.xlu0 %5663
      %5665 = vrot.lane.b32.xlu0 %v5598, 16
      %v5666 = vpop.permute.xlu0 %5665
      %5667 = vrot.lane.b32.xlu0 %v5599, 16
      %v5668 = vpop.permute.xlu0 %5667
      %5669 = vrot.lane.b32.xlu0 %v5600, 16
      %v5670 = vpop.permute.xlu0 %5669
      %5671 = vrot.lane.b32.xlu0 %v5601, 16
      %v5672 = vpop.permute.xlu0 %5671
      %5673 = vrot.lane.b32.xlu0 %v5602, 16
      %v5674 = vpop.permute.xlu0 %5673
      %5675 = vrot.lane.b32.xlu0 %v5603, 16
      %v5676 = vpop.permute.xlu0 %5675
      %5677 = vrot.lane.b32.xlu0 %v5604, 16
      %v5678 = vpop.permute.xlu0 %5677
      %5679 = vrot.lane.b32.xlu0 %v5605, 16
      %v5680 = vpop.permute.xlu0 %5679
      %5681 = vrot.lane.b32.xlu0 %v5606, 16
      %v5682 = vpop.permute.xlu0 %5681
      %5683 = vrot.lane.b32.xlu0 %v5607, 16
      %v5684 = vpop.permute.xlu0 %5683
      %5685 = vrot.lane.b32.xlu0 %v5608, 16
      %v5686 = vpop.permute.xlu0 %5685
      %5687 = vrot.lane.b32.xlu0 %v5609, 16
      %v5688 = vpop.permute.xlu0 %5687
      %5689 = vrot.lane.b32.xlu0 %v5610, 16
      %v5690 = vpop.permute.xlu0 %5689
      %5691 = vrot.lane.b32.xlu0 %v5611, 16
      %v5692 = vpop.permute.xlu0 %5691
      %5693 = vrot.lane.b32.xlu0 %v5612, 16
      %v5694 = vpop.permute.xlu0 %5693
      %5695 = vrot.lane.b32.xlu0 %v5613, 16
      %v5696 = vpop.permute.xlu0 %5695
      %5697 = vrot.lane.b32.xlu0 %v5614, 16
      %v5698 = vpop.permute.xlu0 %5697
      %5699 = vrot.lane.b32.xlu0 %v5615, 16
      %v5700 = vpop.permute.xlu0 %5699
      %5701 = vrot.lane.b32.xlu0 %v5616, 16
      %v5702 = vpop.permute.xlu0 %5701
      %5703 = vrot.lane.b32.xlu0 %v5617, 16
      %v5704 = vpop.permute.xlu0 %5703
      %5705 = vrot.lane.b32.xlu0 %v5618, 16
      %v5706 = vpop.permute.xlu0 %5705
      %5707 = vrot.lane.b32.xlu0 %v5619, 16
      %v5708 = vpop.permute.xlu0 %5707
      %5709 = vrot.lane.b32.xlu0 %v5620, 16
      %v5710 = vpop.permute.xlu0 %5709
      %5711 = vrot.lane.b32.xlu0 %v5621, 16
      %v5712 = vpop.permute.xlu0 %5711
      %5713 = vrot.lane.b32.xlu0 %v5622, 16
      %v5714 = vpop.permute.xlu0 %5713
      %5715 = vrot.lane.b32.xlu0 %v5623, 16
      %v5716 = vpop.permute.xlu0 %5715
      %5717 = vrot.lane.b32.xlu0 %v5624, 16
      %v5718 = vpop.permute.xlu0 %5717
      %5719 = vrot.lane.b32.xlu0 %v5625, 16
      %v5720 = vpop.permute.xlu0 %5719
      %5721 = vrot.lane.b32.xlu0 %v5626, 16
      %v5722 = vpop.permute.xlu0 %5721
      %5755 = vst.msk [vmem:[#allocation3] sm:$0xff] %vm784, %v5660
      %5756 = vst.msk [vmem:[#allocation3 + $0x8] sm:$0xff] %vm784, %v5662
      %5757 = vst.msk [vmem:[#allocation3 + $0x10] sm:$0xff] %vm784, %v5664
      %5758 = vst.msk [vmem:[#allocation3 + $0x18] sm:$0xff] %vm784, %v5666
      %5759 = vst.msk [vmem:[#allocation3 + $0x20] sm:$0xff] %vm784, %v5668
      %5760 = vst.msk [vmem:[#allocation3 + $0x28] sm:$0xff] %vm784, %v5670
      %5761 = vst.msk [vmem:[#allocation3 + $0x30] sm:$0xff] %vm784, %v5672
      %5762 = vst.msk [vmem:[#allocation3 + $0x38] sm:$0xff] %vm784, %v5674
      %5763 = vst.msk [vmem:[#allocation3 + $0x40] sm:$0xff] %vm784, %v5676
      %5764 = vst.msk [vmem:[#allocation3 + $0x48] sm:$0xff] %vm784, %v5678
      %5765 = vst.msk [vmem:[#allocation3 + $0x50] sm:$0xff] %vm784, %v5680
      %5766 = vst.msk [vmem:[#allocation3 + $0x58] sm:$0xff] %vm784, %v5682
      %5767 = vst.msk [vmem:[#allocation3 + $0x60] sm:$0xff] %vm784, %v5684
      %5768 = vst.msk [vmem:[#allocation3 + $0x68] sm:$0xff] %vm784, %v5686
      %5769 = vst.msk [vmem:[#allocation3 + $0x70] sm:$0xff] %vm784, %v5688
      %5770 = vst.msk [vmem:[#allocation3 + $0x78] sm:$0xff] %vm784, %v5690
      %5771 = vst.msk [vmem:[#allocation3 + $0x80] sm:$0xff] %vm784, %v5692
      %5772 = vst.msk [vmem:[#allocation3 + $0x88] sm:$0xff] %vm784, %v5694
      %5773 = vst.msk [vmem:[#allocation3 + $0x90] sm:$0xff] %vm784, %v5696
      %5774 = vst.msk [vmem:[#allocation3 + $0x98] sm:$0xff] %vm784, %v5698
      %5775 = vst.msk [vmem:[#allocation3 + $0xa0] sm:$0xff] %vm784, %v5700
      %5776 = vst.msk [vmem:[#allocation3 + $0xa8] sm:$0xff] %vm784, %v5702
      %5777 = vst.msk [vmem:[#allocation3 + $0xb0] sm:$0xff] %vm784, %v5704
      %5778 = vst.msk [vmem:[#allocation3 + $0xb8] sm:$0xff] %vm784, %v5706
      %5779 = vst.msk [vmem:[#allocation3 + $0xc0] sm:$0xff] %vm784, %v5708
      %5780 = vst.msk [vmem:[#allocation3 + $0xc8] sm:$0xff] %vm784, %v5710
      %5781 = vst.msk [vmem:[#allocation3 + $0xd0] sm:$0xff] %vm784, %v5712
      %5782 = vst.msk [vmem:[#allocation3 + $0xd8] sm:$0xff] %vm784, %v5714
      %5783 = vst.msk [vmem:[#allocation3 + $0xe0] sm:$0xff] %vm784, %v5716
      %5784 = vst.msk [vmem:[#allocation3 + $0xe8] sm:$0xff] %vm784, %v5718
      %5785 = vst.msk [vmem:[#allocation3 + $0xf0] sm:$0xff] %vm784, %v5720
      %5786 = vst.msk [vmem:[#allocation3 + $0xf8] sm:$0xff] %vm784, %v5722
      %v5787 = vld [vmem:[%s2338] sm:$0xff]
      %v5788 = vld [vmem:[%s2338 + $0x8] sm:$0xff]
      %v5789 = vld [vmem:[%s2338 + $0x18] sm:$0xff]
      %v5790 = vld [vmem:[%s2338 + $0x20] sm:$0xff]
      %v5791 = vld [vmem:[%s2338 + $0x30] sm:$0xff]
      %v5792 = vld [vmem:[%s2338 + $0x38] sm:$0xff]
      %v5793 = vld [vmem:[%s2338 + $0x48] sm:$0xff]
      %v5794 = vld [vmem:[%s2338 + $0x50] sm:$0xff]
      %v5795 = vld [vmem:[%s2338 + $0x60] sm:$0xff]
      %v5796 = vld [vmem:[%s2338 + $0x68] sm:$0xff]
      %v5797 = vld [vmem:[%s2338 + $0x78] sm:$0xff]
      %v5798 = vld [vmem:[%s2338 + $0x80] sm:$0xff]
      %v5799 = vld [vmem:[%s2338 + $0x90] sm:$0xff]
      %v5800 = vld [vmem:[%s2338 + $0x98] sm:$0xff]
      %v5801 = vld [vmem:[%s2338 + $0xa8] sm:$0xff]
      %v5802 = vld [vmem:[%s2338 + $0xb0] sm:$0xff]
      %v5803 = vld [vmem:[%s2338 + $0xc0] sm:$0xff]
      %v5804 = vld [vmem:[%s2338 + $0xc8] sm:$0xff]
      %v5805 = vld [vmem:[%s2338 + $0xd8] sm:$0xff]
      %v5806 = vld [vmem:[%s2338 + $0xe0] sm:$0xff]
      %v5807 = vld [vmem:[%s2338 + $0xf0] sm:$0xff]
      %v5808 = vld [vmem:[%s2338 + $0xf8] sm:$0xff]
      %v5809 = vld [vmem:[%s2338 + $0x108] sm:$0xff]
      %v5810 = vld [vmem:[%s2338 + $0x110] sm:$0xff]
      %v5811 = vld [vmem:[%s2338 + $0x120] sm:$0xff]
      %v5812 = vld [vmem:[%s2338 + $0x128] sm:$0xff]
      %v5813 = vld [vmem:[%s2338 + $0x138] sm:$0xff]
      %v5814 = vld [vmem:[%s2338 + $0x140] sm:$0xff]
      %v5815 = vld [vmem:[%s2338 + $0x150] sm:$0xff]
      %v5816 = vld [vmem:[%s2338 + $0x158] sm:$0xff]
      %v5817 = vld [vmem:[%s2338 + $0x168] sm:$0xff]
      %v5818 = vld [vmem:[%s2338 + $0x170] sm:$0xff]
      %5851 = vrot.lane.b32.xlu0 %v5787, 24
      %v5852 = vpop.permute.xlu0 %5851
      %5853 = vrot.lane.b32.xlu0 %v5788, 24
      %v5854 = vpop.permute.xlu0 %5853
      %5855 = vrot.lane.b32.xlu0 %v5789, 24
      %v5856 = vpop.permute.xlu0 %5855
      %5857 = vrot.lane.b32.xlu0 %v5790, 24
      %v5858 = vpop.permute.xlu0 %5857
      %5859 = vrot.lane.b32.xlu0 %v5791, 24
      %v5860 = vpop.permute.xlu0 %5859
      %5861 = vrot.lane.b32.xlu0 %v5792, 24
      %v5862 = vpop.permute.xlu0 %5861
      %5863 = vrot.lane.b32.xlu0 %v5793, 24
      %v5864 = vpop.permute.xlu0 %5863
      %5865 = vrot.lane.b32.xlu0 %v5794, 24
      %v5866 = vpop.permute.xlu0 %5865
      %5867 = vrot.lane.b32.xlu0 %v5795, 24
      %v5868 = vpop.permute.xlu0 %5867
      %5869 = vrot.lane.b32.xlu0 %v5796, 24
      %v5870 = vpop.permute.xlu0 %5869
      %5871 = vrot.lane.b32.xlu0 %v5797, 24
      %v5872 = vpop.permute.xlu0 %5871
      %5873 = vrot.lane.b32.xlu0 %v5798, 24
      %v5874 = vpop.permute.xlu0 %5873
      %5875 = vrot.lane.b32.xlu0 %v5799, 24
      %v5876 = vpop.permute.xlu0 %5875
      %5877 = vrot.lane.b32.xlu0 %v5800, 24
      %v5878 = vpop.permute.xlu0 %5877
      %5879 = vrot.lane.b32.xlu0 %v5801, 24
      %v5880 = vpop.permute.xlu0 %5879
      %5881 = vrot.lane.b32.xlu0 %v5802, 24
      %v5882 = vpop.permute.xlu0 %5881
      %5883 = vrot.lane.b32.xlu0 %v5803, 24
      %v5884 = vpop.permute.xlu0 %5883
      %5885 = vrot.lane.b32.xlu0 %v5804, 24
      %v5886 = vpop.permute.xlu0 %5885
      %5887 = vrot.lane.b32.xlu0 %v5805, 24
      %v5888 = vpop.permute.xlu0 %5887
      %5889 = vrot.lane.b32.xlu0 %v5806, 24
      %v5890 = vpop.permute.xlu0 %5889
      %5891 = vrot.lane.b32.xlu0 %v5807, 24
      %v5892 = vpop.permute.xlu0 %5891
      %5893 = vrot.lane.b32.xlu0 %v5808, 24
      %v5894 = vpop.permute.xlu0 %5893
      %5895 = vrot.lane.b32.xlu0 %v5809, 24
      %v5896 = vpop.permute.xlu0 %5895
      %5897 = vrot.lane.b32.xlu0 %v5810, 24
      %v5898 = vpop.permute.xlu0 %5897
      %5899 = vrot.lane.b32.xlu0 %v5811, 24
      %v5900 = vpop.permute.xlu0 %5899
      %5901 = vrot.lane.b32.xlu0 %v5812, 24
      %v5902 = vpop.permute.xlu0 %5901
      %5903 = vrot.lane.b32.xlu0 %v5813, 24
      %v5904 = vpop.permute.xlu0 %5903
      %5905 = vrot.lane.b32.xlu0 %v5814, 24
      %v5906 = vpop.permute.xlu0 %5905
      %5907 = vrot.lane.b32.xlu0 %v5815, 24
      %v5908 = vpop.permute.xlu0 %5907
      %5909 = vrot.lane.b32.xlu0 %v5816, 24
      %v5910 = vpop.permute.xlu0 %5909
      %5911 = vrot.lane.b32.xlu0 %v5817, 24
      %v5912 = vpop.permute.xlu0 %5911
      %5913 = vrot.lane.b32.xlu0 %v5818, 24
      %v5914 = vpop.permute.xlu0 %5913
      %5947 = vst.msk [vmem:[#allocation3] sm:$0xff] %vm978, %v5852
      %5948 = vst.msk [vmem:[#allocation3 + $0x8] sm:$0xff] %vm978, %v5854
      %5949 = vst.msk [vmem:[#allocation3 + $0x10] sm:$0xff] %vm978, %v5856
      %5950 = vst.msk [vmem:[#allocation3 + $0x18] sm:$0xff] %vm978, %v5858
      %5951 = vst.msk [vmem:[#allocation3 + $0x20] sm:$0xff] %vm978, %v5860
      %5952 = vst.msk [vmem:[#allocation3 + $0x28] sm:$0xff] %vm978, %v5862
      %5953 = vst.msk [vmem:[#allocation3 + $0x30] sm:$0xff] %vm978, %v5864
      %5954 = vst.msk [vmem:[#allocation3 + $0x38] sm:$0xff] %vm978, %v5866
      %5955 = vst.msk [vmem:[#allocation3 + $0x40] sm:$0xff] %vm978, %v5868
      %5956 = vst.msk [vmem:[#allocation3 + $0x48] sm:$0xff] %vm978, %v5870
      %5957 = vst.msk [vmem:[#allocation3 + $0x50] sm:$0xff] %vm978, %v5872
      %5958 = vst.msk [vmem:[#allocation3 + $0x58] sm:$0xff] %vm978, %v5874
      %5959 = vst.msk [vmem:[#allocation3 + $0x60] sm:$0xff] %vm978, %v5876
      %5960 = vst.msk [vmem:[#allocation3 + $0x68] sm:$0xff] %vm978, %v5878
      %5961 = vst.msk [vmem:[#allocation3 + $0x70] sm:$0xff] %vm978, %v5880
      %5962 = vst.msk [vmem:[#allocation3 + $0x78] sm:$0xff] %vm978, %v5882
      %5963 = vst.msk [vmem:[#allocation3 + $0x80] sm:$0xff] %vm978, %v5884
      %5964 = vst.msk [vmem:[#allocation3 + $0x88] sm:$0xff] %vm978, %v5886
      %5965 = vst.msk [vmem:[#allocation3 + $0x90] sm:$0xff] %vm978, %v5888
      %5966 = vst.msk [vmem:[#allocation3 + $0x98] sm:$0xff] %vm978, %v5890
      %5967 = vst.msk [vmem:[#allocation3 + $0xa0] sm:$0xff] %vm978, %v5892
      %5968 = vst.msk [vmem:[#allocation3 + $0xa8] sm:$0xff] %vm978, %v5894
      %5969 = vst.msk [vmem:[#allocation3 + $0xb0] sm:$0xff] %vm978, %v5896
      %5970 = vst.msk [vmem:[#allocation3 + $0xb8] sm:$0xff] %vm978, %v5898
      %5971 = vst.msk [vmem:[#allocation3 + $0xc0] sm:$0xff] %vm978, %v5900
      %5972 = vst.msk [vmem:[#allocation3 + $0xc8] sm:$0xff] %vm978, %v5902
      %5973 = vst.msk [vmem:[#allocation3 + $0xd0] sm:$0xff] %vm978, %v5904
      %5974 = vst.msk [vmem:[#allocation3 + $0xd8] sm:$0xff] %vm978, %v5906
      %5975 = vst.msk [vmem:[#allocation3 + $0xe0] sm:$0xff] %vm978, %v5908
      %5976 = vst.msk [vmem:[#allocation3 + $0xe8] sm:$0xff] %vm978, %v5910
      %5977 = vst.msk [vmem:[#allocation3 + $0xf0] sm:$0xff] %vm978, %v5912
      %5978 = vst.msk [vmem:[#allocation3 + $0xf8] sm:$0xff] %vm978, %v5914
      %v5979 = vld [vmem:[%s2338 + $0x2] sm:$0xff]
      %v5980 = vld [vmem:[%s2338 + $0xa] sm:$0xff]
      %v5981 = vld [vmem:[%s2338 + $0x1a] sm:$0xff]
      %v5982 = vld [vmem:[%s2338 + $0x22] sm:$0xff]
      %v5983 = vld [vmem:[%s2338 + $0x32] sm:$0xff]
      %v5984 = vld [vmem:[%s2338 + $0x3a] sm:$0xff]
      %v5985 = vld [vmem:[%s2338 + $0x4a] sm:$0xff]
      %v5986 = vld [vmem:[%s2338 + $0x52] sm:$0xff]
      %v5987 = vld [vmem:[%s2338 + $0x62] sm:$0xff]
      %v5988 = vld [vmem:[%s2338 + $0x6a] sm:$0xff]
      %v5989 = vld [vmem:[%s2338 + $0x7a] sm:$0xff]
      %v5990 = vld [vmem:[%s2338 + $0x82] sm:$0xff]
      %v5991 = vld [vmem:[%s2338 + $0x92] sm:$0xff]
      %v5992 = vld [vmem:[%s2338 + $0x9a] sm:$0xff]
      %v5993 = vld [vmem:[%s2338 + $0xaa] sm:$0xff]
      %v5994 = vld [vmem:[%s2338 + $0xb2] sm:$0xff]
      %v5995 = vld [vmem:[%s2338 + $0xc2] sm:$0xff]
      %v5996 = vld [vmem:[%s2338 + $0xca] sm:$0xff]
      %v5997 = vld [vmem:[%s2338 + $0xda] sm:$0xff]
      %v5998 = vld [vmem:[%s2338 + $0xe2] sm:$0xff]
      %v5999 = vld [vmem:[%s2338 + $0xf2] sm:$0xff]
      %v6000 = vld [vmem:[%s2338 + $0xfa] sm:$0xff]
      %v6001 = vld [vmem:[%s2338 + $0x10a] sm:$0xff]
      %v6002 = vld [vmem:[%s2338 + $0x112] sm:$0xff]
      %v6003 = vld [vmem:[%s2338 + $0x122] sm:$0xff]
      %v6004 = vld [vmem:[%s2338 + $0x12a] sm:$0xff]
      %v6005 = vld [vmem:[%s2338 + $0x13a] sm:$0xff]
      %v6006 = vld [vmem:[%s2338 + $0x142] sm:$0xff]
      %v6007 = vld [vmem:[%s2338 + $0x152] sm:$0xff]
      %v6008 = vld [vmem:[%s2338 + $0x15a] sm:$0xff]
      %v6009 = vld [vmem:[%s2338 + $0x16a] sm:$0xff]
      %v6010 = vld [vmem:[%s2338 + $0x172] sm:$0xff]
      %6043 = vrot.lane.b32.xlu0 %v5979, 32
      %v6044 = vpop.permute.xlu0 %6043
      %6045 = vrot.lane.b32.xlu0 %v5980, 32
      %v6046 = vpop.permute.xlu0 %6045
      %6047 = vrot.lane.b32.xlu0 %v5981, 32
      %v6048 = vpop.permute.xlu0 %6047
      %6049 = vrot.lane.b32.xlu0 %v5982, 32
      %v6050 = vpop.permute.xlu0 %6049
      %6051 = vrot.lane.b32.xlu0 %v5983, 32
      %v6052 = vpop.permute.xlu0 %6051
      %6053 = vrot.lane.b32.xlu0 %v5984, 32
      %v6054 = vpop.permute.xlu0 %6053
      %6055 = vrot.lane.b32.xlu0 %v5985, 32
      %v6056 = vpop.permute.xlu0 %6055
      %6057 = vrot.lane.b32.xlu0 %v5986, 32
      %v6058 = vpop.permute.xlu0 %6057
      %6059 = vrot.lane.b32.xlu0 %v5987, 32
      %v6060 = vpop.permute.xlu0 %6059
      %6061 = vrot.lane.b32.xlu0 %v5988, 32
      %v6062 = vpop.permute.xlu0 %6061
      %6063 = vrot.lane.b32.xlu0 %v5989, 32
      %v6064 = vpop.permute.xlu0 %6063
      %6065 = vrot.lane.b32.xlu0 %v5990, 32
      %v6066 = vpop.permute.xlu0 %6065
      %6067 = vrot.lane.b32.xlu0 %v5991, 32
      %v6068 = vpop.permute.xlu0 %6067
      %6069 = vrot.lane.b32.xlu0 %v5992, 32
      %v6070 = vpop.permute.xlu0 %6069
      %6071 = vrot.lane.b32.xlu0 %v5993, 32
      %v6072 = vpop.permute.xlu0 %6071
      %6073 = vrot.lane.b32.xlu0 %v5994, 32
      %v6074 = vpop.permute.xlu0 %6073
      %6075 = vrot.lane.b32.xlu0 %v5995, 32
      %v6076 = vpop.permute.xlu0 %6075
      %6077 = vrot.lane.b32.xlu0 %v5996, 32
      %v6078 = vpop.permute.xlu0 %6077
      %6079 = vrot.lane.b32.xlu0 %v5997, 32
      %v6080 = vpop.permute.xlu0 %6079
      %6081 = vrot.lane.b32.xlu0 %v5998, 32
      %v6082 = vpop.permute.xlu0 %6081
      %6083 = vrot.lane.b32.xlu0 %v5999, 32
      %v6084 = vpop.permute.xlu0 %6083
      %6085 = vrot.lane.b32.xlu0 %v6000, 32
      %v6086 = vpop.permute.xlu0 %6085
      %6087 = vrot.lane.b32.xlu0 %v6001, 32
      %v6088 = vpop.permute.xlu0 %6087
      %6089 = vrot.lane.b32.xlu0 %v6002, 32
      %v6090 = vpop.permute.xlu0 %6089
      %6091 = vrot.lane.b32.xlu0 %v6003, 32
      %v6092 = vpop.permute.xlu0 %6091
      %6093 = vrot.lane.b32.xlu0 %v6004, 32
      %v6094 = vpop.permute.xlu0 %6093
      %6095 = vrot.lane.b32.xlu0 %v6005, 32
      %v6096 = vpop.permute.xlu0 %6095
      %6097 = vrot.lane.b32.xlu0 %v6006, 32
      %v6098 = vpop.permute.xlu0 %6097
      %6099 = vrot.lane.b32.xlu0 %v6007, 32
      %v6100 = vpop.permute.xlu0 %6099
      %6101 = vrot.lane.b32.xlu0 %v6008, 32
      %v6102 = vpop.permute.xlu0 %6101
      %6103 = vrot.lane.b32.xlu0 %v6009, 32
      %v6104 = vpop.permute.xlu0 %6103
      %6105 = vrot.lane.b32.xlu0 %v6010, 32
      %v6106 = vpop.permute.xlu0 %6105
      %6139 = vst.msk [vmem:[#allocation3] sm:$0xff] %vm1171, %v6044
      %6140 = vst.msk [vmem:[#allocation3 + $0x8] sm:$0xff] %vm1171, %v6046
      %6141 = vst.msk [vmem:[#allocation3 + $0x10] sm:$0xff] %vm1171, %v6048
      %6142 = vst.msk [vmem:[#allocation3 + $0x18] sm:$0xff] %vm1171, %v6050
      %6143 = vst.msk [vmem:[#allocation3 + $0x20] sm:$0xff] %vm1171, %v6052
      %6144 = vst.msk [vmem:[#allocation3 + $0x28] sm:$0xff] %vm1171, %v6054
      %6145 = vst.msk [vmem:[#allocation3 + $0x30] sm:$0xff] %vm1171, %v6056
      %6146 = vst.msk [vmem:[#allocation3 + $0x38] sm:$0xff] %vm1171, %v6058
      %6147 = vst.msk [vmem:[#allocation3 + $0x40] sm:$0xff] %vm1171, %v6060
      %6148 = vst.msk [vmem:[#allocation3 + $0x48] sm:$0xff] %vm1171, %v6062
      %6149 = vst.msk [vmem:[#allocation3 + $0x50] sm:$0xff] %vm1171, %v6064
      %6150 = vst.msk [vmem:[#allocation3 + $0x58] sm:$0xff] %vm1171, %v6066
      %6151 = vst.msk [vmem:[#allocation3 + $0x60] sm:$0xff] %vm1171, %v6068
      %6152 = vst.msk [vmem:[#allocation3 + $0x68] sm:$0xff] %vm1171, %v6070
      %6153 = vst.msk [vmem:[#allocation3 + $0x70] sm:$0xff] %vm1171, %v6072
      %6154 = vst.msk [vmem:[#allocation3 + $0x78] sm:$0xff] %vm1171, %v6074
      %6155 = vst.msk [vmem:[#allocation3 + $0x80] sm:$0xff] %vm1171, %v6076
      %6156 = vst.msk [vmem:[#allocation3 + $0x88] sm:$0xff] %vm1171, %v6078
      %6157 = vst.msk [vmem:[#allocation3 + $0x90] sm:$0xff] %vm1171, %v6080
      %6158 = vst.msk [vmem:[#allocation3 + $0x98] sm:$0xff] %vm1171, %v6082
      %6159 = vst.msk [vmem:[#allocation3 + $0xa0] sm:$0xff] %vm1171, %v6084
      %6160 = vst.msk [vmem:[#allocation3 + $0xa8] sm:$0xff] %vm1171, %v6086
      %6161 = vst.msk [vmem:[#allocation3 + $0xb0] sm:$0xff] %vm1171, %v6088
      %6162 = vst.msk [vmem:[#allocation3 + $0xb8] sm:$0xff] %vm1171, %v6090
      %6163 = vst.msk [vmem:[#allocation3 + $0xc0] sm:$0xff] %vm1171, %v6092
      %6164 = vst.msk [vmem:[#allocation3 + $0xc8] sm:$0xff] %vm1171, %v6094
      %6165 = vst.msk [vmem:[#allocation3 + $0xd0] sm:$0xff] %vm1171, %v6096
      %6166 = vst.msk [vmem:[#allocation3 + $0xd8] sm:$0xff] %vm1171, %v6098
      %6167 = vst.msk [vmem:[#allocation3 + $0xe0] sm:$0xff] %vm1171, %v6100
      %6168 = vst.msk [vmem:[#allocation3 + $0xe8] sm:$0xff] %vm1171, %v6102
      %6169 = vst.msk [vmem:[#allocation3 + $0xf0] sm:$0xff] %vm1171, %v6104
      %6170 = vst.msk [vmem:[#allocation3 + $0xf8] sm:$0xff] %vm1171, %v6106
      %v6171 = vld [vmem:[%s2338 + $0x4] sm:$0xff]
      %v6172 = vld [vmem:[%s2338 + $0xc] sm:$0xff]
      %v6173 = vld [vmem:[%s2338 + $0x1c] sm:$0xff]
      %v6174 = vld [vmem:[%s2338 + $0x24] sm:$0xff]
      %v6175 = vld [vmem:[%s2338 + $0x34] sm:$0xff]
      %v6176 = vld [vmem:[%s2338 + $0x3c] sm:$0xff]
      %v6177 = vld [vmem:[%s2338 + $0x4c] sm:$0xff]
      %v6178 = vld [vmem:[%s2338 + $0x54] sm:$0xff]
      %v6179 = vld [vmem:[%s2338 + $0x64] sm:$0xff]
      %v6180 = vld [vmem:[%s2338 + $0x6c] sm:$0xff]
      %v6181 = vld [vmem:[%s2338 + $0x7c] sm:$0xff]
      %v6182 = vld [vmem:[%s2338 + $0x84] sm:$0xff]
      %v6183 = vld [vmem:[%s2338 + $0x94] sm:$0xff]
      %v6184 = vld [vmem:[%s2338 + $0x9c] sm:$0xff]
      %v6185 = vld [vmem:[%s2338 + $0xac] sm:$0xff]
      %v6186 = vld [vmem:[%s2338 + $0xb4] sm:$0xff]
      %v6187 = vld [vmem:[%s2338 + $0xc4] sm:$0xff]
      %v6188 = vld [vmem:[%s2338 + $0xcc] sm:$0xff]
      %v6189 = vld [vmem:[%s2338 + $0xdc] sm:$0xff]
      %v6190 = vld [vmem:[%s2338 + $0xe4] sm:$0xff]
      %v6191 = vld [vmem:[%s2338 + $0xf4] sm:$0xff]
      %v6192 = vld [vmem:[%s2338 + $0xfc] sm:$0xff]
      %v6193 = vld [vmem:[%s2338 + $0x10c] sm:$0xff]
      %v6194 = vld [vmem:[%s2338 + $0x114] sm:$0xff]
      %v6195 = vld [vmem:[%s2338 + $0x124] sm:$0xff]
      %v6196 = vld [vmem:[%s2338 + $0x12c] sm:$0xff]
      %v6197 = vld [vmem:[%s2338 + $0x13c] sm:$0xff]
      %v6198 = vld [vmem:[%s2338 + $0x144] sm:$0xff]
      %v6199 = vld [vmem:[%s2338 + $0x154] sm:$0xff]
      %v6200 = vld [vmem:[%s2338 + $0x15c] sm:$0xff]
      %v6201 = vld [vmem:[%s2338 + $0x16c] sm:$0xff]
      %v6202 = vld [vmem:[%s2338 + $0x174] sm:$0xff]
      %6235 = vrot.lane.b32.xlu0 %v6171, 40
      %v6236 = vpop.permute.xlu0 %6235
      %6237 = vrot.lane.b32.xlu0 %v6172, 40
      %v6238 = vpop.permute.xlu0 %6237
      %6239 = vrot.lane.b32.xlu0 %v6173, 40
      %v6240 = vpop.permute.xlu0 %6239
      %6241 = vrot.lane.b32.xlu0 %v6174, 40
      %v6242 = vpop.permute.xlu0 %6241
      %6243 = vrot.lane.b32.xlu0 %v6175, 40
      %v6244 = vpop.permute.xlu0 %6243
      %6245 = vrot.lane.b32.xlu0 %v6176, 40
      %v6246 = vpop.permute.xlu0 %6245
      %6247 = vrot.lane.b32.xlu0 %v6177, 40
      %v6248 = vpop.permute.xlu0 %6247
      %6249 = vrot.lane.b32.xlu0 %v6178, 40
      %v6250 = vpop.permute.xlu0 %6249
      %6251 = vrot.lane.b32.xlu0 %v6179, 40
      %v6252 = vpop.permute.xlu0 %6251
      %6253 = vrot.lane.b32.xlu0 %v6180, 40
      %v6254 = vpop.permute.xlu0 %6253
      %6255 = vrot.lane.b32.xlu0 %v6181, 40
      %v6256 = vpop.permute.xlu0 %6255
      %6257 = vrot.lane.b32.xlu0 %v6182, 40
      %v6258 = vpop.permute.xlu0 %6257
      %6259 = vrot.lane.b32.xlu0 %v6183, 40
      %v6260 = vpop.permute.xlu0 %6259
      %6261 = vrot.lane.b32.xlu0 %v6184, 40
      %v6262 = vpop.permute.xlu0 %6261
      %6263 = vrot.lane.b32.xlu0 %v6185, 40
      %v6264 = vpop.permute.xlu0 %6263
      %6265 = vrot.lane.b32.xlu0 %v6186, 40
      %v6266 = vpop.permute.xlu0 %6265
      %6267 = vrot.lane.b32.xlu0 %v6187, 40
      %v6268 = vpop.permute.xlu0 %6267
      %6269 = vrot.lane.b32.xlu0 %v6188, 40
      %v6270 = vpop.permute.xlu0 %6269
      %6271 = vrot.lane.b32.xlu0 %v6189, 40
      %v6272 = vpop.permute.xlu0 %6271
      %6273 = vrot.lane.b32.xlu0 %v6190, 40
      %v6274 = vpop.permute.xlu0 %6273
      %6275 = vrot.lane.b32.xlu0 %v6191, 40
      %v6276 = vpop.permute.xlu0 %6275
      %6277 = vrot.lane.b32.xlu0 %v6192, 40
      %v6278 = vpop.permute.xlu0 %6277
      %6279 = vrot.lane.b32.xlu0 %v6193, 40
      %v6280 = vpop.permute.xlu0 %6279
      %6281 = vrot.lane.b32.xlu0 %v6194, 40
      %v6282 = vpop.permute.xlu0 %6281
      %6283 = vrot.lane.b32.xlu0 %v6195, 40
      %v6284 = vpop.permute.xlu0 %6283
      %6285 = vrot.lane.b32.xlu0 %v6196, 40
      %v6286 = vpop.permute.xlu0 %6285
      %6287 = vrot.lane.b32.xlu0 %v6197, 40
      %v6288 = vpop.permute.xlu0 %6287
      %6289 = vrot.lane.b32.xlu0 %v6198, 40
      %v6290 = vpop.permute.xlu0 %6289
      %6291 = vrot.lane.b32.xlu0 %v6199, 40
      %v6292 = vpop.permute.xlu0 %6291
      %6293 = vrot.lane.b32.xlu0 %v6200, 40
      %v6294 = vpop.permute.xlu0 %6293
      %6295 = vrot.lane.b32.xlu0 %v6201, 40
      %v6296 = vpop.permute.xlu0 %6295
      %6297 = vrot.lane.b32.xlu0 %v6202, 40
      %v6298 = vpop.permute.xlu0 %6297
      %6331 = vst.msk [vmem:[#allocation3] sm:$0xff] %vm1364, %v6236
      %6332 = vst.msk [vmem:[#allocation3 + $0x8] sm:$0xff] %vm1364, %v6238
      %6333 = vst.msk [vmem:[#allocation3 + $0x10] sm:$0xff] %vm1364, %v6240
      %6334 = vst.msk [vmem:[#allocation3 + $0x18] sm:$0xff] %vm1364, %v6242
      %6335 = vst.msk [vmem:[#allocation3 + $0x20] sm:$0xff] %vm1364, %v6244
      %6336 = vst.msk [vmem:[#allocation3 + $0x28] sm:$0xff] %vm1364, %v6246
      %6337 = vst.msk [vmem:[#allocation3 + $0x30] sm:$0xff] %vm1364, %v6248
      %6338 = vst.msk [vmem:[#allocation3 + $0x38] sm:$0xff] %vm1364, %v6250
      %6339 = vst.msk [vmem:[#allocation3 + $0x40] sm:$0xff] %vm1364, %v6252
      %6340 = vst.msk [vmem:[#allocation3 + $0x48] sm:$0xff] %vm1364, %v6254
      %6341 = vst.msk [vmem:[#allocation3 + $0x50] sm:$0xff] %vm1364, %v6256
      %6342 = vst.msk [vmem:[#allocation3 + $0x58] sm:$0xff] %vm1364, %v6258
      %6343 = vst.msk [vmem:[#allocation3 + $0x60] sm:$0xff] %vm1364, %v6260
      %6344 = vst.msk [vmem:[#allocation3 + $0x68] sm:$0xff] %vm1364, %v6262
      %6345 = vst.msk [vmem:[#allocation3 + $0x70] sm:$0xff] %vm1364, %v6264
      %6346 = vst.msk [vmem:[#allocation3 + $0x78] sm:$0xff] %vm1364, %v6266
      %6347 = vst.msk [vmem:[#allocation3 + $0x80] sm:$0xff] %vm1364, %v6268
      %6348 = vst.msk [vmem:[#allocation3 + $0x88] sm:$0xff] %vm1364, %v6270
      %6349 = vst.msk [vmem:[#allocation3 + $0x90] sm:$0xff] %vm1364, %v6272
      %6350 = vst.msk [vmem:[#allocation3 + $0x98] sm:$0xff] %vm1364, %v6274
      %6351 = vst.msk [vmem:[#allocation3 + $0xa0] sm:$0xff] %vm1364, %v6276
      %6352 = vst.msk [vmem:[#allocation3 + $0xa8] sm:$0xff] %vm1364, %v6278
      %6353 = vst.msk [vmem:[#allocation3 + $0xb0] sm:$0xff] %vm1364, %v6280
      %6354 = vst.msk [vmem:[#allocation3 + $0xb8] sm:$0xff] %vm1364, %v6282
      %6355 = vst.msk [vmem:[#allocation3 + $0xc0] sm:$0xff] %vm1364, %v6284
      %6356 = vst.msk [vmem:[#allocation3 + $0xc8] sm:$0xff] %vm1364, %v6286
      %6357 = vst.msk [vmem:[#allocation3 + $0xd0] sm:$0xff] %vm1364, %v6288
      %6358 = vst.msk [vmem:[#allocation3 + $0xd8] sm:$0xff] %vm1364, %v6290
      %6359 = vst.msk [vmem:[#allocation3 + $0xe0] sm:$0xff] %vm1364, %v6292
      %6360 = vst.msk [vmem:[#allocation3 + $0xe8] sm:$0xff] %vm1364, %v6294
      %6361 = vst.msk [vmem:[#allocation3 + $0xf0] sm:$0xff] %vm1364, %v6296
      %6362 = vst.msk [vmem:[#allocation3 + $0xf8] sm:$0xff] %vm1364, %v6298
      %v6363 = vld [vmem:[%s3428] sm:$0xff]
      %v6364 = vld [vmem:[%s3428 + $0x8] sm:$0xff]
      %v6365 = vld [vmem:[%s3428 + $0x18] sm:$0xff]
      %v6366 = vld [vmem:[%s3428 + $0x20] sm:$0xff]
      %v6367 = vld [vmem:[%s3428 + $0x30] sm:$0xff]
      %v6368 = vld [vmem:[%s3428 + $0x38] sm:$0xff]
      %v6369 = vld [vmem:[%s3428 + $0x48] sm:$0xff]
      %v6370 = vld [vmem:[%s3428 + $0x50] sm:$0xff]
      %v6371 = vld [vmem:[%s3428 + $0x60] sm:$0xff]
      %v6372 = vld [vmem:[%s3428 + $0x68] sm:$0xff]
      %v6373 = vld [vmem:[%s3428 + $0x78] sm:$0xff]
      %v6374 = vld [vmem:[%s3428 + $0x80] sm:$0xff]
      %v6375 = vld [vmem:[%s3428 + $0x90] sm:$0xff]
      %v6376 = vld [vmem:[%s3428 + $0x98] sm:$0xff]
      %v6377 = vld [vmem:[%s3428 + $0xa8] sm:$0xff]
      %v6378 = vld [vmem:[%s3428 + $0xb0] sm:$0xff]
      %v6379 = vld [vmem:[%s3428 + $0xc0] sm:$0xff]
      %v6380 = vld [vmem:[%s3428 + $0xc8] sm:$0xff]
      %v6381 = vld [vmem:[%s3428 + $0xd8] sm:$0xff]
      %v6382 = vld [vmem:[%s3428 + $0xe0] sm:$0xff]
      %v6383 = vld [vmem:[%s3428 + $0xf0] sm:$0xff]
      %v6384 = vld [vmem:[%s3428 + $0xf8] sm:$0xff]
      %v6385 = vld [vmem:[%s3428 + $0x108] sm:$0xff]
      %v6386 = vld [vmem:[%s3428 + $0x110] sm:$0xff]
      %v6387 = vld [vmem:[%s3428 + $0x120] sm:$0xff]
      %v6388 = vld [vmem:[%s3428 + $0x128] sm:$0xff]
      %v6389 = vld [vmem:[%s3428 + $0x138] sm:$0xff]
      %v6390 = vld [vmem:[%s3428 + $0x140] sm:$0xff]
      %v6391 = vld [vmem:[%s3428 + $0x150] sm:$0xff]
      %v6392 = vld [vmem:[%s3428 + $0x158] sm:$0xff]
      %v6393 = vld [vmem:[%s3428 + $0x168] sm:$0xff]
      %v6394 = vld [vmem:[%s3428 + $0x170] sm:$0xff]
      %6427 = vrot.lane.b32.xlu0 %v6363, 48
      %v6428 = vpop.permute.xlu0 %6427
      %6429 = vrot.lane.b32.xlu0 %v6364, 48
      %v6430 = vpop.permute.xlu0 %6429
      %6431 = vrot.lane.b32.xlu0 %v6365, 48
      %v6432 = vpop.permute.xlu0 %6431
      %6433 = vrot.lane.b32.xlu0 %v6366, 48
      %v6434 = vpop.permute.xlu0 %6433
      %6435 = vrot.lane.b32.xlu0 %v6367, 48
      %v6436 = vpop.permute.xlu0 %6435
      %6437 = vrot.lane.b32.xlu0 %v6368, 48
      %v6438 = vpop.permute.xlu0 %6437
      %6439 = vrot.lane.b32.xlu0 %v6369, 48
      %v6440 = vpop.permute.xlu0 %6439
      %6441 = vrot.lane.b32.xlu0 %v6370, 48
      %v6442 = vpop.permute.xlu0 %6441
      %6443 = vrot.lane.b32.xlu0 %v6371, 48
      %v6444 = vpop.permute.xlu0 %6443
      %6445 = vrot.lane.b32.xlu0 %v6372, 48
      %v6446 = vpop.permute.xlu0 %6445
      %6447 = vrot.lane.b32.xlu0 %v6373, 48
      %v6448 = vpop.permute.xlu0 %6447
      %6449 = vrot.lane.b32.xlu0 %v6374, 48
      %v6450 = vpop.permute.xlu0 %6449
      %6451 = vrot.lane.b32.xlu0 %v6375, 48
      %v6452 = vpop.permute.xlu0 %6451
      %6453 = vrot.lane.b32.xlu0 %v6376, 48
      %v6454 = vpop.permute.xlu0 %6453
      %6455 = vrot.lane.b32.xlu0 %v6377, 48
      %v6456 = vpop.permute.xlu0 %6455
      %6457 = vrot.lane.b32.xlu0 %v6378, 48
      %v6458 = vpop.permute.xlu0 %6457
      %6459 = vrot.lane.b32.xlu0 %v6379, 48
      %v6460 = vpop.permute.xlu0 %6459
      %6461 = vrot.lane.b32.xlu0 %v6380, 48
      %v6462 = vpop.permute.xlu0 %6461
      %6463 = vrot.lane.b32.xlu0 %v6381, 48
      %v6464 = vpop.permute.xlu0 %6463
      %6465 = vrot.lane.b32.xlu0 %v6382, 48
      %v6466 = vpop.permute.xlu0 %6465
      %6467 = vrot.lane.b32.xlu0 %v6383, 48
      %v6468 = vpop.permute.xlu0 %6467
      %6469 = vrot.lane.b32.xlu0 %v6384, 48
      %v6470 = vpop.permute.xlu0 %6469
      %6471 = vrot.lane.b32.xlu0 %v6385, 48
      %v6472 = vpop.permute.xlu0 %6471
      %6473 = vrot.lane.b32.xlu0 %v6386, 48
      %v6474 = vpop.permute.xlu0 %6473
      %6475 = vrot.lane.b32.xlu0 %v6387, 48
      %v6476 = vpop.permute.xlu0 %6475
      %6477 = vrot.lane.b32.xlu0 %v6388, 48
      %v6478 = vpop.permute.xlu0 %6477
      %6479 = vrot.lane.b32.xlu0 %v6389, 48
      %v6480 = vpop.permute.xlu0 %6479
      %6481 = vrot.lane.b32.xlu0 %v6390, 48
      %v6482 = vpop.permute.xlu0 %6481
      %6483 = vrot.lane.b32.xlu0 %v6391, 48
      %v6484 = vpop.permute.xlu0 %6483
      %6485 = vrot.lane.b32.xlu0 %v6392, 48
      %v6486 = vpop.permute.xlu0 %6485
      %6487 = vrot.lane.b32.xlu0 %v6393, 48
      %v6488 = vpop.permute.xlu0 %6487
      %6489 = vrot.lane.b32.xlu0 %v6394, 48
      %v6490 = vpop.permute.xlu0 %6489
      %6523 = vst.msk [vmem:[#allocation3] sm:$0xff] %vm1558, %v6428
      %6524 = vst.msk [vmem:[#allocation3 + $0x8] sm:$0xff] %vm1558, %v6430
      %6525 = vst.msk [vmem:[#allocation3 + $0x10] sm:$0xff] %vm1558, %v6432
      %6526 = vst.msk [vmem:[#allocation3 + $0x18] sm:$0xff] %vm1558, %v6434
      %6527 = vst.msk [vmem:[#allocation3 + $0x20] sm:$0xff] %vm1558, %v6436
      %6528 = vst.msk [vmem:[#allocation3 + $0x28] sm:$0xff] %vm1558, %v6438
      %6529 = vst.msk [vmem:[#allocation3 + $0x30] sm:$0xff] %vm1558, %v6440
      %6530 = vst.msk [vmem:[#allocation3 + $0x38] sm:$0xff] %vm1558, %v6442
      %6531 = vst.msk [vmem:[#allocation3 + $0x40] sm:$0xff] %vm1558, %v6444
      %6532 = vst.msk [vmem:[#allocation3 + $0x48] sm:$0xff] %vm1558, %v6446
      %6533 = vst.msk [vmem:[#allocation3 + $0x50] sm:$0xff] %vm1558, %v6448
      %6534 = vst.msk [vmem:[#allocation3 + $0x58] sm:$0xff] %vm1558, %v6450
      %6535 = vst.msk [vmem:[#allocation3 + $0x60] sm:$0xff] %vm1558, %v6452
      %6536 = vst.msk [vmem:[#allocation3 + $0x68] sm:$0xff] %vm1558, %v6454
      %6537 = vst.msk [vmem:[#allocation3 + $0x70] sm:$0xff] %vm1558, %v6456
      %6538 = vst.msk [vmem:[#allocation3 + $0x78] sm:$0xff] %vm1558, %v6458
      %6539 = vst.msk [vmem:[#allocation3 + $0x80] sm:$0xff] %vm1558, %v6460
      %6540 = vst.msk [vmem:[#allocation3 + $0x88] sm:$0xff] %vm1558, %v6462
      %6541 = vst.msk [vmem:[#allocation3 + $0x90] sm:$0xff] %vm1558, %v6464
      %6542 = vst.msk [vmem:[#allocation3 + $0x98] sm:$0xff] %vm1558, %v6466
      %6543 = vst.msk [vmem:[#allocation3 + $0xa0] sm:$0xff] %vm1558, %v6468
      %6544 = vst.msk [vmem:[#allocation3 + $0xa8] sm:$0xff] %vm1558, %v6470
      %6545 = vst.msk [vmem:[#allocation3 + $0xb0] sm:$0xff] %vm1558, %v6472
      %6546 = vst.msk [vmem:[#allocation3 + $0xb8] sm:$0xff] %vm1558, %v6474
      %6547 = vst.msk [vmem:[#allocation3 + $0xc0] sm:$0xff] %vm1558, %v6476
      %6548 = vst.msk [vmem:[#allocation3 + $0xc8] sm:$0xff] %vm1558, %v6478
      %6549 = vst.msk [vmem:[#allocation3 + $0xd0] sm:$0xff] %vm1558, %v6480
      %6550 = vst.msk [vmem:[#allocation3 + $0xd8] sm:$0xff] %vm1558, %v6482
      %6551 = vst.msk [vmem:[#allocation3 + $0xe0] sm:$0xff] %vm1558, %v6484
      %6552 = vst.msk [vmem:[#allocation3 + $0xe8] sm:$0xff] %vm1558, %v6486
      %6553 = vst.msk [vmem:[#allocation3 + $0xf0] sm:$0xff] %vm1558, %v6488
      %6554 = vst.msk [vmem:[#allocation3 + $0xf8] sm:$0xff] %vm1558, %v6490
      %v6555 = vld [vmem:[%s3428 + $0x2] sm:$0xff]
      %v6556 = vld [vmem:[%s3428 + $0xa] sm:$0xff]
      %v6557 = vld [vmem:[%s3428 + $0x1a] sm:$0xff]
      %v6558 = vld [vmem:[%s3428 + $0x22] sm:$0xff]
      %v6559 = vld [vmem:[%s3428 + $0x32] sm:$0xff]
      %v6560 = vld [vmem:[%s3428 + $0x3a] sm:$0xff]
      %v6561 = vld [vmem:[%s3428 + $0x4a] sm:$0xff]
      %v6562 = vld [vmem:[%s3428 + $0x52] sm:$0xff]
      %v6563 = vld [vmem:[%s3428 + $0x62] sm:$0xff]
      %v6564 = vld [vmem:[%s3428 + $0x6a] sm:$0xff]
      %v6565 = vld [vmem:[%s3428 + $0x7a] sm:$0xff]
      %v6566 = vld [vmem:[%s3428 + $0x82] sm:$0xff]
      %v6567 = vld [vmem:[%s3428 + $0x92] sm:$0xff]
      %v6568 = vld [vmem:[%s3428 + $0x9a] sm:$0xff]
      %v6569 = vld [vmem:[%s3428 + $0xaa] sm:$0xff]
      %v6570 = vld [vmem:[%s3428 + $0xb2] sm:$0xff]
      %v6571 = vld [vmem:[%s3428 + $0xc2] sm:$0xff]
      %v6572 = vld [vmem:[%s3428 + $0xca] sm:$0xff]
      %v6573 = vld [vmem:[%s3428 + $0xda] sm:$0xff]
      %v6574 = vld [vmem:[%s3428 + $0xe2] sm:$0xff]
      %v6575 = vld [vmem:[%s3428 + $0xf2] sm:$0xff]
      %v6576 = vld [vmem:[%s3428 + $0xfa] sm:$0xff]
      %v6577 = vld [vmem:[%s3428 + $0x10a] sm:$0xff]
      %v6578 = vld [vmem:[%s3428 + $0x112] sm:$0xff]
      %v6579 = vld [vmem:[%s3428 + $0x122] sm:$0xff]
      %v6580 = vld [vmem:[%s3428 + $0x12a] sm:$0xff]
      %v6581 = vld [vmem:[%s3428 + $0x13a] sm:$0xff]
      %v6582 = vld [vmem:[%s3428 + $0x142] sm:$0xff]
      %v6583 = vld [vmem:[%s3428 + $0x152] sm:$0xff]
      %v6584 = vld [vmem:[%s3428 + $0x15a] sm:$0xff]
      %v6585 = vld [vmem:[%s3428 + $0x16a] sm:$0xff]
      %v6586 = vld [vmem:[%s3428 + $0x172] sm:$0xff]
      %6619 = vrot.lane.b32.xlu0 %v6555, 56
      %v6620 = vpop.permute.xlu0 %6619
      %6621 = vrot.lane.b32.xlu0 %v6556, 56
      %v6622 = vpop.permute.xlu0 %6621
      %6623 = vrot.lane.b32.xlu0 %v6557, 56
      %v6624 = vpop.permute.xlu0 %6623
      %6625 = vrot.lane.b32.xlu0 %v6558, 56
      %v6626 = vpop.permute.xlu0 %6625
      %6627 = vrot.lane.b32.xlu0 %v6559, 56
      %v6628 = vpop.permute.xlu0 %6627
      %6629 = vrot.lane.b32.xlu0 %v6560, 56
      %v6630 = vpop.permute.xlu0 %6629
      %6631 = vrot.lane.b32.xlu0 %v6561, 56
      %v6632 = vpop.permute.xlu0 %6631
      %6633 = vrot.lane.b32.xlu0 %v6562, 56
      %v6634 = vpop.permute.xlu0 %6633
      %6635 = vrot.lane.b32.xlu0 %v6563, 56
      %v6636 = vpop.permute.xlu0 %6635
      %6637 = vrot.lane.b32.xlu0 %v6564, 56
      %v6638 = vpop.permute.xlu0 %6637
      %6639 = vrot.lane.b32.xlu0 %v6565, 56
      %v6640 = vpop.permute.xlu0 %6639
      %6641 = vrot.lane.b32.xlu0 %v6566, 56
      %v6642 = vpop.permute.xlu0 %6641
      %6643 = vrot.lane.b32.xlu0 %v6567, 56
      %v6644 = vpop.permute.xlu0 %6643
      %6645 = vrot.lane.b32.xlu0 %v6568, 56
      %v6646 = vpop.permute.xlu0 %6645
      %6647 = vrot.lane.b32.xlu0 %v6569, 56
      %v6648 = vpop.permute.xlu0 %6647
      %6649 = vrot.lane.b32.xlu0 %v6570, 56
      %v6650 = vpop.permute.xlu0 %6649
      %6651 = vrot.lane.b32.xlu0 %v6571, 56
      %v6652 = vpop.permute.xlu0 %6651
      %6653 = vrot.lane.b32.xlu0 %v6572, 56
      %v6654 = vpop.permute.xlu0 %6653
      %6655 = vrot.lane.b32.xlu0 %v6573, 56
      %v6656 = vpop.permute.xlu0 %6655
      %6657 = vrot.lane.b32.xlu0 %v6574, 56
      %v6658 = vpop.permute.xlu0 %6657
      %6659 = vrot.lane.b32.xlu0 %v6575, 56
      %v6660 = vpop.permute.xlu0 %6659
      %6661 = vrot.lane.b32.xlu0 %v6576, 56
      %v6662 = vpop.permute.xlu0 %6661
      %6663 = vrot.lane.b32.xlu0 %v6577, 56
      %v6664 = vpop.permute.xlu0 %6663
      %6665 = vrot.lane.b32.xlu0 %v6578, 56
      %v6666 = vpop.permute.xlu0 %6665
      %6667 = vrot.lane.b32.xlu0 %v6579, 56
      %v6668 = vpop.permute.xlu0 %6667
      %6669 = vrot.lane.b32.xlu0 %v6580, 56
      %v6670 = vpop.permute.xlu0 %6669
      %6671 = vrot.lane.b32.xlu0 %v6581, 56
      %v6672 = vpop.permute.xlu0 %6671
      %6673 = vrot.lane.b32.xlu0 %v6582, 56
      %v6674 = vpop.permute.xlu0 %6673
      %6675 = vrot.lane.b32.xlu0 %v6583, 56
      %v6676 = vpop.permute.xlu0 %6675
      %6677 = vrot.lane.b32.xlu0 %v6584, 56
      %v6678 = vpop.permute.xlu0 %6677
      %6679 = vrot.lane.b32.xlu0 %v6585, 56
      %v6680 = vpop.permute.xlu0 %6679
      %6681 = vrot.lane.b32.xlu0 %v6586, 56
      %v6682 = vpop.permute.xlu0 %6681
      %6715 = vst.msk [vmem:[#allocation3] sm:$0xff] %vm1751, %v6620
      %6716 = vst.msk [vmem:[#allocation3 + $0x8] sm:$0xff] %vm1751, %v6622
      %6717 = vst.msk [vmem:[#allocation3 + $0x10] sm:$0xff] %vm1751, %v6624
      %6718 = vst.msk [vmem:[#allocation3 + $0x18] sm:$0xff] %vm1751, %v6626
      %6719 = vst.msk [vmem:[#allocation3 + $0x20] sm:$0xff] %vm1751, %v6628
      %6720 = vst.msk [vmem:[#allocation3 + $0x28] sm:$0xff] %vm1751, %v6630
      %6721 = vst.msk [vmem:[#allocation3 + $0x30] sm:$0xff] %vm1751, %v6632
      %6722 = vst.msk [vmem:[#allocation3 + $0x38] sm:$0xff] %vm1751, %v6634
      %6723 = vst.msk [vmem:[#allocation3 + $0x40] sm:$0xff] %vm1751, %v6636
      %6724 = vst.msk [vmem:[#allocation3 + $0x48] sm:$0xff] %vm1751, %v6638
      %6725 = vst.msk [vmem:[#allocation3 + $0x50] sm:$0xff] %vm1751, %v6640
      %6726 = vst.msk [vmem:[#allocation3 + $0x58] sm:$0xff] %vm1751, %v6642
      %6727 = vst.msk [vmem:[#allocation3 + $0x60] sm:$0xff] %vm1751, %v6644
      %6728 = vst.msk [vmem:[#allocation3 + $0x68] sm:$0xff] %vm1751, %v6646
      %6729 = vst.msk [vmem:[#allocation3 + $0x70] sm:$0xff] %vm1751, %v6648
      %6730 = vst.msk [vmem:[#allocation3 + $0x78] sm:$0xff] %vm1751, %v6650
      %6731 = vst.msk [vmem:[#allocation3 + $0x80] sm:$0xff] %vm1751, %v6652
      %6732 = vst.msk [vmem:[#allocation3 + $0x88] sm:$0xff] %vm1751, %v6654
      %6733 = vst.msk [vmem:[#allocation3 + $0x90] sm:$0xff] %vm1751, %v6656
      %6734 = vst.msk [vmem:[#allocation3 + $0x98] sm:$0xff] %vm1751, %v6658
      %6735 = vst.msk [vmem:[#allocation3 + $0xa0] sm:$0xff] %vm1751, %v6660
      %6736 = vst.msk [vmem:[#allocation3 + $0xa8] sm:$0xff] %vm1751, %v6662
      %6737 = vst.msk [vmem:[#allocation3 + $0xb0] sm:$0xff] %vm1751, %v6664
      %6738 = vst.msk [vmem:[#allocation3 + $0xb8] sm:$0xff] %vm1751, %v6666
      %6739 = vst.msk [vmem:[#allocation3 + $0xc0] sm:$0xff] %vm1751, %v6668
      %6740 = vst.msk [vmem:[#allocation3 + $0xc8] sm:$0xff] %vm1751, %v6670
      %6741 = vst.msk [vmem:[#allocation3 + $0xd0] sm:$0xff] %vm1751, %v6672
      %6742 = vst.msk [vmem:[#allocation3 + $0xd8] sm:$0xff] %vm1751, %v6674
      %6743 = vst.msk [vmem:[#allocation3 + $0xe0] sm:$0xff] %vm1751, %v6676
      %6744 = vst.msk [vmem:[#allocation3 + $0xe8] sm:$0xff] %vm1751, %v6678
      %6745 = vst.msk [vmem:[#allocation3 + $0xf0] sm:$0xff] %vm1751, %v6680
      %6746 = vst.msk [vmem:[#allocation3 + $0xf8] sm:$0xff] %vm1751, %v6682
      %v6747 = vld [vmem:[%s3428 + $0x4] sm:$0xff]
      %v6748 = vld [vmem:[%s3428 + $0xc] sm:$0xff]
      %v6749 = vld [vmem:[%s3428 + $0x1c] sm:$0xff]
      %v6750 = vld [vmem:[%s3428 + $0x24] sm:$0xff]
      %v6751 = vld [vmem:[%s3428 + $0x34] sm:$0xff]
      %v6752 = vld [vmem:[%s3428 + $0x3c] sm:$0xff]
      %v6753 = vld [vmem:[%s3428 + $0x4c] sm:$0xff]
      %v6754 = vld [vmem:[%s3428 + $0x54] sm:$0xff]
      %v6755 = vld [vmem:[%s3428 + $0x64] sm:$0xff]
      %v6756 = vld [vmem:[%s3428 + $0x6c] sm:$0xff]
      %v6757 = vld [vmem:[%s3428 + $0x7c] sm:$0xff]
      %v6758 = vld [vmem:[%s3428 + $0x84] sm:$0xff]
      %v6759 = vld [vmem:[%s3428 + $0x94] sm:$0xff]
      %v6760 = vld [vmem:[%s3428 + $0x9c] sm:$0xff]
      %v6761 = vld [vmem:[%s3428 + $0xac] sm:$0xff]
      %v6762 = vld [vmem:[%s3428 + $0xb4] sm:$0xff]
      %v6763 = vld [vmem:[%s3428 + $0xc4] sm:$0xff]
      %v6764 = vld [vmem:[%s3428 + $0xcc] sm:$0xff]
      %v6765 = vld [vmem:[%s3428 + $0xdc] sm:$0xff]
      %v6766 = vld [vmem:[%s3428 + $0xe4] sm:$0xff]
      %v6767 = vld [vmem:[%s3428 + $0xf4] sm:$0xff]
      %v6768 = vld [vmem:[%s3428 + $0xfc] sm:$0xff]
      %v6769 = vld [vmem:[%s3428 + $0x10c] sm:$0xff]
      %v6770 = vld [vmem:[%s3428 + $0x114] sm:$0xff]
      %v6771 = vld [vmem:[%s3428 + $0x124] sm:$0xff]
      %v6772 = vld [vmem:[%s3428 + $0x12c] sm:$0xff]
      %v6773 = vld [vmem:[%s3428 + $0x13c] sm:$0xff]
      %v6774 = vld [vmem:[%s3428 + $0x144] sm:$0xff]
      %v6775 = vld [vmem:[%s3428 + $0x154] sm:$0xff]
      %v6776 = vld [vmem:[%s3428 + $0x15c] sm:$0xff]
      %v6777 = vld [vmem:[%s3428 + $0x16c] sm:$0xff]
      %v6778 = vld [vmem:[%s3428 + $0x174] sm:$0xff]
      %6811 = vrot.lane.b32.xlu0 %v6747, 64
      %v6812 = vpop.permute.xlu0 %6811
      %6813 = vrot.lane.b32.xlu0 %v6748, 64
      %v6814 = vpop.permute.xlu0 %6813
      %6815 = vrot.lane.b32.xlu0 %v6749, 64
      %v6816 = vpop.permute.xlu0 %6815
      %6817 = vrot.lane.b32.xlu0 %v6750, 64
      %v6818 = vpop.permute.xlu0 %6817
      %6819 = vrot.lane.b32.xlu0 %v6751, 64
      %v6820 = vpop.permute.xlu0 %6819
      %6821 = vrot.lane.b32.xlu0 %v6752, 64
      %v6822 = vpop.permute.xlu0 %6821
      %6823 = vrot.lane.b32.xlu0 %v6753, 64
      %v6824 = vpop.permute.xlu0 %6823
      %6825 = vrot.lane.b32.xlu0 %v6754, 64
      %v6826 = vpop.permute.xlu0 %6825
      %6827 = vrot.lane.b32.xlu0 %v6755, 64
      %v6828 = vpop.permute.xlu0 %6827
      %6829 = vrot.lane.b32.xlu0 %v6756, 64
      %v6830 = vpop.permute.xlu0 %6829
      %6831 = vrot.lane.b32.xlu0 %v6757, 64
      %v6832 = vpop.permute.xlu0 %6831
      %6833 = vrot.lane.b32.xlu0 %v6758, 64
      %v6834 = vpop.permute.xlu0 %6833
      %6835 = vrot.lane.b32.xlu0 %v6759, 64
      %v6836 = vpop.permute.xlu0 %6835
      %6837 = vrot.lane.b32.xlu0 %v6760, 64
      %v6838 = vpop.permute.xlu0 %6837
      %6839 = vrot.lane.b32.xlu0 %v6761, 64
      %v6840 = vpop.permute.xlu0 %6839
      %6841 = vrot.lane.b32.xlu0 %v6762, 64
      %v6842 = vpop.permute.xlu0 %6841
      %6843 = vrot.lane.b32.xlu0 %v6763, 64
      %v6844 = vpop.permute.xlu0 %6843
      %6845 = vrot.lane.b32.xlu0 %v6764, 64
      %v6846 = vpop.permute.xlu0 %6845
      %6847 = vrot.lane.b32.xlu0 %v6765, 64
      %v6848 = vpop.permute.xlu0 %6847
      %6849 = vrot.lane.b32.xlu0 %v6766, 64
      %v6850 = vpop.permute.xlu0 %6849
      %6851 = vrot.lane.b32.xlu0 %v6767, 64
      %v6852 = vpop.permute.xlu0 %6851
      %6853 = vrot.lane.b32.xlu0 %v6768, 64
      %v6854 = vpop.permute.xlu0 %6853
      %6855 = vrot.lane.b32.xlu0 %v6769, 64
      %v6856 = vpop.permute.xlu0 %6855
      %6857 = vrot.lane.b32.xlu0 %v6770, 64
      %v6858 = vpop.permute.xlu0 %6857
      %6859 = vrot.lane.b32.xlu0 %v6771, 64
      %v6860 = vpop.permute.xlu0 %6859
      %6861 = vrot.lane.b32.xlu0 %v6772, 64
      %v6862 = vpop.permute.xlu0 %6861
      %6863 = vrot.lane.b32.xlu0 %v6773, 64
      %v6864 = vpop.permute.xlu0 %6863
      %6865 = vrot.lane.b32.xlu0 %v6774, 64
      %v6866 = vpop.permute.xlu0 %6865
      %6867 = vrot.lane.b32.xlu0 %v6775, 64
      %v6868 = vpop.permute.xlu0 %6867
      %6869 = vrot.lane.b32.xlu0 %v6776, 64
      %v6870 = vpop.permute.xlu0 %6869
      %6871 = vrot.lane.b32.xlu0 %v6777, 64
      %v6872 = vpop.permute.xlu0 %6871
      %6873 = vrot.lane.b32.xlu0 %v6778, 64
      %v6874 = vpop.permute.xlu0 %6873
      %6907 = vst.msk [vmem:[#allocation3] sm:$0xff] %vm1944, %v6812
      %6908 = vst.msk [vmem:[#allocation3 + $0x8] sm:$0xff] %vm1944, %v6814
      %6909 = vst.msk [vmem:[#allocation3 + $0x10] sm:$0xff] %vm1944, %v6816
      %6910 = vst.msk [vmem:[#allocation3 + $0x18] sm:$0xff] %vm1944, %v6818
      %6911 = vst.msk [vmem:[#allocation3 + $0x20] sm:$0xff] %vm1944, %v6820
      %6912 = vst.msk [vmem:[#allocation3 + $0x28] sm:$0xff] %vm1944, %v6822
      %6913 = vst.msk [vmem:[#allocation3 + $0x30] sm:$0xff] %vm1944, %v6824
      %6914 = vst.msk [vmem:[#allocation3 + $0x38] sm:$0xff] %vm1944, %v6826
      %6915 = vst.msk [vmem:[#allocation3 + $0x40] sm:$0xff] %vm1944, %v6828
      %6916 = vst.msk [vmem:[#allocation3 + $0x48] sm:$0xff] %vm1944, %v6830
      %6917 = vst.msk [vmem:[#allocation3 + $0x50] sm:$0xff] %vm1944, %v6832
      %6918 = vst.msk [vmem:[#allocation3 + $0x58] sm:$0xff] %vm1944, %v6834
      %6919 = vst.msk [vmem:[#allocation3 + $0x60] sm:$0xff] %vm1944, %v6836
      %6920 = vst.msk [vmem:[#allocation3 + $0x68] sm:$0xff] %vm1944, %v6838
      %6921 = vst.msk [vmem:[#allocation3 + $0x70] sm:$0xff] %vm1944, %v6840
      %6922 = vst.msk [vmem:[#allocation3 + $0x78] sm:$0xff] %vm1944, %v6842
      %6923 = vst.msk [vmem:[#allocation3 + $0x80] sm:$0xff] %vm1944, %v6844
      %6924 = vst.msk [vmem:[#allocation3 + $0x88] sm:$0xff] %vm1944, %v6846
      %6925 = vst.msk [vmem:[#allocation3 + $0x90] sm:$0xff] %vm1944, %v6848
      %6926 = vst.msk [vmem:[#allocation3 + $0x98] sm:$0xff] %vm1944, %v6850
      %6927 = vst.msk [vmem:[#allocation3 + $0xa0] sm:$0xff] %vm1944, %v6852
      %6928 = vst.msk [vmem:[#allocation3 + $0xa8] sm:$0xff] %vm1944, %v6854
      %6929 = vst.msk [vmem:[#allocation3 + $0xb0] sm:$0xff] %vm1944, %v6856
      %6930 = vst.msk [vmem:[#allocation3 + $0xb8] sm:$0xff] %vm1944, %v6858
      %6931 = vst.msk [vmem:[#allocation3 + $0xc0] sm:$0xff] %vm1944, %v6860
      %6932 = vst.msk [vmem:[#allocation3 + $0xc8] sm:$0xff] %vm1944, %v6862
      %6933 = vst.msk [vmem:[#allocation3 + $0xd0] sm:$0xff] %vm1944, %v6864
      %6934 = vst.msk [vmem:[#allocation3 + $0xd8] sm:$0xff] %vm1944, %v6866
      %6935 = vst.msk [vmem:[#allocation3 + $0xe0] sm:$0xff] %vm1944, %v6868
      %6936 = vst.msk [vmem:[#allocation3 + $0xe8] sm:$0xff] %vm1944, %v6870
      %6937 = vst.msk [vmem:[#allocation3 + $0xf0] sm:$0xff] %vm1944, %v6872
      %6938 = vst.msk [vmem:[#allocation3 + $0xf8] sm:$0xff] %vm1944, %v6874
      %v6939 = vld [vmem:[%s817 + $0x2] sm:$0xff]
      %v6940 = vld [vmem:[%s817 + $0xa] sm:$0xff]
      %v6941 = vld [vmem:[%s817 + $0x1a] sm:$0xff]
      %v6942 = vld [vmem:[%s817 + $0x22] sm:$0xff]
      %v6943 = vld [vmem:[%s817 + $0x32] sm:$0xff]
      %v6944 = vld [vmem:[%s817 + $0x3a] sm:$0xff]
      %v6945 = vld [vmem:[%s817 + $0x4a] sm:$0xff]
      %v6946 = vld [vmem:[%s817 + $0x52] sm:$0xff]
      %v6947 = vld [vmem:[%s817 + $0x62] sm:$0xff]
      %v6948 = vld [vmem:[%s817 + $0x6a] sm:$0xff]
      %v6949 = vld [vmem:[%s817 + $0x7a] sm:$0xff]
      %v6950 = vld [vmem:[%s817 + $0x82] sm:$0xff]
      %v6951 = vld [vmem:[%s817 + $0x92] sm:$0xff]
      %v6952 = vld [vmem:[%s817 + $0x9a] sm:$0xff]
      %v6953 = vld [vmem:[%s817 + $0xaa] sm:$0xff]
      %v6954 = vld [vmem:[%s817 + $0xb2] sm:$0xff]
      %v6955 = vld [vmem:[%s817 + $0xc2] sm:$0xff]
      %v6956 = vld [vmem:[%s817 + $0xca] sm:$0xff]
      %v6957 = vld [vmem:[%s817 + $0xda] sm:$0xff]
      %v6958 = vld [vmem:[%s817 + $0xe2] sm:$0xff]
      %v6959 = vld [vmem:[%s817 + $0xf2] sm:$0xff]
      %v6960 = vld [vmem:[%s817 + $0xfa] sm:$0xff]
      %v6961 = vld [vmem:[%s817 + $0x10a] sm:$0xff]
      %v6962 = vld [vmem:[%s817 + $0x112] sm:$0xff]
      %v6963 = vld [vmem:[%s817 + $0x122] sm:$0xff]
      %v6964 = vld [vmem:[%s817 + $0x12a] sm:$0xff]
      %v6965 = vld [vmem:[%s817 + $0x13a] sm:$0xff]
      %v6966 = vld [vmem:[%s817 + $0x142] sm:$0xff]
      %v6967 = vld [vmem:[%s817 + $0x152] sm:$0xff]
      %v6968 = vld [vmem:[%s817 + $0x15a] sm:$0xff]
      %v6969 = vld [vmem:[%s817 + $0x16a] sm:$0xff]
      %v6970 = vld [vmem:[%s817 + $0x172] sm:$0xff]
      %v6971 = vld [vmem:[#allocation3] sm:$0xff]
      %v6972 = vld [vmem:[#allocation3 + $0x8] sm:$0xff]
      %v6973 = vld [vmem:[#allocation3 + $0x10] sm:$0xff]
      %v6974 = vld [vmem:[#allocation3 + $0x18] sm:$0xff]
      %v6975 = vld [vmem:[#allocation3 + $0x20] sm:$0xff]
      %v6976 = vld [vmem:[#allocation3 + $0x28] sm:$0xff]
      %v6977 = vld [vmem:[#allocation3 + $0x30] sm:$0xff]
      %v6978 = vld [vmem:[#allocation3 + $0x38] sm:$0xff]
      %v6979 = vld [vmem:[#allocation3 + $0x40] sm:$0xff]
      %v6980 = vld [vmem:[#allocation3 + $0x48] sm:$0xff]
      %v6981 = vld [vmem:[#allocation3 + $0x50] sm:$0xff]
      %v6982 = vld [vmem:[#allocation3 + $0x58] sm:$0xff]
      %v6983 = vld [vmem:[#allocation3 + $0x60] sm:$0xff]
      %v6984 = vld [vmem:[#allocation3 + $0x68] sm:$0xff]
      %v6985 = vld [vmem:[#allocation3 + $0x70] sm:$0xff]
      %v6986 = vld [vmem:[#allocation3 + $0x78] sm:$0xff]
      %v6987 = vld [vmem:[#allocation3 + $0x80] sm:$0xff]
      %v6988 = vld [vmem:[#allocation3 + $0x88] sm:$0xff]
      %v6989 = vld [vmem:[#allocation3 + $0x90] sm:$0xff]
      %v6990 = vld [vmem:[#allocation3 + $0x98] sm:$0xff]
      %v6991 = vld [vmem:[#allocation3 + $0xa0] sm:$0xff]
      %v6992 = vld [vmem:[#allocation3 + $0xa8] sm:$0xff]
      %v6993 = vld [vmem:[#allocation3 + $0xb0] sm:$0xff]
      %v6994 = vld [vmem:[#allocation3 + $0xb8] sm:$0xff]
      %v6995 = vld [vmem:[#allocation3 + $0xc0] sm:$0xff]
      %v6996 = vld [vmem:[#allocation3 + $0xc8] sm:$0xff]
      %v6997 = vld [vmem:[#allocation3 + $0xd0] sm:$0xff]
      %v6998 = vld [vmem:[#allocation3 + $0xd8] sm:$0xff]
      %v6999 = vld [vmem:[#allocation3 + $0xe0] sm:$0xff]
      %v7000 = vld [vmem:[#allocation3 + $0xe8] sm:$0xff]
      %v7001 = vld [vmem:[#allocation3 + $0xf0] sm:$0xff]
      %v7002 = vld [vmem:[#allocation3 + $0xf8] sm:$0xff]
      %v7003 = vld [vmem:[%s7] sm:$0xff]
      %v7004 = vld [vmem:[%s7 + $0x8] sm:$0xff]
      %v7005 = vld [vmem:[%s7 + $0x10] sm:$0xff]
      %v7006 = vld [vmem:[%s7 + $0x18] sm:$0xff]
      %v7007 = vld [vmem:[%s7 + $0x20] sm:$0xff]
      %v7008 = vld [vmem:[%s7 + $0x28] sm:$0xff]
      %v7009 = vld [vmem:[%s7 + $0x30] sm:$0xff]
      %v7010 = vld [vmem:[%s7 + $0x38] sm:$0xff]
      %v7011 = vld [vmem:[%s7 + $0x40] sm:$0xff]
      %v7013 = vsel %vm2018, %v6971, 0
      %v7016 = vsel %vm2018, %v6972, 0
      %v7019 = vsel %vm2018, %v6973, 0
      %v7022 = vsel %vm2018, %v6974, 0
      %v7025 = vsel %vm2018, %v6975, 0
      %v7028 = vsel %vm2018, %v6976, 0
      %v7031 = vsel %vm2018, %v6977, 0
      %v7034 = vsel %vm2018, %v6978, 0
      %v7037 = vsel %vm2018, %v6979, 0
      %v7040 = vsel %vm2018, %v6980, 0
      %v7043 = vsel %vm2018, %v6981, 0
      %v7046 = vsel %vm2018, %v6982, 0
      %v7049 = vsel %vm2018, %v6983, 0
      %v7052 = vsel %vm2018, %v6984, 0
      %v7055 = vsel %vm2018, %v6985, 0
      %v7058 = vsel %vm2018, %v6986, 0
      %v7061 = vsel %vm2018, %v6987, 0
      %v7064 = vsel %vm2018, %v6988, 0
      %v7067 = vsel %vm2018, %v6989, 0
      %v7070 = vsel %vm2018, %v6990, 0
      %v7073 = vsel %vm2018, %v6991, 0
      %v7076 = vsel %vm2018, %v6992, 0
      %v7079 = vsel %vm2018, %v6993, 0
      %v7082 = vsel %vm2018, %v6994, 0
      %v7085 = vsel %vm2018, %v6995, 0
      %v7088 = vsel %vm2018, %v6996, 0
      %v7091 = vsel %vm2018, %v6997, 0
      %v7094 = vsel %vm2018, %v6998, 0
      %v7097 = vsel %vm2018, %v6999, 0
      %v7100 = vsel %vm2018, %v7000, 0
      %v7103 = vsel %vm2018, %v7001, 0
      %v7106 = vsel %vm2018, %v7002, 0
      %7108 = vmatpush.msra.mxu0 0.0
      %7109 = vmatpush.msra.mxu0 0.0
      %7110 = vmatpush.msra.mxu0 0.0
      %7111 = vmatpush.msra.mxu0 0.0
      %7112 = vmatpush.msra.mxu0 0.0
      %7113 = vmatpush.msra.mxu0 0.0
      %7114 = vmatpush.msra.mxu0 0.0
      %7115 = vmatpush.msra.mxu0 %v7011
      %7116 = vmatpush.msra.mxu0 %v7010
      %7117 = vmatpush.msra.mxu0 %v7009
      %7118 = vmatpush.msra.mxu0 %v7008
      %7119 = vmatpush.msra.mxu0 %v7007
      %7120 = vmatpush.msra.mxu0 %v7006
      %7121 = vmatpush.msra.mxu0 %v7005
      %7122 = vmatpush.msra.mxu0 %v7004
      %7123 = vmatpush.msra.mxu0 %v7003
      %7124 = vmatmul.f32.gmra.mxu0 %v7013
      %v7125 = vpop.f32.mrf.mxu0
      %v7126 = vadd.f32 %v6939, %v7125
      %7127 = vmatmul.f32.gmra.mxu0 %v7016
      %v7128 = vpop.f32.mrf.mxu0
      %v7129 = vadd.f32 %v6940, %v7128
      %7130 = vmatmul.f32.gmra.mxu0 %v7019
      %v7131 = vpop.f32.mrf.mxu0
      %v7132 = vadd.f32 %v6941, %v7131
      %7133 = vmatmul.f32.gmra.mxu0 %v7022
      %v7134 = vpop.f32.mrf.mxu0
      %v7135 = vadd.f32 %v6942, %v7134
      %7136 = vmatmul.f32.gmra.mxu0 %v7025
      %v7137 = vpop.f32.mrf.mxu0
      %v7138 = vadd.f32 %v6943, %v7137
      %7139 = vmatmul.f32.gmra.mxu0 %v7028
      %v7140 = vpop.f32.mrf.mxu0
      %v7141 = vadd.f32 %v6944, %v7140
      %7142 = vmatmul.f32.gmra.mxu0 %v7031
      %v7143 = vpop.f32.mrf.mxu0
      %v7144 = vadd.f32 %v6945, %v7143
      %7145 = vmatmul.f32.gmra.mxu0 %v7034
      %v7146 = vpop.f32.mrf.mxu0
      %v7147 = vadd.f32 %v6946, %v7146
      %7148 = vmatmul.f32.gmra.mxu0 %v7037
      %v7149 = vpop.f32.mrf.mxu0
      %v7150 = vadd.f32 %v6947, %v7149
      %7151 = vmatmul.f32.gmra.mxu0 %v7040
      %v7152 = vpop.f32.mrf.mxu0
      %v7153 = vadd.f32 %v6948, %v7152
      %7154 = vmatmul.f32.gmra.mxu0 %v7043
      %v7155 = vpop.f32.mrf.mxu0
      %v7156 = vadd.f32 %v6949, %v7155
      %7157 = vmatmul.f32.gmra.mxu0 %v7046
      %v7158 = vpop.f32.mrf.mxu0
      %v7159 = vadd.f32 %v6950, %v7158
      %7160 = vmatmul.f32.gmra.mxu0 %v7049
      %v7161 = vpop.f32.mrf.mxu0
      %v7162 = vadd.f32 %v6951, %v7161
      %7163 = vmatmul.f32.gmra.mxu0 %v7052
      %v7164 = vpop.f32.mrf.mxu0
      %v7165 = vadd.f32 %v6952, %v7164
      %7166 = vmatmul.f32.gmra.mxu0 %v7055
      %v7167 = vpop.f32.mrf.mxu0
      %v7168 = vadd.f32 %v6953, %v7167
      %7169 = vmatmul.f32.gmra.mxu0 %v7058
      %v7170 = vpop.f32.mrf.mxu0
      %v7171 = vadd.f32 %v6954, %v7170
      %7172 = vmatmul.f32.gmra.mxu0 %v7061
      %v7173 = vpop.f32.mrf.mxu0
      %v7174 = vadd.f32 %v6955, %v7173
      %7175 = vmatmul.f32.gmra.mxu0 %v7064
      %v7176 = vpop.f32.mrf.mxu0
      %v7177 = vadd.f32 %v6956, %v7176
      %7178 = vmatmul.f32.gmra.mxu0 %v7067
      %v7179 = vpop.f32.mrf.mxu0
      %v7180 = vadd.f32 %v6957, %v7179
      %7181 = vmatmul.f32.gmra.mxu0 %v7070
      %v7182 = vpop.f32.mrf.mxu0
      %v7183 = vadd.f32 %v6958, %v7182
      %7184 = vmatmul.f32.gmra.mxu0 %v7073
      %v7185 = vpop.f32.mrf.mxu0
      %v7186 = vadd.f32 %v6959, %v7185
      %7187 = vmatmul.f32.gmra.mxu0 %v7076
      %v7188 = vpop.f32.mrf.mxu0
      %v7189 = vadd.f32 %v6960, %v7188
      %7190 = vmatmul.f32.gmra.mxu0 %v7079
      %v7191 = vpop.f32.mrf.mxu0
      %v7192 = vadd.f32 %v6961, %v7191
      %7193 = vmatmul.f32.gmra.mxu0 %v7082
      %v7194 = vpop.f32.mrf.mxu0
      %v7195 = vadd.f32 %v6962, %v7194
      %7196 = vmatmul.f32.gmra.mxu0 %v7085
      %v7197 = vpop.f32.mrf.mxu0
      %v7198 = vadd.f32 %v6963, %v7197
      %7199 = vmatmul.f32.gmra.mxu0 %v7088
      %v7200 = vpop.f32.mrf.mxu0
      %v7201 = vadd.f32 %v6964, %v7200
      %7202 = vmatmul.f32.gmra.mxu0 %v7091
      %v7203 = vpop.f32.mrf.mxu0
      %v7204 = vadd.f32 %v6965, %v7203
      %7205 = vmatmul.f32.gmra.mxu0 %v7094
      %v7206 = vpop.f32.mrf.mxu0
      %v7207 = vadd.f32 %v6966, %v7206
      %7208 = vmatmul.f32.gmra.mxu0 %v7097
      %v7209 = vpop.f32.mrf.mxu0
      %v7210 = vadd.f32 %v6967, %v7209
      %7211 = vmatmul.f32.gmra.mxu0 %v7100
      %v7212 = vpop.f32.mrf.mxu0
      %v7213 = vadd.f32 %v6968, %v7212
      %7214 = vmatmul.f32.gmra.mxu0 %v7103
      %v7215 = vpop.f32.mrf.mxu0
      %v7216 = vadd.f32 %v6969, %v7215
      %7217 = vmatmul.f32.gmra.mxu0 %v7106
      %v7218 = vpop.f32.mrf.mxu0
      %v7219 = vadd.f32 %v6970, %v7218
      %7220 = vdwg.mxu0
      %7221 = vst.msk [vmem:[%s365] sm:$0xff] %vm398, %v7126
      %7222 = vst.msk [vmem:[%s365 + $0x8] sm:$0xff] %vm398, %v7129
      %7223 = vst.msk [vmem:[%s365 + $0x10] sm:$0xff] %vm398, %v7132
      %7224 = vst.msk [vmem:[%s365 + $0x18] sm:$0xff] %vm398, %v7135
      %7225 = vst.msk [vmem:[%s365 + $0x20] sm:$0xff] %vm398, %v7138
      %7226 = vst.msk [vmem:[%s365 + $0x28] sm:$0xff] %vm398, %v7141
      %7227 = vst.msk [vmem:[%s365 + $0x30] sm:$0xff] %vm398, %v7144
      %7228 = vst.msk [vmem:[%s365 + $0x38] sm:$0xff] %vm398, %v7147
      %7229 = vst.msk [vmem:[%s365 + $0x40] sm:$0xff] %vm398, %v7150
      %7230 = vst.msk [vmem:[%s365 + $0x48] sm:$0xff] %vm398, %v7153
      %7231 = vst.msk [vmem:[%s365 + $0x50] sm:$0xff] %vm398, %v7156
      %7232 = vst.msk [vmem:[%s365 + $0x58] sm:$0xff] %vm398, %v7159
      %7233 = vst.msk [vmem:[%s365 + $0x60] sm:$0xff] %vm398, %v7162
      %7234 = vst.msk [vmem:[%s365 + $0x68] sm:$0xff] %vm398, %v7165
      %7235 = vst.msk [vmem:[%s365 + $0x70] sm:$0xff] %vm398, %v7168
      %7236 = vst.msk [vmem:[%s365 + $0x78] sm:$0xff] %vm398, %v7171
      %7237 = vst.msk [vmem:[%s365 + $0x80] sm:$0xff] %vm398, %v7174
      %7238 = vst.msk [vmem:[%s365 + $0x88] sm:$0xff] %vm398, %v7177
      %7239 = vst.msk [vmem:[%s365 + $0x90] sm:$0xff] %vm398, %v7180
      %7240 = vst.msk [vmem:[%s365 + $0x98] sm:$0xff] %vm398, %v7183
      %7241 = vst.msk [vmem:[%s365 + $0xa0] sm:$0xff] %vm398, %v7186
      %7242 = vst.msk [vmem:[%s365 + $0xa8] sm:$0xff] %vm398, %v7189
      %7243 = vst.msk [vmem:[%s365 + $0xb0] sm:$0xff] %vm398, %v7192
      %7244 = vst.msk [vmem:[%s365 + $0xb8] sm:$0xff] %vm398, %v7195
      %7245 = vst.msk [vmem:[%s365 + $0xc0] sm:$0xff] %vm398, %v7198
      %7246 = vst.msk [vmem:[%s365 + $0xc8] sm:$0xff] %vm398, %v7201
      %7247 = vst.msk [vmem:[%s365 + $0xd0] sm:$0xff] %vm398, %v7204
      %7248 = vst.msk [vmem:[%s365 + $0xd8] sm:$0xff] %vm398, %v7207
      %7249 = vst.msk [vmem:[%s365 + $0xe0] sm:$0xff] %vm398, %v7210
      %7250 = vst.msk [vmem:[%s365 + $0xe8] sm:$0xff] %vm398, %v7213
      %7251 = vst.msk [vmem:[%s365 + $0xf0] sm:$0xff] %vm398, %v7216
      %7252 = vst.msk [vmem:[%s365 + $0xf8] sm:$0xff] %vm398, %v7219
      %p7253 = scmp.lt.s32.totalorder %s19, 1
      %s7254 = scalar_select %p7253, %s19, 1
      %s7255 = smul.addr %s7254, 32
      %s7256 = smul.addr %s7255, 8
      %s7257 = scalar_lea.vmem %s8, %s7256
      // Predicated region
      $region53: #{disentg_block_forward.5} parent=51 // pred_check
        %p7258 = pneg %p225
      $region54: #{disentg_block_forward.5} parent=51 // pred_check_branch
        %7260 = sbr.rel (%p7258) target = $region56
      $region55: #{disentg_block_forward.5} parent=51 // pred_region
        _
      $region56: #{disentg_block_forward.5} parent=51 // pred_fallthru
        _
    $region52: #{disentg_block_forward.5} parent=5 // pred_fallthru
      _
    %p7261 = scmp.le.s32.totalorder 2, %s14
    // Predicated region
    $region57: #{disentg_block_forward.5} parent=5 // pred_check
      %p7262 = pneg %p7261
    $region58: #{disentg_block_forward.5} parent=5 // pred_check_branch
      %7264 = sbr.rel (%p7262) target = $region60
    $region59: #{disentg_block_forward.5} parent=5 // pred_region
      %s7265 = ssub.s32 %s14, 2
      // Predicated region
      $region61: #{disentg_block_forward.5} parent=59 // pred_check
        %p7266 = pneg %p231
      $region62: #{disentg_block_forward.5} parent=59 // pred_check_branch
        %7268 = sbr.rel (%p7266) target = $region64
      $region63: #{disentg_block_forward.5} parent=59 // pred_region
        %p7269 = scmp.lt.s32.totalorder %s20, 1
        %s7270 = scalar_select %p7269, %s20, 1
        %s7271 = smul.addr %s7270, 32
        %s7272 = smul.addr %s7271, 8
        %s7273 = scalar_lea.vmem %s8, %s7272
      $region64: #{disentg_block_forward.5} parent=59 // pred_fallthru
        _
    $region60: #{disentg_block_forward.5} parent=5 // pred_fallthru
      _
  $region6: #{disentg_block_forward.5} parent=0 // loop_footer
    %s18 = sadd.s32 1, %s14
  $region7: #{disentg_block_forward.5} parent=0 // loop_footer_branch
    %13 = sbr.rel target = $region3
  $region8: #{disentg_block_forward.5} parent=0 // loop_exit
    _

</llo_original>
